<compile_context>
chip_gen: v7x
topology: tpu7x:2x2x1
jax: 0.10.0
libtpu: 0.0.40
codegen_flags: <defaults>
</compile_context>

<pallas_src>
import jax
import jax.numpy as jnp
from jax import lax
from jax.experimental import pallas as pl
from jax.experimental.pallas import tpu as pltpu


# ----------------------------- Pallas kernel --------------------------------
def gd_unroll_kernel(x_ref, a1_ref, a2_ref, w_ref, o_ref):
    """All GD steps in one invocation; x is carried in vregs across the
    statically-unrolled step loop."""
    x = x_ref[...]          # [N, C] f32 (evolving state, lives in vregs)
    a1 = a1_ref[...]        # [N, N] f32 edge-multiplicity adjacency (TAGConv)
    a2 = a2_ref[...]        # [N, N] f32 {0,1} attention mask
    steps = w_ref.shape[0]

    for s in range(steps):  # static unroll: gd_steps is a compile-time constant
        # Leading-dim static indexing of the [steps, 5, C, C] stack is free.
        w0 = w_ref[s, 0]
        w1 = w_ref[s, 1]
        wq = w_ref[s, 2]
        wk = w_ref[s, 3]
        wv = w_ref[s, 4]

        # --- TAGConv branch: x @ W0 + (A1 @ x) @ W1 ---
        ax = jnp.dot(a1, x, preferred_element_type=jnp.float32)
        x1 = (jnp.dot(x, w0, preferred_element_type=jnp.float32)
              + jnp.dot(ax, w1, preferred_element_type=jnp.float32))

        # --- Transformer branch (no softmax): (A2 * (xWq)(xWk)^T) (xWv) ---
        xq = jnp.dot(x, wq, preferred_element_type=jnp.float32)
        xk = jnp.dot(x, wk, preferred_element_type=jnp.float32)
        xv = jnp.dot(x, wv, preferred_element_type=jnp.float32)
        # Contract the last axes -> no explicit x.T / xk.T materialization.
        scores = lax.dot_general(xq, xk, (((1,), (1,)), ((), ())),
                                 preferred_element_type=jnp.float32) * a2
        x2 = jnp.dot(scores, xv, preferred_element_type=jnp.float32)

        x = x1 - x2

    o_ref[...] = x.astype(o_ref.dtype)


def gd_unroll_fused(x, adj1, adj2, w_all):
    """Single pallas_call: all operands are whole-array VMEM-resident (tiny),
    no grid, all steps unrolled inside the kernel."""
    n, c = x.shape
    vmem = lambda: pl.BlockSpec(memory_space=pltpu.MemorySpace.VMEM)
    return pl.pallas_call(
        gd_unroll_kernel,
        out_shape=jax.ShapeDtypeStruct((n, c), jnp.float32),
        in_specs=[vmem(), vmem(), vmem(), vmem()],
        out_specs=vmem(),
    )(x, adj1, adj2, w_all)


# ------------------------------ JAX glue -------------------------------------
def edges_to_dense_adj(edge_index, num_nodes, binary=False):
    """edge_index: int32 [2, E] (row 0 = src, row 1 = dst). Returns f32 [N, N]
    with A[dst, src] accumulating edge multiplicity (TAGConv) or clamped to
    {0,1} (attention mask)."""
    src, dst = edge_index[0], edge_index[1]
    adj = jnp.zeros((num_nodes, num_nodes), jnp.float32)
    adj = adj.at[dst, src].add(1.0)
    if binary:
        adj = jnp.minimum(adj, 1.0)
    return adj


def init_gd_unroll_params(key, in_channels, out_channels, gd_steps):
    """Deterministic synthetic weights. Each GD step owns 5 bias-free linears:
    TAGConv lin_0, lin_1 and attention W_q, W_k, W_v, all [C_in, C_out].
    Attention weights get an extra 0.5 damping so the softmax-free cubic update
    stays well-conditioned over the unrolled steps (synthetic test only)."""
    params = []
    base = 1.0 / jnp.sqrt(jnp.float32(in_channels))
    attn = 0.5 * base
    for s in range(gd_steps):
        ks = jax.random.split(jax.random.fold_in(key, s), 5)
        lin = lambda k, sc: jax.random.normal(k, (in_channels, out_channels), jnp.float32) * sc
        params.append(dict(w0=lin(ks[0], base), w1=lin(ks[1], base),
                           wq=lin(ks[2], attn), wk=lin(ks[3], attn), wv=lin(ks[4], attn)))
    return params


def stack_params(params):
    """Stack per-step weights as [steps, 5, C, C] with slot order
    (W0, W1, Wq, Wk, Wv) -> free leading-dim indexing in the kernel."""
    return jnp.stack([jnp.stack([p['w0'], p['w1'], p['wq'], p['wk'], p['wv']], axis=0)
                      for p in params], axis=0)


def gd_unroll_reference(x, adj1, adj2, params):
    """Pure-JAX f32 reference of the same forward pass."""
    hp = lax.Precision.HIGHEST
    for p in params:
        x1 = (jnp.dot(x, p['w0'], precision=hp)
              + jnp.dot(jnp.dot(adj1, x, precision=hp), p['w1'], precision=hp))
        scores = jnp.dot(jnp.dot(x, p['wq'], precision=hp),
                         jnp.dot(x, p['wk'], precision=hp).T, precision=hp) * adj2
        x2 = jnp.dot(scores, jnp.dot(x, p['wv'], precision=hp), precision=hp)
        x = x1 - x2
    return x


# -------------------------------- main ---------------------------------------
if __name__ == "__main__":
    # Keep kernel and reference matmuls at full f32 precision so the
    # correctness check is tight (default TPU matmul precision may downcast).
    jax.config.update("jax_default_matmul_precision", "highest")

    key = jax.random.PRNGKey(0)
    k_x, k_e1, k_e2, k_w = jax.random.split(key, 4)

    N = 16            # number of graph nodes
    C = 8             # in_channels == out_channels (required for unrolling)
    GD_STEPS = 3
    E = 48            # number of directed edges per graph

    x = jax.random.normal(k_x, (N, C), jnp.float32)
    edge_index = jax.random.randint(k_e1, (2, E), 0, N, dtype=jnp.int32)
    edge_index_2 = jax.random.randint(k_e2, (2, E), 0, N, dtype=jnp.int32)

    params = init_gd_unroll_params(k_w, C, C, GD_STEPS)
    w_all = stack_params(params)                                  # [steps, 5, C, C]

    adj1 = edges_to_dense_adj(edge_index, N)                      # multiplicity (TAGConv sums edges)
    adj2 = edges_to_dense_adj(edge_index_2, N, binary=True)       # 0/1 attention mask

    out = gd_unroll_fused(x, adj1, adj2, w_all)
    out = jax.block_until_ready(out)

    assert out.shape == (N, C) and out.dtype == jnp.float32
    assert bool(jnp.all(jnp.isfinite(out)))

    ref = gd_unroll_reference(x, adj1, adj2, params)
    assert bool(jnp.allclose(out, ref, rtol=1e-2, atol=1e-2))

    print("KERNEL_OK")
</pallas_src>

<mosaic_0001>
module attributes {stable_mosaic.version = 11 : i64} {
  func.func @gd_unroll_kernel(%arg0: memref<16x8xf32, #tpu.memory_space<vmem>>, %arg1: memref<16x16xf32, #tpu.memory_space<vmem>>, %arg2: memref<16x16xf32, #tpu.memory_space<vmem>>, %arg3: memref<3x5x8x8xf32, #tpu.memory_space<vmem>>, %arg4: memref<16x8xf32, #tpu.memory_space<vmem>>) attributes {dimension_semantics = [], scalar_prefetch = 0 : i64, scratch_operands = 0 : i64, tpu.core_type = #tpu.core_type<tc>} {
    %c0 = arith.constant 0 : index
    %c0_0 = arith.constant 0 : index
    %0 = vector.load %arg0[%c0, %c0_0] : memref<16x8xf32, #tpu.memory_space<vmem>>, vector<16x8xf32>
    %c0_1 = arith.constant 0 : index
    %c0_2 = arith.constant 0 : index
    %1 = vector.load %arg1[%c0_1, %c0_2] : memref<16x16xf32, #tpu.memory_space<vmem>>, vector<16x16xf32>
    %c0_3 = arith.constant 0 : index
    %c0_4 = arith.constant 0 : index
    %2 = vector.load %arg2[%c0_3, %c0_4] : memref<16x16xf32, #tpu.memory_space<vmem>>, vector<16x16xf32>
    %c0_5 = arith.constant 0 : index
    %c0_6 = arith.constant 0 : index
    %c0_7 = arith.constant 0 : index
    %c0_8 = arith.constant 0 : index
    %3 = vector.load %arg3[%c0_5, %c0_6, %c0_7, %c0_8] : memref<3x5x8x8xf32, #tpu.memory_space<vmem>>, vector<1x1x8x8xf32>
    %4 = vector.shape_cast %3 : vector<1x1x8x8xf32> to vector<8x8xf32>
    %c0_9 = arith.constant 0 : index
    %c1 = arith.constant 1 : index
    %c0_10 = arith.constant 0 : index
    %c0_11 = arith.constant 0 : index
    %5 = vector.load %arg3[%c0_9, %c1, %c0_10, %c0_11] : memref<3x5x8x8xf32, #tpu.memory_space<vmem>>, vector<1x1x8x8xf32>
    %6 = vector.shape_cast %5 : vector<1x1x8x8xf32> to vector<8x8xf32>
    %c0_12 = arith.constant 0 : index
    %c2 = arith.constant 2 : index
    %c0_13 = arith.constant 0 : index
    %c0_14 = arith.constant 0 : index
    %7 = vector.load %arg3[%c0_12, %c2, %c0_13, %c0_14] : memref<3x5x8x8xf32, #tpu.memory_space<vmem>>, vector<1x1x8x8xf32>
    %8 = vector.shape_cast %7 : vector<1x1x8x8xf32> to vector<8x8xf32>
    %c0_15 = arith.constant 0 : index
    %c3 = arith.constant 3 : index
    %c0_16 = arith.constant 0 : index
    %c0_17 = arith.constant 0 : index
    %9 = vector.load %arg3[%c0_15, %c3, %c0_16, %c0_17] : memref<3x5x8x8xf32, #tpu.memory_space<vmem>>, vector<1x1x8x8xf32>
    %10 = vector.shape_cast %9 : vector<1x1x8x8xf32> to vector<8x8xf32>
    %c0_18 = arith.constant 0 : index
    %c4 = arith.constant 4 : index
    %c0_19 = arith.constant 0 : index
    %c0_20 = arith.constant 0 : index
    %11 = vector.load %arg3[%c0_18, %c4, %c0_19, %c0_20] : memref<3x5x8x8xf32, #tpu.memory_space<vmem>>, vector<1x1x8x8xf32>
    %12 = vector.shape_cast %11 : vector<1x1x8x8xf32> to vector<8x8xf32>
    %cst = arith.constant dense<0.000000e+00> : vector<16x8xf32>
    %13 = tpu.matmul %1, %0, %cst {dimension_numbers = #tpu.dot_dimension_numbers<[1], [0], [0], [1], [0, 0, 1, 1], [], []>, precision = #tpu.contract_precision<fp32>} : vector<16x16xf32>, vector<16x8xf32>, vector<16x8xf32> -> vector<16x8xf32>
    %cst_21 = arith.constant dense<0.000000e+00> : vector<16x8xf32>
    %14 = tpu.matmul %0, %4, %cst_21 {dimension_numbers = #tpu.dot_dimension_numbers<[1], [0], [0], [1], [0, 0, 1, 1], [], []>, precision = #tpu.contract_precision<fp32>} : vector<16x8xf32>, vector<8x8xf32>, vector<16x8xf32> -> vector<16x8xf32>
    %cst_22 = arith.constant dense<0.000000e+00> : vector<16x8xf32>
    %15 = tpu.matmul %13, %6, %cst_22 {dimension_numbers = #tpu.dot_dimension_numbers<[1], [0], [0], [1], [0, 0, 1, 1], [], []>, precision = #tpu.contract_precision<fp32>} : vector<16x8xf32>, vector<8x8xf32>, vector<16x8xf32> -> vector<16x8xf32>
    %16 = arith.addf %14, %15 : vector<16x8xf32>
    %cst_23 = arith.constant dense<0.000000e+00> : vector<16x8xf32>
    %17 = tpu.matmul %0, %8, %cst_23 {dimension_numbers = #tpu.dot_dimension_numbers<[1], [0], [0], [1], [0, 0, 1, 1], [], []>, precision = #tpu.contract_precision<fp32>} : vector<16x8xf32>, vector<8x8xf32>, vector<16x8xf32> -> vector<16x8xf32>
    %cst_24 = arith.constant dense<0.000000e+00> : vector<16x8xf32>
    %18 = tpu.matmul %0, %10, %cst_24 {dimension_numbers = #tpu.dot_dimension_numbers<[1], [0], [0], [1], [0, 0, 1, 1], [], []>, precision = #tpu.contract_precision<fp32>} : vector<16x8xf32>, vector<8x8xf32>, vector<16x8xf32> -> vector<16x8xf32>
    %cst_25 = arith.constant dense<0.000000e+00> : vector<16x8xf32>
    %19 = tpu.matmul %0, %12, %cst_25 {dimension_numbers = #tpu.dot_dimension_numbers<[1], [0], [0], [1], [0, 0, 1, 1], [], []>, precision = #tpu.contract_precision<fp32>} : vector<16x8xf32>, vector<8x8xf32>, vector<16x8xf32> -> vector<16x8xf32>
    %cst_26 = arith.constant dense<0.000000e+00> : vector<16x16xf32>
    %20 = tpu.matmul %17, %18, %cst_26 {dimension_numbers = #tpu.dot_dimension_numbers<[1], [1], [0], [0], [0, 0, 1, 0], [], []>, precision = #tpu.contract_precision<fp32>} : vector<16x8xf32>, vector<16x8xf32>, vector<16x16xf32> -> vector<16x16xf32>
    %21 = arith.mulf %20, %2 : vector<16x16xf32>
    %cst_27 = arith.constant dense<0.000000e+00> : vector<16x8xf32>
    %22 = tpu.matmul %21, %19, %cst_27 {dimension_numbers = #tpu.dot_dimension_numbers<[1], [0], [0], [1], [0, 0, 1, 1], [], []>, precision = #tpu.contract_precision<fp32>} : vector<16x16xf32>, vector<16x8xf32>, vector<16x8xf32> -> vector<16x8xf32>
    %23 = arith.subf %16, %22 : vector<16x8xf32>
    %c1_28 = arith.constant 1 : index
    %c0_29 = arith.constant 0 : index
    %c0_30 = arith.constant 0 : index
    %c0_31 = arith.constant 0 : index
    %24 = vector.load %arg3[%c1_28, %c0_29, %c0_30, %c0_31] : memref<3x5x8x8xf32, #tpu.memory_space<vmem>>, vector<1x1x8x8xf32>
    %25 = vector.shape_cast %24 : vector<1x1x8x8xf32> to vector<8x8xf32>
    %c1_32 = arith.constant 1 : index
    %c1_33 = arith.constant 1 : index
    %c0_34 = arith.constant 0 : index
    %c0_35 = arith.constant 0 : index
    %26 = vector.load %arg3[%c1_32, %c1_33, %c0_34, %c0_35] : memref<3x5x8x8xf32, #tpu.memory_space<vmem>>, vector<1x1x8x8xf32>
    %27 = vector.shape_cast %26 : vector<1x1x8x8xf32> to vector<8x8xf32>
    %c1_36 = arith.constant 1 : index
    %c2_37 = arith.constant 2 : index
    %c0_38 = arith.constant 0 : index
    %c0_39 = arith.constant 0 : index
    %28 = vector.load %arg3[%c1_36, %c2_37, %c0_38, %c0_39] : memref<3x5x8x8xf32, #tpu.memory_space<vmem>>, vector<1x1x8x8xf32>
    %29 = vector.shape_cast %28 : vector<1x1x8x8xf32> to vector<8x8xf32>
    %c1_40 = arith.constant 1 : index
    %c3_41 = arith.constant 3 : index
    %c0_42 = arith.constant 0 : index
    %c0_43 = arith.constant 0 : index
    %30 = vector.load %arg3[%c1_40, %c3_41, %c0_42, %c0_43] : memref<3x5x8x8xf32, #tpu.memory_space<vmem>>, vector<1x1x8x8xf32>
    %31 = vector.shape_cast %30 : vector<1x1x8x8xf32> to vector<8x8xf32>
    %c1_44 = arith.constant 1 : index
    %c4_45 = arith.constant 4 : index
    %c0_46 = arith.constant 0 : index
    %c0_47 = arith.constant 0 : index
    %32 = vector.load %arg3[%c1_44, %c4_45, %c0_46, %c0_47] : memref<3x5x8x8xf32, #tpu.memory_space<vmem>>, vector<1x1x8x8xf32>
    %33 = vector.shape_cast %32 : vector<1x1x8x8xf32> to vector<8x8xf32>
    %cst_48 = arith.constant dense<0.000000e+00> : vector<16x8xf32>
    %34 = tpu.matmul %1, %23, %cst_48 {dimension_numbers = #tpu.dot_dimension_numbers<[1], [0], [0], [1], [0, 0, 1, 1], [], []>, precision = #tpu.contract_precision<fp32>} : vector<16x16xf32>, vector<16x8xf32>, vector<16x8xf32> -> vector<16x8xf32>
    %cst_49 = arith.constant dense<0.000000e+00> : vector<16x8xf32>
    %35 = tpu.matmul %23, %25, %cst_49 {dimension_numbers = #tpu.dot_dimension_numbers<[1], [0], [0], [1], [0, 0, 1, 1], [], []>, precision = #tpu.contract_precision<fp32>} : vector<16x8xf32>, vector<8x8xf32>, vector<16x8xf32> -> vector<16x8xf32>
    %cst_50 = arith.constant dense<0.000000e+00> : vector<16x8xf32>
    %36 = tpu.matmul %34, %27, %cst_50 {dimension_numbers = #tpu.dot_dimension_numbers<[1], [0], [0], [1], [0, 0, 1, 1], [], []>, precision = #tpu.contract_precision<fp32>} : vector<16x8xf32>, vector<8x8xf32>, vector<16x8xf32> -> vector<16x8xf32>
    %37 = arith.addf %35, %36 : vector<16x8xf32>
    %cst_51 = arith.constant dense<0.000000e+00> : vector<16x8xf32>
    %38 = tpu.matmul %23, %29, %cst_51 {dimension_numbers = #tpu.dot_dimension_numbers<[1], [0], [0], [1], [0, 0, 1, 1], [], []>, precision = #tpu.contract_precision<fp32>} : vector<16x8xf32>, vector<8x8xf32>, vector<16x8xf32> -> vector<16x8xf32>
    %cst_52 = arith.constant dense<0.000000e+00> : vector<16x8xf32>
    %39 = tpu.matmul %23, %31, %cst_52 {dimension_numbers = #tpu.dot_dimension_numbers<[1], [0], [0], [1], [0, 0, 1, 1], [], []>, precision = #tpu.contract_precision<fp32>} : vector<16x8xf32>, vector<8x8xf32>, vector<16x8xf32> -> vector<16x8xf32>
    %cst_53 = arith.constant dense<0.000000e+00> : vector<16x8xf32>
    %40 = tpu.matmul %23, %33, %cst_53 {dimension_numbers = #tpu.dot_dimension_numbers<[1], [0], [0], [1], [0, 0, 1, 1], [], []>, precision = #tpu.contract_precision<fp32>} : vector<16x8xf32>, vector<8x8xf32>, vector<16x8xf32> -> vector<16x8xf32>
    %cst_54 = arith.constant dense<0.000000e+00> : vector<16x16xf32>
    %41 = tpu.matmul %38, %39, %cst_54 {dimension_numbers = #tpu.dot_dimension_numbers<[1], [1], [0], [0], [0, 0, 1, 0], [], []>, precision = #tpu.contract_precision<fp32>} : vector<16x8xf32>, vector<16x8xf32>, vector<16x16xf32> -> vector<16x16xf32>
    %42 = arith.mulf %41, %2 : vector<16x16xf32>
    %cst_55 = arith.constant dense<0.000000e+00> : vector<16x8xf32>
    %43 = tpu.matmul %42, %40, %cst_55 {dimension_numbers = #tpu.dot_dimension_numbers<[1], [0], [0], [1], [0, 0, 1, 1], [], []>, precision = #tpu.contract_precision<fp32>} : vector<16x16xf32>, vector<16x8xf32>, vector<16x8xf32> -> vector<16x8xf32>
    %44 = arith.subf %37, %43 : vector<16x8xf32>
    %c2_56 = arith.constant 2 : index
    %c0_57 = arith.constant 0 : index
    %c0_58 = arith.constant 0 : index
    %c0_59 = arith.constant 0 : index
    %45 = vector.load %arg3[%c2_56, %c0_57, %c0_58, %c0_59] : memref<3x5x8x8xf32, #tpu.memory_space<vmem>>, vector<1x1x8x8xf32>
    %46 = vector.shape_cast %45 : vector<1x1x8x8xf32> to vector<8x8xf32>
    %c2_60 = arith.constant 2 : index
    %c1_61 = arith.constant 1 : index
    %c0_62 = arith.constant 0 : index
    %c0_63 = arith.constant 0 : index
    %47 = vector.load %arg3[%c2_60, %c1_61, %c0_62, %c0_63] : memref<3x5x8x8xf32, #tpu.memory_space<vmem>>, vector<1x1x8x8xf32>
    %48 = vector.shape_cast %47 : vector<1x1x8x8xf32> to vector<8x8xf32>
    %c2_64 = arith.constant 2 : index
    %c2_65 = arith.constant 2 : index
    %c0_66 = arith.constant 0 : index
    %c0_67 = arith.constant 0 : index
    %49 = vector.load %arg3[%c2_64, %c2_65, %c0_66, %c0_67] : memref<3x5x8x8xf32, #tpu.memory_space<vmem>>, vector<1x1x8x8xf32>
    %50 = vector.shape_cast %49 : vector<1x1x8x8xf32> to vector<8x8xf32>
    %c2_68 = arith.constant 2 : index
    %c3_69 = arith.constant 3 : index
    %c0_70 = arith.constant 0 : index
    %c0_71 = arith.constant 0 : index
    %51 = vector.load %arg3[%c2_68, %c3_69, %c0_70, %c0_71] : memref<3x5x8x8xf32, #tpu.memory_space<vmem>>, vector<1x1x8x8xf32>
    %52 = vector.shape_cast %51 : vector<1x1x8x8xf32> to vector<8x8xf32>
    %c2_72 = arith.constant 2 : index
    %c4_73 = arith.constant 4 : index
    %c0_74 = arith.constant 0 : index
    %c0_75 = arith.constant 0 : index
    %53 = vector.load %arg3[%c2_72, %c4_73, %c0_74, %c0_75] : memref<3x5x8x8xf32, #tpu.memory_space<vmem>>, vector<1x1x8x8xf32>
    %54 = vector.shape_cast %53 : vector<1x1x8x8xf32> to vector<8x8xf32>
    %cst_76 = arith.constant dense<0.000000e+00> : vector<16x8xf32>
    %55 = tpu.matmul %1, %44, %cst_76 {dimension_numbers = #tpu.dot_dimension_numbers<[1], [0], [0], [1], [0, 0, 1, 1], [], []>, precision = #tpu.contract_precision<fp32>} : vector<16x16xf32>, vector<16x8xf32>, vector<16x8xf32> -> vector<16x8xf32>
    %cst_77 = arith.constant dense<0.000000e+00> : vector<16x8xf32>
    %56 = tpu.matmul %44, %46, %cst_77 {dimension_numbers = #tpu.dot_dimension_numbers<[1], [0], [0], [1], [0, 0, 1, 1], [], []>, precision = #tpu.contract_precision<fp32>} : vector<16x8xf32>, vector<8x8xf32>, vector<16x8xf32> -> vector<16x8xf32>
    %cst_78 = arith.constant dense<0.000000e+00> : vector<16x8xf32>
    %57 = tpu.matmul %55, %48, %cst_78 {dimension_numbers = #tpu.dot_dimension_numbers<[1], [0], [0], [1], [0, 0, 1, 1], [], []>, precision = #tpu.contract_precision<fp32>} : vector<16x8xf32>, vector<8x8xf32>, vector<16x8xf32> -> vector<16x8xf32>
    %58 = arith.addf %56, %57 : vector<16x8xf32>
    %cst_79 = arith.constant dense<0.000000e+00> : vector<16x8xf32>
    %59 = tpu.matmul %44, %50, %cst_79 {dimension_numbers = #tpu.dot_dimension_numbers<[1], [0], [0], [1], [0, 0, 1, 1], [], []>, precision = #tpu.contract_precision<fp32>} : vector<16x8xf32>, vector<8x8xf32>, vector<16x8xf32> -> vector<16x8xf32>
    %cst_80 = arith.constant dense<0.000000e+00> : vector<16x8xf32>
    %60 = tpu.matmul %44, %52, %cst_80 {dimension_numbers = #tpu.dot_dimension_numbers<[1], [0], [0], [1], [0, 0, 1, 1], [], []>, precision = #tpu.contract_precision<fp32>} : vector<16x8xf32>, vector<8x8xf32>, vector<16x8xf32> -> vector<16x8xf32>
    %cst_81 = arith.constant dense<0.000000e+00> : vector<16x8xf32>
    %61 = tpu.matmul %44, %54, %cst_81 {dimension_numbers = #tpu.dot_dimension_numbers<[1], [0], [0], [1], [0, 0, 1, 1], [], []>, precision = #tpu.contract_precision<fp32>} : vector<16x8xf32>, vector<8x8xf32>, vector<16x8xf32> -> vector<16x8xf32>
    %cst_82 = arith.constant dense<0.000000e+00> : vector<16x16xf32>
    %62 = tpu.matmul %59, %60, %cst_82 {dimension_numbers = #tpu.dot_dimension_numbers<[1], [1], [0], [0], [0, 0, 1, 0], [], []>, precision = #tpu.contract_precision<fp32>} : vector<16x8xf32>, vector<16x8xf32>, vector<16x16xf32> -> vector<16x16xf32>
    %63 = arith.mulf %62, %2 : vector<16x16xf32>
    %cst_83 = arith.constant dense<0.000000e+00> : vector<16x8xf32>
    %64 = tpu.matmul %63, %61, %cst_83 {dimension_numbers = #tpu.dot_dimension_numbers<[1], [0], [0], [1], [0, 0, 1, 1], [], []>, precision = #tpu.contract_precision<fp32>} : vector<16x16xf32>, vector<16x8xf32>, vector<16x8xf32> -> vector<16x8xf32>
    %65 = arith.subf %58, %64 : vector<16x8xf32>
    %c0_84 = arith.constant 0 : index
    %c0_85 = arith.constant 0 : index
    %66 = vector.load %arg4[%c0_84, %c0_85] : memref<16x8xf32, #tpu.memory_space<vmem>>, vector<16x8xf32>
    tpu.vector_store %arg4[%c0_84, %c0_85], %65 {strides = array<i32>} : memref<16x8xf32, #tpu.memory_space<vmem>>, vector<16x8xf32>,
    return
  }
}

</mosaic_0001>

<llo_original>
// kernel: tpu_custom_call.1
$region0: #{tpu_custom_call.1}
  #allocation0 [shape = 'u32[]', space=smem, size = 0x4, offset = 0x4, fixed_abs, tag = 'smem constant byte address 0x4 - core index']
  #allocation1 [shape = 'u32[144,128]{1,0:T(1,128)}', space=vmem, size = 0x12000, scoped, tag = 'internal scratch']
  %s0 = inlined_call_operand.vmem [shape: f32[16,8], index: 0, kind: input, shape index: {}]
  %s1 = inlined_call_operand.vmem [shape: f32[16,16], index: 1, kind: input, shape index: {}]
  %s2 = inlined_call_operand.hbm [shape: f32[16,16], index: 2, kind: input, shape index: {}]
  %s3 = inlined_call_operand.hbm [shape: f32[3,5,8,8], index: 3, kind: input, shape index: {}]
  %s4 = inlined_call_operand.vmem [shape: f32[16,8], index: 4, kind: output, shape index: {}]
  %s5 = sld [smem:[#allocation0]]
  $region34: #{tpu_custom_call.1} parent=0
    _
  %s7 = ssub.s32 1, %s5
  %s8 = scalar_select 0, %s7, %s5
  $region1: #{tpu_custom_call.1} parent=0
    #allocation2 [shape = 'u8[8192]{0}', space=vmem, size = 0x2000, scoped, tag = 'input window, operand 2, single buffered']
    #allocation3 [shape = 's32[1]{0}', space=sflag, size = 0x4, scoped, tag = 'scoped memory for tpu_custom_call.1']
    #allocation4 [shape = 'u8[61440]{0}', space=vmem, size = 0xf000, scoped, tag = 'input window, operand 3, single buffered']
    #allocation5 [shape = 's32[1]{0}', space=sflag, size = 0x4, scoped, tag = 'scoped memory for tpu_custom_call.1']
    %9 = vsyncpa [#allocation3], 0
    %10 = vsyncpa [#allocation5], 0
    // Predicated region
    $region2: #{tpu_custom_call.1} parent=1 // pred_check
      _
    $region3: #{tpu_custom_call.1} parent=1 // pred_check_branch
      %12 = sbr.rel (0) target = $region5
    $region4: #{tpu_custom_call.1} parent=1 // pred_region
      _
    $region5: #{tpu_custom_call.1} parent=1 // pred_fallthru
      _
    // Predicated region
    $region6: #{tpu_custom_call.1} parent=1 // pred_check
      _
    $region7: #{tpu_custom_call.1} parent=1 // pred_check_branch
      %14 = sbr.rel (0) target = $region9
    $region8: #{tpu_custom_call.1} parent=1 // pred_region
      _
    $region9: #{tpu_custom_call.1} parent=1 // pred_fallthru
      _
    // Predicated region
    $region10: #{tpu_custom_call.1} parent=1 // pred_check
      _
    $region11: #{tpu_custom_call.1} parent=1 // pred_check_branch
      %16 = sbr.rel (0) target = $region13
    $region12: #{tpu_custom_call.1} parent=1 // pred_region
      %s18 = ssub.s32 256, 256
      %19 = vsyncadd [#allocation3], %s18
      %s20 = sshll.u32 [#allocation2], 4
      %s21 = int_to_ptr.vmem [resolvable:$true] %s20
      %26 = dma.hbm_to_vmem [thread:$0]  %s2, 256, %s21, [#allocation3], 128, 128, 8
    $region13: #{tpu_custom_call.1} parent=1 // pred_fallthru
      _
    // Predicated region
    $region14: #{tpu_custom_call.1} parent=1 // pred_check
      _
    $region15: #{tpu_custom_call.1} parent=1 // pred_check_branch
      %28 = sbr.rel (0) target = $region17
    $region16: #{tpu_custom_call.1} parent=1 // pred_region
      %s30 = ssub.s32 1920, 1920
      %31 = vsyncadd [#allocation5], %s30
      %s32 = sshll.u32 [#allocation4], 4
      %s33 = int_to_ptr.vmem [resolvable:$true] %s32
      %38 = dma.hbm_to_vmem [thread:$0]  %s3, 1920, %s33, [#allocation5], 128, 128, 8
    $region17: #{tpu_custom_call.1} parent=1 // pred_fallthru
      _
    // Predicated region
    $region18: #{tpu_custom_call.1} parent=1 // pred_check
      _
    $region19: #{tpu_custom_call.1} parent=1 // pred_check_branch
      %40 = sbr.rel (0) target = $region21
    $region20: #{tpu_custom_call.1} parent=1 // pred_region
      %41 = dma.done [#allocation3], 256
    $region21: #{tpu_custom_call.1} parent=1 // pred_fallthru
      _
    // Predicated region
    $region22: #{tpu_custom_call.1} parent=1 // pred_check
      _
    $region23: #{tpu_custom_call.1} parent=1 // pred_check_branch
      %43 = sbr.rel (0) target = $region25
    $region24: #{tpu_custom_call.1} parent=1 // pred_region
      %44 = dma.done [#allocation5], 1920
    $region25: #{tpu_custom_call.1} parent=1 // pred_fallthru
      _
    %v45 = vld [vmem:[%s0] sm:$0xff]
    %v46 = vld [vmem:[%s0 + $0x8] sm:$0xff]
    %v47 = vld [vmem:[%s1] sm:$0xff]
    %v48 = vld [vmem:[%s1 + $0x8] sm:$0xff]
    %v49 = vld [vmem:[#allocation2] sm:$0xff]
    %v50 = vld [vmem:[#allocation2 + $0x8] sm:$0xff]
    %v51 = vld [vmem:[#allocation4] sm:$0xff]
    %s52 = scalar_lea.vmem [#allocation4], 8
    %v53 = vld [vmem:[%s52] sm:$0xff]
    %s54 = scalar_lea.vmem [#allocation4], 16
    %v55 = vld [vmem:[%s54] sm:$0xff]
    %s56 = scalar_lea.vmem [#allocation4], 24
    %v57 = vld [vmem:[%s56] sm:$0xff]
    %s58 = scalar_lea.vmem [#allocation4], 32
    %v59 = vld [vmem:[%s58] sm:$0xff]
    %vm60 = vcmask 130048
    %v62 = vsel %vm60, %v47, 0
    %v65 = vsel %vm60, %v48, 0
    %67 = vmatprep.subr.mxu0 0.0
    %v68 = vand.u32 %v45, 4294901760
    %69 = vmatpush1.msra.mxu0 %v68
    %70 = vmatprep.subr.mxu0 0.0
    %v71 = vand.u32 %v46, 4294901760
    %72 = vmatpush1.msra.mxu0 %v71
    %73 = vmatprep.subr.mxu0 0.0
    %74 = vmatpush1.msra.mxu0 0.0
    %75 = vmatprep.subr.mxu0 0.0
    %76 = vmatpush1.msra.mxu0 0.0
    %77 = vmatprep.subr.mxu0 0.0
    %78 = vmatpush1.msra.mxu0 0.0
    %79 = vmatprep.subr.mxu0 0.0
    %80 = vmatpush1.msra.mxu0 0.0
    %81 = vmatprep.subr.mxu0 0.0
    %82 = vmatpush1.msra.mxu0 0.0
    %83 = vmatprep.subr.mxu0 0.0
    %84 = vmatpush1.msra.mxu0 0.0
    %85 = vmatprep.subr.mxu0 0.0
    %86 = vmatpush1.msra.mxu0 0.0
    %87 = vmatprep.subr.mxu0 0.0
    %88 = vmatpush1.msra.mxu0 0.0
    %89 = vmatprep.subr.mxu0 0.0
    %90 = vmatpush1.msra.mxu0 0.0
    %91 = vmatprep.subr.mxu0 0.0
    %92 = vmatpush1.msra.mxu0 0.0
    %93 = vmatprep.subr.mxu0 0.0
    %94 = vmatpush1.msra.mxu0 0.0
    %95 = vmatprep.subr.mxu0 0.0
    %96 = vmatpush1.msra.mxu0 0.0
    %97 = vmatprep.subr.mxu0 0.0
    %98 = vmatpush1.msra.mxu0 0.0
    %99 = vmatprep.subr.mxu0 0.0
    %100 = vmatpush1.msra.mxu0 0.0
    %101 = vmatprep.subr.mxu0 0.0
    %102 = vmatpush1.msra.mxu0 0.0
    %103 = vmatprep.subr.mxu0 0.0
    %104 = vmatpush1.msra.mxu0 0.0
    %105 = vmatprep.subr.mxu0 0.0
    %106 = vmatpush1.msra.mxu0 0.0
    %107 = vmatprep.subr.mxu0 0.0
    %108 = vmatpush1.msra.mxu0 0.0
    %109 = vmatprep.subr.mxu0 0.0
    %110 = vmatpush1.msra.mxu0 0.0
    %111 = vmatprep.subr.mxu0 0.0
    %112 = vmatpush1.msra.mxu0 0.0
    %113 = vmatprep.subr.mxu0 0.0
    %114 = vmatpush1.msra.mxu0 0.0
    %115 = vmatprep.subr.mxu0 0.0
    %116 = vmatpush1.msra.mxu0 0.0
    %117 = vmatprep.subr.mxu0 0.0
    %118 = vmatpush1.msra.mxu0 0.0
    %119 = vmatprep.subr.mxu0 0.0
    %120 = vmatpush1.msra.mxu0 0.0
    %121 = vmatprep.subr.mxu0 0.0
    %122 = vmatpush1.msra.mxu0 0.0
    %123 = vmatprep.subr.mxu0 0.0
    %124 = vmatpush1.msra.mxu0 0.0
    %125 = vmatprep.subr.mxu0 0.0
    %126 = vmatpush1.msra.mxu0 0.0
    %127 = vmatprep.subr.mxu0 0.0
    %128 = vmatpush1.msra.mxu0 0.0
    %129 = vmatprep.subr.mxu0 0.0
    %130 = vmatpush1.msra.mxu0 0.0
    %131 = vmatprep.subr.mxu0 0.0
    %132 = vmatpush1.msra.mxu0 0.0
    %133 = vmatprep.mubr.f32.mxu0 0.0
    %v134 = vand.u32 %v62, 4294901760
    %v135 = vsub.f32 %v62, %v134
    %v136 = vand.u32 %v135, 4294901760
    %v137 = vsub.f32 %v135, %v136
    %v138 = vand.u32 %v137, 4294901760
    %139 = vmatmul.mubr.f32.gmra.mrb[0].mxu0 %v138
    %v140 = vpop.f32.mrb[0].mxu0
    %v141 = vadd.f32 0.0, %v140
    %v142 = vpop.f32.mrb[0].mxu0
    %143 = vmatprep.mubr.f32.mxu0 0.0
    %v144 = vand.u32 %v65, 4294901760
    %v145 = vsub.f32 %v65, %v144
    %v146 = vand.u32 %v145, 4294901760
    %v147 = vsub.f32 %v145, %v146
    %v148 = vand.u32 %v147, 4294901760
    %149 = vmatmul.mubr.f32.gmra.mrb[0].mxu0 %v148
    %v150 = vpop.f32.mrb[0].mxu0
    %v151 = vadd.f32 0.0, %v150
    %v152 = vpop.f32.mrb[0].mxu0
    %153 = vdwg.mxu0
    %154 = vmatprep.subr.mxu0 0.0
    %v155 = vand.u32 %v45, 4294901760
    %v156 = vsub.f32 %v45, %v155
    %v157 = vand.u32 %v156, 4294901760
    %v158 = vsub.f32 %v156, %v157
    %v159 = vand.u32 %v158, 4294901760
    %160 = vmatpush1.msra.mxu0 %v159
    %161 = vmatprep.subr.mxu0 0.0
    %v162 = vand.u32 %v46, 4294901760
    %v163 = vsub.f32 %v46, %v162
    %v164 = vand.u32 %v163, 4294901760
    %v165 = vsub.f32 %v163, %v164
    %v166 = vand.u32 %v165, 4294901760
    %167 = vmatpush1.msra.mxu0 %v166
    %168 = vmatprep.subr.mxu0 0.0
    %169 = vmatpush1.msra.mxu0 0.0
    %170 = vmatprep.subr.mxu0 0.0
    %171 = vmatpush1.msra.mxu0 0.0
    %172 = vmatprep.subr.mxu0 0.0
    %173 = vmatpush1.msra.mxu0 0.0
    %174 = vmatprep.subr.mxu0 0.0
    %175 = vmatpush1.msra.mxu0 0.0
    %176 = vmatprep.subr.mxu0 0.0
    %177 = vmatpush1.msra.mxu0 0.0
    %178 = vmatprep.subr.mxu0 0.0
    %179 = vmatpush1.msra.mxu0 0.0
    %180 = vmatprep.subr.mxu0 0.0
    %181 = vmatpush1.msra.mxu0 0.0
    %182 = vmatprep.subr.mxu0 0.0
    %183 = vmatpush1.msra.mxu0 0.0
    %184 = vmatprep.subr.mxu0 0.0
    %185 = vmatpush1.msra.mxu0 0.0
    %186 = vmatprep.subr.mxu0 0.0
    %187 = vmatpush1.msra.mxu0 0.0
    %188 = vmatprep.subr.mxu0 0.0
    %189 = vmatpush1.msra.mxu0 0.0
    %190 = vmatprep.subr.mxu0 0.0
    %191 = vmatpush1.msra.mxu0 0.0
    %192 = vmatprep.subr.mxu0 0.0
    %193 = vmatpush1.msra.mxu0 0.0
    %194 = vmatprep.subr.mxu0 0.0
    %195 = vmatpush1.msra.mxu0 0.0
    %196 = vmatprep.subr.mxu0 0.0
    %197 = vmatpush1.msra.mxu0 0.0
    %198 = vmatprep.subr.mxu0 0.0
    %199 = vmatpush1.msra.mxu0 0.0
    %200 = vmatprep.subr.mxu0 0.0
    %201 = vmatpush1.msra.mxu0 0.0
    %202 = vmatprep.subr.mxu0 0.0
    %203 = vmatpush1.msra.mxu0 0.0
    %204 = vmatprep.subr.mxu0 0.0
    %205 = vmatpush1.msra.mxu0 0.0
    %206 = vmatprep.subr.mxu0 0.0
    %207 = vmatpush1.msra.mxu0 0.0
    %208 = vmatprep.subr.mxu0 0.0
    %209 = vmatpush1.msra.mxu0 0.0
    %210 = vmatprep.subr.mxu0 0.0
    %211 = vmatpush1.msra.mxu0 0.0
    %212 = vmatprep.subr.mxu0 0.0
    %213 = vmatpush1.msra.mxu0 0.0
    %214 = vmatprep.subr.mxu0 0.0
    %215 = vmatpush1.msra.mxu0 0.0
    %216 = vmatprep.subr.mxu0 0.0
    %217 = vmatpush1.msra.mxu0 0.0
    %218 = vmatprep.subr.mxu0 0.0
    %219 = vmatpush1.msra.mxu0 0.0
    %220 = vmatprep.subr.mxu0 0.0
    %221 = vmatpush1.msra.mxu0 0.0
    %222 = vmatprep.subr.mxu0 0.0
    %223 = vmatpush1.msra.mxu0 0.0
    %224 = vmatprep.subr.mxu0 0.0
    %225 = vmatpush1.msra.mxu0 0.0
    %226 = vmatprep.subr.mxu0 0.0
    %227 = vmatpush1.msra.mxu0 0.0
    %228 = vmatprep.mubr.f32.mxu0 0.0
    %v229 = vand.u32 %v62, 4294901760
    %230 = vmatmul.mubr.f32.gmra.mrb[0].mxu0 %v229
    %v231 = vpop.f32.mrb[0].mxu0
    %v232 = vadd.f32 %v141, %v231
    %v233 = vpop.f32.mrb[0].mxu0
    %234 = vmatprep.mubr.f32.mxu0 0.0
    %v235 = vand.u32 %v65, 4294901760
    %236 = vmatmul.mubr.f32.gmra.mrb[0].mxu0 %v235
    %v237 = vpop.f32.mrb[0].mxu0
    %v238 = vadd.f32 %v151, %v237
    %v239 = vpop.f32.mrb[0].mxu0
    %240 = vdwg.mxu0
    %241 = vmatprep.subr.mxu0 0.0
    %v242 = vand.u32 %v45, 4294901760
    %v243 = vsub.f32 %v45, %v242
    %244 = vmatpush1.msra.mxu0 %v243
    %245 = vmatprep.subr.mxu0 0.0
    %v246 = vand.u32 %v46, 4294901760
    %v247 = vsub.f32 %v46, %v246
    %248 = vmatpush1.msra.mxu0 %v247
    %249 = vmatprep.subr.mxu0 0.0
    %250 = vmatpush1.msra.mxu0 0.0
    %251 = vmatprep.subr.mxu0 0.0
    %252 = vmatpush1.msra.mxu0 0.0
    %253 = vmatprep.subr.mxu0 0.0
    %254 = vmatpush1.msra.mxu0 0.0
    %255 = vmatprep.subr.mxu0 0.0
    %256 = vmatpush1.msra.mxu0 0.0
    %257 = vmatprep.subr.mxu0 0.0
    %258 = vmatpush1.msra.mxu0 0.0
    %259 = vmatprep.subr.mxu0 0.0
    %260 = vmatpush1.msra.mxu0 0.0
    %261 = vmatprep.subr.mxu0 0.0
    %262 = vmatpush1.msra.mxu0 0.0
    %263 = vmatprep.subr.mxu0 0.0
    %264 = vmatpush1.msra.mxu0 0.0
    %265 = vmatprep.subr.mxu0 0.0
    %266 = vmatpush1.msra.mxu0 0.0
    %267 = vmatprep.subr.mxu0 0.0
    %268 = vmatpush1.msra.mxu0 0.0
    %269 = vmatprep.subr.mxu0 0.0
    %270 = vmatpush1.msra.mxu0 0.0
    %271 = vmatprep.subr.mxu0 0.0
    %272 = vmatpush1.msra.mxu0 0.0
    %273 = vmatprep.subr.mxu0 0.0
    %274 = vmatpush1.msra.mxu0 0.0
    %275 = vmatprep.subr.mxu0 0.0
    %276 = vmatpush1.msra.mxu0 0.0
    %277 = vmatprep.subr.mxu0 0.0
    %278 = vmatpush1.msra.mxu0 0.0
    %279 = vmatprep.subr.mxu0 0.0
    %280 = vmatpush1.msra.mxu0 0.0
    %281 = vmatprep.subr.mxu0 0.0
    %282 = vmatpush1.msra.mxu0 0.0
    %283 = vmatprep.subr.mxu0 0.0
    %284 = vmatpush1.msra.mxu0 0.0
    %285 = vmatprep.subr.mxu0 0.0
    %286 = vmatpush1.msra.mxu0 0.0
    %287 = vmatprep.subr.mxu0 0.0
    %288 = vmatpush1.msra.mxu0 0.0
    %289 = vmatprep.subr.mxu0 0.0
    %290 = vmatpush1.msra.mxu0 0.0
    %291 = vmatprep.subr.mxu0 0.0
    %292 = vmatpush1.msra.mxu0 0.0
    %293 = vmatprep.subr.mxu0 0.0
    %294 = vmatpush1.msra.mxu0 0.0
    %295 = vmatprep.subr.mxu0 0.0
    %296 = vmatpush1.msra.mxu0 0.0
    %297 = vmatprep.subr.mxu0 0.0
    %298 = vmatpush1.msra.mxu0 0.0
    %299 = vmatprep.subr.mxu0 0.0
    %300 = vmatpush1.msra.mxu0 0.0
    %301 = vmatprep.subr.mxu0 0.0
    %302 = vmatpush1.msra.mxu0 0.0
    %303 = vmatprep.subr.mxu0 0.0
    %304 = vmatpush1.msra.mxu0 0.0
    %305 = vmatprep.subr.mxu0 0.0
    %306 = vmatpush1.msra.mxu0 0.0
    %307 = vmatprep.subr.mxu0 0.0
    %308 = vmatpush1.msra.mxu0 0.0
    %309 = vmatprep.mubr.f32.mxu0 0.0
    %v310 = vand.u32 %v62, 4294901760
    %v311 = vsub.f32 %v62, %v310
    %312 = vmatmul.mubr.f32.gmra.mrb[0].mxu0 %v311
    %v313 = vpop.f32.mrb[0].mxu0
    %v314 = vadd.f32 %v232, %v313
    %v315 = vpop.f32.mrb[0].mxu0
    %316 = vmatprep.mubr.f32.mxu0 0.0
    %v317 = vand.u32 %v65, 4294901760
    %v318 = vsub.f32 %v65, %v317
    %319 = vmatmul.mubr.f32.gmra.mrb[0].mxu0 %v318
    %v320 = vpop.f32.mrb[0].mxu0
    %v321 = vadd.f32 %v238, %v320
    %v322 = vpop.f32.mrb[0].mxu0
    %323 = vdwg.mxu0
    %324 = vmatprep.subr.mxu0 0.0
    %v325 = vand.u32 %v45, 4294901760
    %326 = vmatpush1.msra.mxu0 %v325
    %327 = vmatprep.subr.mxu0 0.0
    %v328 = vand.u32 %v46, 4294901760
    %329 = vmatpush1.msra.mxu0 %v328
    %330 = vmatprep.subr.mxu0 0.0
    %331 = vmatpush1.msra.mxu0 0.0
    %332 = vmatprep.subr.mxu0 0.0
    %333 = vmatpush1.msra.mxu0 0.0
    %334 = vmatprep.subr.mxu0 0.0
    %335 = vmatpush1.msra.mxu0 0.0
    %336 = vmatprep.subr.mxu0 0.0
    %337 = vmatpush1.msra.mxu0 0.0
    %338 = vmatprep.subr.mxu0 0.0
    %339 = vmatpush1.msra.mxu0 0.0
    %340 = vmatprep.subr.mxu0 0.0
    %341 = vmatpush1.msra.mxu0 0.0
    %342 = vmatprep.subr.mxu0 0.0
    %343 = vmatpush1.msra.mxu0 0.0
    %344 = vmatprep.subr.mxu0 0.0
    %345 = vmatpush1.msra.mxu0 0.0
    %346 = vmatprep.subr.mxu0 0.0
    %347 = vmatpush1.msra.mxu0 0.0
    %348 = vmatprep.subr.mxu0 0.0
    %349 = vmatpush1.msra.mxu0 0.0
    %350 = vmatprep.subr.mxu0 0.0
    %351 = vmatpush1.msra.mxu0 0.0
    %352 = vmatprep.subr.mxu0 0.0
    %353 = vmatpush1.msra.mxu0 0.0
    %354 = vmatprep.subr.mxu0 0.0
    %355 = vmatpush1.msra.mxu0 0.0
    %356 = vmatprep.subr.mxu0 0.0
    %357 = vmatpush1.msra.mxu0 0.0
    %358 = vmatprep.subr.mxu0 0.0
    %359 = vmatpush1.msra.mxu0 0.0
    %360 = vmatprep.subr.mxu0 0.0
    %361 = vmatpush1.msra.mxu0 0.0
    %362 = vmatprep.subr.mxu0 0.0
    %363 = vmatpush1.msra.mxu0 0.0
    %364 = vmatprep.subr.mxu0 0.0
    %365 = vmatpush1.msra.mxu0 0.0
    %366 = vmatprep.subr.mxu0 0.0
    %367 = vmatpush1.msra.mxu0 0.0
    %368 = vmatprep.subr.mxu0 0.0
    %369 = vmatpush1.msra.mxu0 0.0
    %370 = vmatprep.subr.mxu0 0.0
    %371 = vmatpush1.msra.mxu0 0.0
    %372 = vmatprep.subr.mxu0 0.0
    %373 = vmatpush1.msra.mxu0 0.0
    %374 = vmatprep.subr.mxu0 0.0
    %375 = vmatpush1.msra.mxu0 0.0
    %376 = vmatprep.subr.mxu0 0.0
    %377 = vmatpush1.msra.mxu0 0.0
    %378 = vmatprep.subr.mxu0 0.0
    %379 = vmatpush1.msra.mxu0 0.0
    %380 = vmatprep.subr.mxu0 0.0
    %381 = vmatpush1.msra.mxu0 0.0
    %382 = vmatprep.subr.mxu0 0.0
    %383 = vmatpush1.msra.mxu0 0.0
    %384 = vmatprep.subr.mxu0 0.0
    %385 = vmatpush1.msra.mxu0 0.0
    %386 = vmatprep.subr.mxu0 0.0
    %387 = vmatpush1.msra.mxu0 0.0
    %388 = vmatprep.subr.mxu0 0.0
    %389 = vmatpush1.msra.mxu0 0.0
    %390 = vmatprep.mubr.f32.mxu0 0.0
    %v391 = vand.u32 %v62, 4294901760
    %v392 = vsub.f32 %v62, %v391
    %v393 = vand.u32 %v392, 4294901760
    %394 = vmatmul.mubr.f32.gmra.mrb[0].mxu0 %v393
    %v395 = vpop.f32.mrb[0].mxu0
    %v396 = vadd.f32 %v314, %v395
    %v397 = vpop.f32.mrb[0].mxu0
    %398 = vmatprep.mubr.f32.mxu0 0.0
    %v399 = vand.u32 %v65, 4294901760
    %v400 = vsub.f32 %v65, %v399
    %v401 = vand.u32 %v400, 4294901760
    %402 = vmatmul.mubr.f32.gmra.mrb[0].mxu0 %v401
    %v403 = vpop.f32.mrb[0].mxu0
    %v404 = vadd.f32 %v321, %v403
    %v405 = vpop.f32.mrb[0].mxu0
    %406 = vdwg.mxu0
    %407 = vmatprep.subr.mxu0 0.0
    %v408 = vand.u32 %v45, 4294901760
    %v409 = vsub.f32 %v45, %v408
    %v410 = vand.u32 %v409, 4294901760
    %411 = vmatpush1.msra.mxu0 %v410
    %412 = vmatprep.subr.mxu0 0.0
    %v413 = vand.u32 %v46, 4294901760
    %v414 = vsub.f32 %v46, %v413
    %v415 = vand.u32 %v414, 4294901760
    %416 = vmatpush1.msra.mxu0 %v415
    %417 = vmatprep.subr.mxu0 0.0
    %418 = vmatpush1.msra.mxu0 0.0
    %419 = vmatprep.subr.mxu0 0.0
    %420 = vmatpush1.msra.mxu0 0.0
    %421 = vmatprep.subr.mxu0 0.0
    %422 = vmatpush1.msra.mxu0 0.0
    %423 = vmatprep.subr.mxu0 0.0
    %424 = vmatpush1.msra.mxu0 0.0
    %425 = vmatprep.subr.mxu0 0.0
    %426 = vmatpush1.msra.mxu0 0.0
    %427 = vmatprep.subr.mxu0 0.0
    %428 = vmatpush1.msra.mxu0 0.0
    %429 = vmatprep.subr.mxu0 0.0
    %430 = vmatpush1.msra.mxu0 0.0
    %431 = vmatprep.subr.mxu0 0.0
    %432 = vmatpush1.msra.mxu0 0.0
    %433 = vmatprep.subr.mxu0 0.0
    %434 = vmatpush1.msra.mxu0 0.0
    %435 = vmatprep.subr.mxu0 0.0
    %436 = vmatpush1.msra.mxu0 0.0
    %437 = vmatprep.subr.mxu0 0.0
    %438 = vmatpush1.msra.mxu0 0.0
    %439 = vmatprep.subr.mxu0 0.0
    %440 = vmatpush1.msra.mxu0 0.0
    %441 = vmatprep.subr.mxu0 0.0
    %442 = vmatpush1.msra.mxu0 0.0
    %443 = vmatprep.subr.mxu0 0.0
    %444 = vmatpush1.msra.mxu0 0.0
    %445 = vmatprep.subr.mxu0 0.0
    %446 = vmatpush1.msra.mxu0 0.0
    %447 = vmatprep.subr.mxu0 0.0
    %448 = vmatpush1.msra.mxu0 0.0
    %449 = vmatprep.subr.mxu0 0.0
    %450 = vmatpush1.msra.mxu0 0.0
    %451 = vmatprep.subr.mxu0 0.0
    %452 = vmatpush1.msra.mxu0 0.0
    %453 = vmatprep.subr.mxu0 0.0
    %454 = vmatpush1.msra.mxu0 0.0
    %455 = vmatprep.subr.mxu0 0.0
    %456 = vmatpush1.msra.mxu0 0.0
    %457 = vmatprep.subr.mxu0 0.0
    %458 = vmatpush1.msra.mxu0 0.0
    %459 = vmatprep.subr.mxu0 0.0
    %460 = vmatpush1.msra.mxu0 0.0
    %461 = vmatprep.subr.mxu0 0.0
    %462 = vmatpush1.msra.mxu0 0.0
    %463 = vmatprep.subr.mxu0 0.0
    %464 = vmatpush1.msra.mxu0 0.0
    %465 = vmatprep.subr.mxu0 0.0
    %466 = vmatpush1.msra.mxu0 0.0
    %467 = vmatprep.subr.mxu0 0.0
    %468 = vmatpush1.msra.mxu0 0.0
    %469 = vmatprep.subr.mxu0 0.0
    %470 = vmatpush1.msra.mxu0 0.0
    %471 = vmatprep.subr.mxu0 0.0
    %472 = vmatpush1.msra.mxu0 0.0
    %473 = vmatprep.subr.mxu0 0.0
    %474 = vmatpush1.msra.mxu0 0.0
    %475 = vmatprep.subr.mxu0 0.0
    %476 = vmatpush1.msra.mxu0 0.0
    %477 = vmatprep.mubr.f32.mxu0 0.0
    %v478 = vand.u32 %v62, 4294901760
    %479 = vmatmul.mubr.f32.gmra.mrb[0].mxu0 %v478
    %v480 = vpop.f32.mrb[0].mxu0
    %v481 = vadd.f32 %v396, %v480
    %v482 = vpop.f32.mrb[0].mxu0
    %483 = vmatprep.mubr.f32.mxu0 0.0
    %v484 = vand.u32 %v65, 4294901760
    %485 = vmatmul.mubr.f32.gmra.mrb[0].mxu0 %v484
    %v486 = vpop.f32.mrb[0].mxu0
    %v487 = vadd.f32 %v404, %v486
    %v488 = vpop.f32.mrb[0].mxu0
    %489 = vdwg.mxu0
    %490 = vmatprep.subr.mxu0 0.0
    %v491 = vand.u32 %v45, 4294901760
    %492 = vmatpush1.msra.mxu0 %v491
    %493 = vmatprep.subr.mxu0 0.0
    %v494 = vand.u32 %v46, 4294901760
    %495 = vmatpush1.msra.mxu0 %v494
    %496 = vmatprep.subr.mxu0 0.0
    %497 = vmatpush1.msra.mxu0 0.0
    %498 = vmatprep.subr.mxu0 0.0
    %499 = vmatpush1.msra.mxu0 0.0
    %500 = vmatprep.subr.mxu0 0.0
    %501 = vmatpush1.msra.mxu0 0.0
    %502 = vmatprep.subr.mxu0 0.0
    %503 = vmatpush1.msra.mxu0 0.0
    %504 = vmatprep.subr.mxu0 0.0
    %505 = vmatpush1.msra.mxu0 0.0
    %506 = vmatprep.subr.mxu0 0.0
    %507 = vmatpush1.msra.mxu0 0.0
    %508 = vmatprep.subr.mxu0 0.0
    %509 = vmatpush1.msra.mxu0 0.0
    %510 = vmatprep.subr.mxu0 0.0
    %511 = vmatpush1.msra.mxu0 0.0
    %512 = vmatprep.subr.mxu0 0.0
    %513 = vmatpush1.msra.mxu0 0.0
    %514 = vmatprep.subr.mxu0 0.0
    %515 = vmatpush1.msra.mxu0 0.0
    %516 = vmatprep.subr.mxu0 0.0
    %517 = vmatpush1.msra.mxu0 0.0
    %518 = vmatprep.subr.mxu0 0.0
    %519 = vmatpush1.msra.mxu0 0.0
    %520 = vmatprep.subr.mxu0 0.0
    %521 = vmatpush1.msra.mxu0 0.0
    %522 = vmatprep.subr.mxu0 0.0
    %523 = vmatpush1.msra.mxu0 0.0
    %524 = vmatprep.subr.mxu0 0.0
    %525 = vmatpush1.msra.mxu0 0.0
    %526 = vmatprep.subr.mxu0 0.0
    %527 = vmatpush1.msra.mxu0 0.0
    %528 = vmatprep.subr.mxu0 0.0
    %529 = vmatpush1.msra.mxu0 0.0
    %530 = vmatprep.subr.mxu0 0.0
    %531 = vmatpush1.msra.mxu0 0.0
    %532 = vmatprep.subr.mxu0 0.0
    %533 = vmatpush1.msra.mxu0 0.0
    %534 = vmatprep.subr.mxu0 0.0
    %535 = vmatpush1.msra.mxu0 0.0
    %536 = vmatprep.subr.mxu0 0.0
    %537 = vmatpush1.msra.mxu0 0.0
    %538 = vmatprep.subr.mxu0 0.0
    %539 = vmatpush1.msra.mxu0 0.0
    %540 = vmatprep.subr.mxu0 0.0
    %541 = vmatpush1.msra.mxu0 0.0
    %542 = vmatprep.subr.mxu0 0.0
    %543 = vmatpush1.msra.mxu0 0.0
    %544 = vmatprep.subr.mxu0 0.0
    %545 = vmatpush1.msra.mxu0 0.0
    %546 = vmatprep.subr.mxu0 0.0
    %547 = vmatpush1.msra.mxu0 0.0
    %548 = vmatprep.subr.mxu0 0.0
    %549 = vmatpush1.msra.mxu0 0.0
    %550 = vmatprep.subr.mxu0 0.0
    %551 = vmatpush1.msra.mxu0 0.0
    %552 = vmatprep.subr.mxu0 0.0
    %553 = vmatpush1.msra.mxu0 0.0
    %554 = vmatprep.subr.mxu0 0.0
    %555 = vmatpush1.msra.mxu0 0.0
    %556 = vmatprep.mubr.f32.mxu0 0.0
    %v557 = vand.u32 %v62, 4294901760
    %558 = vmatmul.mubr.f32.gmra.mrb[0].mxu0 %v557
    %v559 = vpop.f32.mrb[0].mxu0
    %v560 = vadd.f32 %v481, %v559
    %v561 = vpop.f32.mrb[0].mxu0
    %562 = vmatprep.mubr.f32.mxu0 0.0
    %v563 = vand.u32 %v65, 4294901760
    %564 = vmatmul.mubr.f32.gmra.mrb[0].mxu0 %v563
    %v565 = vpop.f32.mrb[0].mxu0
    %v566 = vadd.f32 %v487, %v565
    %v567 = vpop.f32.mrb[0].mxu0
    %568 = vdwg.mxu0
    %vm569 = vcmask 64512
    %v571 = vsel %vm569, %v560, 0
    %v574 = vsel %vm569, %v566, 0
    %576 = vmatprep.subr.mxu0 0.0
    %v577 = vand.u32 %v53, 4294901760
    %578 = vmatpush1.msra.mxu0 %v577
    %579 = vmatprep.subr.mxu0 0.0
    %580 = vmatpush1.msra.mxu0 0.0
    %581 = vmatprep.subr.mxu0 0.0
    %582 = vmatpush1.msra.mxu0 0.0
    %583 = vmatprep.subr.mxu0 0.0
    %584 = vmatpush1.msra.mxu0 0.0
    %585 = vmatprep.subr.mxu0 0.0
    %586 = vmatpush1.msra.mxu0 0.0
    %587 = vmatprep.subr.mxu0 0.0
    %588 = vmatpush1.msra.mxu0 0.0
    %589 = vmatprep.subr.mxu0 0.0
    %590 = vmatpush1.msra.mxu0 0.0
    %591 = vmatprep.subr.mxu0 0.0
    %592 = vmatpush1.msra.mxu0 0.0
    %593 = vmatprep.subr.mxu0 0.0
    %594 = vmatpush1.msra.mxu0 0.0
    %595 = vmatprep.subr.mxu0 0.0
    %596 = vmatpush1.msra.mxu0 0.0
    %597 = vmatprep.subr.mxu0 0.0
    %598 = vmatpush1.msra.mxu0 0.0
    %599 = vmatprep.subr.mxu0 0.0
    %600 = vmatpush1.msra.mxu0 0.0
    %601 = vmatprep.subr.mxu0 0.0
    %602 = vmatpush1.msra.mxu0 0.0
    %603 = vmatprep.subr.mxu0 0.0
    %604 = vmatpush1.msra.mxu0 0.0
    %605 = vmatprep.subr.mxu0 0.0
    %606 = vmatpush1.msra.mxu0 0.0
    %607 = vmatprep.subr.mxu0 0.0
    %608 = vmatpush1.msra.mxu0 0.0
    %609 = vmatprep.subr.mxu0 0.0
    %610 = vmatpush1.msra.mxu0 0.0
    %611 = vmatprep.subr.mxu0 0.0
    %612 = vmatpush1.msra.mxu0 0.0
    %613 = vmatprep.subr.mxu0 0.0
    %614 = vmatpush1.msra.mxu0 0.0
    %615 = vmatprep.subr.mxu0 0.0
    %616 = vmatpush1.msra.mxu0 0.0
    %617 = vmatprep.subr.mxu0 0.0
    %618 = vmatpush1.msra.mxu0 0.0
    %619 = vmatprep.subr.mxu0 0.0
    %620 = vmatpush1.msra.mxu0 0.0
    %621 = vmatprep.subr.mxu0 0.0
    %622 = vmatpush1.msra.mxu0 0.0
    %623 = vmatprep.subr.mxu0 0.0
    %624 = vmatpush1.msra.mxu0 0.0
    %625 = vmatprep.subr.mxu0 0.0
    %626 = vmatpush1.msra.mxu0 0.0
    %627 = vmatprep.subr.mxu0 0.0
    %628 = vmatpush1.msra.mxu0 0.0
    %629 = vmatprep.subr.mxu0 0.0
    %630 = vmatpush1.msra.mxu0 0.0
    %631 = vmatprep.subr.mxu0 0.0
    %632 = vmatpush1.msra.mxu0 0.0
    %633 = vmatprep.subr.mxu0 0.0
    %634 = vmatpush1.msra.mxu0 0.0
    %635 = vmatprep.subr.mxu0 0.0
    %636 = vmatpush1.msra.mxu0 0.0
    %637 = vmatprep.subr.mxu0 0.0
    %638 = vmatpush1.msra.mxu0 0.0
    %639 = vmatprep.subr.mxu0 0.0
    %640 = vmatpush1.msra.mxu0 0.0
    %641 = vmatprep.mubr.f32.mxu0 0.0
    %v642 = vand.u32 %v571, 4294901760
    %v643 = vsub.f32 %v571, %v642
    %v644 = vand.u32 %v643, 4294901760
    %v645 = vsub.f32 %v643, %v644
    %v646 = vand.u32 %v645, 4294901760
    %647 = vmatmul.mubr.f32.gmra.mrb[0].mxu0 %v646
    %v648 = vpop.f32.mrb[0].mxu0
    %v649 = vadd.f32 0.0, %v648
    %v650 = vpop.f32.mrb[0].mxu0
    %651 = vmatprep.mubr.f32.mxu0 0.0
    %v652 = vand.u32 %v574, 4294901760
    %v653 = vsub.f32 %v574, %v652
    %v654 = vand.u32 %v653, 4294901760
    %v655 = vsub.f32 %v653, %v654
    %v656 = vand.u32 %v655, 4294901760
    %657 = vmatmul.mubr.f32.gmra.mrb[0].mxu0 %v656
    %v658 = vpop.f32.mrb[0].mxu0
    %v659 = vadd.f32 0.0, %v658
    %v660 = vpop.f32.mrb[0].mxu0
    %661 = vdwg.mxu0
    %662 = vmatprep.subr.mxu0 0.0
    %v663 = vand.u32 %v53, 4294901760
    %v664 = vsub.f32 %v53, %v663
    %v665 = vand.u32 %v664, 4294901760
    %v666 = vsub.f32 %v664, %v665
    %v667 = vand.u32 %v666, 4294901760
    %668 = vmatpush1.msra.mxu0 %v667
    %669 = vmatprep.subr.mxu0 0.0
    %670 = vmatpush1.msra.mxu0 0.0
    %671 = vmatprep.subr.mxu0 0.0
    %672 = vmatpush1.msra.mxu0 0.0
    %673 = vmatprep.subr.mxu0 0.0
    %674 = vmatpush1.msra.mxu0 0.0
    %675 = vmatprep.subr.mxu0 0.0
    %676 = vmatpush1.msra.mxu0 0.0
    %677 = vmatprep.subr.mxu0 0.0
    %678 = vmatpush1.msra.mxu0 0.0
    %679 = vmatprep.subr.mxu0 0.0
    %680 = vmatpush1.msra.mxu0 0.0
    %681 = vmatprep.subr.mxu0 0.0
    %682 = vmatpush1.msra.mxu0 0.0
    %683 = vmatprep.subr.mxu0 0.0
    %684 = vmatpush1.msra.mxu0 0.0
    %685 = vmatprep.subr.mxu0 0.0
    %686 = vmatpush1.msra.mxu0 0.0
    %687 = vmatprep.subr.mxu0 0.0
    %688 = vmatpush1.msra.mxu0 0.0
    %689 = vmatprep.subr.mxu0 0.0
    %690 = vmatpush1.msra.mxu0 0.0
    %691 = vmatprep.subr.mxu0 0.0
    %692 = vmatpush1.msra.mxu0 0.0
    %693 = vmatprep.subr.mxu0 0.0
    %694 = vmatpush1.msra.mxu0 0.0
    %695 = vmatprep.subr.mxu0 0.0
    %696 = vmatpush1.msra.mxu0 0.0
    %697 = vmatprep.subr.mxu0 0.0
    %698 = vmatpush1.msra.mxu0 0.0
    %699 = vmatprep.subr.mxu0 0.0
    %700 = vmatpush1.msra.mxu0 0.0
    %701 = vmatprep.subr.mxu0 0.0
    %702 = vmatpush1.msra.mxu0 0.0
    %703 = vmatprep.subr.mxu0 0.0
    %704 = vmatpush1.msra.mxu0 0.0
    %705 = vmatprep.subr.mxu0 0.0
    %706 = vmatpush1.msra.mxu0 0.0
    %707 = vmatprep.subr.mxu0 0.0
    %708 = vmatpush1.msra.mxu0 0.0
    %709 = vmatprep.subr.mxu0 0.0
    %710 = vmatpush1.msra.mxu0 0.0
    %711 = vmatprep.subr.mxu0 0.0
    %712 = vmatpush1.msra.mxu0 0.0
    %713 = vmatprep.subr.mxu0 0.0
    %714 = vmatpush1.msra.mxu0 0.0
    %715 = vmatprep.subr.mxu0 0.0
    %716 = vmatpush1.msra.mxu0 0.0
    %717 = vmatprep.subr.mxu0 0.0
    %718 = vmatpush1.msra.mxu0 0.0
    %719 = vmatprep.subr.mxu0 0.0
    %720 = vmatpush1.msra.mxu0 0.0
    %721 = vmatprep.subr.mxu0 0.0
    %722 = vmatpush1.msra.mxu0 0.0
    %723 = vmatprep.subr.mxu0 0.0
    %724 = vmatpush1.msra.mxu0 0.0
    %725 = vmatprep.subr.mxu0 0.0
    %726 = vmatpush1.msra.mxu0 0.0
    %727 = vmatprep.subr.mxu0 0.0
    %728 = vmatpush1.msra.mxu0 0.0
    %729 = vmatprep.subr.mxu0 0.0
    %730 = vmatpush1.msra.mxu0 0.0
    %731 = vmatprep.mubr.f32.mxu0 0.0
    %v732 = vand.u32 %v571, 4294901760
    %733 = vmatmul.mubr.f32.gmra.mrb[0].mxu0 %v732
    %v734 = vpop.f32.mrb[0].mxu0
    %v735 = vadd.f32 %v649, %v734
    %v736 = vpop.f32.mrb[0].mxu0
    %737 = vmatprep.mubr.f32.mxu0 0.0
    %v738 = vand.u32 %v574, 4294901760
    %739 = vmatmul.mubr.f32.gmra.mrb[0].mxu0 %v738
    %v740 = vpop.f32.mrb[0].mxu0
    %v741 = vadd.f32 %v659, %v740
    %v742 = vpop.f32.mrb[0].mxu0
    %743 = vdwg.mxu0
    %744 = vmatprep.subr.mxu0 0.0
    %v745 = vand.u32 %v53, 4294901760
    %v746 = vsub.f32 %v53, %v745
    %747 = vmatpush1.msra.mxu0 %v746
    %748 = vmatprep.subr.mxu0 0.0
    %749 = vmatpush1.msra.mxu0 0.0
    %750 = vmatprep.subr.mxu0 0.0
    %751 = vmatpush1.msra.mxu0 0.0
    %752 = vmatprep.subr.mxu0 0.0
    %753 = vmatpush1.msra.mxu0 0.0
    %754 = vmatprep.subr.mxu0 0.0
    %755 = vmatpush1.msra.mxu0 0.0
    %756 = vmatprep.subr.mxu0 0.0
    %757 = vmatpush1.msra.mxu0 0.0
    %758 = vmatprep.subr.mxu0 0.0
    %759 = vmatpush1.msra.mxu0 0.0
    %760 = vmatprep.subr.mxu0 0.0
    %761 = vmatpush1.msra.mxu0 0.0
    %762 = vmatprep.subr.mxu0 0.0
    %763 = vmatpush1.msra.mxu0 0.0
    %764 = vmatprep.subr.mxu0 0.0
    %765 = vmatpush1.msra.mxu0 0.0
    %766 = vmatprep.subr.mxu0 0.0
    %767 = vmatpush1.msra.mxu0 0.0
    %768 = vmatprep.subr.mxu0 0.0
    %769 = vmatpush1.msra.mxu0 0.0
    %770 = vmatprep.subr.mxu0 0.0
    %771 = vmatpush1.msra.mxu0 0.0
    %772 = vmatprep.subr.mxu0 0.0
    %773 = vmatpush1.msra.mxu0 0.0
    %774 = vmatprep.subr.mxu0 0.0
    %775 = vmatpush1.msra.mxu0 0.0
    %776 = vmatprep.subr.mxu0 0.0
    %777 = vmatpush1.msra.mxu0 0.0
    %778 = vmatprep.subr.mxu0 0.0
    %779 = vmatpush1.msra.mxu0 0.0
    %780 = vmatprep.subr.mxu0 0.0
    %781 = vmatpush1.msra.mxu0 0.0
    %782 = vmatprep.subr.mxu0 0.0
    %783 = vmatpush1.msra.mxu0 0.0
    %784 = vmatprep.subr.mxu0 0.0
    %785 = vmatpush1.msra.mxu0 0.0
    %786 = vmatprep.subr.mxu0 0.0
    %787 = vmatpush1.msra.mxu0 0.0
    %788 = vmatprep.subr.mxu0 0.0
    %789 = vmatpush1.msra.mxu0 0.0
    %790 = vmatprep.subr.mxu0 0.0
    %791 = vmatpush1.msra.mxu0 0.0
    %792 = vmatprep.subr.mxu0 0.0
    %793 = vmatpush1.msra.mxu0 0.0
    %794 = vmatprep.subr.mxu0 0.0
    %795 = vmatpush1.msra.mxu0 0.0
    %796 = vmatprep.subr.mxu0 0.0
    %797 = vmatpush1.msra.mxu0 0.0
    %798 = vmatprep.subr.mxu0 0.0
    %799 = vmatpush1.msra.mxu0 0.0
    %800 = vmatprep.subr.mxu0 0.0
    %801 = vmatpush1.msra.mxu0 0.0
    %802 = vmatprep.subr.mxu0 0.0
    %803 = vmatpush1.msra.mxu0 0.0
    %804 = vmatprep.subr.mxu0 0.0
    %805 = vmatpush1.msra.mxu0 0.0
    %806 = vmatprep.subr.mxu0 0.0
    %807 = vmatpush1.msra.mxu0 0.0
    %808 = vmatprep.subr.mxu0 0.0
    %809 = vmatpush1.msra.mxu0 0.0
    %810 = vmatprep.mubr.f32.mxu0 0.0
    %v811 = vand.u32 %v571, 4294901760
    %v812 = vsub.f32 %v571, %v811
    %813 = vmatmul.mubr.f32.gmra.mrb[0].mxu0 %v812
    %v814 = vpop.f32.mrb[0].mxu0
    %v815 = vadd.f32 %v735, %v814
    %v816 = vpop.f32.mrb[0].mxu0
    %817 = vmatprep.mubr.f32.mxu0 0.0
    %v818 = vand.u32 %v574, 4294901760
    %v819 = vsub.f32 %v574, %v818
    %820 = vmatmul.mubr.f32.gmra.mrb[0].mxu0 %v819
    %v821 = vpop.f32.mrb[0].mxu0
    %v822 = vadd.f32 %v741, %v821
    %v823 = vpop.f32.mrb[0].mxu0
    %824 = vdwg.mxu0
    %825 = vmatprep.subr.mxu0 0.0
    %v826 = vand.u32 %v53, 4294901760
    %827 = vmatpush1.msra.mxu0 %v826
    %828 = vmatprep.subr.mxu0 0.0
    %829 = vmatpush1.msra.mxu0 0.0
    %830 = vmatprep.subr.mxu0 0.0
    %831 = vmatpush1.msra.mxu0 0.0
    %832 = vmatprep.subr.mxu0 0.0
    %833 = vmatpush1.msra.mxu0 0.0
    %834 = vmatprep.subr.mxu0 0.0
    %835 = vmatpush1.msra.mxu0 0.0
    %836 = vmatprep.subr.mxu0 0.0
    %837 = vmatpush1.msra.mxu0 0.0
    %838 = vmatprep.subr.mxu0 0.0
    %839 = vmatpush1.msra.mxu0 0.0
    %840 = vmatprep.subr.mxu0 0.0
    %841 = vmatpush1.msra.mxu0 0.0
    %842 = vmatprep.subr.mxu0 0.0
    %843 = vmatpush1.msra.mxu0 0.0
    %844 = vmatprep.subr.mxu0 0.0
    %845 = vmatpush1.msra.mxu0 0.0
    %846 = vmatprep.subr.mxu0 0.0
    %847 = vmatpush1.msra.mxu0 0.0
    %848 = vmatprep.subr.mxu0 0.0
    %849 = vmatpush1.msra.mxu0 0.0
    %850 = vmatprep.subr.mxu0 0.0
    %851 = vmatpush1.msra.mxu0 0.0
    %852 = vmatprep.subr.mxu0 0.0
    %853 = vmatpush1.msra.mxu0 0.0
    %854 = vmatprep.subr.mxu0 0.0
    %855 = vmatpush1.msra.mxu0 0.0
    %856 = vmatprep.subr.mxu0 0.0
    %857 = vmatpush1.msra.mxu0 0.0
    %858 = vmatprep.subr.mxu0 0.0
    %859 = vmatpush1.msra.mxu0 0.0
    %860 = vmatprep.subr.mxu0 0.0
    %861 = vmatpush1.msra.mxu0 0.0
    %862 = vmatprep.subr.mxu0 0.0
    %863 = vmatpush1.msra.mxu0 0.0
    %864 = vmatprep.subr.mxu0 0.0
    %865 = vmatpush1.msra.mxu0 0.0
    %866 = vmatprep.subr.mxu0 0.0
    %867 = vmatpush1.msra.mxu0 0.0
    %868 = vmatprep.subr.mxu0 0.0
    %869 = vmatpush1.msra.mxu0 0.0
    %870 = vmatprep.subr.mxu0 0.0
    %871 = vmatpush1.msra.mxu0 0.0
    %872 = vmatprep.subr.mxu0 0.0
    %873 = vmatpush1.msra.mxu0 0.0
    %874 = vmatprep.subr.mxu0 0.0
    %875 = vmatpush1.msra.mxu0 0.0
    %876 = vmatprep.subr.mxu0 0.0
    %877 = vmatpush1.msra.mxu0 0.0
    %878 = vmatprep.subr.mxu0 0.0
    %879 = vmatpush1.msra.mxu0 0.0
    %880 = vmatprep.subr.mxu0 0.0
    %881 = vmatpush1.msra.mxu0 0.0
    %882 = vmatprep.subr.mxu0 0.0
    %883 = vmatpush1.msra.mxu0 0.0
    %884 = vmatprep.subr.mxu0 0.0
    %885 = vmatpush1.msra.mxu0 0.0
    %886 = vmatprep.subr.mxu0 0.0
    %887 = vmatpush1.msra.mxu0 0.0
    %888 = vmatprep.subr.mxu0 0.0
    %889 = vmatpush1.msra.mxu0 0.0
    %890 = vmatprep.mubr.f32.mxu0 0.0
    %v891 = vand.u32 %v571, 4294901760
    %v892 = vsub.f32 %v571, %v891
    %v893 = vand.u32 %v892, 4294901760
    %894 = vmatmul.mubr.f32.gmra.mrb[0].mxu0 %v893
    %v895 = vpop.f32.mrb[0].mxu0
    %v896 = vadd.f32 %v815, %v895
    %v897 = vpop.f32.mrb[0].mxu0
    %898 = vmatprep.mubr.f32.mxu0 0.0
    %v899 = vand.u32 %v574, 4294901760
    %v900 = vsub.f32 %v574, %v899
    %v901 = vand.u32 %v900, 4294901760
    %902 = vmatmul.mubr.f32.gmra.mrb[0].mxu0 %v901
    %v903 = vpop.f32.mrb[0].mxu0
    %v904 = vadd.f32 %v822, %v903
    %v905 = vpop.f32.mrb[0].mxu0
    %906 = vdwg.mxu0
    %907 = vmatprep.subr.mxu0 0.0
    %v908 = vand.u32 %v53, 4294901760
    %v909 = vsub.f32 %v53, %v908
    %v910 = vand.u32 %v909, 4294901760
    %911 = vmatpush1.msra.mxu0 %v910
    %912 = vmatprep.subr.mxu0 0.0
    %913 = vmatpush1.msra.mxu0 0.0
    %914 = vmatprep.subr.mxu0 0.0
    %915 = vmatpush1.msra.mxu0 0.0
    %916 = vmatprep.subr.mxu0 0.0
    %917 = vmatpush1.msra.mxu0 0.0
    %918 = vmatprep.subr.mxu0 0.0
    %919 = vmatpush1.msra.mxu0 0.0
    %920 = vmatprep.subr.mxu0 0.0
    %921 = vmatpush1.msra.mxu0 0.0
    %922 = vmatprep.subr.mxu0 0.0
    %923 = vmatpush1.msra.mxu0 0.0
    %924 = vmatprep.subr.mxu0 0.0
    %925 = vmatpush1.msra.mxu0 0.0
    %926 = vmatprep.subr.mxu0 0.0
    %927 = vmatpush1.msra.mxu0 0.0
    %928 = vmatprep.subr.mxu0 0.0
    %929 = vmatpush1.msra.mxu0 0.0
    %930 = vmatprep.subr.mxu0 0.0
    %931 = vmatpush1.msra.mxu0 0.0
    %932 = vmatprep.subr.mxu0 0.0
    %933 = vmatpush1.msra.mxu0 0.0
    %934 = vmatprep.subr.mxu0 0.0
    %935 = vmatpush1.msra.mxu0 0.0
    %936 = vmatprep.subr.mxu0 0.0
    %937 = vmatpush1.msra.mxu0 0.0
    %938 = vmatprep.subr.mxu0 0.0
    %939 = vmatpush1.msra.mxu0 0.0
    %940 = vmatprep.subr.mxu0 0.0
    %941 = vmatpush1.msra.mxu0 0.0
    %942 = vmatprep.subr.mxu0 0.0
    %943 = vmatpush1.msra.mxu0 0.0
    %944 = vmatprep.subr.mxu0 0.0
    %945 = vmatpush1.msra.mxu0 0.0
    %946 = vmatprep.subr.mxu0 0.0
    %947 = vmatpush1.msra.mxu0 0.0
    %948 = vmatprep.subr.mxu0 0.0
    %949 = vmatpush1.msra.mxu0 0.0
    %950 = vmatprep.subr.mxu0 0.0
    %951 = vmatpush1.msra.mxu0 0.0
    %952 = vmatprep.subr.mxu0 0.0
    %953 = vmatpush1.msra.mxu0 0.0
    %954 = vmatprep.subr.mxu0 0.0
    %955 = vmatpush1.msra.mxu0 0.0
    %956 = vmatprep.subr.mxu0 0.0
    %957 = vmatpush1.msra.mxu0 0.0
    %958 = vmatprep.subr.mxu0 0.0
    %959 = vmatpush1.msra.mxu0 0.0
    %960 = vmatprep.subr.mxu0 0.0
    %961 = vmatpush1.msra.mxu0 0.0
    %962 = vmatprep.subr.mxu0 0.0
    %963 = vmatpush1.msra.mxu0 0.0
    %964 = vmatprep.subr.mxu0 0.0
    %965 = vmatpush1.msra.mxu0 0.0
    %966 = vmatprep.subr.mxu0 0.0
    %967 = vmatpush1.msra.mxu0 0.0
    %968 = vmatprep.subr.mxu0 0.0
    %969 = vmatpush1.msra.mxu0 0.0
    %970 = vmatprep.subr.mxu0 0.0
    %971 = vmatpush1.msra.mxu0 0.0
    %972 = vmatprep.subr.mxu0 0.0
    %973 = vmatpush1.msra.mxu0 0.0
    %974 = vmatprep.mubr.f32.mxu0 0.0
    %v975 = vand.u32 %v571, 4294901760
    %976 = vmatmul.mubr.f32.gmra.mrb[0].mxu0 %v975
    %v977 = vpop.f32.mrb[0].mxu0
    %v978 = vadd.f32 %v896, %v977
    %v979 = vpop.f32.mrb[0].mxu0
    %980 = vmatprep.mubr.f32.mxu0 0.0
    %v981 = vand.u32 %v574, 4294901760
    %982 = vmatmul.mubr.f32.gmra.mrb[0].mxu0 %v981
    %v983 = vpop.f32.mrb[0].mxu0
    %v984 = vadd.f32 %v904, %v983
    %v985 = vpop.f32.mrb[0].mxu0
    %986 = vdwg.mxu0
    %987 = vmatprep.subr.mxu0 0.0
    %v988 = vand.u32 %v53, 4294901760
    %989 = vmatpush1.msra.mxu0 %v988
    %990 = vmatprep.subr.mxu0 0.0
    %991 = vmatpush1.msra.mxu0 0.0
    %992 = vmatprep.subr.mxu0 0.0
    %993 = vmatpush1.msra.mxu0 0.0
    %994 = vmatprep.subr.mxu0 0.0
    %995 = vmatpush1.msra.mxu0 0.0
    %996 = vmatprep.subr.mxu0 0.0
    %997 = vmatpush1.msra.mxu0 0.0
    %998 = vmatprep.subr.mxu0 0.0
    %999 = vmatpush1.msra.mxu0 0.0
    %1000 = vmatprep.subr.mxu0 0.0
    %1001 = vmatpush1.msra.mxu0 0.0
    %1002 = vmatprep.subr.mxu0 0.0
    %1003 = vmatpush1.msra.mxu0 0.0
    %1004 = vmatprep.subr.mxu0 0.0
    %1005 = vmatpush1.msra.mxu0 0.0
    %1006 = vmatprep.subr.mxu0 0.0
    %1007 = vmatpush1.msra.mxu0 0.0
    %1008 = vmatprep.subr.mxu0 0.0
    %1009 = vmatpush1.msra.mxu0 0.0
    %1010 = vmatprep.subr.mxu0 0.0
    %1011 = vmatpush1.msra.mxu0 0.0
    %1012 = vmatprep.subr.mxu0 0.0
    %1013 = vmatpush1.msra.mxu0 0.0
    %1014 = vmatprep.subr.mxu0 0.0
    %1015 = vmatpush1.msra.mxu0 0.0
    %1016 = vmatprep.subr.mxu0 0.0
    %1017 = vmatpush1.msra.mxu0 0.0
    %1018 = vmatprep.subr.mxu0 0.0
    %1019 = vmatpush1.msra.mxu0 0.0
    %1020 = vmatprep.subr.mxu0 0.0
    %1021 = vmatpush1.msra.mxu0 0.0
    %1022 = vmatprep.subr.mxu0 0.0
    %1023 = vmatpush1.msra.mxu0 0.0
    %1024 = vmatprep.subr.mxu0 0.0
    %1025 = vmatpush1.msra.mxu0 0.0
    %1026 = vmatprep.subr.mxu0 0.0
    %1027 = vmatpush1.msra.mxu0 0.0
    %1028 = vmatprep.subr.mxu0 0.0
    %1029 = vmatpush1.msra.mxu0 0.0
    %1030 = vmatprep.subr.mxu0 0.0
    %1031 = vmatpush1.msra.mxu0 0.0
    %1032 = vmatprep.subr.mxu0 0.0
    %1033 = vmatpush1.msra.mxu0 0.0
    %1034 = vmatprep.subr.mxu0 0.0
    %1035 = vmatpush1.msra.mxu0 0.0
    %1036 = vmatprep.subr.mxu0 0.0
    %1037 = vmatpush1.msra.mxu0 0.0
    %1038 = vmatprep.subr.mxu0 0.0
    %1039 = vmatpush1.msra.mxu0 0.0
    %1040 = vmatprep.subr.mxu0 0.0
    %1041 = vmatpush1.msra.mxu0 0.0
    %1042 = vmatprep.subr.mxu0 0.0
    %1043 = vmatpush1.msra.mxu0 0.0
    %1044 = vmatprep.subr.mxu0 0.0
    %1045 = vmatpush1.msra.mxu0 0.0
    %1046 = vmatprep.subr.mxu0 0.0
    %1047 = vmatpush1.msra.mxu0 0.0
    %1048 = vmatprep.subr.mxu0 0.0
    %1049 = vmatpush1.msra.mxu0 0.0
    %1050 = vmatprep.subr.mxu0 0.0
    %1051 = vmatpush1.msra.mxu0 0.0
    %1052 = vmatprep.mubr.f32.mxu0 0.0
    %v1053 = vand.u32 %v571, 4294901760
    %1054 = vmatmul.mubr.f32.gmra.mrb[0].mxu0 %v1053
    %v1055 = vpop.f32.mrb[0].mxu0
    %v1056 = vadd.f32 %v978, %v1055
    %v1057 = vpop.f32.mrb[0].mxu0
    %1058 = vmatprep.mubr.f32.mxu0 0.0
    %v1059 = vand.u32 %v574, 4294901760
    %1060 = vmatmul.mubr.f32.gmra.mrb[0].mxu0 %v1059
    %v1061 = vpop.f32.mrb[0].mxu0
    %v1062 = vadd.f32 %v984, %v1061
    %v1063 = vpop.f32.mrb[0].mxu0
    %1064 = vdwg.mxu0
    %v1066 = vsel %vm569, %v45, 0
    %v1069 = vsel %vm569, %v46, 0
    %1071 = vmatprep.subr.mxu0 0.0
    %v1072 = vand.u32 %v51, 4294901760
    %1073 = vmatpush1.msra.mxu0 %v1072
    %1074 = vmatprep.subr.mxu0 0.0
    %1075 = vmatpush1.msra.mxu0 0.0
    %1076 = vmatprep.subr.mxu0 0.0
    %1077 = vmatpush1.msra.mxu0 0.0
    %1078 = vmatprep.subr.mxu0 0.0
    %1079 = vmatpush1.msra.mxu0 0.0
    %1080 = vmatprep.subr.mxu0 0.0
    %1081 = vmatpush1.msra.mxu0 0.0
    %1082 = vmatprep.subr.mxu0 0.0
    %1083 = vmatpush1.msra.mxu0 0.0
    %1084 = vmatprep.subr.mxu0 0.0
    %1085 = vmatpush1.msra.mxu0 0.0
    %1086 = vmatprep.subr.mxu0 0.0
    %1087 = vmatpush1.msra.mxu0 0.0
    %1088 = vmatprep.subr.mxu0 0.0
    %1089 = vmatpush1.msra.mxu0 0.0
    %1090 = vmatprep.subr.mxu0 0.0
    %1091 = vmatpush1.msra.mxu0 0.0
    %1092 = vmatprep.subr.mxu0 0.0
    %1093 = vmatpush1.msra.mxu0 0.0
    %1094 = vmatprep.subr.mxu0 0.0
    %1095 = vmatpush1.msra.mxu0 0.0
    %1096 = vmatprep.subr.mxu0 0.0
    %1097 = vmatpush1.msra.mxu0 0.0
    %1098 = vmatprep.subr.mxu0 0.0
    %1099 = vmatpush1.msra.mxu0 0.0
    %1100 = vmatprep.subr.mxu0 0.0
    %1101 = vmatpush1.msra.mxu0 0.0
    %1102 = vmatprep.subr.mxu0 0.0
    %1103 = vmatpush1.msra.mxu0 0.0
    %1104 = vmatprep.subr.mxu0 0.0
    %1105 = vmatpush1.msra.mxu0 0.0
    %1106 = vmatprep.subr.mxu0 0.0
    %1107 = vmatpush1.msra.mxu0 0.0
    %1108 = vmatprep.subr.mxu0 0.0
    %1109 = vmatpush1.msra.mxu0 0.0
    %1110 = vmatprep.subr.mxu0 0.0
    %1111 = vmatpush1.msra.mxu0 0.0
    %1112 = vmatprep.subr.mxu0 0.0
    %1113 = vmatpush1.msra.mxu0 0.0
    %1114 = vmatprep.subr.mxu0 0.0
    %1115 = vmatpush1.msra.mxu0 0.0
    %1116 = vmatprep.subr.mxu0 0.0
    %1117 = vmatpush1.msra.mxu0 0.0
    %1118 = vmatprep.subr.mxu0 0.0
    %1119 = vmatpush1.msra.mxu0 0.0
    %1120 = vmatprep.subr.mxu0 0.0
    %1121 = vmatpush1.msra.mxu0 0.0
    %1122 = vmatprep.subr.mxu0 0.0
    %1123 = vmatpush1.msra.mxu0 0.0
    %1124 = vmatprep.subr.mxu0 0.0
    %1125 = vmatpush1.msra.mxu0 0.0
    %1126 = vmatprep.subr.mxu0 0.0
    %1127 = vmatpush1.msra.mxu0 0.0
    %1128 = vmatprep.subr.mxu0 0.0
    %1129 = vmatpush1.msra.mxu0 0.0
    %1130 = vmatprep.subr.mxu0 0.0
    %1131 = vmatpush1.msra.mxu0 0.0
    %1132 = vmatprep.subr.mxu0 0.0
    %1133 = vmatpush1.msra.mxu0 0.0
    %1134 = vmatprep.subr.mxu0 0.0
    %1135 = vmatpush1.msra.mxu0 0.0
    %1136 = vmatprep.mubr.f32.mxu0 0.0
    %v1137 = vand.u32 %v1066, 4294901760
    %v1138 = vsub.f32 %v1066, %v1137
    %v1139 = vand.u32 %v1138, 4294901760
    %v1140 = vsub.f32 %v1138, %v1139
    %v1141 = vand.u32 %v1140, 4294901760
    %1142 = vmatmul.mubr.f32.gmra.mrb[0].mxu0 %v1141
    %v1143 = vpop.f32.mrb[0].mxu0
    %v1144 = vadd.f32 %v1056, %v1143
    %v1145 = vpop.f32.mrb[0].mxu0
    %1146 = vmatprep.mubr.f32.mxu0 0.0
    %v1147 = vand.u32 %v1069, 4294901760
    %v1148 = vsub.f32 %v1069, %v1147
    %v1149 = vand.u32 %v1148, 4294901760
    %v1150 = vsub.f32 %v1148, %v1149
    %v1151 = vand.u32 %v1150, 4294901760
    %1152 = vmatmul.mubr.f32.gmra.mrb[0].mxu0 %v1151
    %v1153 = vpop.f32.mrb[0].mxu0
    %v1154 = vadd.f32 %v1062, %v1153
    %v1155 = vpop.f32.mrb[0].mxu0
    %1156 = vdwg.mxu0
    %1157 = vmatprep.subr.mxu0 0.0
    %v1158 = vand.u32 %v51, 4294901760
    %v1159 = vsub.f32 %v51, %v1158
    %v1160 = vand.u32 %v1159, 4294901760
    %v1161 = vsub.f32 %v1159, %v1160
    %v1162 = vand.u32 %v1161, 4294901760
    %1163 = vmatpush1.msra.mxu0 %v1162
    %1164 = vmatprep.subr.mxu0 0.0
    %1165 = vmatpush1.msra.mxu0 0.0
    %1166 = vmatprep.subr.mxu0 0.0
    %1167 = vmatpush1.msra.mxu0 0.0
    %1168 = vmatprep.subr.mxu0 0.0
    %1169 = vmatpush1.msra.mxu0 0.0
    %1170 = vmatprep.subr.mxu0 0.0
    %1171 = vmatpush1.msra.mxu0 0.0
    %1172 = vmatprep.subr.mxu0 0.0
    %1173 = vmatpush1.msra.mxu0 0.0
    %1174 = vmatprep.subr.mxu0 0.0
    %1175 = vmatpush1.msra.mxu0 0.0
    %1176 = vmatprep.subr.mxu0 0.0
    %1177 = vmatpush1.msra.mxu0 0.0
    %1178 = vmatprep.subr.mxu0 0.0
    %1179 = vmatpush1.msra.mxu0 0.0
    %1180 = vmatprep.subr.mxu0 0.0
    %1181 = vmatpush1.msra.mxu0 0.0
    %1182 = vmatprep.subr.mxu0 0.0
    %1183 = vmatpush1.msra.mxu0 0.0
    %1184 = vmatprep.subr.mxu0 0.0
    %1185 = vmatpush1.msra.mxu0 0.0
    %1186 = vmatprep.subr.mxu0 0.0
    %1187 = vmatpush1.msra.mxu0 0.0
    %1188 = vmatprep.subr.mxu0 0.0
    %1189 = vmatpush1.msra.mxu0 0.0
    %1190 = vmatprep.subr.mxu0 0.0
    %1191 = vmatpush1.msra.mxu0 0.0
    %1192 = vmatprep.subr.mxu0 0.0
    %1193 = vmatpush1.msra.mxu0 0.0
    %1194 = vmatprep.subr.mxu0 0.0
    %1195 = vmatpush1.msra.mxu0 0.0
    %1196 = vmatprep.subr.mxu0 0.0
    %1197 = vmatpush1.msra.mxu0 0.0
    %1198 = vmatprep.subr.mxu0 0.0
    %1199 = vmatpush1.msra.mxu0 0.0
    %1200 = vmatprep.subr.mxu0 0.0
    %1201 = vmatpush1.msra.mxu0 0.0
    %1202 = vmatprep.subr.mxu0 0.0
    %1203 = vmatpush1.msra.mxu0 0.0
    %1204 = vmatprep.subr.mxu0 0.0
    %1205 = vmatpush1.msra.mxu0 0.0
    %1206 = vmatprep.subr.mxu0 0.0
    %1207 = vmatpush1.msra.mxu0 0.0
    %1208 = vmatprep.subr.mxu0 0.0
    %1209 = vmatpush1.msra.mxu0 0.0
    %1210 = vmatprep.subr.mxu0 0.0
    %1211 = vmatpush1.msra.mxu0 0.0
    %1212 = vmatprep.subr.mxu0 0.0
    %1213 = vmatpush1.msra.mxu0 0.0
    %1214 = vmatprep.subr.mxu0 0.0
    %1215 = vmatpush1.msra.mxu0 0.0
    %1216 = vmatprep.subr.mxu0 0.0
    %1217 = vmatpush1.msra.mxu0 0.0
    %1218 = vmatprep.subr.mxu0 0.0
    %1219 = vmatpush1.msra.mxu0 0.0
    %1220 = vmatprep.subr.mxu0 0.0
    %1221 = vmatpush1.msra.mxu0 0.0
    %1222 = vmatprep.subr.mxu0 0.0
    %1223 = vmatpush1.msra.mxu0 0.0
    %1224 = vmatprep.subr.mxu0 0.0
    %1225 = vmatpush1.msra.mxu0 0.0
    %1226 = vmatprep.mubr.f32.mxu0 0.0
    %v1227 = vand.u32 %v1066, 4294901760
    %1228 = vmatmul.mubr.f32.gmra.mrb[0].mxu0 %v1227
    %v1229 = vpop.f32.mrb[0].mxu0
    %v1230 = vadd.f32 %v1144, %v1229
    %v1231 = vpop.f32.mrb[0].mxu0
    %1232 = vmatprep.mubr.f32.mxu0 0.0
    %v1233 = vand.u32 %v1069, 4294901760
    %1234 = vmatmul.mubr.f32.gmra.mrb[0].mxu0 %v1233
    %v1235 = vpop.f32.mrb[0].mxu0
    %v1236 = vadd.f32 %v1154, %v1235
    %v1237 = vpop.f32.mrb[0].mxu0
    %1238 = vdwg.mxu0
    %1239 = vmatprep.subr.mxu0 0.0
    %v1240 = vand.u32 %v51, 4294901760
    %v1241 = vsub.f32 %v51, %v1240
    %1242 = vmatpush1.msra.mxu0 %v1241
    %1243 = vmatprep.subr.mxu0 0.0
    %1244 = vmatpush1.msra.mxu0 0.0
    %1245 = vmatprep.subr.mxu0 0.0
    %1246 = vmatpush1.msra.mxu0 0.0
    %1247 = vmatprep.subr.mxu0 0.0
    %1248 = vmatpush1.msra.mxu0 0.0
    %1249 = vmatprep.subr.mxu0 0.0
    %1250 = vmatpush1.msra.mxu0 0.0
    %1251 = vmatprep.subr.mxu0 0.0
    %1252 = vmatpush1.msra.mxu0 0.0
    %1253 = vmatprep.subr.mxu0 0.0
    %1254 = vmatpush1.msra.mxu0 0.0
    %1255 = vmatprep.subr.mxu0 0.0
    %1256 = vmatpush1.msra.mxu0 0.0
    %1257 = vmatprep.subr.mxu0 0.0
    %1258 = vmatpush1.msra.mxu0 0.0
    %1259 = vmatprep.subr.mxu0 0.0
    %1260 = vmatpush1.msra.mxu0 0.0
    %1261 = vmatprep.subr.mxu0 0.0
    %1262 = vmatpush1.msra.mxu0 0.0
    %1263 = vmatprep.subr.mxu0 0.0
    %1264 = vmatpush1.msra.mxu0 0.0
    %1265 = vmatprep.subr.mxu0 0.0
    %1266 = vmatpush1.msra.mxu0 0.0
    %1267 = vmatprep.subr.mxu0 0.0
    %1268 = vmatpush1.msra.mxu0 0.0
    %1269 = vmatprep.subr.mxu0 0.0
    %1270 = vmatpush1.msra.mxu0 0.0
    %1271 = vmatprep.subr.mxu0 0.0
    %1272 = vmatpush1.msra.mxu0 0.0
    %1273 = vmatprep.subr.mxu0 0.0
    %1274 = vmatpush1.msra.mxu0 0.0
    %1275 = vmatprep.subr.mxu0 0.0
    %1276 = vmatpush1.msra.mxu0 0.0
    %1277 = vmatprep.subr.mxu0 0.0
    %1278 = vmatpush1.msra.mxu0 0.0
    %1279 = vmatprep.subr.mxu0 0.0
    %1280 = vmatpush1.msra.mxu0 0.0
    %1281 = vmatprep.subr.mxu0 0.0
    %1282 = vmatpush1.msra.mxu0 0.0
    %1283 = vmatprep.subr.mxu0 0.0
    %1284 = vmatpush1.msra.mxu0 0.0
    %1285 = vmatprep.subr.mxu0 0.0
    %1286 = vmatpush1.msra.mxu0 0.0
    %1287 = vmatprep.subr.mxu0 0.0
    %1288 = vmatpush1.msra.mxu0 0.0
    %1289 = vmatprep.subr.mxu0 0.0
    %1290 = vmatpush1.msra.mxu0 0.0
    %1291 = vmatprep.subr.mxu0 0.0
    %1292 = vmatpush1.msra.mxu0 0.0
    %1293 = vmatprep.subr.mxu0 0.0
    %1294 = vmatpush1.msra.mxu0 0.0
    %1295 = vmatprep.subr.mxu0 0.0
    %1296 = vmatpush1.msra.mxu0 0.0
    %1297 = vmatprep.subr.mxu0 0.0
    %1298 = vmatpush1.msra.mxu0 0.0
    %1299 = vmatprep.subr.mxu0 0.0
    %1300 = vmatpush1.msra.mxu0 0.0
    %1301 = vmatprep.subr.mxu0 0.0
    %1302 = vmatpush1.msra.mxu0 0.0
    %1303 = vmatprep.subr.mxu0 0.0
    %1304 = vmatpush1.msra.mxu0 0.0
    %1305 = vmatprep.mubr.f32.mxu0 0.0
    %v1306 = vand.u32 %v1066, 4294901760
    %v1307 = vsub.f32 %v1066, %v1306
    %1308 = vmatmul.mubr.f32.gmra.mrb[0].mxu0 %v1307
    %v1309 = vpop.f32.mrb[0].mxu0
    %v1310 = vadd.f32 %v1230, %v1309
    %v1311 = vpop.f32.mrb[0].mxu0
    %1312 = vmatprep.mubr.f32.mxu0 0.0
    %v1313 = vand.u32 %v1069, 4294901760
    %v1314 = vsub.f32 %v1069, %v1313
    %1315 = vmatmul.mubr.f32.gmra.mrb[0].mxu0 %v1314
    %v1316 = vpop.f32.mrb[0].mxu0
    %v1317 = vadd.f32 %v1236, %v1316
    %v1318 = vpop.f32.mrb[0].mxu0
    %1319 = vdwg.mxu0
    %1320 = vmatprep.subr.mxu0 0.0
    %v1321 = vand.u32 %v51, 4294901760
    %1322 = vmatpush1.msra.mxu0 %v1321
    %1323 = vmatprep.subr.mxu0 0.0
    %1324 = vmatpush1.msra.mxu0 0.0
    %1325 = vmatprep.subr.mxu0 0.0
    %1326 = vmatpush1.msra.mxu0 0.0
    %1327 = vmatprep.subr.mxu0 0.0
    %1328 = vmatpush1.msra.mxu0 0.0
    %1329 = vmatprep.subr.mxu0 0.0
    %1330 = vmatpush1.msra.mxu0 0.0
    %1331 = vmatprep.subr.mxu0 0.0
    %1332 = vmatpush1.msra.mxu0 0.0
    %1333 = vmatprep.subr.mxu0 0.0
    %1334 = vmatpush1.msra.mxu0 0.0
    %1335 = vmatprep.subr.mxu0 0.0
    %1336 = vmatpush1.msra.mxu0 0.0
    %1337 = vmatprep.subr.mxu0 0.0
    %1338 = vmatpush1.msra.mxu0 0.0
    %1339 = vmatprep.subr.mxu0 0.0
    %1340 = vmatpush1.msra.mxu0 0.0
    %1341 = vmatprep.subr.mxu0 0.0
    %1342 = vmatpush1.msra.mxu0 0.0
    %1343 = vmatprep.subr.mxu0 0.0
    %1344 = vmatpush1.msra.mxu0 0.0
    %1345 = vmatprep.subr.mxu0 0.0
    %1346 = vmatpush1.msra.mxu0 0.0
    %1347 = vmatprep.subr.mxu0 0.0
    %1348 = vmatpush1.msra.mxu0 0.0
    %1349 = vmatprep.subr.mxu0 0.0
    %1350 = vmatpush1.msra.mxu0 0.0
    %1351 = vmatprep.subr.mxu0 0.0
    %1352 = vmatpush1.msra.mxu0 0.0
    %1353 = vmatprep.subr.mxu0 0.0
    %1354 = vmatpush1.msra.mxu0 0.0
    %1355 = vmatprep.subr.mxu0 0.0
    %1356 = vmatpush1.msra.mxu0 0.0
    %1357 = vmatprep.subr.mxu0 0.0
    %1358 = vmatpush1.msra.mxu0 0.0
    %1359 = vmatprep.subr.mxu0 0.0
    %1360 = vmatpush1.msra.mxu0 0.0
    %1361 = vmatprep.subr.mxu0 0.0
    %1362 = vmatpush1.msra.mxu0 0.0
    %1363 = vmatprep.subr.mxu0 0.0
    %1364 = vmatpush1.msra.mxu0 0.0
    %1365 = vmatprep.subr.mxu0 0.0
    %1366 = vmatpush1.msra.mxu0 0.0
    %1367 = vmatprep.subr.mxu0 0.0
    %1368 = vmatpush1.msra.mxu0 0.0
    %1369 = vmatprep.subr.mxu0 0.0
    %1370 = vmatpush1.msra.mxu0 0.0
    %1371 = vmatprep.subr.mxu0 0.0
    %1372 = vmatpush1.msra.mxu0 0.0
    %1373 = vmatprep.subr.mxu0 0.0
    %1374 = vmatpush1.msra.mxu0 0.0
    %1375 = vmatprep.subr.mxu0 0.0
    %1376 = vmatpush1.msra.mxu0 0.0
    %1377 = vmatprep.subr.mxu0 0.0
    %1378 = vmatpush1.msra.mxu0 0.0
    %1379 = vmatprep.subr.mxu0 0.0
    %1380 = vmatpush1.msra.mxu0 0.0
    %1381 = vmatprep.subr.mxu0 0.0
    %1382 = vmatpush1.msra.mxu0 0.0
    %1383 = vmatprep.subr.mxu0 0.0
    %1384 = vmatpush1.msra.mxu0 0.0
    %1385 = vmatprep.mubr.f32.mxu0 0.0
    %v1386 = vand.u32 %v1066, 4294901760
    %v1387 = vsub.f32 %v1066, %v1386
    %v1388 = vand.u32 %v1387, 4294901760
    %1389 = vmatmul.mubr.f32.gmra.mrb[0].mxu0 %v1388
    %v1390 = vpop.f32.mrb[0].mxu0
    %v1391 = vadd.f32 %v1310, %v1390
    %v1392 = vpop.f32.mrb[0].mxu0
    %1393 = vmatprep.mubr.f32.mxu0 0.0
    %v1394 = vand.u32 %v1069, 4294901760
    %v1395 = vsub.f32 %v1069, %v1394
    %v1396 = vand.u32 %v1395, 4294901760
    %1397 = vmatmul.mubr.f32.gmra.mrb[0].mxu0 %v1396
    %v1398 = vpop.f32.mrb[0].mxu0
    %v1399 = vadd.f32 %v1317, %v1398
    %v1400 = vpop.f32.mrb[0].mxu0
    %1401 = vdwg.mxu0
    %1402 = vmatprep.subr.mxu0 0.0
    %v1403 = vand.u32 %v51, 4294901760
    %v1404 = vsub.f32 %v51, %v1403
    %v1405 = vand.u32 %v1404, 4294901760
    %1406 = vmatpush1.msra.mxu0 %v1405
    %1407 = vmatprep.subr.mxu0 0.0
    %1408 = vmatpush1.msra.mxu0 0.0
    %1409 = vmatprep.subr.mxu0 0.0
    %1410 = vmatpush1.msra.mxu0 0.0
    %1411 = vmatprep.subr.mxu0 0.0
    %1412 = vmatpush1.msra.mxu0 0.0
    %1413 = vmatprep.subr.mxu0 0.0
    %1414 = vmatpush1.msra.mxu0 0.0
    %1415 = vmatprep.subr.mxu0 0.0
    %1416 = vmatpush1.msra.mxu0 0.0
    %1417 = vmatprep.subr.mxu0 0.0
    %1418 = vmatpush1.msra.mxu0 0.0
    %1419 = vmatprep.subr.mxu0 0.0
    %1420 = vmatpush1.msra.mxu0 0.0
    %1421 = vmatprep.subr.mxu0 0.0
    %1422 = vmatpush1.msra.mxu0 0.0
    %1423 = vmatprep.subr.mxu0 0.0
    %1424 = vmatpush1.msra.mxu0 0.0
    %1425 = vmatprep.subr.mxu0 0.0
    %1426 = vmatpush1.msra.mxu0 0.0
    %1427 = vmatprep.subr.mxu0 0.0
    %1428 = vmatpush1.msra.mxu0 0.0
    %1429 = vmatprep.subr.mxu0 0.0
    %1430 = vmatpush1.msra.mxu0 0.0
    %1431 = vmatprep.subr.mxu0 0.0
    %1432 = vmatpush1.msra.mxu0 0.0
    %1433 = vmatprep.subr.mxu0 0.0
    %1434 = vmatpush1.msra.mxu0 0.0
    %1435 = vmatprep.subr.mxu0 0.0
    %1436 = vmatpush1.msra.mxu0 0.0
    %1437 = vmatprep.subr.mxu0 0.0
    %1438 = vmatpush1.msra.mxu0 0.0
    %1439 = vmatprep.subr.mxu0 0.0
    %1440 = vmatpush1.msra.mxu0 0.0
    %1441 = vmatprep.subr.mxu0 0.0
    %1442 = vmatpush1.msra.mxu0 0.0
    %1443 = vmatprep.subr.mxu0 0.0
    %1444 = vmatpush1.msra.mxu0 0.0
    %1445 = vmatprep.subr.mxu0 0.0
    %1446 = vmatpush1.msra.mxu0 0.0
    %1447 = vmatprep.subr.mxu0 0.0
    %1448 = vmatpush1.msra.mxu0 0.0
    %1449 = vmatprep.subr.mxu0 0.0
    %1450 = vmatpush1.msra.mxu0 0.0
    %1451 = vmatprep.subr.mxu0 0.0
    %1452 = vmatpush1.msra.mxu0 0.0
    %1453 = vmatprep.subr.mxu0 0.0
    %1454 = vmatpush1.msra.mxu0 0.0
    %1455 = vmatprep.subr.mxu0 0.0
    %1456 = vmatpush1.msra.mxu0 0.0
    %1457 = vmatprep.subr.mxu0 0.0
    %1458 = vmatpush1.msra.mxu0 0.0
    %1459 = vmatprep.subr.mxu0 0.0
    %1460 = vmatpush1.msra.mxu0 0.0
    %1461 = vmatprep.subr.mxu0 0.0
    %1462 = vmatpush1.msra.mxu0 0.0
    %1463 = vmatprep.subr.mxu0 0.0
    %1464 = vmatpush1.msra.mxu0 0.0
    %1465 = vmatprep.subr.mxu0 0.0
    %1466 = vmatpush1.msra.mxu0 0.0
    %1467 = vmatprep.subr.mxu0 0.0
    %1468 = vmatpush1.msra.mxu0 0.0
    %1469 = vmatprep.mubr.f32.mxu0 0.0
    %v1470 = vand.u32 %v1066, 4294901760
    %1471 = vmatmul.mubr.f32.gmra.mrb[0].mxu0 %v1470
    %v1472 = vpop.f32.mrb[0].mxu0
    %v1473 = vadd.f32 %v1391, %v1472
    %v1474 = vpop.f32.mrb[0].mxu0
    %1475 = vmatprep.mubr.f32.mxu0 0.0
    %v1476 = vand.u32 %v1069, 4294901760
    %1477 = vmatmul.mubr.f32.gmra.mrb[0].mxu0 %v1476
    %v1478 = vpop.f32.mrb[0].mxu0
    %v1479 = vadd.f32 %v1399, %v1478
    %v1480 = vpop.f32.mrb[0].mxu0
    %1481 = vdwg.mxu0
    %1482 = vmatprep.subr.mxu0 0.0
    %v1483 = vand.u32 %v51, 4294901760
    %1484 = vmatpush1.msra.mxu0 %v1483
    %1485 = vmatprep.subr.mxu0 0.0
    %1486 = vmatpush1.msra.mxu0 0.0
    %1487 = vmatprep.subr.mxu0 0.0
    %1488 = vmatpush1.msra.mxu0 0.0
    %1489 = vmatprep.subr.mxu0 0.0
    %1490 = vmatpush1.msra.mxu0 0.0
    %1491 = vmatprep.subr.mxu0 0.0
    %1492 = vmatpush1.msra.mxu0 0.0
    %1493 = vmatprep.subr.mxu0 0.0
    %1494 = vmatpush1.msra.mxu0 0.0
    %1495 = vmatprep.subr.mxu0 0.0
    %1496 = vmatpush1.msra.mxu0 0.0
    %1497 = vmatprep.subr.mxu0 0.0
    %1498 = vmatpush1.msra.mxu0 0.0
    %1499 = vmatprep.subr.mxu0 0.0
    %1500 = vmatpush1.msra.mxu0 0.0
    %1501 = vmatprep.subr.mxu0 0.0
    %1502 = vmatpush1.msra.mxu0 0.0
    %1503 = vmatprep.subr.mxu0 0.0
    %1504 = vmatpush1.msra.mxu0 0.0
    %1505 = vmatprep.subr.mxu0 0.0
    %1506 = vmatpush1.msra.mxu0 0.0
    %1507 = vmatprep.subr.mxu0 0.0
    %1508 = vmatpush1.msra.mxu0 0.0
    %1509 = vmatprep.subr.mxu0 0.0
    %1510 = vmatpush1.msra.mxu0 0.0
    %1511 = vmatprep.subr.mxu0 0.0
    %1512 = vmatpush1.msra.mxu0 0.0
    %1513 = vmatprep.subr.mxu0 0.0
    %1514 = vmatpush1.msra.mxu0 0.0
    %1515 = vmatprep.subr.mxu0 0.0
    %1516 = vmatpush1.msra.mxu0 0.0
    %1517 = vmatprep.subr.mxu0 0.0
    %1518 = vmatpush1.msra.mxu0 0.0
    %1519 = vmatprep.subr.mxu0 0.0
    %1520 = vmatpush1.msra.mxu0 0.0
    %1521 = vmatprep.subr.mxu0 0.0
    %1522 = vmatpush1.msra.mxu0 0.0
    %1523 = vmatprep.subr.mxu0 0.0
    %1524 = vmatpush1.msra.mxu0 0.0
    %1525 = vmatprep.subr.mxu0 0.0
    %1526 = vmatpush1.msra.mxu0 0.0
    %1527 = vmatprep.subr.mxu0 0.0
    %1528 = vmatpush1.msra.mxu0 0.0
    %1529 = vmatprep.subr.mxu0 0.0
    %1530 = vmatpush1.msra.mxu0 0.0
    %1531 = vmatprep.subr.mxu0 0.0
    %1532 = vmatpush1.msra.mxu0 0.0
    %1533 = vmatprep.subr.mxu0 0.0
    %1534 = vmatpush1.msra.mxu0 0.0
    %1535 = vmatprep.subr.mxu0 0.0
    %1536 = vmatpush1.msra.mxu0 0.0
    %1537 = vmatprep.subr.mxu0 0.0
    %1538 = vmatpush1.msra.mxu0 0.0
    %1539 = vmatprep.subr.mxu0 0.0
    %1540 = vmatpush1.msra.mxu0 0.0
    %1541 = vmatprep.subr.mxu0 0.0
    %1542 = vmatpush1.msra.mxu0 0.0
    %1543 = vmatprep.subr.mxu0 0.0
    %1544 = vmatpush1.msra.mxu0 0.0
    %1545 = vmatprep.subr.mxu0 0.0
    %1546 = vmatpush1.msra.mxu0 0.0
    %1547 = vmatprep.mubr.f32.mxu0 0.0
    %v1548 = vand.u32 %v1066, 4294901760
    %1549 = vmatmul.mubr.f32.gmra.mrb[0].mxu0 %v1548
    %v1550 = vpop.f32.mrb[0].mxu0
    %v1551 = vadd.f32 %v1473, %v1550
    %v1552 = vpop.f32.mrb[0].mxu0
    %1553 = vmatprep.mubr.f32.mxu0 0.0
    %v1554 = vand.u32 %v1069, 4294901760
    %1555 = vmatmul.mubr.f32.gmra.mrb[0].mxu0 %v1554
    %v1556 = vpop.f32.mrb[0].mxu0
    %v1557 = vadd.f32 %v1479, %v1556
    %v1558 = vpop.f32.mrb[0].mxu0
    %1559 = vdwg.mxu0
    %1560 = vmatprep.subr.mxu0 0.0
    %v1561 = vand.u32 %v55, 4294901760
    %1562 = vmatpush1.msra.mxu0 %v1561
    %1563 = vmatprep.subr.mxu0 0.0
    %1564 = vmatpush1.msra.mxu0 0.0
    %1565 = vmatprep.subr.mxu0 0.0
    %1566 = vmatpush1.msra.mxu0 0.0
    %1567 = vmatprep.subr.mxu0 0.0
    %1568 = vmatpush1.msra.mxu0 0.0
    %1569 = vmatprep.subr.mxu0 0.0
    %1570 = vmatpush1.msra.mxu0 0.0
    %1571 = vmatprep.subr.mxu0 0.0
    %1572 = vmatpush1.msra.mxu0 0.0
    %1573 = vmatprep.subr.mxu0 0.0
    %1574 = vmatpush1.msra.mxu0 0.0
    %1575 = vmatprep.subr.mxu0 0.0
    %1576 = vmatpush1.msra.mxu0 0.0
    %1577 = vmatprep.subr.mxu0 0.0
    %1578 = vmatpush1.msra.mxu0 0.0
    %1579 = vmatprep.subr.mxu0 0.0
    %1580 = vmatpush1.msra.mxu0 0.0
    %1581 = vmatprep.subr.mxu0 0.0
    %1582 = vmatpush1.msra.mxu0 0.0
    %1583 = vmatprep.subr.mxu0 0.0
    %1584 = vmatpush1.msra.mxu0 0.0
    %1585 = vmatprep.subr.mxu0 0.0
    %1586 = vmatpush1.msra.mxu0 0.0
    %1587 = vmatprep.subr.mxu0 0.0
    %1588 = vmatpush1.msra.mxu0 0.0
    %1589 = vmatprep.subr.mxu0 0.0
    %1590 = vmatpush1.msra.mxu0 0.0
    %1591 = vmatprep.subr.mxu0 0.0
    %1592 = vmatpush1.msra.mxu0 0.0
    %1593 = vmatprep.subr.mxu0 0.0
    %1594 = vmatpush1.msra.mxu0 0.0
    %1595 = vmatprep.subr.mxu0 0.0
    %1596 = vmatpush1.msra.mxu0 0.0
    %1597 = vmatprep.subr.mxu0 0.0
    %1598 = vmatpush1.msra.mxu0 0.0
    %1599 = vmatprep.subr.mxu0 0.0
    %1600 = vmatpush1.msra.mxu0 0.0
    %1601 = vmatprep.subr.mxu0 0.0
    %1602 = vmatpush1.msra.mxu0 0.0
    %1603 = vmatprep.subr.mxu0 0.0
    %1604 = vmatpush1.msra.mxu0 0.0
    %1605 = vmatprep.subr.mxu0 0.0
    %1606 = vmatpush1.msra.mxu0 0.0
    %1607 = vmatprep.subr.mxu0 0.0
    %1608 = vmatpush1.msra.mxu0 0.0
    %1609 = vmatprep.subr.mxu0 0.0
    %1610 = vmatpush1.msra.mxu0 0.0
    %1611 = vmatprep.subr.mxu0 0.0
    %1612 = vmatpush1.msra.mxu0 0.0
    %1613 = vmatprep.subr.mxu0 0.0
    %1614 = vmatpush1.msra.mxu0 0.0
    %1615 = vmatprep.subr.mxu0 0.0
    %1616 = vmatpush1.msra.mxu0 0.0
    %1617 = vmatprep.subr.mxu0 0.0
    %1618 = vmatpush1.msra.mxu0 0.0
    %1619 = vmatprep.subr.mxu0 0.0
    %1620 = vmatpush1.msra.mxu0 0.0
    %1621 = vmatprep.subr.mxu0 0.0
    %1622 = vmatpush1.msra.mxu0 0.0
    %1623 = vmatprep.subr.mxu0 0.0
    %1624 = vmatpush1.msra.mxu0 0.0
    %1625 = vmatprep.mubr.f32.mxu0 0.0
    %v1626 = vand.u32 %v1066, 4294901760
    %v1627 = vsub.f32 %v1066, %v1626
    %v1628 = vand.u32 %v1627, 4294901760
    %v1629 = vsub.f32 %v1627, %v1628
    %v1630 = vand.u32 %v1629, 4294901760
    %1631 = vmatmul.mubr.f32.gmra.mrb[0].mxu0 %v1630
    %v1632 = vpop.f32.mrb[0].mxu0
    %v1633 = vadd.f32 0.0, %v1632
    %v1634 = vpop.f32.mrb[0].mxu0
    %1635 = vmatprep.mubr.f32.mxu0 0.0
    %v1636 = vand.u32 %v1069, 4294901760
    %v1637 = vsub.f32 %v1069, %v1636
    %v1638 = vand.u32 %v1637, 4294901760
    %v1639 = vsub.f32 %v1637, %v1638
    %v1640 = vand.u32 %v1639, 4294901760
    %1641 = vmatmul.mubr.f32.gmra.mrb[0].mxu0 %v1640
    %v1642 = vpop.f32.mrb[0].mxu0
    %v1643 = vadd.f32 0.0, %v1642
    %v1644 = vpop.f32.mrb[0].mxu0
    %1645 = vdwg.mxu0
    %1646 = vmatprep.subr.mxu0 0.0
    %v1647 = vand.u32 %v55, 4294901760
    %v1648 = vsub.f32 %v55, %v1647
    %v1649 = vand.u32 %v1648, 4294901760
    %v1650 = vsub.f32 %v1648, %v1649
    %v1651 = vand.u32 %v1650, 4294901760
    %1652 = vmatpush1.msra.mxu0 %v1651
    %1653 = vmatprep.subr.mxu0 0.0
    %1654 = vmatpush1.msra.mxu0 0.0
    %1655 = vmatprep.subr.mxu0 0.0
    %1656 = vmatpush1.msra.mxu0 0.0
    %1657 = vmatprep.subr.mxu0 0.0
    %1658 = vmatpush1.msra.mxu0 0.0
    %1659 = vmatprep.subr.mxu0 0.0
    %1660 = vmatpush1.msra.mxu0 0.0
    %1661 = vmatprep.subr.mxu0 0.0
    %1662 = vmatpush1.msra.mxu0 0.0
    %1663 = vmatprep.subr.mxu0 0.0
    %1664 = vmatpush1.msra.mxu0 0.0
    %1665 = vmatprep.subr.mxu0 0.0
    %1666 = vmatpush1.msra.mxu0 0.0
    %1667 = vmatprep.subr.mxu0 0.0
    %1668 = vmatpush1.msra.mxu0 0.0
    %1669 = vmatprep.subr.mxu0 0.0
    %1670 = vmatpush1.msra.mxu0 0.0
    %1671 = vmatprep.subr.mxu0 0.0
    %1672 = vmatpush1.msra.mxu0 0.0
    %1673 = vmatprep.subr.mxu0 0.0
    %1674 = vmatpush1.msra.mxu0 0.0
    %1675 = vmatprep.subr.mxu0 0.0
    %1676 = vmatpush1.msra.mxu0 0.0
    %1677 = vmatprep.subr.mxu0 0.0
    %1678 = vmatpush1.msra.mxu0 0.0
    %1679 = vmatprep.subr.mxu0 0.0
    %1680 = vmatpush1.msra.mxu0 0.0
    %1681 = vmatprep.subr.mxu0 0.0
    %1682 = vmatpush1.msra.mxu0 0.0
    %1683 = vmatprep.subr.mxu0 0.0
    %1684 = vmatpush1.msra.mxu0 0.0
    %1685 = vmatprep.subr.mxu0 0.0
    %1686 = vmatpush1.msra.mxu0 0.0
    %1687 = vmatprep.subr.mxu0 0.0
    %1688 = vmatpush1.msra.mxu0 0.0
    %1689 = vmatprep.subr.mxu0 0.0
    %1690 = vmatpush1.msra.mxu0 0.0
    %1691 = vmatprep.subr.mxu0 0.0
    %1692 = vmatpush1.msra.mxu0 0.0
    %1693 = vmatprep.subr.mxu0 0.0
    %1694 = vmatpush1.msra.mxu0 0.0
    %1695 = vmatprep.subr.mxu0 0.0
    %1696 = vmatpush1.msra.mxu0 0.0
    %1697 = vmatprep.subr.mxu0 0.0
    %1698 = vmatpush1.msra.mxu0 0.0
    %1699 = vmatprep.subr.mxu0 0.0
    %1700 = vmatpush1.msra.mxu0 0.0
    %1701 = vmatprep.subr.mxu0 0.0
    %1702 = vmatpush1.msra.mxu0 0.0
    %1703 = vmatprep.subr.mxu0 0.0
    %1704 = vmatpush1.msra.mxu0 0.0
    %1705 = vmatprep.subr.mxu0 0.0
    %1706 = vmatpush1.msra.mxu0 0.0
    %1707 = vmatprep.subr.mxu0 0.0
    %1708 = vmatpush1.msra.mxu0 0.0
    %1709 = vmatprep.subr.mxu0 0.0
    %1710 = vmatpush1.msra.mxu0 0.0
    %1711 = vmatprep.subr.mxu0 0.0
    %1712 = vmatpush1.msra.mxu0 0.0
    %1713 = vmatprep.subr.mxu0 0.0
    %1714 = vmatpush1.msra.mxu0 0.0
    %1715 = vmatprep.mubr.f32.mxu0 0.0
    %v1716 = vand.u32 %v1066, 4294901760
    %1717 = vmatmul.mubr.f32.gmra.mrb[0].mxu0 %v1716
    %v1718 = vpop.f32.mrb[0].mxu0
    %v1719 = vadd.f32 %v1633, %v1718
    %v1720 = vpop.f32.mrb[0].mxu0
    %1721 = vmatprep.mubr.f32.mxu0 0.0
    %v1722 = vand.u32 %v1069, 4294901760
    %1723 = vmatmul.mubr.f32.gmra.mrb[0].mxu0 %v1722
    %v1724 = vpop.f32.mrb[0].mxu0
    %v1725 = vadd.f32 %v1643, %v1724
    %v1726 = vpop.f32.mrb[0].mxu0
    %1727 = vdwg.mxu0
    %1728 = vmatprep.subr.mxu0 0.0
    %v1729 = vand.u32 %v55, 4294901760
    %v1730 = vsub.f32 %v55, %v1729
    %1731 = vmatpush1.msra.mxu0 %v1730
    %1732 = vmatprep.subr.mxu0 0.0
    %1733 = vmatpush1.msra.mxu0 0.0
    %1734 = vmatprep.subr.mxu0 0.0
    %1735 = vmatpush1.msra.mxu0 0.0
    %1736 = vmatprep.subr.mxu0 0.0
    %1737 = vmatpush1.msra.mxu0 0.0
    %1738 = vmatprep.subr.mxu0 0.0
    %1739 = vmatpush1.msra.mxu0 0.0
    %1740 = vmatprep.subr.mxu0 0.0
    %1741 = vmatpush1.msra.mxu0 0.0
    %1742 = vmatprep.subr.mxu0 0.0
    %1743 = vmatpush1.msra.mxu0 0.0
    %1744 = vmatprep.subr.mxu0 0.0
    %1745 = vmatpush1.msra.mxu0 0.0
    %1746 = vmatprep.subr.mxu0 0.0
    %1747 = vmatpush1.msra.mxu0 0.0
    %1748 = vmatprep.subr.mxu0 0.0
    %1749 = vmatpush1.msra.mxu0 0.0
    %1750 = vmatprep.subr.mxu0 0.0
    %1751 = vmatpush1.msra.mxu0 0.0
    %1752 = vmatprep.subr.mxu0 0.0
    %1753 = vmatpush1.msra.mxu0 0.0
    %1754 = vmatprep.subr.mxu0 0.0
    %1755 = vmatpush1.msra.mxu0 0.0
    %1756 = vmatprep.subr.mxu0 0.0
    %1757 = vmatpush1.msra.mxu0 0.0
    %1758 = vmatprep.subr.mxu0 0.0
    %1759 = vmatpush1.msra.mxu0 0.0
    %1760 = vmatprep.subr.mxu0 0.0
    %1761 = vmatpush1.msra.mxu0 0.0
    %1762 = vmatprep.subr.mxu0 0.0
    %1763 = vmatpush1.msra.mxu0 0.0
    %1764 = vmatprep.subr.mxu0 0.0
    %1765 = vmatpush1.msra.mxu0 0.0
    %1766 = vmatprep.subr.mxu0 0.0
    %1767 = vmatpush1.msra.mxu0 0.0
    %1768 = vmatprep.subr.mxu0 0.0
    %1769 = vmatpush1.msra.mxu0 0.0
    %1770 = vmatprep.subr.mxu0 0.0
    %1771 = vmatpush1.msra.mxu0 0.0
    %1772 = vmatprep.subr.mxu0 0.0
    %1773 = vmatpush1.msra.mxu0 0.0
    %1774 = vmatprep.subr.mxu0 0.0
    %1775 = vmatpush1.msra.mxu0 0.0
    %1776 = vmatprep.subr.mxu0 0.0
    %1777 = vmatpush1.msra.mxu0 0.0
    %1778 = vmatprep.subr.mxu0 0.0
    %1779 = vmatpush1.msra.mxu0 0.0
    %1780 = vmatprep.subr.mxu0 0.0
    %1781 = vmatpush1.msra.mxu0 0.0
    %1782 = vmatprep.subr.mxu0 0.0
    %1783 = vmatpush1.msra.mxu0 0.0
    %1784 = vmatprep.subr.mxu0 0.0
    %1785 = vmatpush1.msra.mxu0 0.0
    %1786 = vmatprep.subr.mxu0 0.0
    %1787 = vmatpush1.msra.mxu0 0.0
    %1788 = vmatprep.subr.mxu0 0.0
    %1789 = vmatpush1.msra.mxu0 0.0
    %1790 = vmatprep.subr.mxu0 0.0
    %1791 = vmatpush1.msra.mxu0 0.0
    %1792 = vmatprep.subr.mxu0 0.0
    %1793 = vmatpush1.msra.mxu0 0.0
    %1794 = vmatprep.mubr.f32.mxu0 0.0
    %v1795 = vand.u32 %v1066, 4294901760
    %v1796 = vsub.f32 %v1066, %v1795
    %1797 = vmatmul.mubr.f32.gmra.mrb[0].mxu0 %v1796
    %v1798 = vpop.f32.mrb[0].mxu0
    %v1799 = vadd.f32 %v1719, %v1798
    %v1800 = vpop.f32.mrb[0].mxu0
    %1801 = vmatprep.mubr.f32.mxu0 0.0
    %v1802 = vand.u32 %v1069, 4294901760
    %v1803 = vsub.f32 %v1069, %v1802
    %1804 = vmatmul.mubr.f32.gmra.mrb[0].mxu0 %v1803
    %v1805 = vpop.f32.mrb[0].mxu0
    %v1806 = vadd.f32 %v1725, %v1805
    %v1807 = vpop.f32.mrb[0].mxu0
    %1808 = vdwg.mxu0
    %1809 = vmatprep.subr.mxu0 0.0
    %v1810 = vand.u32 %v55, 4294901760
    %1811 = vmatpush1.msra.mxu0 %v1810
    %1812 = vmatprep.subr.mxu0 0.0
    %1813 = vmatpush1.msra.mxu0 0.0
    %1814 = vmatprep.subr.mxu0 0.0
    %1815 = vmatpush1.msra.mxu0 0.0
    %1816 = vmatprep.subr.mxu0 0.0
    %1817 = vmatpush1.msra.mxu0 0.0
    %1818 = vmatprep.subr.mxu0 0.0
    %1819 = vmatpush1.msra.mxu0 0.0
    %1820 = vmatprep.subr.mxu0 0.0
    %1821 = vmatpush1.msra.mxu0 0.0
    %1822 = vmatprep.subr.mxu0 0.0
    %1823 = vmatpush1.msra.mxu0 0.0
    %1824 = vmatprep.subr.mxu0 0.0
    %1825 = vmatpush1.msra.mxu0 0.0
    %1826 = vmatprep.subr.mxu0 0.0
    %1827 = vmatpush1.msra.mxu0 0.0
    %1828 = vmatprep.subr.mxu0 0.0
    %1829 = vmatpush1.msra.mxu0 0.0
    %1830 = vmatprep.subr.mxu0 0.0
    %1831 = vmatpush1.msra.mxu0 0.0
    %1832 = vmatprep.subr.mxu0 0.0
    %1833 = vmatpush1.msra.mxu0 0.0
    %1834 = vmatprep.subr.mxu0 0.0
    %1835 = vmatpush1.msra.mxu0 0.0
    %1836 = vmatprep.subr.mxu0 0.0
    %1837 = vmatpush1.msra.mxu0 0.0
    %1838 = vmatprep.subr.mxu0 0.0
    %1839 = vmatpush1.msra.mxu0 0.0
    %1840 = vmatprep.subr.mxu0 0.0
    %1841 = vmatpush1.msra.mxu0 0.0
    %1842 = vmatprep.subr.mxu0 0.0
    %1843 = vmatpush1.msra.mxu0 0.0
    %1844 = vmatprep.subr.mxu0 0.0
    %1845 = vmatpush1.msra.mxu0 0.0
    %1846 = vmatprep.subr.mxu0 0.0
    %1847 = vmatpush1.msra.mxu0 0.0
    %1848 = vmatprep.subr.mxu0 0.0
    %1849 = vmatpush1.msra.mxu0 0.0
    %1850 = vmatprep.subr.mxu0 0.0
    %1851 = vmatpush1.msra.mxu0 0.0
    %1852 = vmatprep.subr.mxu0 0.0
    %1853 = vmatpush1.msra.mxu0 0.0
    %1854 = vmatprep.subr.mxu0 0.0
    %1855 = vmatpush1.msra.mxu0 0.0
    %1856 = vmatprep.subr.mxu0 0.0
    %1857 = vmatpush1.msra.mxu0 0.0
    %1858 = vmatprep.subr.mxu0 0.0
    %1859 = vmatpush1.msra.mxu0 0.0
    %1860 = vmatprep.subr.mxu0 0.0
    %1861 = vmatpush1.msra.mxu0 0.0
    %1862 = vmatprep.subr.mxu0 0.0
    %1863 = vmatpush1.msra.mxu0 0.0
    %1864 = vmatprep.subr.mxu0 0.0
    %1865 = vmatpush1.msra.mxu0 0.0
    %1866 = vmatprep.subr.mxu0 0.0
    %1867 = vmatpush1.msra.mxu0 0.0
    %1868 = vmatprep.subr.mxu0 0.0
    %1869 = vmatpush1.msra.mxu0 0.0
    %1870 = vmatprep.subr.mxu0 0.0
    %1871 = vmatpush1.msra.mxu0 0.0
    %1872 = vmatprep.subr.mxu0 0.0
    %1873 = vmatpush1.msra.mxu0 0.0
    %1874 = vmatprep.mubr.f32.mxu0 0.0
    %v1875 = vand.u32 %v1066, 4294901760
    %v1876 = vsub.f32 %v1066, %v1875
    %v1877 = vand.u32 %v1876, 4294901760
    %1878 = vmatmul.mubr.f32.gmra.mrb[0].mxu0 %v1877
    %v1879 = vpop.f32.mrb[0].mxu0
    %v1880 = vadd.f32 %v1799, %v1879
    %v1881 = vpop.f32.mrb[0].mxu0
    %1882 = vmatprep.mubr.f32.mxu0 0.0
    %v1883 = vand.u32 %v1069, 4294901760
    %v1884 = vsub.f32 %v1069, %v1883
    %v1885 = vand.u32 %v1884, 4294901760
    %1886 = vmatmul.mubr.f32.gmra.mrb[0].mxu0 %v1885
    %v1887 = vpop.f32.mrb[0].mxu0
    %v1888 = vadd.f32 %v1806, %v1887
    %v1889 = vpop.f32.mrb[0].mxu0
    %1890 = vdwg.mxu0
    %1891 = vmatprep.subr.mxu0 0.0
    %v1892 = vand.u32 %v55, 4294901760
    %v1893 = vsub.f32 %v55, %v1892
    %v1894 = vand.u32 %v1893, 4294901760
    %1895 = vmatpush1.msra.mxu0 %v1894
    %1896 = vmatprep.subr.mxu0 0.0
    %1897 = vmatpush1.msra.mxu0 0.0
    %1898 = vmatprep.subr.mxu0 0.0
    %1899 = vmatpush1.msra.mxu0 0.0
    %1900 = vmatprep.subr.mxu0 0.0
    %1901 = vmatpush1.msra.mxu0 0.0
    %1902 = vmatprep.subr.mxu0 0.0
    %1903 = vmatpush1.msra.mxu0 0.0
    %1904 = vmatprep.subr.mxu0 0.0
    %1905 = vmatpush1.msra.mxu0 0.0
    %1906 = vmatprep.subr.mxu0 0.0
    %1907 = vmatpush1.msra.mxu0 0.0
    %1908 = vmatprep.subr.mxu0 0.0
    %1909 = vmatpush1.msra.mxu0 0.0
    %1910 = vmatprep.subr.mxu0 0.0
    %1911 = vmatpush1.msra.mxu0 0.0
    %1912 = vmatprep.subr.mxu0 0.0
    %1913 = vmatpush1.msra.mxu0 0.0
    %1914 = vmatprep.subr.mxu0 0.0
    %1915 = vmatpush1.msra.mxu0 0.0
    %1916 = vmatprep.subr.mxu0 0.0
    %1917 = vmatpush1.msra.mxu0 0.0
    %1918 = vmatprep.subr.mxu0 0.0
    %1919 = vmatpush1.msra.mxu0 0.0
    %1920 = vmatprep.subr.mxu0 0.0
    %1921 = vmatpush1.msra.mxu0 0.0
    %1922 = vmatprep.subr.mxu0 0.0
    %1923 = vmatpush1.msra.mxu0 0.0
    %1924 = vmatprep.subr.mxu0 0.0
    %1925 = vmatpush1.msra.mxu0 0.0
    %1926 = vmatprep.subr.mxu0 0.0
    %1927 = vmatpush1.msra.mxu0 0.0
    %1928 = vmatprep.subr.mxu0 0.0
    %1929 = vmatpush1.msra.mxu0 0.0
    %1930 = vmatprep.subr.mxu0 0.0
    %1931 = vmatpush1.msra.mxu0 0.0
    %1932 = vmatprep.subr.mxu0 0.0
    %1933 = vmatpush1.msra.mxu0 0.0
    %1934 = vmatprep.subr.mxu0 0.0
    %1935 = vmatpush1.msra.mxu0 0.0
    %1936 = vmatprep.subr.mxu0 0.0
    %1937 = vmatpush1.msra.mxu0 0.0
    %1938 = vmatprep.subr.mxu0 0.0
    %1939 = vmatpush1.msra.mxu0 0.0
    %1940 = vmatprep.subr.mxu0 0.0
    %1941 = vmatpush1.msra.mxu0 0.0
    %1942 = vmatprep.subr.mxu0 0.0
    %1943 = vmatpush1.msra.mxu0 0.0
    %1944 = vmatprep.subr.mxu0 0.0
    %1945 = vmatpush1.msra.mxu0 0.0
    %1946 = vmatprep.subr.mxu0 0.0
    %1947 = vmatpush1.msra.mxu0 0.0
    %1948 = vmatprep.subr.mxu0 0.0
    %1949 = vmatpush1.msra.mxu0 0.0
    %1950 = vmatprep.subr.mxu0 0.0
    %1951 = vmatpush1.msra.mxu0 0.0
    %1952 = vmatprep.subr.mxu0 0.0
    %1953 = vmatpush1.msra.mxu0 0.0
    %1954 = vmatprep.subr.mxu0 0.0
    %1955 = vmatpush1.msra.mxu0 0.0
    %1956 = vmatprep.subr.mxu0 0.0
    %1957 = vmatpush1.msra.mxu0 0.0
    %1958 = vmatprep.mubr.f32.mxu0 0.0
    %v1959 = vand.u32 %v1066, 4294901760
    %1960 = vmatmul.mubr.f32.gmra.mrb[0].mxu0 %v1959
    %v1961 = vpop.f32.mrb[0].mxu0
    %v1962 = vadd.f32 %v1880, %v1961
    %v1963 = vpop.f32.mrb[0].mxu0
    %1964 = vmatprep.mubr.f32.mxu0 0.0
    %v1965 = vand.u32 %v1069, 4294901760
    %1966 = vmatmul.mubr.f32.gmra.mrb[0].mxu0 %v1965
    %v1967 = vpop.f32.mrb[0].mxu0
    %v1968 = vadd.f32 %v1888, %v1967
    %v1969 = vpop.f32.mrb[0].mxu0
    %1970 = vdwg.mxu0
    %1971 = vmatprep.subr.mxu0 0.0
    %v1972 = vand.u32 %v55, 4294901760
    %1973 = vmatpush1.msra.mxu0 %v1972
    %1974 = vmatprep.subr.mxu0 0.0
    %1975 = vmatpush1.msra.mxu0 0.0
    %1976 = vmatprep.subr.mxu0 0.0
    %1977 = vmatpush1.msra.mxu0 0.0
    %1978 = vmatprep.subr.mxu0 0.0
    %1979 = vmatpush1.msra.mxu0 0.0
    %1980 = vmatprep.subr.mxu0 0.0
    %1981 = vmatpush1.msra.mxu0 0.0
    %1982 = vmatprep.subr.mxu0 0.0
    %1983 = vmatpush1.msra.mxu0 0.0
    %1984 = vmatprep.subr.mxu0 0.0
    %1985 = vmatpush1.msra.mxu0 0.0
    %1986 = vmatprep.subr.mxu0 0.0
    %1987 = vmatpush1.msra.mxu0 0.0
    %1988 = vmatprep.subr.mxu0 0.0
    %1989 = vmatpush1.msra.mxu0 0.0
    %1990 = vmatprep.subr.mxu0 0.0
    %1991 = vmatpush1.msra.mxu0 0.0
    %1992 = vmatprep.subr.mxu0 0.0
    %1993 = vmatpush1.msra.mxu0 0.0
    %1994 = vmatprep.subr.mxu0 0.0
    %1995 = vmatpush1.msra.mxu0 0.0
    %1996 = vmatprep.subr.mxu0 0.0
    %1997 = vmatpush1.msra.mxu0 0.0
    %1998 = vmatprep.subr.mxu0 0.0
    %1999 = vmatpush1.msra.mxu0 0.0
    %2000 = vmatprep.subr.mxu0 0.0
    %2001 = vmatpush1.msra.mxu0 0.0
    %2002 = vmatprep.subr.mxu0 0.0
    %2003 = vmatpush1.msra.mxu0 0.0
    %2004 = vmatprep.subr.mxu0 0.0
    %2005 = vmatpush1.msra.mxu0 0.0
    %2006 = vmatprep.subr.mxu0 0.0
    %2007 = vmatpush1.msra.mxu0 0.0
    %2008 = vmatprep.subr.mxu0 0.0
    %2009 = vmatpush1.msra.mxu0 0.0
    %2010 = vmatprep.subr.mxu0 0.0
    %2011 = vmatpush1.msra.mxu0 0.0
    %2012 = vmatprep.subr.mxu0 0.0
    %2013 = vmatpush1.msra.mxu0 0.0
    %2014 = vmatprep.subr.mxu0 0.0
    %2015 = vmatpush1.msra.mxu0 0.0
    %2016 = vmatprep.subr.mxu0 0.0
    %2017 = vmatpush1.msra.mxu0 0.0
    %2018 = vmatprep.subr.mxu0 0.0
    %2019 = vmatpush1.msra.mxu0 0.0
    %2020 = vmatprep.subr.mxu0 0.0
    %2021 = vmatpush1.msra.mxu0 0.0
    %2022 = vmatprep.subr.mxu0 0.0
    %2023 = vmatpush1.msra.mxu0 0.0
    %2024 = vmatprep.subr.mxu0 0.0
    %2025 = vmatpush1.msra.mxu0 0.0
    %2026 = vmatprep.subr.mxu0 0.0
    %2027 = vmatpush1.msra.mxu0 0.0
    %2028 = vmatprep.subr.mxu0 0.0
    %2029 = vmatpush1.msra.mxu0 0.0
    %2030 = vmatprep.subr.mxu0 0.0
    %2031 = vmatpush1.msra.mxu0 0.0
    %2032 = vmatprep.subr.mxu0 0.0
    %2033 = vmatpush1.msra.mxu0 0.0
    %2034 = vmatprep.subr.mxu0 0.0
    %2035 = vmatpush1.msra.mxu0 0.0
    %2036 = vmatprep.mubr.f32.mxu0 0.0
    %v2037 = vand.u32 %v1066, 4294901760
    %2038 = vmatmul.mubr.f32.gmra.mrb[0].mxu0 %v2037
    %v2039 = vpop.f32.mrb[0].mxu0
    %v2040 = vadd.f32 %v1962, %v2039
    %v2041 = vpop.f32.mrb[0].mxu0
    %2042 = vmatprep.mubr.f32.mxu0 0.0
    %v2043 = vand.u32 %v1069, 4294901760
    %2044 = vmatmul.mubr.f32.gmra.mrb[0].mxu0 %v2043
    %v2045 = vpop.f32.mrb[0].mxu0
    %v2046 = vadd.f32 %v1968, %v2045
    %v2047 = vpop.f32.mrb[0].mxu0
    %2048 = vdwg.mxu0
    %2049 = vmatprep.subr.mxu0 0.0
    %v2050 = vand.u32 %v57, 4294901760
    %2051 = vmatpush1.msra.mxu0 %v2050
    %2052 = vmatprep.subr.mxu0 0.0
    %2053 = vmatpush1.msra.mxu0 0.0
    %2054 = vmatprep.subr.mxu0 0.0
    %2055 = vmatpush1.msra.mxu0 0.0
    %2056 = vmatprep.subr.mxu0 0.0
    %2057 = vmatpush1.msra.mxu0 0.0
    %2058 = vmatprep.subr.mxu0 0.0
    %2059 = vmatpush1.msra.mxu0 0.0
    %2060 = vmatprep.subr.mxu0 0.0
    %2061 = vmatpush1.msra.mxu0 0.0
    %2062 = vmatprep.subr.mxu0 0.0
    %2063 = vmatpush1.msra.mxu0 0.0
    %2064 = vmatprep.subr.mxu0 0.0
    %2065 = vmatpush1.msra.mxu0 0.0
    %2066 = vmatprep.subr.mxu0 0.0
    %2067 = vmatpush1.msra.mxu0 0.0
    %2068 = vmatprep.subr.mxu0 0.0
    %2069 = vmatpush1.msra.mxu0 0.0
    %2070 = vmatprep.subr.mxu0 0.0
    %2071 = vmatpush1.msra.mxu0 0.0
    %2072 = vmatprep.subr.mxu0 0.0
    %2073 = vmatpush1.msra.mxu0 0.0
    %2074 = vmatprep.subr.mxu0 0.0
    %2075 = vmatpush1.msra.mxu0 0.0
    %2076 = vmatprep.subr.mxu0 0.0
    %2077 = vmatpush1.msra.mxu0 0.0
    %2078 = vmatprep.subr.mxu0 0.0
    %2079 = vmatpush1.msra.mxu0 0.0
    %2080 = vmatprep.subr.mxu0 0.0
    %2081 = vmatpush1.msra.mxu0 0.0
    %2082 = vmatprep.subr.mxu0 0.0
    %2083 = vmatpush1.msra.mxu0 0.0
    %2084 = vmatprep.subr.mxu0 0.0
    %2085 = vmatpush1.msra.mxu0 0.0
    %2086 = vmatprep.subr.mxu0 0.0
    %2087 = vmatpush1.msra.mxu0 0.0
    %2088 = vmatprep.subr.mxu0 0.0
    %2089 = vmatpush1.msra.mxu0 0.0
    %2090 = vmatprep.subr.mxu0 0.0
    %2091 = vmatpush1.msra.mxu0 0.0
    %2092 = vmatprep.subr.mxu0 0.0
    %2093 = vmatpush1.msra.mxu0 0.0
    %2094 = vmatprep.subr.mxu0 0.0
    %2095 = vmatpush1.msra.mxu0 0.0
    %2096 = vmatprep.subr.mxu0 0.0
    %2097 = vmatpush1.msra.mxu0 0.0
    %2098 = vmatprep.subr.mxu0 0.0
    %2099 = vmatpush1.msra.mxu0 0.0
    %2100 = vmatprep.subr.mxu0 0.0
    %2101 = vmatpush1.msra.mxu0 0.0
    %2102 = vmatprep.subr.mxu0 0.0
    %2103 = vmatpush1.msra.mxu0 0.0
    %2104 = vmatprep.subr.mxu0 0.0
    %2105 = vmatpush1.msra.mxu0 0.0
    %2106 = vmatprep.subr.mxu0 0.0
    %2107 = vmatpush1.msra.mxu0 0.0
    %2108 = vmatprep.subr.mxu0 0.0
    %2109 = vmatpush1.msra.mxu0 0.0
    %2110 = vmatprep.subr.mxu0 0.0
    %2111 = vmatpush1.msra.mxu0 0.0
    %2112 = vmatprep.subr.mxu0 0.0
    %2113 = vmatpush1.msra.mxu0 0.0
    %2114 = vmatprep.mubr.f32.mxu0 0.0
    %v2115 = vand.u32 %v1066, 4294901760
    %v2116 = vsub.f32 %v1066, %v2115
    %v2117 = vand.u32 %v2116, 4294901760
    %v2118 = vsub.f32 %v2116, %v2117
    %v2119 = vand.u32 %v2118, 4294901760
    %2120 = vmatmul.mubr.f32.gmra.mrb[0].mxu0 %v2119
    %v2121 = vpop.f32.mrb[0].mxu0
    %v2122 = vadd.f32 0.0, %v2121
    %v2123 = vpop.f32.mrb[0].mxu0
    %2124 = vmatprep.mubr.f32.mxu0 0.0
    %v2125 = vand.u32 %v1069, 4294901760
    %v2126 = vsub.f32 %v1069, %v2125
    %v2127 = vand.u32 %v2126, 4294901760
    %v2128 = vsub.f32 %v2126, %v2127
    %v2129 = vand.u32 %v2128, 4294901760
    %2130 = vmatmul.mubr.f32.gmra.mrb[0].mxu0 %v2129
    %v2131 = vpop.f32.mrb[0].mxu0
    %v2132 = vadd.f32 0.0, %v2131
    %v2133 = vpop.f32.mrb[0].mxu0
    %2134 = vdwg.mxu0
    %2135 = vmatprep.subr.mxu0 0.0
    %v2136 = vand.u32 %v57, 4294901760
    %v2137 = vsub.f32 %v57, %v2136
    %v2138 = vand.u32 %v2137, 4294901760
    %v2139 = vsub.f32 %v2137, %v2138
    %v2140 = vand.u32 %v2139, 4294901760
    %2141 = vmatpush1.msra.mxu0 %v2140
    %2142 = vmatprep.subr.mxu0 0.0
    %2143 = vmatpush1.msra.mxu0 0.0
    %2144 = vmatprep.subr.mxu0 0.0
    %2145 = vmatpush1.msra.mxu0 0.0
    %2146 = vmatprep.subr.mxu0 0.0
    %2147 = vmatpush1.msra.mxu0 0.0
    %2148 = vmatprep.subr.mxu0 0.0
    %2149 = vmatpush1.msra.mxu0 0.0
    %2150 = vmatprep.subr.mxu0 0.0
    %2151 = vmatpush1.msra.mxu0 0.0
    %2152 = vmatprep.subr.mxu0 0.0
    %2153 = vmatpush1.msra.mxu0 0.0
    %2154 = vmatprep.subr.mxu0 0.0
    %2155 = vmatpush1.msra.mxu0 0.0
    %2156 = vmatprep.subr.mxu0 0.0
    %2157 = vmatpush1.msra.mxu0 0.0
    %2158 = vmatprep.subr.mxu0 0.0
    %2159 = vmatpush1.msra.mxu0 0.0
    %2160 = vmatprep.subr.mxu0 0.0
    %2161 = vmatpush1.msra.mxu0 0.0
    %2162 = vmatprep.subr.mxu0 0.0
    %2163 = vmatpush1.msra.mxu0 0.0
    %2164 = vmatprep.subr.mxu0 0.0
    %2165 = vmatpush1.msra.mxu0 0.0
    %2166 = vmatprep.subr.mxu0 0.0
    %2167 = vmatpush1.msra.mxu0 0.0
    %2168 = vmatprep.subr.mxu0 0.0
    %2169 = vmatpush1.msra.mxu0 0.0
    %2170 = vmatprep.subr.mxu0 0.0
    %2171 = vmatpush1.msra.mxu0 0.0
    %2172 = vmatprep.subr.mxu0 0.0
    %2173 = vmatpush1.msra.mxu0 0.0
    %2174 = vmatprep.subr.mxu0 0.0
    %2175 = vmatpush1.msra.mxu0 0.0
    %2176 = vmatprep.subr.mxu0 0.0
    %2177 = vmatpush1.msra.mxu0 0.0
    %2178 = vmatprep.subr.mxu0 0.0
    %2179 = vmatpush1.msra.mxu0 0.0
    %2180 = vmatprep.subr.mxu0 0.0
    %2181 = vmatpush1.msra.mxu0 0.0
    %2182 = vmatprep.subr.mxu0 0.0
    %2183 = vmatpush1.msra.mxu0 0.0
    %2184 = vmatprep.subr.mxu0 0.0
    %2185 = vmatpush1.msra.mxu0 0.0
    %2186 = vmatprep.subr.mxu0 0.0
    %2187 = vmatpush1.msra.mxu0 0.0
    %2188 = vmatprep.subr.mxu0 0.0
    %2189 = vmatpush1.msra.mxu0 0.0
    %2190 = vmatprep.subr.mxu0 0.0
    %2191 = vmatpush1.msra.mxu0 0.0
    %2192 = vmatprep.subr.mxu0 0.0
    %2193 = vmatpush1.msra.mxu0 0.0
    %2194 = vmatprep.subr.mxu0 0.0
    %2195 = vmatpush1.msra.mxu0 0.0
    %2196 = vmatprep.subr.mxu0 0.0
    %2197 = vmatpush1.msra.mxu0 0.0
    %2198 = vmatprep.subr.mxu0 0.0
    %2199 = vmatpush1.msra.mxu0 0.0
    %2200 = vmatprep.subr.mxu0 0.0
    %2201 = vmatpush1.msra.mxu0 0.0
    %2202 = vmatprep.subr.mxu0 0.0
    %2203 = vmatpush1.msra.mxu0 0.0
    %2204 = vmatprep.mubr.f32.mxu0 0.0
    %v2205 = vand.u32 %v1066, 4294901760
    %2206 = vmatmul.mubr.f32.gmra.mrb[0].mxu0 %v2205
    %v2207 = vpop.f32.mrb[0].mxu0
    %v2208 = vadd.f32 %v2122, %v2207
    %v2209 = vpop.f32.mrb[0].mxu0
    %2210 = vmatprep.mubr.f32.mxu0 0.0
    %v2211 = vand.u32 %v1069, 4294901760
    %2212 = vmatmul.mubr.f32.gmra.mrb[0].mxu0 %v2211
    %v2213 = vpop.f32.mrb[0].mxu0
    %v2214 = vadd.f32 %v2132, %v2213
    %v2215 = vpop.f32.mrb[0].mxu0
    %2216 = vdwg.mxu0
    %2217 = vmatprep.subr.mxu0 0.0
    %v2218 = vand.u32 %v57, 4294901760
    %v2219 = vsub.f32 %v57, %v2218
    %2220 = vmatpush1.msra.mxu0 %v2219
    %2221 = vmatprep.subr.mxu0 0.0
    %2222 = vmatpush1.msra.mxu0 0.0
    %2223 = vmatprep.subr.mxu0 0.0
    %2224 = vmatpush1.msra.mxu0 0.0
    %2225 = vmatprep.subr.mxu0 0.0
    %2226 = vmatpush1.msra.mxu0 0.0
    %2227 = vmatprep.subr.mxu0 0.0
    %2228 = vmatpush1.msra.mxu0 0.0
    %2229 = vmatprep.subr.mxu0 0.0
    %2230 = vmatpush1.msra.mxu0 0.0
    %2231 = vmatprep.subr.mxu0 0.0
    %2232 = vmatpush1.msra.mxu0 0.0
    %2233 = vmatprep.subr.mxu0 0.0
    %2234 = vmatpush1.msra.mxu0 0.0
    %2235 = vmatprep.subr.mxu0 0.0
    %2236 = vmatpush1.msra.mxu0 0.0
    %2237 = vmatprep.subr.mxu0 0.0
    %2238 = vmatpush1.msra.mxu0 0.0
    %2239 = vmatprep.subr.mxu0 0.0
    %2240 = vmatpush1.msra.mxu0 0.0
    %2241 = vmatprep.subr.mxu0 0.0
    %2242 = vmatpush1.msra.mxu0 0.0
    %2243 = vmatprep.subr.mxu0 0.0
    %2244 = vmatpush1.msra.mxu0 0.0
    %2245 = vmatprep.subr.mxu0 0.0
    %2246 = vmatpush1.msra.mxu0 0.0
    %2247 = vmatprep.subr.mxu0 0.0
    %2248 = vmatpush1.msra.mxu0 0.0
    %2249 = vmatprep.subr.mxu0 0.0
    %2250 = vmatpush1.msra.mxu0 0.0
    %2251 = vmatprep.subr.mxu0 0.0
    %2252 = vmatpush1.msra.mxu0 0.0
    %2253 = vmatprep.subr.mxu0 0.0
    %2254 = vmatpush1.msra.mxu0 0.0
    %2255 = vmatprep.subr.mxu0 0.0
    %2256 = vmatpush1.msra.mxu0 0.0
    %2257 = vmatprep.subr.mxu0 0.0
    %2258 = vmatpush1.msra.mxu0 0.0
    %2259 = vmatprep.subr.mxu0 0.0
    %2260 = vmatpush1.msra.mxu0 0.0
    %2261 = vmatprep.subr.mxu0 0.0
    %2262 = vmatpush1.msra.mxu0 0.0
    %2263 = vmatprep.subr.mxu0 0.0
    %2264 = vmatpush1.msra.mxu0 0.0
    %2265 = vmatprep.subr.mxu0 0.0
    %2266 = vmatpush1.msra.mxu0 0.0
    %2267 = vmatprep.subr.mxu0 0.0
    %2268 = vmatpush1.msra.mxu0 0.0
    %2269 = vmatprep.subr.mxu0 0.0
    %2270 = vmatpush1.msra.mxu0 0.0
    %2271 = vmatprep.subr.mxu0 0.0
    %2272 = vmatpush1.msra.mxu0 0.0
    %2273 = vmatprep.subr.mxu0 0.0
    %2274 = vmatpush1.msra.mxu0 0.0
    %2275 = vmatprep.subr.mxu0 0.0
    %2276 = vmatpush1.msra.mxu0 0.0
    %2277 = vmatprep.subr.mxu0 0.0
    %2278 = vmatpush1.msra.mxu0 0.0
    %2279 = vmatprep.subr.mxu0 0.0
    %2280 = vmatpush1.msra.mxu0 0.0
    %2281 = vmatprep.subr.mxu0 0.0
    %2282 = vmatpush1.msra.mxu0 0.0
    %2283 = vmatprep.mubr.f32.mxu0 0.0
    %v2284 = vand.u32 %v1066, 4294901760
    %v2285 = vsub.f32 %v1066, %v2284
    %2286 = vmatmul.mubr.f32.gmra.mrb[0].mxu0 %v2285
    %v2287 = vpop.f32.mrb[0].mxu0
    %v2288 = vadd.f32 %v2208, %v2287
    %v2289 = vpop.f32.mrb[0].mxu0
    %2290 = vmatprep.mubr.f32.mxu0 0.0
    %v2291 = vand.u32 %v1069, 4294901760
    %v2292 = vsub.f32 %v1069, %v2291
    %2293 = vmatmul.mubr.f32.gmra.mrb[0].mxu0 %v2292
    %v2294 = vpop.f32.mrb[0].mxu0
    %v2295 = vadd.f32 %v2214, %v2294
    %v2296 = vpop.f32.mrb[0].mxu0
    %2297 = vdwg.mxu0
    %2298 = vmatprep.subr.mxu0 0.0
    %v2299 = vand.u32 %v57, 4294901760
    %2300 = vmatpush1.msra.mxu0 %v2299
    %2301 = vmatprep.subr.mxu0 0.0
    %2302 = vmatpush1.msra.mxu0 0.0
    %2303 = vmatprep.subr.mxu0 0.0
    %2304 = vmatpush1.msra.mxu0 0.0
    %2305 = vmatprep.subr.mxu0 0.0
    %2306 = vmatpush1.msra.mxu0 0.0
    %2307 = vmatprep.subr.mxu0 0.0
    %2308 = vmatpush1.msra.mxu0 0.0
    %2309 = vmatprep.subr.mxu0 0.0
    %2310 = vmatpush1.msra.mxu0 0.0
    %2311 = vmatprep.subr.mxu0 0.0
    %2312 = vmatpush1.msra.mxu0 0.0
    %2313 = vmatprep.subr.mxu0 0.0
    %2314 = vmatpush1.msra.mxu0 0.0
    %2315 = vmatprep.subr.mxu0 0.0
    %2316 = vmatpush1.msra.mxu0 0.0
    %2317 = vmatprep.subr.mxu0 0.0
    %2318 = vmatpush1.msra.mxu0 0.0
    %2319 = vmatprep.subr.mxu0 0.0
    %2320 = vmatpush1.msra.mxu0 0.0
    %2321 = vmatprep.subr.mxu0 0.0
    %2322 = vmatpush1.msra.mxu0 0.0
    %2323 = vmatprep.subr.mxu0 0.0
    %2324 = vmatpush1.msra.mxu0 0.0
    %2325 = vmatprep.subr.mxu0 0.0
    %2326 = vmatpush1.msra.mxu0 0.0
    %2327 = vmatprep.subr.mxu0 0.0
    %2328 = vmatpush1.msra.mxu0 0.0
    %2329 = vmatprep.subr.mxu0 0.0
    %2330 = vmatpush1.msra.mxu0 0.0
    %2331 = vmatprep.subr.mxu0 0.0
    %2332 = vmatpush1.msra.mxu0 0.0
    %2333 = vmatprep.subr.mxu0 0.0
    %2334 = vmatpush1.msra.mxu0 0.0
    %2335 = vmatprep.subr.mxu0 0.0
    %2336 = vmatpush1.msra.mxu0 0.0
    %2337 = vmatprep.subr.mxu0 0.0
    %2338 = vmatpush1.msra.mxu0 0.0
    %2339 = vmatprep.subr.mxu0 0.0
    %2340 = vmatpush1.msra.mxu0 0.0
    %2341 = vmatprep.subr.mxu0 0.0
    %2342 = vmatpush1.msra.mxu0 0.0
    %2343 = vmatprep.subr.mxu0 0.0
    %2344 = vmatpush1.msra.mxu0 0.0
    %2345 = vmatprep.subr.mxu0 0.0
    %2346 = vmatpush1.msra.mxu0 0.0
    %2347 = vmatprep.subr.mxu0 0.0
    %2348 = vmatpush1.msra.mxu0 0.0
    %2349 = vmatprep.subr.mxu0 0.0
    %2350 = vmatpush1.msra.mxu0 0.0
    %2351 = vmatprep.subr.mxu0 0.0
    %2352 = vmatpush1.msra.mxu0 0.0
    %2353 = vmatprep.subr.mxu0 0.0
    %2354 = vmatpush1.msra.mxu0 0.0
    %2355 = vmatprep.subr.mxu0 0.0
    %2356 = vmatpush1.msra.mxu0 0.0
    %2357 = vmatprep.subr.mxu0 0.0
    %2358 = vmatpush1.msra.mxu0 0.0
    %2359 = vmatprep.subr.mxu0 0.0
    %2360 = vmatpush1.msra.mxu0 0.0
    %2361 = vmatprep.subr.mxu0 0.0
    %2362 = vmatpush1.msra.mxu0 0.0
    %2363 = vmatprep.mubr.f32.mxu0 0.0
    %v2364 = vand.u32 %v1066, 4294901760
    %v2365 = vsub.f32 %v1066, %v2364
    %v2366 = vand.u32 %v2365, 4294901760
    %2367 = vmatmul.mubr.f32.gmra.mrb[0].mxu0 %v2366
    %v2368 = vpop.f32.mrb[0].mxu0
    %v2369 = vadd.f32 %v2288, %v2368
    %v2370 = vpop.f32.mrb[0].mxu0
    %2371 = vmatprep.mubr.f32.mxu0 0.0
    %v2372 = vand.u32 %v1069, 4294901760
    %v2373 = vsub.f32 %v1069, %v2372
    %v2374 = vand.u32 %v2373, 4294901760
    %2375 = vmatmul.mubr.f32.gmra.mrb[0].mxu0 %v2374
    %v2376 = vpop.f32.mrb[0].mxu0
    %v2377 = vadd.f32 %v2295, %v2376
    %v2378 = vpop.f32.mrb[0].mxu0
    %2379 = vdwg.mxu0
    %2380 = vmatprep.subr.mxu0 0.0
    %v2381 = vand.u32 %v57, 4294901760
    %v2382 = vsub.f32 %v57, %v2381
    %v2383 = vand.u32 %v2382, 4294901760
    %2384 = vmatpush1.msra.mxu0 %v2383
    %2385 = vmatprep.subr.mxu0 0.0
    %2386 = vmatpush1.msra.mxu0 0.0
    %2387 = vmatprep.subr.mxu0 0.0
    %2388 = vmatpush1.msra.mxu0 0.0
    %2389 = vmatprep.subr.mxu0 0.0
    %2390 = vmatpush1.msra.mxu0 0.0
    %2391 = vmatprep.subr.mxu0 0.0
    %2392 = vmatpush1.msra.mxu0 0.0
    %2393 = vmatprep.subr.mxu0 0.0
    %2394 = vmatpush1.msra.mxu0 0.0
    %2395 = vmatprep.subr.mxu0 0.0
    %2396 = vmatpush1.msra.mxu0 0.0
    %2397 = vmatprep.subr.mxu0 0.0
    %2398 = vmatpush1.msra.mxu0 0.0
    %2399 = vmatprep.subr.mxu0 0.0
    %2400 = vmatpush1.msra.mxu0 0.0
    %2401 = vmatprep.subr.mxu0 0.0
    %2402 = vmatpush1.msra.mxu0 0.0
    %2403 = vmatprep.subr.mxu0 0.0
    %2404 = vmatpush1.msra.mxu0 0.0
    %2405 = vmatprep.subr.mxu0 0.0
    %2406 = vmatpush1.msra.mxu0 0.0
    %2407 = vmatprep.subr.mxu0 0.0
    %2408 = vmatpush1.msra.mxu0 0.0
    %2409 = vmatprep.subr.mxu0 0.0
    %2410 = vmatpush1.msra.mxu0 0.0
    %2411 = vmatprep.subr.mxu0 0.0
    %2412 = vmatpush1.msra.mxu0 0.0
    %2413 = vmatprep.subr.mxu0 0.0
    %2414 = vmatpush1.msra.mxu0 0.0
    %2415 = vmatprep.subr.mxu0 0.0
    %2416 = vmatpush1.msra.mxu0 0.0
    %2417 = vmatprep.subr.mxu0 0.0
    %2418 = vmatpush1.msra.mxu0 0.0
    %2419 = vmatprep.subr.mxu0 0.0
    %2420 = vmatpush1.msra.mxu0 0.0
    %2421 = vmatprep.subr.mxu0 0.0
    %2422 = vmatpush1.msra.mxu0 0.0
    %2423 = vmatprep.subr.mxu0 0.0
    %2424 = vmatpush1.msra.mxu0 0.0
    %2425 = vmatprep.subr.mxu0 0.0
    %2426 = vmatpush1.msra.mxu0 0.0
    %2427 = vmatprep.subr.mxu0 0.0
    %2428 = vmatpush1.msra.mxu0 0.0
    %2429 = vmatprep.subr.mxu0 0.0
    %2430 = vmatpush1.msra.mxu0 0.0
    %2431 = vmatprep.subr.mxu0 0.0
    %2432 = vmatpush1.msra.mxu0 0.0
    %2433 = vmatprep.subr.mxu0 0.0
    %2434 = vmatpush1.msra.mxu0 0.0
    %2435 = vmatprep.subr.mxu0 0.0
    %2436 = vmatpush1.msra.mxu0 0.0
    %2437 = vmatprep.subr.mxu0 0.0
    %2438 = vmatpush1.msra.mxu0 0.0
    %2439 = vmatprep.subr.mxu0 0.0
    %2440 = vmatpush1.msra.mxu0 0.0
    %2441 = vmatprep.subr.mxu0 0.0
    %2442 = vmatpush1.msra.mxu0 0.0
    %2443 = vmatprep.subr.mxu0 0.0
    %2444 = vmatpush1.msra.mxu0 0.0
    %2445 = vmatprep.subr.mxu0 0.0
    %2446 = vmatpush1.msra.mxu0 0.0
    %2447 = vmatprep.mubr.f32.mxu0 0.0
    %v2448 = vand.u32 %v1066, 4294901760
    %2449 = vmatmul.mubr.f32.gmra.mrb[0].mxu0 %v2448
    %v2450 = vpop.f32.mrb[0].mxu0
    %v2451 = vadd.f32 %v2369, %v2450
    %v2452 = vpop.f32.mrb[0].mxu0
    %2453 = vmatprep.mubr.f32.mxu0 0.0
    %v2454 = vand.u32 %v1069, 4294901760
    %2455 = vmatmul.mubr.f32.gmra.mrb[0].mxu0 %v2454
    %v2456 = vpop.f32.mrb[0].mxu0
    %v2457 = vadd.f32 %v2377, %v2456
    %v2458 = vpop.f32.mrb[0].mxu0
    %2459 = vdwg.mxu0
    %2460 = vmatprep.subr.mxu0 0.0
    %v2461 = vand.u32 %v57, 4294901760
    %2462 = vmatpush1.msra.mxu0 %v2461
    %2463 = vmatprep.subr.mxu0 0.0
    %2464 = vmatpush1.msra.mxu0 0.0
    %2465 = vmatprep.subr.mxu0 0.0
    %2466 = vmatpush1.msra.mxu0 0.0
    %2467 = vmatprep.subr.mxu0 0.0
    %2468 = vmatpush1.msra.mxu0 0.0
    %2469 = vmatprep.subr.mxu0 0.0
    %2470 = vmatpush1.msra.mxu0 0.0
    %2471 = vmatprep.subr.mxu0 0.0
    %2472 = vmatpush1.msra.mxu0 0.0
    %2473 = vmatprep.subr.mxu0 0.0
    %2474 = vmatpush1.msra.mxu0 0.0
    %2475 = vmatprep.subr.mxu0 0.0
    %2476 = vmatpush1.msra.mxu0 0.0
    %2477 = vmatprep.subr.mxu0 0.0
    %2478 = vmatpush1.msra.mxu0 0.0
    %2479 = vmatprep.subr.mxu0 0.0
    %2480 = vmatpush1.msra.mxu0 0.0
    %2481 = vmatprep.subr.mxu0 0.0
    %2482 = vmatpush1.msra.mxu0 0.0
    %2483 = vmatprep.subr.mxu0 0.0
    %2484 = vmatpush1.msra.mxu0 0.0
    %2485 = vmatprep.subr.mxu0 0.0
    %2486 = vmatpush1.msra.mxu0 0.0
    %2487 = vmatprep.subr.mxu0 0.0
    %2488 = vmatpush1.msra.mxu0 0.0
    %2489 = vmatprep.subr.mxu0 0.0
    %2490 = vmatpush1.msra.mxu0 0.0
    %2491 = vmatprep.subr.mxu0 0.0
    %2492 = vmatpush1.msra.mxu0 0.0
    %2493 = vmatprep.subr.mxu0 0.0
    %2494 = vmatpush1.msra.mxu0 0.0
    %2495 = vmatprep.subr.mxu0 0.0
    %2496 = vmatpush1.msra.mxu0 0.0
    %2497 = vmatprep.subr.mxu0 0.0
    %2498 = vmatpush1.msra.mxu0 0.0
    %2499 = vmatprep.subr.mxu0 0.0
    %2500 = vmatpush1.msra.mxu0 0.0
    %2501 = vmatprep.subr.mxu0 0.0
    %2502 = vmatpush1.msra.mxu0 0.0
    %2503 = vmatprep.subr.mxu0 0.0
    %2504 = vmatpush1.msra.mxu0 0.0
    %2505 = vmatprep.subr.mxu0 0.0
    %2506 = vmatpush1.msra.mxu0 0.0
    %2507 = vmatprep.subr.mxu0 0.0
    %2508 = vmatpush1.msra.mxu0 0.0
    %2509 = vmatprep.subr.mxu0 0.0
    %2510 = vmatpush1.msra.mxu0 0.0
    %2511 = vmatprep.subr.mxu0 0.0
    %2512 = vmatpush1.msra.mxu0 0.0
    %2513 = vmatprep.subr.mxu0 0.0
    %2514 = vmatpush1.msra.mxu0 0.0
    %2515 = vmatprep.subr.mxu0 0.0
    %2516 = vmatpush1.msra.mxu0 0.0
    %2517 = vmatprep.subr.mxu0 0.0
    %2518 = vmatpush1.msra.mxu0 0.0
    %2519 = vmatprep.subr.mxu0 0.0
    %2520 = vmatpush1.msra.mxu0 0.0
    %2521 = vmatprep.subr.mxu0 0.0
    %2522 = vmatpush1.msra.mxu0 0.0
    %2523 = vmatprep.subr.mxu0 0.0
    %2524 = vmatpush1.msra.mxu0 0.0
    %2525 = vmatprep.mubr.f32.mxu0 0.0
    %v2526 = vand.u32 %v1066, 4294901760
    %2527 = vmatmul.mubr.f32.gmra.mrb[0].mxu0 %v2526
    %v2528 = vpop.f32.mrb[0].mxu0
    %v2529 = vadd.f32 %v2451, %v2528
    %v2530 = vpop.f32.mrb[0].mxu0
    %2531 = vmatprep.mubr.f32.mxu0 0.0
    %v2532 = vand.u32 %v1069, 4294901760
    %2533 = vmatmul.mubr.f32.gmra.mrb[0].mxu0 %v2532
    %v2534 = vpop.f32.mrb[0].mxu0
    %v2535 = vadd.f32 %v2457, %v2534
    %v2536 = vpop.f32.mrb[0].mxu0
    %2537 = vdwg.mxu0
    %2538 = vmatprep.subr.mxu0 0.0
    %v2539 = vand.u32 %v59, 4294901760
    %2540 = vmatpush1.msra.mxu0 %v2539
    %2541 = vmatprep.subr.mxu0 0.0
    %2542 = vmatpush1.msra.mxu0 0.0
    %2543 = vmatprep.subr.mxu0 0.0
    %2544 = vmatpush1.msra.mxu0 0.0
    %2545 = vmatprep.subr.mxu0 0.0
    %2546 = vmatpush1.msra.mxu0 0.0
    %2547 = vmatprep.subr.mxu0 0.0
    %2548 = vmatpush1.msra.mxu0 0.0
    %2549 = vmatprep.subr.mxu0 0.0
    %2550 = vmatpush1.msra.mxu0 0.0
    %2551 = vmatprep.subr.mxu0 0.0
    %2552 = vmatpush1.msra.mxu0 0.0
    %2553 = vmatprep.subr.mxu0 0.0
    %2554 = vmatpush1.msra.mxu0 0.0
    %2555 = vmatprep.subr.mxu0 0.0
    %2556 = vmatpush1.msra.mxu0 0.0
    %2557 = vmatprep.subr.mxu0 0.0
    %2558 = vmatpush1.msra.mxu0 0.0
    %2559 = vmatprep.subr.mxu0 0.0
    %2560 = vmatpush1.msra.mxu0 0.0
    %2561 = vmatprep.subr.mxu0 0.0
    %2562 = vmatpush1.msra.mxu0 0.0
    %2563 = vmatprep.subr.mxu0 0.0
    %2564 = vmatpush1.msra.mxu0 0.0
    %2565 = vmatprep.subr.mxu0 0.0
    %2566 = vmatpush1.msra.mxu0 0.0
    %2567 = vmatprep.subr.mxu0 0.0
    %2568 = vmatpush1.msra.mxu0 0.0
    %2569 = vmatprep.subr.mxu0 0.0
    %2570 = vmatpush1.msra.mxu0 0.0
    %2571 = vmatprep.subr.mxu0 0.0
    %2572 = vmatpush1.msra.mxu0 0.0
    %2573 = vmatprep.subr.mxu0 0.0
    %2574 = vmatpush1.msra.mxu0 0.0
    %2575 = vmatprep.subr.mxu0 0.0
    %2576 = vmatpush1.msra.mxu0 0.0
    %2577 = vmatprep.subr.mxu0 0.0
    %2578 = vmatpush1.msra.mxu0 0.0
    %2579 = vmatprep.subr.mxu0 0.0
    %2580 = vmatpush1.msra.mxu0 0.0
    %2581 = vmatprep.subr.mxu0 0.0
    %2582 = vmatpush1.msra.mxu0 0.0
    %2583 = vmatprep.subr.mxu0 0.0
    %2584 = vmatpush1.msra.mxu0 0.0
    %2585 = vmatprep.subr.mxu0 0.0
    %2586 = vmatpush1.msra.mxu0 0.0
    %2587 = vmatprep.subr.mxu0 0.0
    %2588 = vmatpush1.msra.mxu0 0.0
    %2589 = vmatprep.subr.mxu0 0.0
    %2590 = vmatpush1.msra.mxu0 0.0
    %2591 = vmatprep.subr.mxu0 0.0
    %2592 = vmatpush1.msra.mxu0 0.0
    %2593 = vmatprep.subr.mxu0 0.0
    %2594 = vmatpush1.msra.mxu0 0.0
    %2595 = vmatprep.subr.mxu0 0.0
    %2596 = vmatpush1.msra.mxu0 0.0
    %2597 = vmatprep.subr.mxu0 0.0
    %2598 = vmatpush1.msra.mxu0 0.0
    %2599 = vmatprep.subr.mxu0 0.0
    %2600 = vmatpush1.msra.mxu0 0.0
    %2601 = vmatprep.subr.mxu0 0.0
    %2602 = vmatpush1.msra.mxu0 0.0
    %2603 = vmatprep.mubr.f32.mxu0 0.0
    %v2604 = vand.u32 %v1066, 4294901760
    %v2605 = vsub.f32 %v1066, %v2604
    %v2606 = vand.u32 %v2605, 4294901760
    %v2607 = vsub.f32 %v2605, %v2606
    %v2608 = vand.u32 %v2607, 4294901760
    %2609 = vmatmul.mubr.f32.gmra.mrb[0].mxu0 %v2608
    %v2610 = vpop.f32.mrb[0].mxu0
    %v2611 = vadd.f32 0.0, %v2610
    %v2612 = vpop.f32.mrb[0].mxu0
    %2613 = vmatprep.mubr.f32.mxu0 0.0
    %v2614 = vand.u32 %v1069, 4294901760
    %v2615 = vsub.f32 %v1069, %v2614
    %v2616 = vand.u32 %v2615, 4294901760
    %v2617 = vsub.f32 %v2615, %v2616
    %v2618 = vand.u32 %v2617, 4294901760
    %2619 = vmatmul.mubr.f32.gmra.mrb[0].mxu0 %v2618
    %v2620 = vpop.f32.mrb[0].mxu0
    %v2621 = vadd.f32 0.0, %v2620
    %v2622 = vpop.f32.mrb[0].mxu0
    %2623 = vdwg.mxu0
    %2624 = vmatprep.subr.mxu0 0.0
    %v2625 = vand.u32 %v59, 4294901760
    %v2626 = vsub.f32 %v59, %v2625
    %v2627 = vand.u32 %v2626, 4294901760
    %v2628 = vsub.f32 %v2626, %v2627
    %v2629 = vand.u32 %v2628, 4294901760
    %2630 = vmatpush1.msra.mxu0 %v2629
    %2631 = vmatprep.subr.mxu0 0.0
    %2632 = vmatpush1.msra.mxu0 0.0
    %2633 = vmatprep.subr.mxu0 0.0
    %2634 = vmatpush1.msra.mxu0 0.0
    %2635 = vmatprep.subr.mxu0 0.0
    %2636 = vmatpush1.msra.mxu0 0.0
    %2637 = vmatprep.subr.mxu0 0.0
    %2638 = vmatpush1.msra.mxu0 0.0
    %2639 = vmatprep.subr.mxu0 0.0
    %2640 = vmatpush1.msra.mxu0 0.0
    %2641 = vmatprep.subr.mxu0 0.0
    %2642 = vmatpush1.msra.mxu0 0.0
    %2643 = vmatprep.subr.mxu0 0.0
    %2644 = vmatpush1.msra.mxu0 0.0
    %2645 = vmatprep.subr.mxu0 0.0
    %2646 = vmatpush1.msra.mxu0 0.0
    %2647 = vmatprep.subr.mxu0 0.0
    %2648 = vmatpush1.msra.mxu0 0.0
    %2649 = vmatprep.subr.mxu0 0.0
    %2650 = vmatpush1.msra.mxu0 0.0
    %2651 = vmatprep.subr.mxu0 0.0
    %2652 = vmatpush1.msra.mxu0 0.0
    %2653 = vmatprep.subr.mxu0 0.0
    %2654 = vmatpush1.msra.mxu0 0.0
    %2655 = vmatprep.subr.mxu0 0.0
    %2656 = vmatpush1.msra.mxu0 0.0
    %2657 = vmatprep.subr.mxu0 0.0
    %2658 = vmatpush1.msra.mxu0 0.0
    %2659 = vmatprep.subr.mxu0 0.0
    %2660 = vmatpush1.msra.mxu0 0.0
    %2661 = vmatprep.subr.mxu0 0.0
    %2662 = vmatpush1.msra.mxu0 0.0
    %2663 = vmatprep.subr.mxu0 0.0
    %2664 = vmatpush1.msra.mxu0 0.0
    %2665 = vmatprep.subr.mxu0 0.0
    %2666 = vmatpush1.msra.mxu0 0.0
    %2667 = vmatprep.subr.mxu0 0.0
    %2668 = vmatpush1.msra.mxu0 0.0
    %2669 = vmatprep.subr.mxu0 0.0
    %2670 = vmatpush1.msra.mxu0 0.0
    %2671 = vmatprep.subr.mxu0 0.0
    %2672 = vmatpush1.msra.mxu0 0.0
    %2673 = vmatprep.subr.mxu0 0.0
    %2674 = vmatpush1.msra.mxu0 0.0
    %2675 = vmatprep.subr.mxu0 0.0
    %2676 = vmatpush1.msra.mxu0 0.0
    %2677 = vmatprep.subr.mxu0 0.0
    %2678 = vmatpush1.msra.mxu0 0.0
    %2679 = vmatprep.subr.mxu0 0.0
    %2680 = vmatpush1.msra.mxu0 0.0
    %2681 = vmatprep.subr.mxu0 0.0
    %2682 = vmatpush1.msra.mxu0 0.0
    %2683 = vmatprep.subr.mxu0 0.0
    %2684 = vmatpush1.msra.mxu0 0.0
    %2685 = vmatprep.subr.mxu0 0.0
    %2686 = vmatpush1.msra.mxu0 0.0
    %2687 = vmatprep.subr.mxu0 0.0
    %2688 = vmatpush1.msra.mxu0 0.0
    %2689 = vmatprep.subr.mxu0 0.0
    %2690 = vmatpush1.msra.mxu0 0.0
    %2691 = vmatprep.subr.mxu0 0.0
    %2692 = vmatpush1.msra.mxu0 0.0
    %2693 = vmatprep.mubr.f32.mxu0 0.0
    %v2694 = vand.u32 %v1066, 4294901760
    %2695 = vmatmul.mubr.f32.gmra.mrb[0].mxu0 %v2694
    %v2696 = vpop.f32.mrb[0].mxu0
    %v2697 = vadd.f32 %v2611, %v2696
    %v2698 = vpop.f32.mrb[0].mxu0
    %2699 = vmatprep.mubr.f32.mxu0 0.0
    %v2700 = vand.u32 %v1069, 4294901760
    %2701 = vmatmul.mubr.f32.gmra.mrb[0].mxu0 %v2700
    %v2702 = vpop.f32.mrb[0].mxu0
    %v2703 = vadd.f32 %v2621, %v2702
    %v2704 = vpop.f32.mrb[0].mxu0
    %2705 = vdwg.mxu0
    %2706 = vmatprep.subr.mxu0 0.0
    %v2707 = vand.u32 %v59, 4294901760
    %v2708 = vsub.f32 %v59, %v2707
    %2709 = vmatpush1.msra.mxu0 %v2708
    %2710 = vmatprep.subr.mxu0 0.0
    %2711 = vmatpush1.msra.mxu0 0.0
    %2712 = vmatprep.subr.mxu0 0.0
    %2713 = vmatpush1.msra.mxu0 0.0
    %2714 = vmatprep.subr.mxu0 0.0
    %2715 = vmatpush1.msra.mxu0 0.0
    %2716 = vmatprep.subr.mxu0 0.0
    %2717 = vmatpush1.msra.mxu0 0.0
    %2718 = vmatprep.subr.mxu0 0.0
    %2719 = vmatpush1.msra.mxu0 0.0
    %2720 = vmatprep.subr.mxu0 0.0
    %2721 = vmatpush1.msra.mxu0 0.0
    %2722 = vmatprep.subr.mxu0 0.0
    %2723 = vmatpush1.msra.mxu0 0.0
    %2724 = vmatprep.subr.mxu0 0.0
    %2725 = vmatpush1.msra.mxu0 0.0
    %2726 = vmatprep.subr.mxu0 0.0
    %2727 = vmatpush1.msra.mxu0 0.0
    %2728 = vmatprep.subr.mxu0 0.0
    %2729 = vmatpush1.msra.mxu0 0.0
    %2730 = vmatprep.subr.mxu0 0.0
    %2731 = vmatpush1.msra.mxu0 0.0
    %2732 = vmatprep.subr.mxu0 0.0
    %2733 = vmatpush1.msra.mxu0 0.0
    %2734 = vmatprep.subr.mxu0 0.0
    %2735 = vmatpush1.msra.mxu0 0.0
    %2736 = vmatprep.subr.mxu0 0.0
    %2737 = vmatpush1.msra.mxu0 0.0
    %2738 = vmatprep.subr.mxu0 0.0
    %2739 = vmatpush1.msra.mxu0 0.0
    %2740 = vmatprep.subr.mxu0 0.0
    %2741 = vmatpush1.msra.mxu0 0.0
    %2742 = vmatprep.subr.mxu0 0.0
    %2743 = vmatpush1.msra.mxu0 0.0
    %2744 = vmatprep.subr.mxu0 0.0
    %2745 = vmatpush1.msra.mxu0 0.0
    %2746 = vmatprep.subr.mxu0 0.0
    %2747 = vmatpush1.msra.mxu0 0.0
    %2748 = vmatprep.subr.mxu0 0.0
    %2749 = vmatpush1.msra.mxu0 0.0
    %2750 = vmatprep.subr.mxu0 0.0
    %2751 = vmatpush1.msra.mxu0 0.0
    %2752 = vmatprep.subr.mxu0 0.0
    %2753 = vmatpush1.msra.mxu0 0.0
    %2754 = vmatprep.subr.mxu0 0.0
    %2755 = vmatpush1.msra.mxu0 0.0
    %2756 = vmatprep.subr.mxu0 0.0
    %2757 = vmatpush1.msra.mxu0 0.0
    %2758 = vmatprep.subr.mxu0 0.0
    %2759 = vmatpush1.msra.mxu0 0.0
    %2760 = vmatprep.subr.mxu0 0.0
    %2761 = vmatpush1.msra.mxu0 0.0
    %2762 = vmatprep.subr.mxu0 0.0
    %2763 = vmatpush1.msra.mxu0 0.0
    %2764 = vmatprep.subr.mxu0 0.0
    %2765 = vmatpush1.msra.mxu0 0.0
    %2766 = vmatprep.subr.mxu0 0.0
    %2767 = vmatpush1.msra.mxu0 0.0
    %2768 = vmatprep.subr.mxu0 0.0
    %2769 = vmatpush1.msra.mxu0 0.0
    %2770 = vmatprep.subr.mxu0 0.0
    %2771 = vmatpush1.msra.mxu0 0.0
    %2772 = vmatprep.mubr.f32.mxu0 0.0
    %v2773 = vand.u32 %v1066, 4294901760
    %v2774 = vsub.f32 %v1066, %v2773
    %2775 = vmatmul.mubr.f32.gmra.mrb[0].mxu0 %v2774
    %v2776 = vpop.f32.mrb[0].mxu0
    %v2777 = vadd.f32 %v2697, %v2776
    %v2778 = vpop.f32.mrb[0].mxu0
    %2779 = vmatprep.mubr.f32.mxu0 0.0
    %v2780 = vand.u32 %v1069, 4294901760
    %v2781 = vsub.f32 %v1069, %v2780
    %2782 = vmatmul.mubr.f32.gmra.mrb[0].mxu0 %v2781
    %v2783 = vpop.f32.mrb[0].mxu0
    %v2784 = vadd.f32 %v2703, %v2783
    %v2785 = vpop.f32.mrb[0].mxu0
    %2786 = vdwg.mxu0
    %2787 = vmatprep.subr.mxu0 0.0
    %v2788 = vand.u32 %v59, 4294901760
    %2789 = vmatpush1.msra.mxu0 %v2788
    %2790 = vmatprep.subr.mxu0 0.0
    %2791 = vmatpush1.msra.mxu0 0.0
    %2792 = vmatprep.subr.mxu0 0.0
    %2793 = vmatpush1.msra.mxu0 0.0
    %2794 = vmatprep.subr.mxu0 0.0
    %2795 = vmatpush1.msra.mxu0 0.0
    %2796 = vmatprep.subr.mxu0 0.0
    %2797 = vmatpush1.msra.mxu0 0.0
    %2798 = vmatprep.subr.mxu0 0.0
    %2799 = vmatpush1.msra.mxu0 0.0
    %2800 = vmatprep.subr.mxu0 0.0
    %2801 = vmatpush1.msra.mxu0 0.0
    %2802 = vmatprep.subr.mxu0 0.0
    %2803 = vmatpush1.msra.mxu0 0.0
    %2804 = vmatprep.subr.mxu0 0.0
    %2805 = vmatpush1.msra.mxu0 0.0
    %2806 = vmatprep.subr.mxu0 0.0
    %2807 = vmatpush1.msra.mxu0 0.0
    %2808 = vmatprep.subr.mxu0 0.0
    %2809 = vmatpush1.msra.mxu0 0.0
    %2810 = vmatprep.subr.mxu0 0.0
    %2811 = vmatpush1.msra.mxu0 0.0
    %2812 = vmatprep.subr.mxu0 0.0
    %2813 = vmatpush1.msra.mxu0 0.0
    %2814 = vmatprep.subr.mxu0 0.0
    %2815 = vmatpush1.msra.mxu0 0.0
    %2816 = vmatprep.subr.mxu0 0.0
    %2817 = vmatpush1.msra.mxu0 0.0
    %2818 = vmatprep.subr.mxu0 0.0
    %2819 = vmatpush1.msra.mxu0 0.0
    %2820 = vmatprep.subr.mxu0 0.0
    %2821 = vmatpush1.msra.mxu0 0.0
    %2822 = vmatprep.subr.mxu0 0.0
    %2823 = vmatpush1.msra.mxu0 0.0
    %2824 = vmatprep.subr.mxu0 0.0
    %2825 = vmatpush1.msra.mxu0 0.0
    %2826 = vmatprep.subr.mxu0 0.0
    %2827 = vmatpush1.msra.mxu0 0.0
    %2828 = vmatprep.subr.mxu0 0.0
    %2829 = vmatpush1.msra.mxu0 0.0
    %2830 = vmatprep.subr.mxu0 0.0
    %2831 = vmatpush1.msra.mxu0 0.0
    %2832 = vmatprep.subr.mxu0 0.0
    %2833 = vmatpush1.msra.mxu0 0.0
    %2834 = vmatprep.subr.mxu0 0.0
    %2835 = vmatpush1.msra.mxu0 0.0
    %2836 = vmatprep.subr.mxu0 0.0
    %2837 = vmatpush1.msra.mxu0 0.0
    %2838 = vmatprep.subr.mxu0 0.0
    %2839 = vmatpush1.msra.mxu0 0.0
    %2840 = vmatprep.subr.mxu0 0.0
    %2841 = vmatpush1.msra.mxu0 0.0
    %2842 = vmatprep.subr.mxu0 0.0
    %2843 = vmatpush1.msra.mxu0 0.0
    %2844 = vmatprep.subr.mxu0 0.0
    %2845 = vmatpush1.msra.mxu0 0.0
    %2846 = vmatprep.subr.mxu0 0.0
    %2847 = vmatpush1.msra.mxu0 0.0
    %2848 = vmatprep.subr.mxu0 0.0
    %2849 = vmatpush1.msra.mxu0 0.0
    %2850 = vmatprep.subr.mxu0 0.0
    %2851 = vmatpush1.msra.mxu0 0.0
    %2852 = vmatprep.mubr.f32.mxu0 0.0
    %v2853 = vand.u32 %v1066, 4294901760
    %v2854 = vsub.f32 %v1066, %v2853
    %v2855 = vand.u32 %v2854, 4294901760
    %2856 = vmatmul.mubr.f32.gmra.mrb[0].mxu0 %v2855
    %v2857 = vpop.f32.mrb[0].mxu0
    %v2858 = vadd.f32 %v2777, %v2857
    %v2859 = vpop.f32.mrb[0].mxu0
    %2860 = vmatprep.mubr.f32.mxu0 0.0
    %v2861 = vand.u32 %v1069, 4294901760
    %v2862 = vsub.f32 %v1069, %v2861
    %v2863 = vand.u32 %v2862, 4294901760
    %2864 = vmatmul.mubr.f32.gmra.mrb[0].mxu0 %v2863
    %v2865 = vpop.f32.mrb[0].mxu0
    %v2866 = vadd.f32 %v2784, %v2865
    %v2867 = vpop.f32.mrb[0].mxu0
    %2868 = vdwg.mxu0
    %2869 = vmatprep.subr.mxu0 0.0
    %v2870 = vand.u32 %v59, 4294901760
    %v2871 = vsub.f32 %v59, %v2870
    %v2872 = vand.u32 %v2871, 4294901760
    %2873 = vmatpush1.msra.mxu0 %v2872
    %2874 = vmatprep.subr.mxu0 0.0
    %2875 = vmatpush1.msra.mxu0 0.0
    %2876 = vmatprep.subr.mxu0 0.0
    %2877 = vmatpush1.msra.mxu0 0.0
    %2878 = vmatprep.subr.mxu0 0.0
    %2879 = vmatpush1.msra.mxu0 0.0
    %2880 = vmatprep.subr.mxu0 0.0
    %2881 = vmatpush1.msra.mxu0 0.0
    %2882 = vmatprep.subr.mxu0 0.0
    %2883 = vmatpush1.msra.mxu0 0.0
    %2884 = vmatprep.subr.mxu0 0.0
    %2885 = vmatpush1.msra.mxu0 0.0
    %2886 = vmatprep.subr.mxu0 0.0
    %2887 = vmatpush1.msra.mxu0 0.0
    %2888 = vmatprep.subr.mxu0 0.0
    %2889 = vmatpush1.msra.mxu0 0.0
    %2890 = vmatprep.subr.mxu0 0.0
    %2891 = vmatpush1.msra.mxu0 0.0
    %2892 = vmatprep.subr.mxu0 0.0
    %2893 = vmatpush1.msra.mxu0 0.0
    %2894 = vmatprep.subr.mxu0 0.0
    %2895 = vmatpush1.msra.mxu0 0.0
    %2896 = vmatprep.subr.mxu0 0.0
    %2897 = vmatpush1.msra.mxu0 0.0
    %2898 = vmatprep.subr.mxu0 0.0
    %2899 = vmatpush1.msra.mxu0 0.0
    %2900 = vmatprep.subr.mxu0 0.0
    %2901 = vmatpush1.msra.mxu0 0.0
    %2902 = vmatprep.subr.mxu0 0.0
    %2903 = vmatpush1.msra.mxu0 0.0
    %2904 = vmatprep.subr.mxu0 0.0
    %2905 = vmatpush1.msra.mxu0 0.0
    %2906 = vmatprep.subr.mxu0 0.0
    %2907 = vmatpush1.msra.mxu0 0.0
    %2908 = vmatprep.subr.mxu0 0.0
    %2909 = vmatpush1.msra.mxu0 0.0
    %2910 = vmatprep.subr.mxu0 0.0
    %2911 = vmatpush1.msra.mxu0 0.0
    %2912 = vmatprep.subr.mxu0 0.0
    %2913 = vmatpush1.msra.mxu0 0.0
    %2914 = vmatprep.subr.mxu0 0.0
    %2915 = vmatpush1.msra.mxu0 0.0
    %2916 = vmatprep.subr.mxu0 0.0
    %2917 = vmatpush1.msra.mxu0 0.0
    %2918 = vmatprep.subr.mxu0 0.0
    %2919 = vmatpush1.msra.mxu0 0.0
    %2920 = vmatprep.subr.mxu0 0.0
    %2921 = vmatpush1.msra.mxu0 0.0
    %2922 = vmatprep.subr.mxu0 0.0
    %2923 = vmatpush1.msra.mxu0 0.0
    %2924 = vmatprep.subr.mxu0 0.0
    %2925 = vmatpush1.msra.mxu0 0.0
    %2926 = vmatprep.subr.mxu0 0.0
    %2927 = vmatpush1.msra.mxu0 0.0
    %2928 = vmatprep.subr.mxu0 0.0
    %2929 = vmatpush1.msra.mxu0 0.0
    %2930 = vmatprep.subr.mxu0 0.0
    %2931 = vmatpush1.msra.mxu0 0.0
    %2932 = vmatprep.subr.mxu0 0.0
    %2933 = vmatpush1.msra.mxu0 0.0
    %2934 = vmatprep.subr.mxu0 0.0
    %2935 = vmatpush1.msra.mxu0 0.0
    %2936 = vmatprep.mubr.f32.mxu0 0.0
    %v2937 = vand.u32 %v1066, 4294901760
    %2938 = vmatmul.mubr.f32.gmra.mrb[0].mxu0 %v2937
    %v2939 = vpop.f32.mrb[0].mxu0
    %v2940 = vadd.f32 %v2858, %v2939
    %v2941 = vpop.f32.mrb[0].mxu0
    %2942 = vmatprep.mubr.f32.mxu0 0.0
    %v2943 = vand.u32 %v1069, 4294901760
    %2944 = vmatmul.mubr.f32.gmra.mrb[0].mxu0 %v2943
    %v2945 = vpop.f32.mrb[0].mxu0
    %v2946 = vadd.f32 %v2866, %v2945
    %v2947 = vpop.f32.mrb[0].mxu0
    %2948 = vdwg.mxu0
    %2949 = vmatprep.subr.mxu0 0.0
    %v2950 = vand.u32 %v59, 4294901760
    %2951 = vmatpush1.msra.mxu0 %v2950
    %2952 = vmatprep.subr.mxu0 0.0
    %2953 = vmatpush1.msra.mxu0 0.0
    %2954 = vmatprep.subr.mxu0 0.0
    %2955 = vmatpush1.msra.mxu0 0.0
    %2956 = vmatprep.subr.mxu0 0.0
    %2957 = vmatpush1.msra.mxu0 0.0
    %2958 = vmatprep.subr.mxu0 0.0
    %2959 = vmatpush1.msra.mxu0 0.0
    %2960 = vmatprep.subr.mxu0 0.0
    %2961 = vmatpush1.msra.mxu0 0.0
    %2962 = vmatprep.subr.mxu0 0.0
    %2963 = vmatpush1.msra.mxu0 0.0
    %2964 = vmatprep.subr.mxu0 0.0
    %2965 = vmatpush1.msra.mxu0 0.0
    %2966 = vmatprep.subr.mxu0 0.0
    %2967 = vmatpush1.msra.mxu0 0.0
    %2968 = vmatprep.subr.mxu0 0.0
    %2969 = vmatpush1.msra.mxu0 0.0
    %2970 = vmatprep.subr.mxu0 0.0
    %2971 = vmatpush1.msra.mxu0 0.0
    %2972 = vmatprep.subr.mxu0 0.0
    %2973 = vmatpush1.msra.mxu0 0.0
    %2974 = vmatprep.subr.mxu0 0.0
    %2975 = vmatpush1.msra.mxu0 0.0
    %2976 = vmatprep.subr.mxu0 0.0
    %2977 = vmatpush1.msra.mxu0 0.0
    %2978 = vmatprep.subr.mxu0 0.0
    %2979 = vmatpush1.msra.mxu0 0.0
    %2980 = vmatprep.subr.mxu0 0.0
    %2981 = vmatpush1.msra.mxu0 0.0
    %2982 = vmatprep.subr.mxu0 0.0
    %2983 = vmatpush1.msra.mxu0 0.0
    %2984 = vmatprep.subr.mxu0 0.0
    %2985 = vmatpush1.msra.mxu0 0.0
    %2986 = vmatprep.subr.mxu0 0.0
    %2987 = vmatpush1.msra.mxu0 0.0
    %2988 = vmatprep.subr.mxu0 0.0
    %2989 = vmatpush1.msra.mxu0 0.0
    %2990 = vmatprep.subr.mxu0 0.0
    %2991 = vmatpush1.msra.mxu0 0.0
    %2992 = vmatprep.subr.mxu0 0.0
    %2993 = vmatpush1.msra.mxu0 0.0
    %2994 = vmatprep.subr.mxu0 0.0
    %2995 = vmatpush1.msra.mxu0 0.0
    %2996 = vmatprep.subr.mxu0 0.0
    %2997 = vmatpush1.msra.mxu0 0.0
    %2998 = vmatprep.subr.mxu0 0.0
    %2999 = vmatpush1.msra.mxu0 0.0
    %3000 = vmatprep.subr.mxu0 0.0
    %3001 = vmatpush1.msra.mxu0 0.0
    %3002 = vmatprep.subr.mxu0 0.0
    %3003 = vmatpush1.msra.mxu0 0.0
    %3004 = vmatprep.subr.mxu0 0.0
    %3005 = vmatpush1.msra.mxu0 0.0
    %3006 = vmatprep.subr.mxu0 0.0
    %3007 = vmatpush1.msra.mxu0 0.0
    %3008 = vmatprep.subr.mxu0 0.0
    %3009 = vmatpush1.msra.mxu0 0.0
    %3010 = vmatprep.subr.mxu0 0.0
    %3011 = vmatpush1.msra.mxu0 0.0
    %3012 = vmatprep.subr.mxu0 0.0
    %3013 = vmatpush1.msra.mxu0 0.0
    %3014 = vmatprep.mubr.f32.mxu0 0.0
    %v3015 = vand.u32 %v1066, 4294901760
    %3016 = vmatmul.mubr.f32.gmra.mrb[0].mxu0 %v3015
    %v3017 = vpop.f32.mrb[0].mxu0
    %v3018 = vadd.f32 %v2940, %v3017
    %v3019 = vpop.f32.mrb[0].mxu0
    %3020 = vmatprep.mubr.f32.mxu0 0.0
    %v3021 = vand.u32 %v1069, 4294901760
    %3022 = vmatmul.mubr.f32.gmra.mrb[0].mxu0 %v3021
    %v3023 = vpop.f32.mrb[0].mxu0
    %v3024 = vadd.f32 %v2946, %v3023
    %v3025 = vpop.f32.mrb[0].mxu0
    %3026 = vdwg.mxu0
    %v3028 = vsel %vm569, %v2040, 0
    %v3031 = vsel %vm569, %v2046, 0
    %v3034 = vsel %vm569, %v2529, 0
    %v3037 = vsel %vm569, %v2535, 0
    %3039 = vmatprep.subr.mxu0 0.0
    %v3040 = vand.u32 %v3034, 4294901760
    %3041 = vmatpush1.xpose.msra.mxu0 %v3040
    %3042 = vmatprep.subr.mxu0 0.0
    %v3043 = vand.u32 %v3037, 4294901760
    %3044 = vmatpush1.xpose.msra.mxu0 %v3043
    %3045 = vmatprep.subr.mxu0 0.0
    %3046 = vmatpush1.xpose.msra.mxu0 0.0
    %3047 = vmatprep.subr.mxu0 0.0
    %3048 = vmatpush1.xpose.msra.mxu0 0.0
    %3049 = vmatprep.subr.mxu0 0.0
    %3050 = vmatpush1.xpose.msra.mxu0 0.0
    %3051 = vmatprep.subr.mxu0 0.0
    %3052 = vmatpush1.xpose.msra.mxu0 0.0
    %3053 = vmatprep.subr.mxu0 0.0
    %3054 = vmatpush1.xpose.msra.mxu0 0.0
    %3055 = vmatprep.subr.mxu0 0.0
    %3056 = vmatpush1.xpose.msra.mxu0 0.0
    %3057 = vmatprep.subr.mxu0 0.0
    %3058 = vmatpush1.xpose.msra.mxu0 0.0
    %3059 = vmatprep.subr.mxu0 0.0
    %3060 = vmatpush1.xpose.msra.mxu0 0.0
    %3061 = vmatprep.subr.mxu0 0.0
    %3062 = vmatpush1.xpose.msra.mxu0 0.0
    %3063 = vmatprep.subr.mxu0 0.0
    %3064 = vmatpush1.xpose.msra.mxu0 0.0
    %3065 = vmatprep.subr.mxu0 0.0
    %3066 = vmatpush1.xpose.msra.mxu0 0.0
    %3067 = vmatprep.subr.mxu0 0.0
    %3068 = vmatpush1.xpose.msra.mxu0 0.0
    %3069 = vmatprep.subr.mxu0 0.0
    %3070 = vmatpush1.xpose.msra.mxu0 0.0
    %3071 = vmatprep.subr.mxu0 0.0
    %3072 = vmatpush1.xpose.msra.mxu0 0.0
    %3073 = vmatprep.subr.mxu0 0.0
    %3074 = vmatpush1.xpose.msra.mxu0 0.0
    %3075 = vmatprep.subr.mxu0 0.0
    %3076 = vmatpush1.xpose.msra.mxu0 0.0
    %3077 = vmatprep.subr.mxu0 0.0
    %3078 = vmatpush1.xpose.msra.mxu0 0.0
    %3079 = vmatprep.subr.mxu0 0.0
    %3080 = vmatpush1.xpose.msra.mxu0 0.0
    %3081 = vmatprep.subr.mxu0 0.0
    %3082 = vmatpush1.xpose.msra.mxu0 0.0
    %3083 = vmatprep.subr.mxu0 0.0
    %3084 = vmatpush1.xpose.msra.mxu0 0.0
    %3085 = vmatprep.subr.mxu0 0.0
    %3086 = vmatpush1.xpose.msra.mxu0 0.0
    %3087 = vmatprep.subr.mxu0 0.0
    %3088 = vmatpush1.xpose.msra.mxu0 0.0
    %3089 = vmatprep.subr.mxu0 0.0
    %3090 = vmatpush1.xpose.msra.mxu0 0.0
    %3091 = vmatprep.subr.mxu0 0.0
    %3092 = vmatpush1.xpose.msra.mxu0 0.0
    %3093 = vmatprep.subr.mxu0 0.0
    %3094 = vmatpush1.xpose.msra.mxu0 0.0
    %3095 = vmatprep.subr.mxu0 0.0
    %3096 = vmatpush1.xpose.msra.mxu0 0.0
    %3097 = vmatprep.subr.mxu0 0.0
    %3098 = vmatpush1.xpose.msra.mxu0 0.0
    %3099 = vmatprep.subr.mxu0 0.0
    %3100 = vmatpush1.xpose.msra.mxu0 0.0
    %3101 = vmatprep.subr.mxu0 0.0
    %3102 = vmatpush1.xpose.msra.mxu0 0.0
    %3103 = vmatprep.subr.mxu0 0.0
    %3104 = vmatpush1.xpose.msra.mxu0 0.0
    %3105 = vmatprep.mubr.f32.mxu0 0.0
    %v3106 = vand.u32 %v3028, 4294901760
    %v3107 = vsub.f32 %v3028, %v3106
    %v3108 = vand.u32 %v3107, 4294901760
    %v3109 = vsub.f32 %v3107, %v3108
    %v3110 = vand.u32 %v3109, 4294901760
    %3111 = vmatmul.mubr.f32.gmra.mrb[0].mxu0 %v3110
    %v3112 = vpop.f32.mrb[0].mxu0
    %v3113 = vadd.f32 0.0, %v3112
    %v3114 = vpop.f32.mrb[0].mxu0
    %3115 = vmatprep.mubr.f32.mxu0 0.0
    %v3116 = vand.u32 %v3031, 4294901760
    %v3117 = vsub.f32 %v3031, %v3116
    %v3118 = vand.u32 %v3117, 4294901760
    %v3119 = vsub.f32 %v3117, %v3118
    %v3120 = vand.u32 %v3119, 4294901760
    %3121 = vmatmul.mubr.f32.gmra.mrb[0].mxu0 %v3120
    %v3122 = vpop.f32.mrb[0].mxu0
    %v3123 = vadd.f32 0.0, %v3122
    %v3124 = vpop.f32.mrb[0].mxu0
    %3125 = vdwg.mxu0
    %3126 = vmatprep.subr.mxu0 0.0
    %v3127 = vand.u32 %v3034, 4294901760
    %v3128 = vsub.f32 %v3034, %v3127
    %v3129 = vand.u32 %v3128, 4294901760
    %v3130 = vsub.f32 %v3128, %v3129
    %v3131 = vand.u32 %v3130, 4294901760
    %3132 = vmatpush1.xpose.msra.mxu0 %v3131
    %3133 = vmatprep.subr.mxu0 0.0
    %v3134 = vand.u32 %v3037, 4294901760
    %v3135 = vsub.f32 %v3037, %v3134
    %v3136 = vand.u32 %v3135, 4294901760
    %v3137 = vsub.f32 %v3135, %v3136
    %v3138 = vand.u32 %v3137, 4294901760
    %3139 = vmatpush1.xpose.msra.mxu0 %v3138
    %3140 = vmatprep.subr.mxu0 0.0
    %3141 = vmatpush1.xpose.msra.mxu0 0.0
    %3142 = vmatprep.subr.mxu0 0.0
    %3143 = vmatpush1.xpose.msra.mxu0 0.0
    %3144 = vmatprep.subr.mxu0 0.0
    %3145 = vmatpush1.xpose.msra.mxu0 0.0
    %3146 = vmatprep.subr.mxu0 0.0
    %3147 = vmatpush1.xpose.msra.mxu0 0.0
    %3148 = vmatprep.subr.mxu0 0.0
    %3149 = vmatpush1.xpose.msra.mxu0 0.0
    %3150 = vmatprep.subr.mxu0 0.0
    %3151 = vmatpush1.xpose.msra.mxu0 0.0
    %3152 = vmatprep.subr.mxu0 0.0
    %3153 = vmatpush1.xpose.msra.mxu0 0.0
    %3154 = vmatprep.subr.mxu0 0.0
    %3155 = vmatpush1.xpose.msra.mxu0 0.0
    %3156 = vmatprep.subr.mxu0 0.0
    %3157 = vmatpush1.xpose.msra.mxu0 0.0
    %3158 = vmatprep.subr.mxu0 0.0
    %3159 = vmatpush1.xpose.msra.mxu0 0.0
    %3160 = vmatprep.subr.mxu0 0.0
    %3161 = vmatpush1.xpose.msra.mxu0 0.0
    %3162 = vmatprep.subr.mxu0 0.0
    %3163 = vmatpush1.xpose.msra.mxu0 0.0
    %3164 = vmatprep.subr.mxu0 0.0
    %3165 = vmatpush1.xpose.msra.mxu0 0.0
    %3166 = vmatprep.subr.mxu0 0.0
    %3167 = vmatpush1.xpose.msra.mxu0 0.0
    %3168 = vmatprep.subr.mxu0 0.0
    %3169 = vmatpush1.xpose.msra.mxu0 0.0
    %3170 = vmatprep.subr.mxu0 0.0
    %3171 = vmatpush1.xpose.msra.mxu0 0.0
    %3172 = vmatprep.subr.mxu0 0.0
    %3173 = vmatpush1.xpose.msra.mxu0 0.0
    %3174 = vmatprep.subr.mxu0 0.0
    %3175 = vmatpush1.xpose.msra.mxu0 0.0
    %3176 = vmatprep.subr.mxu0 0.0
    %3177 = vmatpush1.xpose.msra.mxu0 0.0
    %3178 = vmatprep.subr.mxu0 0.0
    %3179 = vmatpush1.xpose.msra.mxu0 0.0
    %3180 = vmatprep.subr.mxu0 0.0
    %3181 = vmatpush1.xpose.msra.mxu0 0.0
    %3182 = vmatprep.subr.mxu0 0.0
    %3183 = vmatpush1.xpose.msra.mxu0 0.0
    %3184 = vmatprep.subr.mxu0 0.0
    %3185 = vmatpush1.xpose.msra.mxu0 0.0
    %3186 = vmatprep.subr.mxu0 0.0
    %3187 = vmatpush1.xpose.msra.mxu0 0.0
    %3188 = vmatprep.subr.mxu0 0.0
    %3189 = vmatpush1.xpose.msra.mxu0 0.0
    %3190 = vmatprep.subr.mxu0 0.0
    %3191 = vmatpush1.xpose.msra.mxu0 0.0
    %3192 = vmatprep.subr.mxu0 0.0
    %3193 = vmatpush1.xpose.msra.mxu0 0.0
    %3194 = vmatprep.subr.mxu0 0.0
    %3195 = vmatpush1.xpose.msra.mxu0 0.0
    %3196 = vmatprep.subr.mxu0 0.0
    %3197 = vmatpush1.xpose.msra.mxu0 0.0
    %3198 = vmatprep.subr.mxu0 0.0
    %3199 = vmatpush1.xpose.msra.mxu0 0.0
    %3200 = vmatprep.mubr.f32.mxu0 0.0
    %v3201 = vand.u32 %v3028, 4294901760
    %3202 = vmatmul.mubr.f32.gmra.mrb[0].mxu0 %v3201
    %v3203 = vpop.f32.mrb[0].mxu0
    %v3204 = vadd.f32 %v3113, %v3203
    %v3205 = vpop.f32.mrb[0].mxu0
    %3206 = vmatprep.mubr.f32.mxu0 0.0
    %v3207 = vand.u32 %v3031, 4294901760
    %3208 = vmatmul.mubr.f32.gmra.mrb[0].mxu0 %v3207
    %v3209 = vpop.f32.mrb[0].mxu0
    %v3210 = vadd.f32 %v3123, %v3209
    %v3211 = vpop.f32.mrb[0].mxu0
    %3212 = vdwg.mxu0
    %3213 = vmatprep.subr.mxu0 0.0
    %v3214 = vand.u32 %v3034, 4294901760
    %v3215 = vsub.f32 %v3034, %v3214
    %3216 = vmatpush1.xpose.msra.mxu0 %v3215
    %3217 = vmatprep.subr.mxu0 0.0
    %v3218 = vand.u32 %v3037, 4294901760
    %v3219 = vsub.f32 %v3037, %v3218
    %3220 = vmatpush1.xpose.msra.mxu0 %v3219
    %3221 = vmatprep.subr.mxu0 0.0
    %3222 = vmatpush1.xpose.msra.mxu0 0.0
    %3223 = vmatprep.subr.mxu0 0.0
    %3224 = vmatpush1.xpose.msra.mxu0 0.0
    %3225 = vmatprep.subr.mxu0 0.0
    %3226 = vmatpush1.xpose.msra.mxu0 0.0
    %3227 = vmatprep.subr.mxu0 0.0
    %3228 = vmatpush1.xpose.msra.mxu0 0.0
    %3229 = vmatprep.subr.mxu0 0.0
    %3230 = vmatpush1.xpose.msra.mxu0 0.0
    %3231 = vmatprep.subr.mxu0 0.0
    %3232 = vmatpush1.xpose.msra.mxu0 0.0
    %3233 = vmatprep.subr.mxu0 0.0
    %3234 = vmatpush1.xpose.msra.mxu0 0.0
    %3235 = vmatprep.subr.mxu0 0.0
    %3236 = vmatpush1.xpose.msra.mxu0 0.0
    %3237 = vmatprep.subr.mxu0 0.0
    %3238 = vmatpush1.xpose.msra.mxu0 0.0
    %3239 = vmatprep.subr.mxu0 0.0
    %3240 = vmatpush1.xpose.msra.mxu0 0.0
    %3241 = vmatprep.subr.mxu0 0.0
    %3242 = vmatpush1.xpose.msra.mxu0 0.0
    %3243 = vmatprep.subr.mxu0 0.0
    %3244 = vmatpush1.xpose.msra.mxu0 0.0
    %3245 = vmatprep.subr.mxu0 0.0
    %3246 = vmatpush1.xpose.msra.mxu0 0.0
    %3247 = vmatprep.subr.mxu0 0.0
    %3248 = vmatpush1.xpose.msra.mxu0 0.0
    %3249 = vmatprep.subr.mxu0 0.0
    %3250 = vmatpush1.xpose.msra.mxu0 0.0
    %3251 = vmatprep.subr.mxu0 0.0
    %3252 = vmatpush1.xpose.msra.mxu0 0.0
    %3253 = vmatprep.subr.mxu0 0.0
    %3254 = vmatpush1.xpose.msra.mxu0 0.0
    %3255 = vmatprep.subr.mxu0 0.0
    %3256 = vmatpush1.xpose.msra.mxu0 0.0
    %3257 = vmatprep.subr.mxu0 0.0
    %3258 = vmatpush1.xpose.msra.mxu0 0.0
    %3259 = vmatprep.subr.mxu0 0.0
    %3260 = vmatpush1.xpose.msra.mxu0 0.0
    %3261 = vmatprep.subr.mxu0 0.0
    %3262 = vmatpush1.xpose.msra.mxu0 0.0
    %3263 = vmatprep.subr.mxu0 0.0
    %3264 = vmatpush1.xpose.msra.mxu0 0.0
    %3265 = vmatprep.subr.mxu0 0.0
    %3266 = vmatpush1.xpose.msra.mxu0 0.0
    %3267 = vmatprep.subr.mxu0 0.0
    %3268 = vmatpush1.xpose.msra.mxu0 0.0
    %3269 = vmatprep.subr.mxu0 0.0
    %3270 = vmatpush1.xpose.msra.mxu0 0.0
    %3271 = vmatprep.subr.mxu0 0.0
    %3272 = vmatpush1.xpose.msra.mxu0 0.0
    %3273 = vmatprep.subr.mxu0 0.0
    %3274 = vmatpush1.xpose.msra.mxu0 0.0
    %3275 = vmatprep.subr.mxu0 0.0
    %3276 = vmatpush1.xpose.msra.mxu0 0.0
    %3277 = vmatprep.subr.mxu0 0.0
    %3278 = vmatpush1.xpose.msra.mxu0 0.0
    %3279 = vmatprep.subr.mxu0 0.0
    %3280 = vmatpush1.xpose.msra.mxu0 0.0
    %3281 = vmatprep.mubr.f32.mxu0 0.0
    %v3282 = vand.u32 %v3028, 4294901760
    %v3283 = vsub.f32 %v3028, %v3282
    %3284 = vmatmul.mubr.f32.gmra.mrb[0].mxu0 %v3283
    %v3285 = vpop.f32.mrb[0].mxu0
    %v3286 = vadd.f32 %v3204, %v3285
    %v3287 = vpop.f32.mrb[0].mxu0
    %3288 = vmatprep.mubr.f32.mxu0 0.0
    %v3289 = vand.u32 %v3031, 4294901760
    %v3290 = vsub.f32 %v3031, %v3289
    %3291 = vmatmul.mubr.f32.gmra.mrb[0].mxu0 %v3290
    %v3292 = vpop.f32.mrb[0].mxu0
    %v3293 = vadd.f32 %v3210, %v3292
    %v3294 = vpop.f32.mrb[0].mxu0
    %3295 = vdwg.mxu0
    %3296 = vmatprep.subr.mxu0 0.0
    %v3297 = vand.u32 %v3034, 4294901760
    %3298 = vmatpush1.xpose.msra.mxu0 %v3297
    %3299 = vmatprep.subr.mxu0 0.0
    %v3300 = vand.u32 %v3037, 4294901760
    %3301 = vmatpush1.xpose.msra.mxu0 %v3300
    %3302 = vmatprep.subr.mxu0 0.0
    %3303 = vmatpush1.xpose.msra.mxu0 0.0
    %3304 = vmatprep.subr.mxu0 0.0
    %3305 = vmatpush1.xpose.msra.mxu0 0.0
    %3306 = vmatprep.subr.mxu0 0.0
    %3307 = vmatpush1.xpose.msra.mxu0 0.0
    %3308 = vmatprep.subr.mxu0 0.0
    %3309 = vmatpush1.xpose.msra.mxu0 0.0
    %3310 = vmatprep.subr.mxu0 0.0
    %3311 = vmatpush1.xpose.msra.mxu0 0.0
    %3312 = vmatprep.subr.mxu0 0.0
    %3313 = vmatpush1.xpose.msra.mxu0 0.0
    %3314 = vmatprep.subr.mxu0 0.0
    %3315 = vmatpush1.xpose.msra.mxu0 0.0
    %3316 = vmatprep.subr.mxu0 0.0
    %3317 = vmatpush1.xpose.msra.mxu0 0.0
    %3318 = vmatprep.subr.mxu0 0.0
    %3319 = vmatpush1.xpose.msra.mxu0 0.0
    %3320 = vmatprep.subr.mxu0 0.0
    %3321 = vmatpush1.xpose.msra.mxu0 0.0
    %3322 = vmatprep.subr.mxu0 0.0
    %3323 = vmatpush1.xpose.msra.mxu0 0.0
    %3324 = vmatprep.subr.mxu0 0.0
    %3325 = vmatpush1.xpose.msra.mxu0 0.0
    %3326 = vmatprep.subr.mxu0 0.0
    %3327 = vmatpush1.xpose.msra.mxu0 0.0
    %3328 = vmatprep.subr.mxu0 0.0
    %3329 = vmatpush1.xpose.msra.mxu0 0.0
    %3330 = vmatprep.subr.mxu0 0.0
    %3331 = vmatpush1.xpose.msra.mxu0 0.0
    %3332 = vmatprep.subr.mxu0 0.0
    %3333 = vmatpush1.xpose.msra.mxu0 0.0
    %3334 = vmatprep.subr.mxu0 0.0
    %3335 = vmatpush1.xpose.msra.mxu0 0.0
    %3336 = vmatprep.subr.mxu0 0.0
    %3337 = vmatpush1.xpose.msra.mxu0 0.0
    %3338 = vmatprep.subr.mxu0 0.0
    %3339 = vmatpush1.xpose.msra.mxu0 0.0
    %3340 = vmatprep.subr.mxu0 0.0
    %3341 = vmatpush1.xpose.msra.mxu0 0.0
    %3342 = vmatprep.subr.mxu0 0.0
    %3343 = vmatpush1.xpose.msra.mxu0 0.0
    %3344 = vmatprep.subr.mxu0 0.0
    %3345 = vmatpush1.xpose.msra.mxu0 0.0
    %3346 = vmatprep.subr.mxu0 0.0
    %3347 = vmatpush1.xpose.msra.mxu0 0.0
    %3348 = vmatprep.subr.mxu0 0.0
    %3349 = vmatpush1.xpose.msra.mxu0 0.0
    %3350 = vmatprep.subr.mxu0 0.0
    %3351 = vmatpush1.xpose.msra.mxu0 0.0
    %3352 = vmatprep.subr.mxu0 0.0
    %3353 = vmatpush1.xpose.msra.mxu0 0.0
    %3354 = vmatprep.subr.mxu0 0.0
    %3355 = vmatpush1.xpose.msra.mxu0 0.0
    %3356 = vmatprep.subr.mxu0 0.0
    %3357 = vmatpush1.xpose.msra.mxu0 0.0
    %3358 = vmatprep.subr.mxu0 0.0
    %3359 = vmatpush1.xpose.msra.mxu0 0.0
    %3360 = vmatprep.subr.mxu0 0.0
    %3361 = vmatpush1.xpose.msra.mxu0 0.0
    %3362 = vmatprep.mubr.f32.mxu0 0.0
    %v3363 = vand.u32 %v3028, 4294901760
    %v3364 = vsub.f32 %v3028, %v3363
    %v3365 = vand.u32 %v3364, 4294901760
    %3366 = vmatmul.mubr.f32.gmra.mrb[0].mxu0 %v3365
    %v3367 = vpop.f32.mrb[0].mxu0
    %v3368 = vadd.f32 %v3286, %v3367
    %v3369 = vpop.f32.mrb[0].mxu0
    %3370 = vmatprep.mubr.f32.mxu0 0.0
    %v3371 = vand.u32 %v3031, 4294901760
    %v3372 = vsub.f32 %v3031, %v3371
    %v3373 = vand.u32 %v3372, 4294901760
    %3374 = vmatmul.mubr.f32.gmra.mrb[0].mxu0 %v3373
    %v3375 = vpop.f32.mrb[0].mxu0
    %v3376 = vadd.f32 %v3293, %v3375
    %v3377 = vpop.f32.mrb[0].mxu0
    %3378 = vdwg.mxu0
    %3379 = vmatprep.subr.mxu0 0.0
    %v3380 = vand.u32 %v3034, 4294901760
    %v3381 = vsub.f32 %v3034, %v3380
    %v3382 = vand.u32 %v3381, 4294901760
    %3383 = vmatpush1.xpose.msra.mxu0 %v3382
    %3384 = vmatprep.subr.mxu0 0.0
    %v3385 = vand.u32 %v3037, 4294901760
    %v3386 = vsub.f32 %v3037, %v3385
    %v3387 = vand.u32 %v3386, 4294901760
    %3388 = vmatpush1.xpose.msra.mxu0 %v3387
    %3389 = vmatprep.subr.mxu0 0.0
    %3390 = vmatpush1.xpose.msra.mxu0 0.0
    %3391 = vmatprep.subr.mxu0 0.0
    %3392 = vmatpush1.xpose.msra.mxu0 0.0
    %3393 = vmatprep.subr.mxu0 0.0
    %3394 = vmatpush1.xpose.msra.mxu0 0.0
    %3395 = vmatprep.subr.mxu0 0.0
    %3396 = vmatpush1.xpose.msra.mxu0 0.0
    %3397 = vmatprep.subr.mxu0 0.0
    %3398 = vmatpush1.xpose.msra.mxu0 0.0
    %3399 = vmatprep.subr.mxu0 0.0
    %3400 = vmatpush1.xpose.msra.mxu0 0.0
    %3401 = vmatprep.subr.mxu0 0.0
    %3402 = vmatpush1.xpose.msra.mxu0 0.0
    %3403 = vmatprep.subr.mxu0 0.0
    %3404 = vmatpush1.xpose.msra.mxu0 0.0
    %3405 = vmatprep.subr.mxu0 0.0
    %3406 = vmatpush1.xpose.msra.mxu0 0.0
    %3407 = vmatprep.subr.mxu0 0.0
    %3408 = vmatpush1.xpose.msra.mxu0 0.0
    %3409 = vmatprep.subr.mxu0 0.0
    %3410 = vmatpush1.xpose.msra.mxu0 0.0
    %3411 = vmatprep.subr.mxu0 0.0
    %3412 = vmatpush1.xpose.msra.mxu0 0.0
    %3413 = vmatprep.subr.mxu0 0.0
    %3414 = vmatpush1.xpose.msra.mxu0 0.0
    %3415 = vmatprep.subr.mxu0 0.0
    %3416 = vmatpush1.xpose.msra.mxu0 0.0
    %3417 = vmatprep.subr.mxu0 0.0
    %3418 = vmatpush1.xpose.msra.mxu0 0.0
    %3419 = vmatprep.subr.mxu0 0.0
    %3420 = vmatpush1.xpose.msra.mxu0 0.0
    %3421 = vmatprep.subr.mxu0 0.0
    %3422 = vmatpush1.xpose.msra.mxu0 0.0
    %3423 = vmatprep.subr.mxu0 0.0
    %3424 = vmatpush1.xpose.msra.mxu0 0.0
    %3425 = vmatprep.subr.mxu0 0.0
    %3426 = vmatpush1.xpose.msra.mxu0 0.0
    %3427 = vmatprep.subr.mxu0 0.0
    %3428 = vmatpush1.xpose.msra.mxu0 0.0
    %3429 = vmatprep.subr.mxu0 0.0
    %3430 = vmatpush1.xpose.msra.mxu0 0.0
    %3431 = vmatprep.subr.mxu0 0.0
    %3432 = vmatpush1.xpose.msra.mxu0 0.0
    %3433 = vmatprep.subr.mxu0 0.0
    %3434 = vmatpush1.xpose.msra.mxu0 0.0
    %3435 = vmatprep.subr.mxu0 0.0
    %3436 = vmatpush1.xpose.msra.mxu0 0.0
    %3437 = vmatprep.subr.mxu0 0.0
    %3438 = vmatpush1.xpose.msra.mxu0 0.0
    %3439 = vmatprep.subr.mxu0 0.0
    %3440 = vmatpush1.xpose.msra.mxu0 0.0
    %3441 = vmatprep.subr.mxu0 0.0
    %3442 = vmatpush1.xpose.msra.mxu0 0.0
    %3443 = vmatprep.subr.mxu0 0.0
    %3444 = vmatpush1.xpose.msra.mxu0 0.0
    %3445 = vmatprep.subr.mxu0 0.0
    %3446 = vmatpush1.xpose.msra.mxu0 0.0
    %3447 = vmatprep.subr.mxu0 0.0
    %3448 = vmatpush1.xpose.msra.mxu0 0.0
    %3449 = vmatprep.mubr.f32.mxu0 0.0
    %v3450 = vand.u32 %v3028, 4294901760
    %3451 = vmatmul.mubr.f32.gmra.mrb[0].mxu0 %v3450
    %v3452 = vpop.f32.mrb[0].mxu0
    %v3453 = vadd.f32 %v3368, %v3452
    %v3454 = vpop.f32.mrb[0].mxu0
    %3455 = vmatprep.mubr.f32.mxu0 0.0
    %v3456 = vand.u32 %v3031, 4294901760
    %3457 = vmatmul.mubr.f32.gmra.mrb[0].mxu0 %v3456
    %v3458 = vpop.f32.mrb[0].mxu0
    %v3459 = vadd.f32 %v3376, %v3458
    %v3460 = vpop.f32.mrb[0].mxu0
    %3461 = vdwg.mxu0
    %3462 = vmatprep.subr.mxu0 0.0
    %v3463 = vand.u32 %v3034, 4294901760
    %3464 = vmatpush1.xpose.msra.mxu0 %v3463
    %3465 = vmatprep.subr.mxu0 0.0
    %v3466 = vand.u32 %v3037, 4294901760
    %3467 = vmatpush1.xpose.msra.mxu0 %v3466
    %3468 = vmatprep.subr.mxu0 0.0
    %3469 = vmatpush1.xpose.msra.mxu0 0.0
    %3470 = vmatprep.subr.mxu0 0.0
    %3471 = vmatpush1.xpose.msra.mxu0 0.0
    %3472 = vmatprep.subr.mxu0 0.0
    %3473 = vmatpush1.xpose.msra.mxu0 0.0
    %3474 = vmatprep.subr.mxu0 0.0
    %3475 = vmatpush1.xpose.msra.mxu0 0.0
    %3476 = vmatprep.subr.mxu0 0.0
    %3477 = vmatpush1.xpose.msra.mxu0 0.0
    %3478 = vmatprep.subr.mxu0 0.0
    %3479 = vmatpush1.xpose.msra.mxu0 0.0
    %3480 = vmatprep.subr.mxu0 0.0
    %3481 = vmatpush1.xpose.msra.mxu0 0.0
    %3482 = vmatprep.subr.mxu0 0.0
    %3483 = vmatpush1.xpose.msra.mxu0 0.0
    %3484 = vmatprep.subr.mxu0 0.0
    %3485 = vmatpush1.xpose.msra.mxu0 0.0
    %3486 = vmatprep.subr.mxu0 0.0
    %3487 = vmatpush1.xpose.msra.mxu0 0.0
    %3488 = vmatprep.subr.mxu0 0.0
    %3489 = vmatpush1.xpose.msra.mxu0 0.0
    %3490 = vmatprep.subr.mxu0 0.0
    %3491 = vmatpush1.xpose.msra.mxu0 0.0
    %3492 = vmatprep.subr.mxu0 0.0
    %3493 = vmatpush1.xpose.msra.mxu0 0.0
    %3494 = vmatprep.subr.mxu0 0.0
    %3495 = vmatpush1.xpose.msra.mxu0 0.0
    %3496 = vmatprep.subr.mxu0 0.0
    %3497 = vmatpush1.xpose.msra.mxu0 0.0
    %3498 = vmatprep.subr.mxu0 0.0
    %3499 = vmatpush1.xpose.msra.mxu0 0.0
    %3500 = vmatprep.subr.mxu0 0.0
    %3501 = vmatpush1.xpose.msra.mxu0 0.0
    %3502 = vmatprep.subr.mxu0 0.0
    %3503 = vmatpush1.xpose.msra.mxu0 0.0
    %3504 = vmatprep.subr.mxu0 0.0
    %3505 = vmatpush1.xpose.msra.mxu0 0.0
    %3506 = vmatprep.subr.mxu0 0.0
    %3507 = vmatpush1.xpose.msra.mxu0 0.0
    %3508 = vmatprep.subr.mxu0 0.0
    %3509 = vmatpush1.xpose.msra.mxu0 0.0
    %3510 = vmatprep.subr.mxu0 0.0
    %3511 = vmatpush1.xpose.msra.mxu0 0.0
    %3512 = vmatprep.subr.mxu0 0.0
    %3513 = vmatpush1.xpose.msra.mxu0 0.0
    %3514 = vmatprep.subr.mxu0 0.0
    %3515 = vmatpush1.xpose.msra.mxu0 0.0
    %3516 = vmatprep.subr.mxu0 0.0
    %3517 = vmatpush1.xpose.msra.mxu0 0.0
    %3518 = vmatprep.subr.mxu0 0.0
    %3519 = vmatpush1.xpose.msra.mxu0 0.0
    %3520 = vmatprep.subr.mxu0 0.0
    %3521 = vmatpush1.xpose.msra.mxu0 0.0
    %3522 = vmatprep.subr.mxu0 0.0
    %3523 = vmatpush1.xpose.msra.mxu0 0.0
    %3524 = vmatprep.subr.mxu0 0.0
    %3525 = vmatpush1.xpose.msra.mxu0 0.0
    %3526 = vmatprep.subr.mxu0 0.0
    %3527 = vmatpush1.xpose.msra.mxu0 0.0
    %3528 = vmatprep.mubr.f32.mxu0 0.0
    %v3529 = vand.u32 %v3028, 4294901760
    %3530 = vmatmul.mubr.f32.gmra.mrb[0].mxu0 %v3529
    %v3531 = vpop.f32.mrb[0].mxu0
    %v3532 = vadd.f32 %v3453, %v3531
    %v3533 = vpop.f32.mrb[0].mxu0
    %3534 = vmatprep.mubr.f32.mxu0 0.0
    %v3535 = vand.u32 %v3031, 4294901760
    %3536 = vmatmul.mubr.f32.gmra.mrb[0].mxu0 %v3535
    %v3537 = vpop.f32.mrb[0].mxu0
    %v3538 = vadd.f32 %v3459, %v3537
    %v3539 = vpop.f32.mrb[0].mxu0
    %3540 = vdwg.mxu0
    %v3541 = vmul.f32 %v3532, %v49
    %v3542 = vmul.f32 %v3538, %v50
    %v3544 = vsel %vm60, %v3541, 0
    %v3547 = vsel %vm60, %v3542, 0
    %3549 = vmatprep.subr.mxu0 0.0
    %v3550 = vand.u32 %v3018, 4294901760
    %3551 = vmatpush1.msra.mxu0 %v3550
    %3552 = vmatprep.subr.mxu0 0.0
    %v3553 = vand.u32 %v3024, 4294901760
    %3554 = vmatpush1.msra.mxu0 %v3553
    %3555 = vmatprep.subr.mxu0 0.0
    %3556 = vmatpush1.msra.mxu0 0.0
    %3557 = vmatprep.subr.mxu0 0.0
    %3558 = vmatpush1.msra.mxu0 0.0
    %3559 = vmatprep.subr.mxu0 0.0
    %3560 = vmatpush1.msra.mxu0 0.0
    %3561 = vmatprep.subr.mxu0 0.0
    %3562 = vmatpush1.msra.mxu0 0.0
    %3563 = vmatprep.subr.mxu0 0.0
    %3564 = vmatpush1.msra.mxu0 0.0
    %3565 = vmatprep.subr.mxu0 0.0
    %3566 = vmatpush1.msra.mxu0 0.0
    %3567 = vmatprep.subr.mxu0 0.0
    %3568 = vmatpush1.msra.mxu0 0.0
    %3569 = vmatprep.subr.mxu0 0.0
    %3570 = vmatpush1.msra.mxu0 0.0
    %3571 = vmatprep.subr.mxu0 0.0
    %3572 = vmatpush1.msra.mxu0 0.0
    %3573 = vmatprep.subr.mxu0 0.0
    %3574 = vmatpush1.msra.mxu0 0.0
    %3575 = vmatprep.subr.mxu0 0.0
    %3576 = vmatpush1.msra.mxu0 0.0
    %3577 = vmatprep.subr.mxu0 0.0
    %3578 = vmatpush1.msra.mxu0 0.0
    %3579 = vmatprep.subr.mxu0 0.0
    %3580 = vmatpush1.msra.mxu0 0.0
    %3581 = vmatprep.subr.mxu0 0.0
    %3582 = vmatpush1.msra.mxu0 0.0
    %3583 = vmatprep.subr.mxu0 0.0
    %3584 = vmatpush1.msra.mxu0 0.0
    %3585 = vmatprep.subr.mxu0 0.0
    %3586 = vmatpush1.msra.mxu0 0.0
    %3587 = vmatprep.subr.mxu0 0.0
    %3588 = vmatpush1.msra.mxu0 0.0
    %3589 = vmatprep.subr.mxu0 0.0
    %3590 = vmatpush1.msra.mxu0 0.0
    %3591 = vmatprep.subr.mxu0 0.0
    %3592 = vmatpush1.msra.mxu0 0.0
    %3593 = vmatprep.subr.mxu0 0.0
    %3594 = vmatpush1.msra.mxu0 0.0
    %3595 = vmatprep.subr.mxu0 0.0
    %3596 = vmatpush1.msra.mxu0 0.0
    %3597 = vmatprep.subr.mxu0 0.0
    %3598 = vmatpush1.msra.mxu0 0.0
    %3599 = vmatprep.subr.mxu0 0.0
    %3600 = vmatpush1.msra.mxu0 0.0
    %3601 = vmatprep.subr.mxu0 0.0
    %3602 = vmatpush1.msra.mxu0 0.0
    %3603 = vmatprep.subr.mxu0 0.0
    %3604 = vmatpush1.msra.mxu0 0.0
    %3605 = vmatprep.subr.mxu0 0.0
    %3606 = vmatpush1.msra.mxu0 0.0
    %3607 = vmatprep.subr.mxu0 0.0
    %3608 = vmatpush1.msra.mxu0 0.0
    %3609 = vmatprep.subr.mxu0 0.0
    %3610 = vmatpush1.msra.mxu0 0.0
    %3611 = vmatprep.subr.mxu0 0.0
    %3612 = vmatpush1.msra.mxu0 0.0
    %3613 = vmatprep.subr.mxu0 0.0
    %3614 = vmatpush1.msra.mxu0 0.0
    %3615 = vmatprep.mubr.f32.mxu0 0.0
    %v3616 = vand.u32 %v3544, 4294901760
    %v3617 = vsub.f32 %v3544, %v3616
    %v3618 = vand.u32 %v3617, 4294901760
    %v3619 = vsub.f32 %v3617, %v3618
    %v3620 = vand.u32 %v3619, 4294901760
    %3621 = vmatmul.mubr.f32.gmra.mrb[0].mxu0 %v3620
    %v3622 = vpop.f32.mrb[0].mxu0
    %v3623 = vadd.f32 0.0, %v3622
    %v3624 = vpop.f32.mrb[0].mxu0
    %3625 = vmatprep.mubr.f32.mxu0 0.0
    %v3626 = vand.u32 %v3547, 4294901760
    %v3627 = vsub.f32 %v3547, %v3626
    %v3628 = vand.u32 %v3627, 4294901760
    %v3629 = vsub.f32 %v3627, %v3628
    %v3630 = vand.u32 %v3629, 4294901760
    %3631 = vmatmul.mubr.f32.gmra.mrb[0].mxu0 %v3630
    %v3632 = vpop.f32.mrb[0].mxu0
    %v3633 = vadd.f32 0.0, %v3632
    %v3634 = vpop.f32.mrb[0].mxu0
    %3635 = vdwg.mxu0
    %3636 = vmatprep.subr.mxu0 0.0
    %v3637 = vand.u32 %v3018, 4294901760
    %v3638 = vsub.f32 %v3018, %v3637
    %v3639 = vand.u32 %v3638, 4294901760
    %v3640 = vsub.f32 %v3638, %v3639
    %v3641 = vand.u32 %v3640, 4294901760
    %3642 = vmatpush1.msra.mxu0 %v3641
    %3643 = vmatprep.subr.mxu0 0.0
    %v3644 = vand.u32 %v3024, 4294901760
    %v3645 = vsub.f32 %v3024, %v3644
    %v3646 = vand.u32 %v3645, 4294901760
    %v3647 = vsub.f32 %v3645, %v3646
    %v3648 = vand.u32 %v3647, 4294901760
    %3649 = vmatpush1.msra.mxu0 %v3648
    %3650 = vmatprep.subr.mxu0 0.0
    %3651 = vmatpush1.msra.mxu0 0.0
    %3652 = vmatprep.subr.mxu0 0.0
    %3653 = vmatpush1.msra.mxu0 0.0
    %3654 = vmatprep.subr.mxu0 0.0
    %3655 = vmatpush1.msra.mxu0 0.0
    %3656 = vmatprep.subr.mxu0 0.0
    %3657 = vmatpush1.msra.mxu0 0.0
    %3658 = vmatprep.subr.mxu0 0.0
    %3659 = vmatpush1.msra.mxu0 0.0
    %3660 = vmatprep.subr.mxu0 0.0
    %3661 = vmatpush1.msra.mxu0 0.0
    %3662 = vmatprep.subr.mxu0 0.0
    %3663 = vmatpush1.msra.mxu0 0.0
    %3664 = vmatprep.subr.mxu0 0.0
    %3665 = vmatpush1.msra.mxu0 0.0
    %3666 = vmatprep.subr.mxu0 0.0
    %3667 = vmatpush1.msra.mxu0 0.0
    %3668 = vmatprep.subr.mxu0 0.0
    %3669 = vmatpush1.msra.mxu0 0.0
    %3670 = vmatprep.subr.mxu0 0.0
    %3671 = vmatpush1.msra.mxu0 0.0
    %3672 = vmatprep.subr.mxu0 0.0
    %3673 = vmatpush1.msra.mxu0 0.0
    %3674 = vmatprep.subr.mxu0 0.0
    %3675 = vmatpush1.msra.mxu0 0.0
    %3676 = vmatprep.subr.mxu0 0.0
    %3677 = vmatpush1.msra.mxu0 0.0
    %3678 = vmatprep.subr.mxu0 0.0
    %3679 = vmatpush1.msra.mxu0 0.0
    %3680 = vmatprep.subr.mxu0 0.0
    %3681 = vmatpush1.msra.mxu0 0.0
    %3682 = vmatprep.subr.mxu0 0.0
    %3683 = vmatpush1.msra.mxu0 0.0
    %3684 = vmatprep.subr.mxu0 0.0
    %3685 = vmatpush1.msra.mxu0 0.0
    %3686 = vmatprep.subr.mxu0 0.0
    %3687 = vmatpush1.msra.mxu0 0.0
    %3688 = vmatprep.subr.mxu0 0.0
    %3689 = vmatpush1.msra.mxu0 0.0
    %3690 = vmatprep.subr.mxu0 0.0
    %3691 = vmatpush1.msra.mxu0 0.0
    %3692 = vmatprep.subr.mxu0 0.0
    %3693 = vmatpush1.msra.mxu0 0.0
    %3694 = vmatprep.subr.mxu0 0.0
    %3695 = vmatpush1.msra.mxu0 0.0
    %3696 = vmatprep.subr.mxu0 0.0
    %3697 = vmatpush1.msra.mxu0 0.0
    %3698 = vmatprep.subr.mxu0 0.0
    %3699 = vmatpush1.msra.mxu0 0.0
    %3700 = vmatprep.subr.mxu0 0.0
    %3701 = vmatpush1.msra.mxu0 0.0
    %3702 = vmatprep.subr.mxu0 0.0
    %3703 = vmatpush1.msra.mxu0 0.0
    %3704 = vmatprep.subr.mxu0 0.0
    %3705 = vmatpush1.msra.mxu0 0.0
    %3706 = vmatprep.subr.mxu0 0.0
    %3707 = vmatpush1.msra.mxu0 0.0
    %3708 = vmatprep.subr.mxu0 0.0
    %3709 = vmatpush1.msra.mxu0 0.0
    %3710 = vmatprep.mubr.f32.mxu0 0.0
    %v3711 = vand.u32 %v3544, 4294901760
    %3712 = vmatmul.mubr.f32.gmra.mrb[0].mxu0 %v3711
    %v3713 = vpop.f32.mrb[0].mxu0
    %v3714 = vadd.f32 %v3623, %v3713
    %v3715 = vpop.f32.mrb[0].mxu0
    %3716 = vmatprep.mubr.f32.mxu0 0.0
    %v3717 = vand.u32 %v3547, 4294901760
    %3718 = vmatmul.mubr.f32.gmra.mrb[0].mxu0 %v3717
    %v3719 = vpop.f32.mrb[0].mxu0
    %v3720 = vadd.f32 %v3633, %v3719
    %v3721 = vpop.f32.mrb[0].mxu0
    %3722 = vdwg.mxu0
    %3723 = vmatprep.subr.mxu0 0.0
    %v3724 = vand.u32 %v3018, 4294901760
    %v3725 = vsub.f32 %v3018, %v3724
    %3726 = vmatpush1.msra.mxu0 %v3725
    %3727 = vmatprep.subr.mxu0 0.0
    %v3728 = vand.u32 %v3024, 4294901760
    %v3729 = vsub.f32 %v3024, %v3728
    %3730 = vmatpush1.msra.mxu0 %v3729
    %3731 = vmatprep.subr.mxu0 0.0
    %3732 = vmatpush1.msra.mxu0 0.0
    %3733 = vmatprep.subr.mxu0 0.0
    %3734 = vmatpush1.msra.mxu0 0.0
    %3735 = vmatprep.subr.mxu0 0.0
    %3736 = vmatpush1.msra.mxu0 0.0
    %3737 = vmatprep.subr.mxu0 0.0
    %3738 = vmatpush1.msra.mxu0 0.0
    %3739 = vmatprep.subr.mxu0 0.0
    %3740 = vmatpush1.msra.mxu0 0.0
    %3741 = vmatprep.subr.mxu0 0.0
    %3742 = vmatpush1.msra.mxu0 0.0
    %3743 = vmatprep.subr.mxu0 0.0
    %3744 = vmatpush1.msra.mxu0 0.0
    %3745 = vmatprep.subr.mxu0 0.0
    %3746 = vmatpush1.msra.mxu0 0.0
    %3747 = vmatprep.subr.mxu0 0.0
    %3748 = vmatpush1.msra.mxu0 0.0
    %3749 = vmatprep.subr.mxu0 0.0
    %3750 = vmatpush1.msra.mxu0 0.0
    %3751 = vmatprep.subr.mxu0 0.0
    %3752 = vmatpush1.msra.mxu0 0.0
    %3753 = vmatprep.subr.mxu0 0.0
    %3754 = vmatpush1.msra.mxu0 0.0
    %3755 = vmatprep.subr.mxu0 0.0
    %3756 = vmatpush1.msra.mxu0 0.0
    %3757 = vmatprep.subr.mxu0 0.0
    %3758 = vmatpush1.msra.mxu0 0.0
    %3759 = vmatprep.subr.mxu0 0.0
    %3760 = vmatpush1.msra.mxu0 0.0
    %3761 = vmatprep.subr.mxu0 0.0
    %3762 = vmatpush1.msra.mxu0 0.0
    %3763 = vmatprep.subr.mxu0 0.0
    %3764 = vmatpush1.msra.mxu0 0.0
    %3765 = vmatprep.subr.mxu0 0.0
    %3766 = vmatpush1.msra.mxu0 0.0
    %3767 = vmatprep.subr.mxu0 0.0
    %3768 = vmatpush1.msra.mxu0 0.0
    %3769 = vmatprep.subr.mxu0 0.0
    %3770 = vmatpush1.msra.mxu0 0.0
    %3771 = vmatprep.subr.mxu0 0.0
    %3772 = vmatpush1.msra.mxu0 0.0
    %3773 = vmatprep.subr.mxu0 0.0
    %3774 = vmatpush1.msra.mxu0 0.0
    %3775 = vmatprep.subr.mxu0 0.0
    %3776 = vmatpush1.msra.mxu0 0.0
    %3777 = vmatprep.subr.mxu0 0.0
    %3778 = vmatpush1.msra.mxu0 0.0
    %3779 = vmatprep.subr.mxu0 0.0
    %3780 = vmatpush1.msra.mxu0 0.0
    %3781 = vmatprep.subr.mxu0 0.0
    %3782 = vmatpush1.msra.mxu0 0.0
    %3783 = vmatprep.subr.mxu0 0.0
    %3784 = vmatpush1.msra.mxu0 0.0
    %3785 = vmatprep.subr.mxu0 0.0
    %3786 = vmatpush1.msra.mxu0 0.0
    %3787 = vmatprep.subr.mxu0 0.0
    %3788 = vmatpush1.msra.mxu0 0.0
    %3789 = vmatprep.subr.mxu0 0.0
    %3790 = vmatpush1.msra.mxu0 0.0
    %3791 = vmatprep.mubr.f32.mxu0 0.0
    %v3792 = vand.u32 %v3544, 4294901760
    %v3793 = vsub.f32 %v3544, %v3792
    %3794 = vmatmul.mubr.f32.gmra.mrb[0].mxu0 %v3793
    %v3795 = vpop.f32.mrb[0].mxu0
    %v3796 = vadd.f32 %v3714, %v3795
    %v3797 = vpop.f32.mrb[0].mxu0
    %3798 = vmatprep.mubr.f32.mxu0 0.0
    %v3799 = vand.u32 %v3547, 4294901760
    %v3800 = vsub.f32 %v3547, %v3799
    %3801 = vmatmul.mubr.f32.gmra.mrb[0].mxu0 %v3800
    %v3802 = vpop.f32.mrb[0].mxu0
    %v3803 = vadd.f32 %v3720, %v3802
    %v3804 = vpop.f32.mrb[0].mxu0
    %3805 = vdwg.mxu0
    %3806 = vmatprep.subr.mxu0 0.0
    %v3807 = vand.u32 %v3018, 4294901760
    %3808 = vmatpush1.msra.mxu0 %v3807
    %3809 = vmatprep.subr.mxu0 0.0
    %v3810 = vand.u32 %v3024, 4294901760
    %3811 = vmatpush1.msra.mxu0 %v3810
    %3812 = vmatprep.subr.mxu0 0.0
    %3813 = vmatpush1.msra.mxu0 0.0
    %3814 = vmatprep.subr.mxu0 0.0
    %3815 = vmatpush1.msra.mxu0 0.0
    %3816 = vmatprep.subr.mxu0 0.0
    %3817 = vmatpush1.msra.mxu0 0.0
    %3818 = vmatprep.subr.mxu0 0.0
    %3819 = vmatpush1.msra.mxu0 0.0
    %3820 = vmatprep.subr.mxu0 0.0
    %3821 = vmatpush1.msra.mxu0 0.0
    %3822 = vmatprep.subr.mxu0 0.0
    %3823 = vmatpush1.msra.mxu0 0.0
    %3824 = vmatprep.subr.mxu0 0.0
    %3825 = vmatpush1.msra.mxu0 0.0
    %3826 = vmatprep.subr.mxu0 0.0
    %3827 = vmatpush1.msra.mxu0 0.0
    %3828 = vmatprep.subr.mxu0 0.0
    %3829 = vmatpush1.msra.mxu0 0.0
    %3830 = vmatprep.subr.mxu0 0.0
    %3831 = vmatpush1.msra.mxu0 0.0
    %3832 = vmatprep.subr.mxu0 0.0
    %3833 = vmatpush1.msra.mxu0 0.0
    %3834 = vmatprep.subr.mxu0 0.0
    %3835 = vmatpush1.msra.mxu0 0.0
    %3836 = vmatprep.subr.mxu0 0.0
    %3837 = vmatpush1.msra.mxu0 0.0
    %3838 = vmatprep.subr.mxu0 0.0
    %3839 = vmatpush1.msra.mxu0 0.0
    %3840 = vmatprep.subr.mxu0 0.0
    %3841 = vmatpush1.msra.mxu0 0.0
    %3842 = vmatprep.subr.mxu0 0.0
    %3843 = vmatpush1.msra.mxu0 0.0
    %3844 = vmatprep.subr.mxu0 0.0
    %3845 = vmatpush1.msra.mxu0 0.0
    %3846 = vmatprep.subr.mxu0 0.0
    %3847 = vmatpush1.msra.mxu0 0.0
    %3848 = vmatprep.subr.mxu0 0.0
    %3849 = vmatpush1.msra.mxu0 0.0
    %3850 = vmatprep.subr.mxu0 0.0
    %3851 = vmatpush1.msra.mxu0 0.0
    %3852 = vmatprep.subr.mxu0 0.0
    %3853 = vmatpush1.msra.mxu0 0.0
    %3854 = vmatprep.subr.mxu0 0.0
    %3855 = vmatpush1.msra.mxu0 0.0
    %3856 = vmatprep.subr.mxu0 0.0
    %3857 = vmatpush1.msra.mxu0 0.0
    %3858 = vmatprep.subr.mxu0 0.0
    %3859 = vmatpush1.msra.mxu0 0.0
    %3860 = vmatprep.subr.mxu0 0.0
    %3861 = vmatpush1.msra.mxu0 0.0
    %3862 = vmatprep.subr.mxu0 0.0
    %3863 = vmatpush1.msra.mxu0 0.0
    %3864 = vmatprep.subr.mxu0 0.0
    %3865 = vmatpush1.msra.mxu0 0.0
    %3866 = vmatprep.subr.mxu0 0.0
    %3867 = vmatpush1.msra.mxu0 0.0
    %3868 = vmatprep.subr.mxu0 0.0
    %3869 = vmatpush1.msra.mxu0 0.0
    %3870 = vmatprep.subr.mxu0 0.0
    %3871 = vmatpush1.msra.mxu0 0.0
    %3872 = vmatprep.mubr.f32.mxu0 0.0
    %v3873 = vand.u32 %v3544, 4294901760
    %v3874 = vsub.f32 %v3544, %v3873
    %v3875 = vand.u32 %v3874, 4294901760
    %3876 = vmatmul.mubr.f32.gmra.mrb[0].mxu0 %v3875
    %v3877 = vpop.f32.mrb[0].mxu0
    %v3878 = vadd.f32 %v3796, %v3877
    %v3879 = vpop.f32.mrb[0].mxu0
    %3880 = vmatprep.mubr.f32.mxu0 0.0
    %v3881 = vand.u32 %v3547, 4294901760
    %v3882 = vsub.f32 %v3547, %v3881
    %v3883 = vand.u32 %v3882, 4294901760
    %3884 = vmatmul.mubr.f32.gmra.mrb[0].mxu0 %v3883
    %v3885 = vpop.f32.mrb[0].mxu0
    %v3886 = vadd.f32 %v3803, %v3885
    %v3887 = vpop.f32.mrb[0].mxu0
    %3888 = vdwg.mxu0
    %3889 = vmatprep.subr.mxu0 0.0
    %v3890 = vand.u32 %v3018, 4294901760
    %v3891 = vsub.f32 %v3018, %v3890
    %v3892 = vand.u32 %v3891, 4294901760
    %3893 = vmatpush1.msra.mxu0 %v3892
    %3894 = vmatprep.subr.mxu0 0.0
    %v3895 = vand.u32 %v3024, 4294901760
    %v3896 = vsub.f32 %v3024, %v3895
    %v3897 = vand.u32 %v3896, 4294901760
    %3898 = vmatpush1.msra.mxu0 %v3897
    %3899 = vmatprep.subr.mxu0 0.0
    %3900 = vmatpush1.msra.mxu0 0.0
    %3901 = vmatprep.subr.mxu0 0.0
    %3902 = vmatpush1.msra.mxu0 0.0
    %3903 = vmatprep.subr.mxu0 0.0
    %3904 = vmatpush1.msra.mxu0 0.0
    %3905 = vmatprep.subr.mxu0 0.0
    %3906 = vmatpush1.msra.mxu0 0.0
    %3907 = vmatprep.subr.mxu0 0.0
    %3908 = vmatpush1.msra.mxu0 0.0
    %3909 = vmatprep.subr.mxu0 0.0
    %3910 = vmatpush1.msra.mxu0 0.0
    %3911 = vmatprep.subr.mxu0 0.0
    %3912 = vmatpush1.msra.mxu0 0.0
    %3913 = vmatprep.subr.mxu0 0.0
    %3914 = vmatpush1.msra.mxu0 0.0
    %3915 = vmatprep.subr.mxu0 0.0
    %3916 = vmatpush1.msra.mxu0 0.0
    %3917 = vmatprep.subr.mxu0 0.0
    %3918 = vmatpush1.msra.mxu0 0.0
    %3919 = vmatprep.subr.mxu0 0.0
    %3920 = vmatpush1.msra.mxu0 0.0
    %3921 = vmatprep.subr.mxu0 0.0
    %3922 = vmatpush1.msra.mxu0 0.0
    %3923 = vmatprep.subr.mxu0 0.0
    %3924 = vmatpush1.msra.mxu0 0.0
    %3925 = vmatprep.subr.mxu0 0.0
    %3926 = vmatpush1.msra.mxu0 0.0
    %3927 = vmatprep.subr.mxu0 0.0
    %3928 = vmatpush1.msra.mxu0 0.0
    %3929 = vmatprep.subr.mxu0 0.0
    %3930 = vmatpush1.msra.mxu0 0.0
    %3931 = vmatprep.subr.mxu0 0.0
    %3932 = vmatpush1.msra.mxu0 0.0
    %3933 = vmatprep.subr.mxu0 0.0
    %3934 = vmatpush1.msra.mxu0 0.0
    %3935 = vmatprep.subr.mxu0 0.0
    %3936 = vmatpush1.msra.mxu0 0.0
    %3937 = vmatprep.subr.mxu0 0.0
    %3938 = vmatpush1.msra.mxu0 0.0
    %3939 = vmatprep.subr.mxu0 0.0
    %3940 = vmatpush1.msra.mxu0 0.0
    %3941 = vmatprep.subr.mxu0 0.0
    %3942 = vmatpush1.msra.mxu0 0.0
    %3943 = vmatprep.subr.mxu0 0.0
    %3944 = vmatpush1.msra.mxu0 0.0
    %3945 = vmatprep.subr.mxu0 0.0
    %3946 = vmatpush1.msra.mxu0 0.0
    %3947 = vmatprep.subr.mxu0 0.0
    %3948 = vmatpush1.msra.mxu0 0.0
    %3949 = vmatprep.subr.mxu0 0.0
    %3950 = vmatpush1.msra.mxu0 0.0
    %3951 = vmatprep.subr.mxu0 0.0
    %3952 = vmatpush1.msra.mxu0 0.0
    %3953 = vmatprep.subr.mxu0 0.0
    %3954 = vmatpush1.msra.mxu0 0.0
    %3955 = vmatprep.subr.mxu0 0.0
    %3956 = vmatpush1.msra.mxu0 0.0
    %3957 = vmatprep.subr.mxu0 0.0
    %3958 = vmatpush1.msra.mxu0 0.0
    %3959 = vmatprep.mubr.f32.mxu0 0.0
    %v3960 = vand.u32 %v3544, 4294901760
    %3961 = vmatmul.mubr.f32.gmra.mrb[0].mxu0 %v3960
    %v3962 = vpop.f32.mrb[0].mxu0
    %v3963 = vadd.f32 %v3878, %v3962
    %v3964 = vpop.f32.mrb[0].mxu0
    %3965 = vmatprep.mubr.f32.mxu0 0.0
    %v3966 = vand.u32 %v3547, 4294901760
    %3967 = vmatmul.mubr.f32.gmra.mrb[0].mxu0 %v3966
    %v3968 = vpop.f32.mrb[0].mxu0
    %v3969 = vadd.f32 %v3886, %v3968
    %v3970 = vpop.f32.mrb[0].mxu0
    %3971 = vdwg.mxu0
    %3972 = vmatprep.subr.mxu0 0.0
    %v3973 = vand.u32 %v3018, 4294901760
    %3974 = vmatpush1.msra.mxu0 %v3973
    %3975 = vmatprep.subr.mxu0 0.0
    %v3976 = vand.u32 %v3024, 4294901760
    %3977 = vmatpush1.msra.mxu0 %v3976
    %3978 = vmatprep.subr.mxu0 0.0
    %3979 = vmatpush1.msra.mxu0 0.0
    %3980 = vmatprep.subr.mxu0 0.0
    %3981 = vmatpush1.msra.mxu0 0.0
    %3982 = vmatprep.subr.mxu0 0.0
    %3983 = vmatpush1.msra.mxu0 0.0
    %3984 = vmatprep.subr.mxu0 0.0
    %3985 = vmatpush1.msra.mxu0 0.0
    %3986 = vmatprep.subr.mxu0 0.0
    %3987 = vmatpush1.msra.mxu0 0.0
    %3988 = vmatprep.subr.mxu0 0.0
    %3989 = vmatpush1.msra.mxu0 0.0
    %3990 = vmatprep.subr.mxu0 0.0
    %3991 = vmatpush1.msra.mxu0 0.0
    %3992 = vmatprep.subr.mxu0 0.0
    %3993 = vmatpush1.msra.mxu0 0.0
    %3994 = vmatprep.subr.mxu0 0.0
    %3995 = vmatpush1.msra.mxu0 0.0
    %3996 = vmatprep.subr.mxu0 0.0
    %3997 = vmatpush1.msra.mxu0 0.0
    %3998 = vmatprep.subr.mxu0 0.0
    %3999 = vmatpush1.msra.mxu0 0.0
    %4000 = vmatprep.subr.mxu0 0.0
    %4001 = vmatpush1.msra.mxu0 0.0
    %4002 = vmatprep.subr.mxu0 0.0
    %4003 = vmatpush1.msra.mxu0 0.0
    %4004 = vmatprep.subr.mxu0 0.0
    %4005 = vmatpush1.msra.mxu0 0.0
    %4006 = vmatprep.subr.mxu0 0.0
    %4007 = vmatpush1.msra.mxu0 0.0
    %4008 = vmatprep.subr.mxu0 0.0
    %4009 = vmatpush1.msra.mxu0 0.0
    %4010 = vmatprep.subr.mxu0 0.0
    %4011 = vmatpush1.msra.mxu0 0.0
    %4012 = vmatprep.subr.mxu0 0.0
    %4013 = vmatpush1.msra.mxu0 0.0
    %4014 = vmatprep.subr.mxu0 0.0
    %4015 = vmatpush1.msra.mxu0 0.0
    %4016 = vmatprep.subr.mxu0 0.0
    %4017 = vmatpush1.msra.mxu0 0.0
    %4018 = vmatprep.subr.mxu0 0.0
    %4019 = vmatpush1.msra.mxu0 0.0
    %4020 = vmatprep.subr.mxu0 0.0
    %4021 = vmatpush1.msra.mxu0 0.0
    %4022 = vmatprep.subr.mxu0 0.0
    %4023 = vmatpush1.msra.mxu0 0.0
    %4024 = vmatprep.subr.mxu0 0.0
    %4025 = vmatpush1.msra.mxu0 0.0
    %4026 = vmatprep.subr.mxu0 0.0
    %4027 = vmatpush1.msra.mxu0 0.0
    %4028 = vmatprep.subr.mxu0 0.0
    %4029 = vmatpush1.msra.mxu0 0.0
    %4030 = vmatprep.subr.mxu0 0.0
    %4031 = vmatpush1.msra.mxu0 0.0
    %4032 = vmatprep.subr.mxu0 0.0
    %4033 = vmatpush1.msra.mxu0 0.0
    %4034 = vmatprep.subr.mxu0 0.0
    %4035 = vmatpush1.msra.mxu0 0.0
    %4036 = vmatprep.subr.mxu0 0.0
    %4037 = vmatpush1.msra.mxu0 0.0
    %4038 = vmatprep.mubr.f32.mxu0 0.0
    %v4039 = vand.u32 %v3544, 4294901760
    %4040 = vmatmul.mubr.f32.gmra.mrb[0].mxu0 %v4039
    %v4041 = vpop.f32.mrb[0].mxu0
    %v4042 = vadd.f32 %v3963, %v4041
    %v4043 = vpop.f32.mrb[0].mxu0
    %4044 = vmatprep.mubr.f32.mxu0 0.0
    %v4045 = vand.u32 %v3547, 4294901760
    %4046 = vmatmul.mubr.f32.gmra.mrb[0].mxu0 %v4045
    %v4047 = vpop.f32.mrb[0].mxu0
    %v4048 = vadd.f32 %v3969, %v4047
    %v4049 = vpop.f32.mrb[0].mxu0
    %4050 = vdwg.mxu0
    %v4051 = vsub.f32 %v1551, %v4042
    %v4052 = vsub.f32 %v1557, %v4048
    %s4053 = scalar_lea.vmem [#allocation4], 40
    %v4054 = vld [vmem:[%s4053] sm:$0xff]
    %s4055 = scalar_lea.vmem [#allocation4], 48
    %v4056 = vld [vmem:[%s4055] sm:$0xff]
    %s4057 = scalar_lea.vmem [#allocation4], 56
    %v4058 = vld [vmem:[%s4057] sm:$0xff]
    %s4059 = scalar_lea.vmem [#allocation4], 64
    %v4060 = vld [vmem:[%s4059] sm:$0xff]
    %s4061 = scalar_lea.vmem [#allocation4], 72
    %v4062 = vld [vmem:[%s4061] sm:$0xff]
    %4063 = vmatprep.subr.mxu0 0.0
    %v4064 = vand.u32 %v4051, 4294901760
    %4065 = vmatpush1.msra.mxu0 %v4064
    %4066 = vmatprep.subr.mxu0 0.0
    %v4067 = vand.u32 %v4052, 4294901760
    %4068 = vmatpush1.msra.mxu0 %v4067
    %4069 = vmatprep.subr.mxu0 0.0
    %4070 = vmatpush1.msra.mxu0 0.0
    %4071 = vmatprep.subr.mxu0 0.0
    %4072 = vmatpush1.msra.mxu0 0.0
    %4073 = vmatprep.subr.mxu0 0.0
    %4074 = vmatpush1.msra.mxu0 0.0
    %4075 = vmatprep.subr.mxu0 0.0
    %4076 = vmatpush1.msra.mxu0 0.0
    %4077 = vmatprep.subr.mxu0 0.0
    %4078 = vmatpush1.msra.mxu0 0.0
    %4079 = vmatprep.subr.mxu0 0.0
    %4080 = vmatpush1.msra.mxu0 0.0
    %4081 = vmatprep.subr.mxu0 0.0
    %4082 = vmatpush1.msra.mxu0 0.0
    %4083 = vmatprep.subr.mxu0 0.0
    %4084 = vmatpush1.msra.mxu0 0.0
    %4085 = vmatprep.subr.mxu0 0.0
    %4086 = vmatpush1.msra.mxu0 0.0
    %4087 = vmatprep.subr.mxu0 0.0
    %4088 = vmatpush1.msra.mxu0 0.0
    %4089 = vmatprep.subr.mxu0 0.0
    %4090 = vmatpush1.msra.mxu0 0.0
    %4091 = vmatprep.subr.mxu0 0.0
    %4092 = vmatpush1.msra.mxu0 0.0
    %4093 = vmatprep.subr.mxu0 0.0
    %4094 = vmatpush1.msra.mxu0 0.0
    %4095 = vmatprep.subr.mxu0 0.0
    %4096 = vmatpush1.msra.mxu0 0.0
    %4097 = vmatprep.subr.mxu0 0.0
    %4098 = vmatpush1.msra.mxu0 0.0
    %4099 = vmatprep.subr.mxu0 0.0
    %4100 = vmatpush1.msra.mxu0 0.0
    %4101 = vmatprep.subr.mxu0 0.0
    %4102 = vmatpush1.msra.mxu0 0.0
    %4103 = vmatprep.subr.mxu0 0.0
    %4104 = vmatpush1.msra.mxu0 0.0
    %4105 = vmatprep.subr.mxu0 0.0
    %4106 = vmatpush1.msra.mxu0 0.0
    %4107 = vmatprep.subr.mxu0 0.0
    %4108 = vmatpush1.msra.mxu0 0.0
    %4109 = vmatprep.subr.mxu0 0.0
    %4110 = vmatpush1.msra.mxu0 0.0
    %4111 = vmatprep.subr.mxu0 0.0
    %4112 = vmatpush1.msra.mxu0 0.0
    %4113 = vmatprep.subr.mxu0 0.0
    %4114 = vmatpush1.msra.mxu0 0.0
    %4115 = vmatprep.subr.mxu0 0.0
    %4116 = vmatpush1.msra.mxu0 0.0
    %4117 = vmatprep.subr.mxu0 0.0
    %4118 = vmatpush1.msra.mxu0 0.0
    %4119 = vmatprep.subr.mxu0 0.0
    %4120 = vmatpush1.msra.mxu0 0.0
    %4121 = vmatprep.subr.mxu0 0.0
    %4122 = vmatpush1.msra.mxu0 0.0
    %4123 = vmatprep.subr.mxu0 0.0
    %4124 = vmatpush1.msra.mxu0 0.0
    %4125 = vmatprep.subr.mxu0 0.0
    %4126 = vmatpush1.msra.mxu0 0.0
    %4127 = vmatprep.subr.mxu0 0.0
    %4128 = vmatpush1.msra.mxu0 0.0
    %4129 = vmatprep.mubr.f32.mxu0 0.0
    %v4130 = vand.u32 %v62, 4294901760
    %v4131 = vsub.f32 %v62, %v4130
    %v4132 = vand.u32 %v4131, 4294901760
    %v4133 = vsub.f32 %v4131, %v4132
    %v4134 = vand.u32 %v4133, 4294901760
    %4135 = vmatmul.mubr.f32.gmra.mrb[0].mxu0 %v4134
    %v4136 = vpop.f32.mrb[0].mxu0
    %v4137 = vadd.f32 0.0, %v4136
    %v4138 = vpop.f32.mrb[0].mxu0
    %4139 = vmatprep.mubr.f32.mxu0 0.0
    %v4140 = vand.u32 %v65, 4294901760
    %v4141 = vsub.f32 %v65, %v4140
    %v4142 = vand.u32 %v4141, 4294901760
    %v4143 = vsub.f32 %v4141, %v4142
    %v4144 = vand.u32 %v4143, 4294901760
    %4145 = vmatmul.mubr.f32.gmra.mrb[0].mxu0 %v4144
    %v4146 = vpop.f32.mrb[0].mxu0
    %v4147 = vadd.f32 0.0, %v4146
    %v4148 = vpop.f32.mrb[0].mxu0
    %4149 = vdwg.mxu0
    %4150 = vmatprep.subr.mxu0 0.0
    %v4151 = vand.u32 %v4051, 4294901760
    %v4152 = vsub.f32 %v4051, %v4151
    %v4153 = vand.u32 %v4152, 4294901760
    %v4154 = vsub.f32 %v4152, %v4153
    %v4155 = vand.u32 %v4154, 4294901760
    %4156 = vmatpush1.msra.mxu0 %v4155
    %4157 = vmatprep.subr.mxu0 0.0
    %v4158 = vand.u32 %v4052, 4294901760
    %v4159 = vsub.f32 %v4052, %v4158
    %v4160 = vand.u32 %v4159, 4294901760
    %v4161 = vsub.f32 %v4159, %v4160
    %v4162 = vand.u32 %v4161, 4294901760
    %4163 = vmatpush1.msra.mxu0 %v4162
    %4164 = vmatprep.subr.mxu0 0.0
    %4165 = vmatpush1.msra.mxu0 0.0
    %4166 = vmatprep.subr.mxu0 0.0
    %4167 = vmatpush1.msra.mxu0 0.0
    %4168 = vmatprep.subr.mxu0 0.0
    %4169 = vmatpush1.msra.mxu0 0.0
    %4170 = vmatprep.subr.mxu0 0.0
    %4171 = vmatpush1.msra.mxu0 0.0
    %4172 = vmatprep.subr.mxu0 0.0
    %4173 = vmatpush1.msra.mxu0 0.0
    %4174 = vmatprep.subr.mxu0 0.0
    %4175 = vmatpush1.msra.mxu0 0.0
    %4176 = vmatprep.subr.mxu0 0.0
    %4177 = vmatpush1.msra.mxu0 0.0
    %4178 = vmatprep.subr.mxu0 0.0
    %4179 = vmatpush1.msra.mxu0 0.0
    %4180 = vmatprep.subr.mxu0 0.0
    %4181 = vmatpush1.msra.mxu0 0.0
    %4182 = vmatprep.subr.mxu0 0.0
    %4183 = vmatpush1.msra.mxu0 0.0
    %4184 = vmatprep.subr.mxu0 0.0
    %4185 = vmatpush1.msra.mxu0 0.0
    %4186 = vmatprep.subr.mxu0 0.0
    %4187 = vmatpush1.msra.mxu0 0.0
    %4188 = vmatprep.subr.mxu0 0.0
    %4189 = vmatpush1.msra.mxu0 0.0
    %4190 = vmatprep.subr.mxu0 0.0
    %4191 = vmatpush1.msra.mxu0 0.0
    %4192 = vmatprep.subr.mxu0 0.0
    %4193 = vmatpush1.msra.mxu0 0.0
    %4194 = vmatprep.subr.mxu0 0.0
    %4195 = vmatpush1.msra.mxu0 0.0
    %4196 = vmatprep.subr.mxu0 0.0
    %4197 = vmatpush1.msra.mxu0 0.0
    %4198 = vmatprep.subr.mxu0 0.0
    %4199 = vmatpush1.msra.mxu0 0.0
    %4200 = vmatprep.subr.mxu0 0.0
    %4201 = vmatpush1.msra.mxu0 0.0
    %4202 = vmatprep.subr.mxu0 0.0
    %4203 = vmatpush1.msra.mxu0 0.0
    %4204 = vmatprep.subr.mxu0 0.0
    %4205 = vmatpush1.msra.mxu0 0.0
    %4206 = vmatprep.subr.mxu0 0.0
    %4207 = vmatpush1.msra.mxu0 0.0
    %4208 = vmatprep.subr.mxu0 0.0
    %4209 = vmatpush1.msra.mxu0 0.0
    %4210 = vmatprep.subr.mxu0 0.0
    %4211 = vmatpush1.msra.mxu0 0.0
    %4212 = vmatprep.subr.mxu0 0.0
    %4213 = vmatpush1.msra.mxu0 0.0
    %4214 = vmatprep.subr.mxu0 0.0
    %4215 = vmatpush1.msra.mxu0 0.0
    %4216 = vmatprep.subr.mxu0 0.0
    %4217 = vmatpush1.msra.mxu0 0.0
    %4218 = vmatprep.subr.mxu0 0.0
    %4219 = vmatpush1.msra.mxu0 0.0
    %4220 = vmatprep.subr.mxu0 0.0
    %4221 = vmatpush1.msra.mxu0 0.0
    %4222 = vmatprep.subr.mxu0 0.0
    %4223 = vmatpush1.msra.mxu0 0.0
    %4224 = vmatprep.mubr.f32.mxu0 0.0
    %v4225 = vand.u32 %v62, 4294901760
    %4226 = vmatmul.mubr.f32.gmra.mrb[0].mxu0 %v4225
    %v4227 = vpop.f32.mrb[0].mxu0
    %v4228 = vadd.f32 %v4137, %v4227
    %v4229 = vpop.f32.mrb[0].mxu0
    %4230 = vmatprep.mubr.f32.mxu0 0.0
    %v4231 = vand.u32 %v65, 4294901760
    %4232 = vmatmul.mubr.f32.gmra.mrb[0].mxu0 %v4231
    %v4233 = vpop.f32.mrb[0].mxu0
    %v4234 = vadd.f32 %v4147, %v4233
    %v4235 = vpop.f32.mrb[0].mxu0
    %4236 = vdwg.mxu0
    %4237 = vmatprep.subr.mxu0 0.0
    %v4238 = vand.u32 %v4051, 4294901760
    %v4239 = vsub.f32 %v4051, %v4238
    %4240 = vmatpush1.msra.mxu0 %v4239
    %4241 = vmatprep.subr.mxu0 0.0
    %v4242 = vand.u32 %v4052, 4294901760
    %v4243 = vsub.f32 %v4052, %v4242
    %4244 = vmatpush1.msra.mxu0 %v4243
    %4245 = vmatprep.subr.mxu0 0.0
    %4246 = vmatpush1.msra.mxu0 0.0
    %4247 = vmatprep.subr.mxu0 0.0
    %4248 = vmatpush1.msra.mxu0 0.0
    %4249 = vmatprep.subr.mxu0 0.0
    %4250 = vmatpush1.msra.mxu0 0.0
    %4251 = vmatprep.subr.mxu0 0.0
    %4252 = vmatpush1.msra.mxu0 0.0
    %4253 = vmatprep.subr.mxu0 0.0
    %4254 = vmatpush1.msra.mxu0 0.0
    %4255 = vmatprep.subr.mxu0 0.0
    %4256 = vmatpush1.msra.mxu0 0.0
    %4257 = vmatprep.subr.mxu0 0.0
    %4258 = vmatpush1.msra.mxu0 0.0
    %4259 = vmatprep.subr.mxu0 0.0
    %4260 = vmatpush1.msra.mxu0 0.0
    %4261 = vmatprep.subr.mxu0 0.0
    %4262 = vmatpush1.msra.mxu0 0.0
    %4263 = vmatprep.subr.mxu0 0.0
    %4264 = vmatpush1.msra.mxu0 0.0
    %4265 = vmatprep.subr.mxu0 0.0
    %4266 = vmatpush1.msra.mxu0 0.0
    %4267 = vmatprep.subr.mxu0 0.0
    %4268 = vmatpush1.msra.mxu0 0.0
    %4269 = vmatprep.subr.mxu0 0.0
    %4270 = vmatpush1.msra.mxu0 0.0
    %4271 = vmatprep.subr.mxu0 0.0
    %4272 = vmatpush1.msra.mxu0 0.0
    %4273 = vmatprep.subr.mxu0 0.0
    %4274 = vmatpush1.msra.mxu0 0.0
    %4275 = vmatprep.subr.mxu0 0.0
    %4276 = vmatpush1.msra.mxu0 0.0
    %4277 = vmatprep.subr.mxu0 0.0
    %4278 = vmatpush1.msra.mxu0 0.0
    %4279 = vmatprep.subr.mxu0 0.0
    %4280 = vmatpush1.msra.mxu0 0.0
    %4281 = vmatprep.subr.mxu0 0.0
    %4282 = vmatpush1.msra.mxu0 0.0
    %4283 = vmatprep.subr.mxu0 0.0
    %4284 = vmatpush1.msra.mxu0 0.0
    %4285 = vmatprep.subr.mxu0 0.0
    %4286 = vmatpush1.msra.mxu0 0.0
    %4287 = vmatprep.subr.mxu0 0.0
    %4288 = vmatpush1.msra.mxu0 0.0
    %4289 = vmatprep.subr.mxu0 0.0
    %4290 = vmatpush1.msra.mxu0 0.0
    %4291 = vmatprep.subr.mxu0 0.0
    %4292 = vmatpush1.msra.mxu0 0.0
    %4293 = vmatprep.subr.mxu0 0.0
    %4294 = vmatpush1.msra.mxu0 0.0
    %4295 = vmatprep.subr.mxu0 0.0
    %4296 = vmatpush1.msra.mxu0 0.0
    %4297 = vmatprep.subr.mxu0 0.0
    %4298 = vmatpush1.msra.mxu0 0.0
    %4299 = vmatprep.subr.mxu0 0.0
    %4300 = vmatpush1.msra.mxu0 0.0
    %4301 = vmatprep.subr.mxu0 0.0
    %4302 = vmatpush1.msra.mxu0 0.0
    %4303 = vmatprep.subr.mxu0 0.0
    %4304 = vmatpush1.msra.mxu0 0.0
    %4305 = vmatprep.mubr.f32.mxu0 0.0
    %v4306 = vand.u32 %v62, 4294901760
    %v4307 = vsub.f32 %v62, %v4306
    %4308 = vmatmul.mubr.f32.gmra.mrb[0].mxu0 %v4307
    %v4309 = vpop.f32.mrb[0].mxu0
    %v4310 = vadd.f32 %v4228, %v4309
    %v4311 = vpop.f32.mrb[0].mxu0
    %4312 = vmatprep.mubr.f32.mxu0 0.0
    %v4313 = vand.u32 %v65, 4294901760
    %v4314 = vsub.f32 %v65, %v4313
    %4315 = vmatmul.mubr.f32.gmra.mrb[0].mxu0 %v4314
    %v4316 = vpop.f32.mrb[0].mxu0
    %v4317 = vadd.f32 %v4234, %v4316
    %v4318 = vpop.f32.mrb[0].mxu0
    %4319 = vdwg.mxu0
    %4320 = vmatprep.subr.mxu0 0.0
    %v4321 = vand.u32 %v4051, 4294901760
    %4322 = vmatpush1.msra.mxu0 %v4321
    %4323 = vmatprep.subr.mxu0 0.0
    %v4324 = vand.u32 %v4052, 4294901760
    %4325 = vmatpush1.msra.mxu0 %v4324
    %4326 = vmatprep.subr.mxu0 0.0
    %4327 = vmatpush1.msra.mxu0 0.0
    %4328 = vmatprep.subr.mxu0 0.0
    %4329 = vmatpush1.msra.mxu0 0.0
    %4330 = vmatprep.subr.mxu0 0.0
    %4331 = vmatpush1.msra.mxu0 0.0
    %4332 = vmatprep.subr.mxu0 0.0
    %4333 = vmatpush1.msra.mxu0 0.0
    %4334 = vmatprep.subr.mxu0 0.0
    %4335 = vmatpush1.msra.mxu0 0.0
    %4336 = vmatprep.subr.mxu0 0.0
    %4337 = vmatpush1.msra.mxu0 0.0
    %4338 = vmatprep.subr.mxu0 0.0
    %4339 = vmatpush1.msra.mxu0 0.0
    %4340 = vmatprep.subr.mxu0 0.0
    %4341 = vmatpush1.msra.mxu0 0.0
    %4342 = vmatprep.subr.mxu0 0.0
    %4343 = vmatpush1.msra.mxu0 0.0
    %4344 = vmatprep.subr.mxu0 0.0
    %4345 = vmatpush1.msra.mxu0 0.0
    %4346 = vmatprep.subr.mxu0 0.0
    %4347 = vmatpush1.msra.mxu0 0.0
    %4348 = vmatprep.subr.mxu0 0.0
    %4349 = vmatpush1.msra.mxu0 0.0
    %4350 = vmatprep.subr.mxu0 0.0
    %4351 = vmatpush1.msra.mxu0 0.0
    %4352 = vmatprep.subr.mxu0 0.0
    %4353 = vmatpush1.msra.mxu0 0.0
    %4354 = vmatprep.subr.mxu0 0.0
    %4355 = vmatpush1.msra.mxu0 0.0
    %4356 = vmatprep.subr.mxu0 0.0
    %4357 = vmatpush1.msra.mxu0 0.0
    %4358 = vmatprep.subr.mxu0 0.0
    %4359 = vmatpush1.msra.mxu0 0.0
    %4360 = vmatprep.subr.mxu0 0.0
    %4361 = vmatpush1.msra.mxu0 0.0
    %4362 = vmatprep.subr.mxu0 0.0
    %4363 = vmatpush1.msra.mxu0 0.0
    %4364 = vmatprep.subr.mxu0 0.0
    %4365 = vmatpush1.msra.mxu0 0.0
    %4366 = vmatprep.subr.mxu0 0.0
    %4367 = vmatpush1.msra.mxu0 0.0
    %4368 = vmatprep.subr.mxu0 0.0
    %4369 = vmatpush1.msra.mxu0 0.0
    %4370 = vmatprep.subr.mxu0 0.0
    %4371 = vmatpush1.msra.mxu0 0.0
    %4372 = vmatprep.subr.mxu0 0.0
    %4373 = vmatpush1.msra.mxu0 0.0
    %4374 = vmatprep.subr.mxu0 0.0
    %4375 = vmatpush1.msra.mxu0 0.0
    %4376 = vmatprep.subr.mxu0 0.0
    %4377 = vmatpush1.msra.mxu0 0.0
    %4378 = vmatprep.subr.mxu0 0.0
    %4379 = vmatpush1.msra.mxu0 0.0
    %4380 = vmatprep.subr.mxu0 0.0
    %4381 = vmatpush1.msra.mxu0 0.0
    %4382 = vmatprep.subr.mxu0 0.0
    %4383 = vmatpush1.msra.mxu0 0.0
    %4384 = vmatprep.subr.mxu0 0.0
    %4385 = vmatpush1.msra.mxu0 0.0
    %4386 = vmatprep.mubr.f32.mxu0 0.0
    %v4387 = vand.u32 %v62, 4294901760
    %v4388 = vsub.f32 %v62, %v4387
    %v4389 = vand.u32 %v4388, 4294901760
    %4390 = vmatmul.mubr.f32.gmra.mrb[0].mxu0 %v4389
    %v4391 = vpop.f32.mrb[0].mxu0
    %v4392 = vadd.f32 %v4310, %v4391
    %v4393 = vpop.f32.mrb[0].mxu0
    %4394 = vmatprep.mubr.f32.mxu0 0.0
    %v4395 = vand.u32 %v65, 4294901760
    %v4396 = vsub.f32 %v65, %v4395
    %v4397 = vand.u32 %v4396, 4294901760
    %4398 = vmatmul.mubr.f32.gmra.mrb[0].mxu0 %v4397
    %v4399 = vpop.f32.mrb[0].mxu0
    %v4400 = vadd.f32 %v4317, %v4399
    %v4401 = vpop.f32.mrb[0].mxu0
    %4402 = vdwg.mxu0
    %4403 = vmatprep.subr.mxu0 0.0
    %v4404 = vand.u32 %v4051, 4294901760
    %v4405 = vsub.f32 %v4051, %v4404
    %v4406 = vand.u32 %v4405, 4294901760
    %4407 = vmatpush1.msra.mxu0 %v4406
    %4408 = vmatprep.subr.mxu0 0.0
    %v4409 = vand.u32 %v4052, 4294901760
    %v4410 = vsub.f32 %v4052, %v4409
    %v4411 = vand.u32 %v4410, 4294901760
    %4412 = vmatpush1.msra.mxu0 %v4411
    %4413 = vmatprep.subr.mxu0 0.0
    %4414 = vmatpush1.msra.mxu0 0.0
    %4415 = vmatprep.subr.mxu0 0.0
    %4416 = vmatpush1.msra.mxu0 0.0
    %4417 = vmatprep.subr.mxu0 0.0
    %4418 = vmatpush1.msra.mxu0 0.0
    %4419 = vmatprep.subr.mxu0 0.0
    %4420 = vmatpush1.msra.mxu0 0.0
    %4421 = vmatprep.subr.mxu0 0.0
    %4422 = vmatpush1.msra.mxu0 0.0
    %4423 = vmatprep.subr.mxu0 0.0
    %4424 = vmatpush1.msra.mxu0 0.0
    %4425 = vmatprep.subr.mxu0 0.0
    %4426 = vmatpush1.msra.mxu0 0.0
    %4427 = vmatprep.subr.mxu0 0.0
    %4428 = vmatpush1.msra.mxu0 0.0
    %4429 = vmatprep.subr.mxu0 0.0
    %4430 = vmatpush1.msra.mxu0 0.0
    %4431 = vmatprep.subr.mxu0 0.0
    %4432 = vmatpush1.msra.mxu0 0.0
    %4433 = vmatprep.subr.mxu0 0.0
    %4434 = vmatpush1.msra.mxu0 0.0
    %4435 = vmatprep.subr.mxu0 0.0
    %4436 = vmatpush1.msra.mxu0 0.0
    %4437 = vmatprep.subr.mxu0 0.0
    %4438 = vmatpush1.msra.mxu0 0.0
    %4439 = vmatprep.subr.mxu0 0.0
    %4440 = vmatpush1.msra.mxu0 0.0
    %4441 = vmatprep.subr.mxu0 0.0
    %4442 = vmatpush1.msra.mxu0 0.0
    %4443 = vmatprep.subr.mxu0 0.0
    %4444 = vmatpush1.msra.mxu0 0.0
    %4445 = vmatprep.subr.mxu0 0.0
    %4446 = vmatpush1.msra.mxu0 0.0
    %4447 = vmatprep.subr.mxu0 0.0
    %4448 = vmatpush1.msra.mxu0 0.0
    %4449 = vmatprep.subr.mxu0 0.0
    %4450 = vmatpush1.msra.mxu0 0.0
    %4451 = vmatprep.subr.mxu0 0.0
    %4452 = vmatpush1.msra.mxu0 0.0
    %4453 = vmatprep.subr.mxu0 0.0
    %4454 = vmatpush1.msra.mxu0 0.0
    %4455 = vmatprep.subr.mxu0 0.0
    %4456 = vmatpush1.msra.mxu0 0.0
    %4457 = vmatprep.subr.mxu0 0.0
    %4458 = vmatpush1.msra.mxu0 0.0
    %4459 = vmatprep.subr.mxu0 0.0
    %4460 = vmatpush1.msra.mxu0 0.0
    %4461 = vmatprep.subr.mxu0 0.0
    %4462 = vmatpush1.msra.mxu0 0.0
    %4463 = vmatprep.subr.mxu0 0.0
    %4464 = vmatpush1.msra.mxu0 0.0
    %4465 = vmatprep.subr.mxu0 0.0
    %4466 = vmatpush1.msra.mxu0 0.0
    %4467 = vmatprep.subr.mxu0 0.0
    %4468 = vmatpush1.msra.mxu0 0.0
    %4469 = vmatprep.subr.mxu0 0.0
    %4470 = vmatpush1.msra.mxu0 0.0
    %4471 = vmatprep.subr.mxu0 0.0
    %4472 = vmatpush1.msra.mxu0 0.0
    %4473 = vmatprep.mubr.f32.mxu0 0.0
    %v4474 = vand.u32 %v62, 4294901760
    %4475 = vmatmul.mubr.f32.gmra.mrb[0].mxu0 %v4474
    %v4476 = vpop.f32.mrb[0].mxu0
    %v4477 = vadd.f32 %v4392, %v4476
    %v4478 = vpop.f32.mrb[0].mxu0
    %4479 = vmatprep.mubr.f32.mxu0 0.0
    %v4480 = vand.u32 %v65, 4294901760
    %4481 = vmatmul.mubr.f32.gmra.mrb[0].mxu0 %v4480
    %v4482 = vpop.f32.mrb[0].mxu0
    %v4483 = vadd.f32 %v4400, %v4482
    %v4484 = vpop.f32.mrb[0].mxu0
    %4485 = vdwg.mxu0
    %4486 = vmatprep.subr.mxu0 0.0
    %v4487 = vand.u32 %v4051, 4294901760
    %4488 = vmatpush1.msra.mxu0 %v4487
    %4489 = vmatprep.subr.mxu0 0.0
    %v4490 = vand.u32 %v4052, 4294901760
    %4491 = vmatpush1.msra.mxu0 %v4490
    %4492 = vmatprep.subr.mxu0 0.0
    %4493 = vmatpush1.msra.mxu0 0.0
    %4494 = vmatprep.subr.mxu0 0.0
    %4495 = vmatpush1.msra.mxu0 0.0
    %4496 = vmatprep.subr.mxu0 0.0
    %4497 = vmatpush1.msra.mxu0 0.0
    %4498 = vmatprep.subr.mxu0 0.0
    %4499 = vmatpush1.msra.mxu0 0.0
    %4500 = vmatprep.subr.mxu0 0.0
    %4501 = vmatpush1.msra.mxu0 0.0
    %4502 = vmatprep.subr.mxu0 0.0
    %4503 = vmatpush1.msra.mxu0 0.0
    %4504 = vmatprep.subr.mxu0 0.0
    %4505 = vmatpush1.msra.mxu0 0.0
    %4506 = vmatprep.subr.mxu0 0.0
    %4507 = vmatpush1.msra.mxu0 0.0
    %4508 = vmatprep.subr.mxu0 0.0
    %4509 = vmatpush1.msra.mxu0 0.0
    %4510 = vmatprep.subr.mxu0 0.0
    %4511 = vmatpush1.msra.mxu0 0.0
    %4512 = vmatprep.subr.mxu0 0.0
    %4513 = vmatpush1.msra.mxu0 0.0
    %4514 = vmatprep.subr.mxu0 0.0
    %4515 = vmatpush1.msra.mxu0 0.0
    %4516 = vmatprep.subr.mxu0 0.0
    %4517 = vmatpush1.msra.mxu0 0.0
    %4518 = vmatprep.subr.mxu0 0.0
    %4519 = vmatpush1.msra.mxu0 0.0
    %4520 = vmatprep.subr.mxu0 0.0
    %4521 = vmatpush1.msra.mxu0 0.0
    %4522 = vmatprep.subr.mxu0 0.0
    %4523 = vmatpush1.msra.mxu0 0.0
    %4524 = vmatprep.subr.mxu0 0.0
    %4525 = vmatpush1.msra.mxu0 0.0
    %4526 = vmatprep.subr.mxu0 0.0
    %4527 = vmatpush1.msra.mxu0 0.0
    %4528 = vmatprep.subr.mxu0 0.0
    %4529 = vmatpush1.msra.mxu0 0.0
    %4530 = vmatprep.subr.mxu0 0.0
    %4531 = vmatpush1.msra.mxu0 0.0
    %4532 = vmatprep.subr.mxu0 0.0
    %4533 = vmatpush1.msra.mxu0 0.0
    %4534 = vmatprep.subr.mxu0 0.0
    %4535 = vmatpush1.msra.mxu0 0.0
    %4536 = vmatprep.subr.mxu0 0.0
    %4537 = vmatpush1.msra.mxu0 0.0
    %4538 = vmatprep.subr.mxu0 0.0
    %4539 = vmatpush1.msra.mxu0 0.0
    %4540 = vmatprep.subr.mxu0 0.0
    %4541 = vmatpush1.msra.mxu0 0.0
    %4542 = vmatprep.subr.mxu0 0.0
    %4543 = vmatpush1.msra.mxu0 0.0
    %4544 = vmatprep.subr.mxu0 0.0
    %4545 = vmatpush1.msra.mxu0 0.0
    %4546 = vmatprep.subr.mxu0 0.0
    %4547 = vmatpush1.msra.mxu0 0.0
    %4548 = vmatprep.subr.mxu0 0.0
    %4549 = vmatpush1.msra.mxu0 0.0
    %4550 = vmatprep.subr.mxu0 0.0
    %4551 = vmatpush1.msra.mxu0 0.0
    %4552 = vmatprep.mubr.f32.mxu0 0.0
    %v4553 = vand.u32 %v62, 4294901760
    %4554 = vmatmul.mubr.f32.gmra.mrb[0].mxu0 %v4553
    %v4555 = vpop.f32.mrb[0].mxu0
    %v4556 = vadd.f32 %v4477, %v4555
    %v4557 = vpop.f32.mrb[0].mxu0
    %4558 = vmatprep.mubr.f32.mxu0 0.0
    %v4559 = vand.u32 %v65, 4294901760
    %4560 = vmatmul.mubr.f32.gmra.mrb[0].mxu0 %v4559
    %v4561 = vpop.f32.mrb[0].mxu0
    %v4562 = vadd.f32 %v4483, %v4561
    %v4563 = vpop.f32.mrb[0].mxu0
    %4564 = vdwg.mxu0
    %v4566 = vsel %vm569, %v4556, 0
    %v4569 = vsel %vm569, %v4562, 0
    %4571 = vmatprep.subr.mxu0 0.0
    %v4572 = vand.u32 %v4056, 4294901760
    %4573 = vmatpush1.msra.mxu0 %v4572
    %4574 = vmatprep.subr.mxu0 0.0
    %4575 = vmatpush1.msra.mxu0 0.0
    %4576 = vmatprep.subr.mxu0 0.0
    %4577 = vmatpush1.msra.mxu0 0.0
    %4578 = vmatprep.subr.mxu0 0.0
    %4579 = vmatpush1.msra.mxu0 0.0
    %4580 = vmatprep.subr.mxu0 0.0
    %4581 = vmatpush1.msra.mxu0 0.0
    %4582 = vmatprep.subr.mxu0 0.0
    %4583 = vmatpush1.msra.mxu0 0.0
    %4584 = vmatprep.subr.mxu0 0.0
    %4585 = vmatpush1.msra.mxu0 0.0
    %4586 = vmatprep.subr.mxu0 0.0
    %4587 = vmatpush1.msra.mxu0 0.0
    %4588 = vmatprep.subr.mxu0 0.0
    %4589 = vmatpush1.msra.mxu0 0.0
    %4590 = vmatprep.subr.mxu0 0.0
    %4591 = vmatpush1.msra.mxu0 0.0
    %4592 = vmatprep.subr.mxu0 0.0
    %4593 = vmatpush1.msra.mxu0 0.0
    %4594 = vmatprep.subr.mxu0 0.0
    %4595 = vmatpush1.msra.mxu0 0.0
    %4596 = vmatprep.subr.mxu0 0.0
    %4597 = vmatpush1.msra.mxu0 0.0
    %4598 = vmatprep.subr.mxu0 0.0
    %4599 = vmatpush1.msra.mxu0 0.0
    %4600 = vmatprep.subr.mxu0 0.0
    %4601 = vmatpush1.msra.mxu0 0.0
    %4602 = vmatprep.subr.mxu0 0.0
    %4603 = vmatpush1.msra.mxu0 0.0
    %4604 = vmatprep.subr.mxu0 0.0
    %4605 = vmatpush1.msra.mxu0 0.0
    %4606 = vmatprep.subr.mxu0 0.0
    %4607 = vmatpush1.msra.mxu0 0.0
    %4608 = vmatprep.subr.mxu0 0.0
    %4609 = vmatpush1.msra.mxu0 0.0
    %4610 = vmatprep.subr.mxu0 0.0
    %4611 = vmatpush1.msra.mxu0 0.0
    %4612 = vmatprep.subr.mxu0 0.0
    %4613 = vmatpush1.msra.mxu0 0.0
    %4614 = vmatprep.subr.mxu0 0.0
    %4615 = vmatpush1.msra.mxu0 0.0
    %4616 = vmatprep.subr.mxu0 0.0
    %4617 = vmatpush1.msra.mxu0 0.0
    %4618 = vmatprep.subr.mxu0 0.0
    %4619 = vmatpush1.msra.mxu0 0.0
    %4620 = vmatprep.subr.mxu0 0.0
    %4621 = vmatpush1.msra.mxu0 0.0
    %4622 = vmatprep.subr.mxu0 0.0
    %4623 = vmatpush1.msra.mxu0 0.0
    %4624 = vmatprep.subr.mxu0 0.0
    %4625 = vmatpush1.msra.mxu0 0.0
    %4626 = vmatprep.subr.mxu0 0.0
    %4627 = vmatpush1.msra.mxu0 0.0
    %4628 = vmatprep.subr.mxu0 0.0
    %4629 = vmatpush1.msra.mxu0 0.0
    %4630 = vmatprep.subr.mxu0 0.0
    %4631 = vmatpush1.msra.mxu0 0.0
    %4632 = vmatprep.subr.mxu0 0.0
    %4633 = vmatpush1.msra.mxu0 0.0
    %4634 = vmatprep.subr.mxu0 0.0
    %4635 = vmatpush1.msra.mxu0 0.0
    %4636 = vmatprep.mubr.f32.mxu0 0.0
    %v4637 = vand.u32 %v4566, 4294901760
    %v4638 = vsub.f32 %v4566, %v4637
    %v4639 = vand.u32 %v4638, 4294901760
    %v4640 = vsub.f32 %v4638, %v4639
    %v4641 = vand.u32 %v4640, 4294901760
    %4642 = vmatmul.mubr.f32.gmra.mrb[0].mxu0 %v4641
    %v4643 = vpop.f32.mrb[0].mxu0
    %v4644 = vadd.f32 0.0, %v4643
    %v4645 = vpop.f32.mrb[0].mxu0
    %4646 = vmatprep.mubr.f32.mxu0 0.0
    %v4647 = vand.u32 %v4569, 4294901760
    %v4648 = vsub.f32 %v4569, %v4647
    %v4649 = vand.u32 %v4648, 4294901760
    %v4650 = vsub.f32 %v4648, %v4649
    %v4651 = vand.u32 %v4650, 4294901760
    %4652 = vmatmul.mubr.f32.gmra.mrb[0].mxu0 %v4651
    %v4653 = vpop.f32.mrb[0].mxu0
    %v4654 = vadd.f32 0.0, %v4653
    %v4655 = vpop.f32.mrb[0].mxu0
    %4656 = vdwg.mxu0
    %4657 = vmatprep.subr.mxu0 0.0
    %v4658 = vand.u32 %v4056, 4294901760
    %v4659 = vsub.f32 %v4056, %v4658
    %v4660 = vand.u32 %v4659, 4294901760
    %v4661 = vsub.f32 %v4659, %v4660
    %v4662 = vand.u32 %v4661, 4294901760
    %4663 = vmatpush1.msra.mxu0 %v4662
    %4664 = vmatprep.subr.mxu0 0.0
    %4665 = vmatpush1.msra.mxu0 0.0
    %4666 = vmatprep.subr.mxu0 0.0
    %4667 = vmatpush1.msra.mxu0 0.0
    %4668 = vmatprep.subr.mxu0 0.0
    %4669 = vmatpush1.msra.mxu0 0.0
    %4670 = vmatprep.subr.mxu0 0.0
    %4671 = vmatpush1.msra.mxu0 0.0
    %4672 = vmatprep.subr.mxu0 0.0
    %4673 = vmatpush1.msra.mxu0 0.0
    %4674 = vmatprep.subr.mxu0 0.0
    %4675 = vmatpush1.msra.mxu0 0.0
    %4676 = vmatprep.subr.mxu0 0.0
    %4677 = vmatpush1.msra.mxu0 0.0
    %4678 = vmatprep.subr.mxu0 0.0
    %4679 = vmatpush1.msra.mxu0 0.0
    %4680 = vmatprep.subr.mxu0 0.0
    %4681 = vmatpush1.msra.mxu0 0.0
    %4682 = vmatprep.subr.mxu0 0.0
    %4683 = vmatpush1.msra.mxu0 0.0
    %4684 = vmatprep.subr.mxu0 0.0
    %4685 = vmatpush1.msra.mxu0 0.0
    %4686 = vmatprep.subr.mxu0 0.0
    %4687 = vmatpush1.msra.mxu0 0.0
    %4688 = vmatprep.subr.mxu0 0.0
    %4689 = vmatpush1.msra.mxu0 0.0
    %4690 = vmatprep.subr.mxu0 0.0
    %4691 = vmatpush1.msra.mxu0 0.0
    %4692 = vmatprep.subr.mxu0 0.0
    %4693 = vmatpush1.msra.mxu0 0.0
    %4694 = vmatprep.subr.mxu0 0.0
    %4695 = vmatpush1.msra.mxu0 0.0
    %4696 = vmatprep.subr.mxu0 0.0
    %4697 = vmatpush1.msra.mxu0 0.0
    %4698 = vmatprep.subr.mxu0 0.0
    %4699 = vmatpush1.msra.mxu0 0.0
    %4700 = vmatprep.subr.mxu0 0.0
    %4701 = vmatpush1.msra.mxu0 0.0
    %4702 = vmatprep.subr.mxu0 0.0
    %4703 = vmatpush1.msra.mxu0 0.0
    %4704 = vmatprep.subr.mxu0 0.0
    %4705 = vmatpush1.msra.mxu0 0.0
    %4706 = vmatprep.subr.mxu0 0.0
    %4707 = vmatpush1.msra.mxu0 0.0
    %4708 = vmatprep.subr.mxu0 0.0
    %4709 = vmatpush1.msra.mxu0 0.0
    %4710 = vmatprep.subr.mxu0 0.0
    %4711 = vmatpush1.msra.mxu0 0.0
    %4712 = vmatprep.subr.mxu0 0.0
    %4713 = vmatpush1.msra.mxu0 0.0
    %4714 = vmatprep.subr.mxu0 0.0
    %4715 = vmatpush1.msra.mxu0 0.0
    %4716 = vmatprep.subr.mxu0 0.0
    %4717 = vmatpush1.msra.mxu0 0.0
    %4718 = vmatprep.subr.mxu0 0.0
    %4719 = vmatpush1.msra.mxu0 0.0
    %4720 = vmatprep.subr.mxu0 0.0
    %4721 = vmatpush1.msra.mxu0 0.0
    %4722 = vmatprep.subr.mxu0 0.0
    %4723 = vmatpush1.msra.mxu0 0.0
    %4724 = vmatprep.subr.mxu0 0.0
    %4725 = vmatpush1.msra.mxu0 0.0
    %4726 = vmatprep.mubr.f32.mxu0 0.0
    %v4727 = vand.u32 %v4566, 4294901760
    %4728 = vmatmul.mubr.f32.gmra.mrb[0].mxu0 %v4727
    %v4729 = vpop.f32.mrb[0].mxu0
    %v4730 = vadd.f32 %v4644, %v4729
    %v4731 = vpop.f32.mrb[0].mxu0
    %4732 = vmatprep.mubr.f32.mxu0 0.0
    %v4733 = vand.u32 %v4569, 4294901760
    %4734 = vmatmul.mubr.f32.gmra.mrb[0].mxu0 %v4733
    %v4735 = vpop.f32.mrb[0].mxu0
    %v4736 = vadd.f32 %v4654, %v4735
    %v4737 = vpop.f32.mrb[0].mxu0
    %4738 = vdwg.mxu0
    %4739 = vmatprep.subr.mxu0 0.0
    %v4740 = vand.u32 %v4056, 4294901760
    %v4741 = vsub.f32 %v4056, %v4740
    %4742 = vmatpush1.msra.mxu0 %v4741
    %4743 = vmatprep.subr.mxu0 0.0
    %4744 = vmatpush1.msra.mxu0 0.0
    %4745 = vmatprep.subr.mxu0 0.0
    %4746 = vmatpush1.msra.mxu0 0.0
    %4747 = vmatprep.subr.mxu0 0.0
    %4748 = vmatpush1.msra.mxu0 0.0
    %4749 = vmatprep.subr.mxu0 0.0
    %4750 = vmatpush1.msra.mxu0 0.0
    %4751 = vmatprep.subr.mxu0 0.0
    %4752 = vmatpush1.msra.mxu0 0.0
    %4753 = vmatprep.subr.mxu0 0.0
    %4754 = vmatpush1.msra.mxu0 0.0
    %4755 = vmatprep.subr.mxu0 0.0
    %4756 = vmatpush1.msra.mxu0 0.0
    %4757 = vmatprep.subr.mxu0 0.0
    %4758 = vmatpush1.msra.mxu0 0.0
    %4759 = vmatprep.subr.mxu0 0.0
    %4760 = vmatpush1.msra.mxu0 0.0
    %4761 = vmatprep.subr.mxu0 0.0
    %4762 = vmatpush1.msra.mxu0 0.0
    %4763 = vmatprep.subr.mxu0 0.0
    %4764 = vmatpush1.msra.mxu0 0.0
    %4765 = vmatprep.subr.mxu0 0.0
    %4766 = vmatpush1.msra.mxu0 0.0
    %4767 = vmatprep.subr.mxu0 0.0
    %4768 = vmatpush1.msra.mxu0 0.0
    %4769 = vmatprep.subr.mxu0 0.0
    %4770 = vmatpush1.msra.mxu0 0.0
    %4771 = vmatprep.subr.mxu0 0.0
    %4772 = vmatpush1.msra.mxu0 0.0
    %4773 = vmatprep.subr.mxu0 0.0
    %4774 = vmatpush1.msra.mxu0 0.0
    %4775 = vmatprep.subr.mxu0 0.0
    %4776 = vmatpush1.msra.mxu0 0.0
    %4777 = vmatprep.subr.mxu0 0.0
    %4778 = vmatpush1.msra.mxu0 0.0
    %4779 = vmatprep.subr.mxu0 0.0
    %4780 = vmatpush1.msra.mxu0 0.0
    %4781 = vmatprep.subr.mxu0 0.0
    %4782 = vmatpush1.msra.mxu0 0.0
    %4783 = vmatprep.subr.mxu0 0.0
    %4784 = vmatpush1.msra.mxu0 0.0
    %4785 = vmatprep.subr.mxu0 0.0
    %4786 = vmatpush1.msra.mxu0 0.0
    %4787 = vmatprep.subr.mxu0 0.0
    %4788 = vmatpush1.msra.mxu0 0.0
    %4789 = vmatprep.subr.mxu0 0.0
    %4790 = vmatpush1.msra.mxu0 0.0
    %4791 = vmatprep.subr.mxu0 0.0
    %4792 = vmatpush1.msra.mxu0 0.0
    %4793 = vmatprep.subr.mxu0 0.0
    %4794 = vmatpush1.msra.mxu0 0.0
    %4795 = vmatprep.subr.mxu0 0.0
    %4796 = vmatpush1.msra.mxu0 0.0
    %4797 = vmatprep.subr.mxu0 0.0
    %4798 = vmatpush1.msra.mxu0 0.0
    %4799 = vmatprep.subr.mxu0 0.0
    %4800 = vmatpush1.msra.mxu0 0.0
    %4801 = vmatprep.subr.mxu0 0.0
    %4802 = vmatpush1.msra.mxu0 0.0
    %4803 = vmatprep.subr.mxu0 0.0
    %4804 = vmatpush1.msra.mxu0 0.0
    %4805 = vmatprep.mubr.f32.mxu0 0.0
    %v4806 = vand.u32 %v4566, 4294901760
    %v4807 = vsub.f32 %v4566, %v4806
    %4808 = vmatmul.mubr.f32.gmra.mrb[0].mxu0 %v4807
    %v4809 = vpop.f32.mrb[0].mxu0
    %v4810 = vadd.f32 %v4730, %v4809
    %v4811 = vpop.f32.mrb[0].mxu0
    %4812 = vmatprep.mubr.f32.mxu0 0.0
    %v4813 = vand.u32 %v4569, 4294901760
    %v4814 = vsub.f32 %v4569, %v4813
    %4815 = vmatmul.mubr.f32.gmra.mrb[0].mxu0 %v4814
    %v4816 = vpop.f32.mrb[0].mxu0
    %v4817 = vadd.f32 %v4736, %v4816
    %v4818 = vpop.f32.mrb[0].mxu0
    %4819 = vdwg.mxu0
    %4820 = vmatprep.subr.mxu0 0.0
    %v4821 = vand.u32 %v4056, 4294901760
    %4822 = vmatpush1.msra.mxu0 %v4821
    %4823 = vmatprep.subr.mxu0 0.0
    %4824 = vmatpush1.msra.mxu0 0.0
    %4825 = vmatprep.subr.mxu0 0.0
    %4826 = vmatpush1.msra.mxu0 0.0
    %4827 = vmatprep.subr.mxu0 0.0
    %4828 = vmatpush1.msra.mxu0 0.0
    %4829 = vmatprep.subr.mxu0 0.0
    %4830 = vmatpush1.msra.mxu0 0.0
    %4831 = vmatprep.subr.mxu0 0.0
    %4832 = vmatpush1.msra.mxu0 0.0
    %4833 = vmatprep.subr.mxu0 0.0
    %4834 = vmatpush1.msra.mxu0 0.0
    %4835 = vmatprep.subr.mxu0 0.0
    %4836 = vmatpush1.msra.mxu0 0.0
    %4837 = vmatprep.subr.mxu0 0.0
    %4838 = vmatpush1.msra.mxu0 0.0
    %4839 = vmatprep.subr.mxu0 0.0
    %4840 = vmatpush1.msra.mxu0 0.0
    %4841 = vmatprep.subr.mxu0 0.0
    %4842 = vmatpush1.msra.mxu0 0.0
    %4843 = vmatprep.subr.mxu0 0.0
    %4844 = vmatpush1.msra.mxu0 0.0
    %4845 = vmatprep.subr.mxu0 0.0
    %4846 = vmatpush1.msra.mxu0 0.0
    %4847 = vmatprep.subr.mxu0 0.0
    %4848 = vmatpush1.msra.mxu0 0.0
    %4849 = vmatprep.subr.mxu0 0.0
    %4850 = vmatpush1.msra.mxu0 0.0
    %4851 = vmatprep.subr.mxu0 0.0
    %4852 = vmatpush1.msra.mxu0 0.0
    %4853 = vmatprep.subr.mxu0 0.0
    %4854 = vmatpush1.msra.mxu0 0.0
    %4855 = vmatprep.subr.mxu0 0.0
    %4856 = vmatpush1.msra.mxu0 0.0
    %4857 = vmatprep.subr.mxu0 0.0
    %4858 = vmatpush1.msra.mxu0 0.0
    %4859 = vmatprep.subr.mxu0 0.0
    %4860 = vmatpush1.msra.mxu0 0.0
    %4861 = vmatprep.subr.mxu0 0.0
    %4862 = vmatpush1.msra.mxu0 0.0
    %4863 = vmatprep.subr.mxu0 0.0
    %4864 = vmatpush1.msra.mxu0 0.0
    %4865 = vmatprep.subr.mxu0 0.0
    %4866 = vmatpush1.msra.mxu0 0.0
    %4867 = vmatprep.subr.mxu0 0.0
    %4868 = vmatpush1.msra.mxu0 0.0
    %4869 = vmatprep.subr.mxu0 0.0
    %4870 = vmatpush1.msra.mxu0 0.0
    %4871 = vmatprep.subr.mxu0 0.0
    %4872 = vmatpush1.msra.mxu0 0.0
    %4873 = vmatprep.subr.mxu0 0.0
    %4874 = vmatpush1.msra.mxu0 0.0
    %4875 = vmatprep.subr.mxu0 0.0
    %4876 = vmatpush1.msra.mxu0 0.0
    %4877 = vmatprep.subr.mxu0 0.0
    %4878 = vmatpush1.msra.mxu0 0.0
    %4879 = vmatprep.subr.mxu0 0.0
    %4880 = vmatpush1.msra.mxu0 0.0
    %4881 = vmatprep.subr.mxu0 0.0
    %4882 = vmatpush1.msra.mxu0 0.0
    %4883 = vmatprep.subr.mxu0 0.0
    %4884 = vmatpush1.msra.mxu0 0.0
    %4885 = vmatprep.mubr.f32.mxu0 0.0
    %v4886 = vand.u32 %v4566, 4294901760
    %v4887 = vsub.f32 %v4566, %v4886
    %v4888 = vand.u32 %v4887, 4294901760
    %4889 = vmatmul.mubr.f32.gmra.mrb[0].mxu0 %v4888
    %v4890 = vpop.f32.mrb[0].mxu0
    %v4891 = vadd.f32 %v4810, %v4890
    %v4892 = vpop.f32.mrb[0].mxu0
    %4893 = vmatprep.mubr.f32.mxu0 0.0
    %v4894 = vand.u32 %v4569, 4294901760
    %v4895 = vsub.f32 %v4569, %v4894
    %v4896 = vand.u32 %v4895, 4294901760
    %4897 = vmatmul.mubr.f32.gmra.mrb[0].mxu0 %v4896
    %v4898 = vpop.f32.mrb[0].mxu0
    %v4899 = vadd.f32 %v4817, %v4898
    %v4900 = vpop.f32.mrb[0].mxu0
    %4901 = vdwg.mxu0
    %4902 = vmatprep.subr.mxu0 0.0
    %v4903 = vand.u32 %v4056, 4294901760
    %v4904 = vsub.f32 %v4056, %v4903
    %v4905 = vand.u32 %v4904, 4294901760
    %4906 = vmatpush1.msra.mxu0 %v4905
    %4907 = vmatprep.subr.mxu0 0.0
    %4908 = vmatpush1.msra.mxu0 0.0
    %4909 = vmatprep.subr.mxu0 0.0
    %4910 = vmatpush1.msra.mxu0 0.0
    %4911 = vmatprep.subr.mxu0 0.0
    %4912 = vmatpush1.msra.mxu0 0.0
    %4913 = vmatprep.subr.mxu0 0.0
    %4914 = vmatpush1.msra.mxu0 0.0
    %4915 = vmatprep.subr.mxu0 0.0
    %4916 = vmatpush1.msra.mxu0 0.0
    %4917 = vmatprep.subr.mxu0 0.0
    %4918 = vmatpush1.msra.mxu0 0.0
    %4919 = vmatprep.subr.mxu0 0.0
    %4920 = vmatpush1.msra.mxu0 0.0
    %4921 = vmatprep.subr.mxu0 0.0
    %4922 = vmatpush1.msra.mxu0 0.0
    %4923 = vmatprep.subr.mxu0 0.0
    %4924 = vmatpush1.msra.mxu0 0.0
    %4925 = vmatprep.subr.mxu0 0.0
    %4926 = vmatpush1.msra.mxu0 0.0
    %4927 = vmatprep.subr.mxu0 0.0
    %4928 = vmatpush1.msra.mxu0 0.0
    %4929 = vmatprep.subr.mxu0 0.0
    %4930 = vmatpush1.msra.mxu0 0.0
    %4931 = vmatprep.subr.mxu0 0.0
    %4932 = vmatpush1.msra.mxu0 0.0
    %4933 = vmatprep.subr.mxu0 0.0
    %4934 = vmatpush1.msra.mxu0 0.0
    %4935 = vmatprep.subr.mxu0 0.0
    %4936 = vmatpush1.msra.mxu0 0.0
    %4937 = vmatprep.subr.mxu0 0.0
    %4938 = vmatpush1.msra.mxu0 0.0
    %4939 = vmatprep.subr.mxu0 0.0
    %4940 = vmatpush1.msra.mxu0 0.0
    %4941 = vmatprep.subr.mxu0 0.0
    %4942 = vmatpush1.msra.mxu0 0.0
    %4943 = vmatprep.subr.mxu0 0.0
    %4944 = vmatpush1.msra.mxu0 0.0
    %4945 = vmatprep.subr.mxu0 0.0
    %4946 = vmatpush1.msra.mxu0 0.0
    %4947 = vmatprep.subr.mxu0 0.0
    %4948 = vmatpush1.msra.mxu0 0.0
    %4949 = vmatprep.subr.mxu0 0.0
    %4950 = vmatpush1.msra.mxu0 0.0
    %4951 = vmatprep.subr.mxu0 0.0
    %4952 = vmatpush1.msra.mxu0 0.0
    %4953 = vmatprep.subr.mxu0 0.0
    %4954 = vmatpush1.msra.mxu0 0.0
    %4955 = vmatprep.subr.mxu0 0.0
    %4956 = vmatpush1.msra.mxu0 0.0
    %4957 = vmatprep.subr.mxu0 0.0
    %4958 = vmatpush1.msra.mxu0 0.0
    %4959 = vmatprep.subr.mxu0 0.0
    %4960 = vmatpush1.msra.mxu0 0.0
    %4961 = vmatprep.subr.mxu0 0.0
    %4962 = vmatpush1.msra.mxu0 0.0
    %4963 = vmatprep.subr.mxu0 0.0
    %4964 = vmatpush1.msra.mxu0 0.0
    %4965 = vmatprep.subr.mxu0 0.0
    %4966 = vmatpush1.msra.mxu0 0.0
    %4967 = vmatprep.subr.mxu0 0.0
    %4968 = vmatpush1.msra.mxu0 0.0
    %4969 = vmatprep.mubr.f32.mxu0 0.0
    %v4970 = vand.u32 %v4566, 4294901760
    %4971 = vmatmul.mubr.f32.gmra.mrb[0].mxu0 %v4970
    %v4972 = vpop.f32.mrb[0].mxu0
    %v4973 = vadd.f32 %v4891, %v4972
    %v4974 = vpop.f32.mrb[0].mxu0
    %4975 = vmatprep.mubr.f32.mxu0 0.0
    %v4976 = vand.u32 %v4569, 4294901760
    %4977 = vmatmul.mubr.f32.gmra.mrb[0].mxu0 %v4976
    %v4978 = vpop.f32.mrb[0].mxu0
    %v4979 = vadd.f32 %v4899, %v4978
    %v4980 = vpop.f32.mrb[0].mxu0
    %4981 = vdwg.mxu0
    %4982 = vmatprep.subr.mxu0 0.0
    %v4983 = vand.u32 %v4056, 4294901760
    %4984 = vmatpush1.msra.mxu0 %v4983
    %4985 = vmatprep.subr.mxu0 0.0
    %4986 = vmatpush1.msra.mxu0 0.0
    %4987 = vmatprep.subr.mxu0 0.0
    %4988 = vmatpush1.msra.mxu0 0.0
    %4989 = vmatprep.subr.mxu0 0.0
    %4990 = vmatpush1.msra.mxu0 0.0
    %4991 = vmatprep.subr.mxu0 0.0
    %4992 = vmatpush1.msra.mxu0 0.0
    %4993 = vmatprep.subr.mxu0 0.0
    %4994 = vmatpush1.msra.mxu0 0.0
    %4995 = vmatprep.subr.mxu0 0.0
    %4996 = vmatpush1.msra.mxu0 0.0
    %4997 = vmatprep.subr.mxu0 0.0
    %4998 = vmatpush1.msra.mxu0 0.0
    %4999 = vmatprep.subr.mxu0 0.0
    %5000 = vmatpush1.msra.mxu0 0.0
    %5001 = vmatprep.subr.mxu0 0.0
    %5002 = vmatpush1.msra.mxu0 0.0
    %5003 = vmatprep.subr.mxu0 0.0
    %5004 = vmatpush1.msra.mxu0 0.0
    %5005 = vmatprep.subr.mxu0 0.0
    %5006 = vmatpush1.msra.mxu0 0.0
    %5007 = vmatprep.subr.mxu0 0.0
    %5008 = vmatpush1.msra.mxu0 0.0
    %5009 = vmatprep.subr.mxu0 0.0
    %5010 = vmatpush1.msra.mxu0 0.0
    %5011 = vmatprep.subr.mxu0 0.0
    %5012 = vmatpush1.msra.mxu0 0.0
    %5013 = vmatprep.subr.mxu0 0.0
    %5014 = vmatpush1.msra.mxu0 0.0
    %5015 = vmatprep.subr.mxu0 0.0
    %5016 = vmatpush1.msra.mxu0 0.0
    %5017 = vmatprep.subr.mxu0 0.0
    %5018 = vmatpush1.msra.mxu0 0.0
    %5019 = vmatprep.subr.mxu0 0.0
    %5020 = vmatpush1.msra.mxu0 0.0
    %5021 = vmatprep.subr.mxu0 0.0
    %5022 = vmatpush1.msra.mxu0 0.0
    %5023 = vmatprep.subr.mxu0 0.0
    %5024 = vmatpush1.msra.mxu0 0.0
    %5025 = vmatprep.subr.mxu0 0.0
    %5026 = vmatpush1.msra.mxu0 0.0
    %5027 = vmatprep.subr.mxu0 0.0
    %5028 = vmatpush1.msra.mxu0 0.0
    %5029 = vmatprep.subr.mxu0 0.0
    %5030 = vmatpush1.msra.mxu0 0.0
    %5031 = vmatprep.subr.mxu0 0.0
    %5032 = vmatpush1.msra.mxu0 0.0
    %5033 = vmatprep.subr.mxu0 0.0
    %5034 = vmatpush1.msra.mxu0 0.0
    %5035 = vmatprep.subr.mxu0 0.0
    %5036 = vmatpush1.msra.mxu0 0.0
    %5037 = vmatprep.subr.mxu0 0.0
    %5038 = vmatpush1.msra.mxu0 0.0
    %5039 = vmatprep.subr.mxu0 0.0
    %5040 = vmatpush1.msra.mxu0 0.0
    %5041 = vmatprep.subr.mxu0 0.0
    %5042 = vmatpush1.msra.mxu0 0.0
    %5043 = vmatprep.subr.mxu0 0.0
    %5044 = vmatpush1.msra.mxu0 0.0
    %5045 = vmatprep.subr.mxu0 0.0
    %5046 = vmatpush1.msra.mxu0 0.0
    %5047 = vmatprep.mubr.f32.mxu0 0.0
    %v5048 = vand.u32 %v4566, 4294901760
    %5049 = vmatmul.mubr.f32.gmra.mrb[0].mxu0 %v5048
    %v5050 = vpop.f32.mrb[0].mxu0
    %v5051 = vadd.f32 %v4973, %v5050
    %v5052 = vpop.f32.mrb[0].mxu0
    %5053 = vmatprep.mubr.f32.mxu0 0.0
    %v5054 = vand.u32 %v4569, 4294901760
    %5055 = vmatmul.mubr.f32.gmra.mrb[0].mxu0 %v5054
    %v5056 = vpop.f32.mrb[0].mxu0
    %v5057 = vadd.f32 %v4979, %v5056
    %v5058 = vpop.f32.mrb[0].mxu0
    %5059 = vdwg.mxu0
    %v5061 = vsel %vm569, %v4051, 0
    %v5064 = vsel %vm569, %v4052, 0
    %5066 = vmatprep.subr.mxu0 0.0
    %v5067 = vand.u32 %v4054, 4294901760
    %5068 = vmatpush1.msra.mxu0 %v5067
    %5069 = vmatprep.subr.mxu0 0.0
    %5070 = vmatpush1.msra.mxu0 0.0
    %5071 = vmatprep.subr.mxu0 0.0
    %5072 = vmatpush1.msra.mxu0 0.0
    %5073 = vmatprep.subr.mxu0 0.0
    %5074 = vmatpush1.msra.mxu0 0.0
    %5075 = vmatprep.subr.mxu0 0.0
    %5076 = vmatpush1.msra.mxu0 0.0
    %5077 = vmatprep.subr.mxu0 0.0
    %5078 = vmatpush1.msra.mxu0 0.0
    %5079 = vmatprep.subr.mxu0 0.0
    %5080 = vmatpush1.msra.mxu0 0.0
    %5081 = vmatprep.subr.mxu0 0.0
    %5082 = vmatpush1.msra.mxu0 0.0
    %5083 = vmatprep.subr.mxu0 0.0
    %5084 = vmatpush1.msra.mxu0 0.0
    %5085 = vmatprep.subr.mxu0 0.0
    %5086 = vmatpush1.msra.mxu0 0.0
    %5087 = vmatprep.subr.mxu0 0.0
    %5088 = vmatpush1.msra.mxu0 0.0
    %5089 = vmatprep.subr.mxu0 0.0
    %5090 = vmatpush1.msra.mxu0 0.0
    %5091 = vmatprep.subr.mxu0 0.0
    %5092 = vmatpush1.msra.mxu0 0.0
    %5093 = vmatprep.subr.mxu0 0.0
    %5094 = vmatpush1.msra.mxu0 0.0
    %5095 = vmatprep.subr.mxu0 0.0
    %5096 = vmatpush1.msra.mxu0 0.0
    %5097 = vmatprep.subr.mxu0 0.0
    %5098 = vmatpush1.msra.mxu0 0.0
    %5099 = vmatprep.subr.mxu0 0.0
    %5100 = vmatpush1.msra.mxu0 0.0
    %5101 = vmatprep.subr.mxu0 0.0
    %5102 = vmatpush1.msra.mxu0 0.0
    %5103 = vmatprep.subr.mxu0 0.0
    %5104 = vmatpush1.msra.mxu0 0.0
    %5105 = vmatprep.subr.mxu0 0.0
    %5106 = vmatpush1.msra.mxu0 0.0
    %5107 = vmatprep.subr.mxu0 0.0
    %5108 = vmatpush1.msra.mxu0 0.0
    %5109 = vmatprep.subr.mxu0 0.0
    %5110 = vmatpush1.msra.mxu0 0.0
    %5111 = vmatprep.subr.mxu0 0.0
    %5112 = vmatpush1.msra.mxu0 0.0
    %5113 = vmatprep.subr.mxu0 0.0
    %5114 = vmatpush1.msra.mxu0 0.0
    %5115 = vmatprep.subr.mxu0 0.0
    %5116 = vmatpush1.msra.mxu0 0.0
    %5117 = vmatprep.subr.mxu0 0.0
    %5118 = vmatpush1.msra.mxu0 0.0
    %5119 = vmatprep.subr.mxu0 0.0
    %5120 = vmatpush1.msra.mxu0 0.0
    %5121 = vmatprep.subr.mxu0 0.0
    %5122 = vmatpush1.msra.mxu0 0.0
    %5123 = vmatprep.subr.mxu0 0.0
    %5124 = vmatpush1.msra.mxu0 0.0
    %5125 = vmatprep.subr.mxu0 0.0
    %5126 = vmatpush1.msra.mxu0 0.0
    %5127 = vmatprep.subr.mxu0 0.0
    %5128 = vmatpush1.msra.mxu0 0.0
    %5129 = vmatprep.subr.mxu0 0.0
    %5130 = vmatpush1.msra.mxu0 0.0
    %5131 = vmatprep.mubr.f32.mxu0 0.0
    %v5132 = vand.u32 %v5061, 4294901760
    %v5133 = vsub.f32 %v5061, %v5132
    %v5134 = vand.u32 %v5133, 4294901760
    %v5135 = vsub.f32 %v5133, %v5134
    %v5136 = vand.u32 %v5135, 4294901760
    %5137 = vmatmul.mubr.f32.gmra.mrb[0].mxu0 %v5136
    %v5138 = vpop.f32.mrb[0].mxu0
    %v5139 = vadd.f32 %v5051, %v5138
    %v5140 = vpop.f32.mrb[0].mxu0
    %5141 = vmatprep.mubr.f32.mxu0 0.0
    %v5142 = vand.u32 %v5064, 4294901760
    %v5143 = vsub.f32 %v5064, %v5142
    %v5144 = vand.u32 %v5143, 4294901760
    %v5145 = vsub.f32 %v5143, %v5144
    %v5146 = vand.u32 %v5145, 4294901760
    %5147 = vmatmul.mubr.f32.gmra.mrb[0].mxu0 %v5146
    %v5148 = vpop.f32.mrb[0].mxu0
    %v5149 = vadd.f32 %v5057, %v5148
    %v5150 = vpop.f32.mrb[0].mxu0
    %5151 = vdwg.mxu0
    %5152 = vmatprep.subr.mxu0 0.0
    %v5153 = vand.u32 %v4054, 4294901760
    %v5154 = vsub.f32 %v4054, %v5153
    %v5155 = vand.u32 %v5154, 4294901760
    %v5156 = vsub.f32 %v5154, %v5155
    %v5157 = vand.u32 %v5156, 4294901760
    %5158 = vmatpush1.msra.mxu0 %v5157
    %5159 = vmatprep.subr.mxu0 0.0
    %5160 = vmatpush1.msra.mxu0 0.0
    %5161 = vmatprep.subr.mxu0 0.0
    %5162 = vmatpush1.msra.mxu0 0.0
    %5163 = vmatprep.subr.mxu0 0.0
    %5164 = vmatpush1.msra.mxu0 0.0
    %5165 = vmatprep.subr.mxu0 0.0
    %5166 = vmatpush1.msra.mxu0 0.0
    %5167 = vmatprep.subr.mxu0 0.0
    %5168 = vmatpush1.msra.mxu0 0.0
    %5169 = vmatprep.subr.mxu0 0.0
    %5170 = vmatpush1.msra.mxu0 0.0
    %5171 = vmatprep.subr.mxu0 0.0
    %5172 = vmatpush1.msra.mxu0 0.0
    %5173 = vmatprep.subr.mxu0 0.0
    %5174 = vmatpush1.msra.mxu0 0.0
    %5175 = vmatprep.subr.mxu0 0.0
    %5176 = vmatpush1.msra.mxu0 0.0
    %5177 = vmatprep.subr.mxu0 0.0
    %5178 = vmatpush1.msra.mxu0 0.0
    %5179 = vmatprep.subr.mxu0 0.0
    %5180 = vmatpush1.msra.mxu0 0.0
    %5181 = vmatprep.subr.mxu0 0.0
    %5182 = vmatpush1.msra.mxu0 0.0
    %5183 = vmatprep.subr.mxu0 0.0
    %5184 = vmatpush1.msra.mxu0 0.0
    %5185 = vmatprep.subr.mxu0 0.0
    %5186 = vmatpush1.msra.mxu0 0.0
    %5187 = vmatprep.subr.mxu0 0.0
    %5188 = vmatpush1.msra.mxu0 0.0
    %5189 = vmatprep.subr.mxu0 0.0
    %5190 = vmatpush1.msra.mxu0 0.0
    %5191 = vmatprep.subr.mxu0 0.0
    %5192 = vmatpush1.msra.mxu0 0.0
    %5193 = vmatprep.subr.mxu0 0.0
    %5194 = vmatpush1.msra.mxu0 0.0
    %5195 = vmatprep.subr.mxu0 0.0
    %5196 = vmatpush1.msra.mxu0 0.0
    %5197 = vmatprep.subr.mxu0 0.0
    %5198 = vmatpush1.msra.mxu0 0.0
    %5199 = vmatprep.subr.mxu0 0.0
    %5200 = vmatpush1.msra.mxu0 0.0
    %5201 = vmatprep.subr.mxu0 0.0
    %5202 = vmatpush1.msra.mxu0 0.0
    %5203 = vmatprep.subr.mxu0 0.0
    %5204 = vmatpush1.msra.mxu0 0.0
    %5205 = vmatprep.subr.mxu0 0.0
    %5206 = vmatpush1.msra.mxu0 0.0
    %5207 = vmatprep.subr.mxu0 0.0
    %5208 = vmatpush1.msra.mxu0 0.0
    %5209 = vmatprep.subr.mxu0 0.0
    %5210 = vmatpush1.msra.mxu0 0.0
    %5211 = vmatprep.subr.mxu0 0.0
    %5212 = vmatpush1.msra.mxu0 0.0
    %5213 = vmatprep.subr.mxu0 0.0
    %5214 = vmatpush1.msra.mxu0 0.0
    %5215 = vmatprep.subr.mxu0 0.0
    %5216 = vmatpush1.msra.mxu0 0.0
    %5217 = vmatprep.subr.mxu0 0.0
    %5218 = vmatpush1.msra.mxu0 0.0
    %5219 = vmatprep.subr.mxu0 0.0
    %5220 = vmatpush1.msra.mxu0 0.0
    %5221 = vmatprep.mubr.f32.mxu0 0.0
    %v5222 = vand.u32 %v5061, 4294901760
    %5223 = vmatmul.mubr.f32.gmra.mrb[0].mxu0 %v5222
    %v5224 = vpop.f32.mrb[0].mxu0
    %v5225 = vadd.f32 %v5139, %v5224
    %v5226 = vpop.f32.mrb[0].mxu0
    %5227 = vmatprep.mubr.f32.mxu0 0.0
    %v5228 = vand.u32 %v5064, 4294901760
    %5229 = vmatmul.mubr.f32.gmra.mrb[0].mxu0 %v5228
    %v5230 = vpop.f32.mrb[0].mxu0
    %v5231 = vadd.f32 %v5149, %v5230
    %v5232 = vpop.f32.mrb[0].mxu0
    %5233 = vdwg.mxu0
    %5234 = vmatprep.subr.mxu0 0.0
    %v5235 = vand.u32 %v4054, 4294901760
    %v5236 = vsub.f32 %v4054, %v5235
    %5237 = vmatpush1.msra.mxu0 %v5236
    %5238 = vmatprep.subr.mxu0 0.0
    %5239 = vmatpush1.msra.mxu0 0.0
    %5240 = vmatprep.subr.mxu0 0.0
    %5241 = vmatpush1.msra.mxu0 0.0
    %5242 = vmatprep.subr.mxu0 0.0
    %5243 = vmatpush1.msra.mxu0 0.0
    %5244 = vmatprep.subr.mxu0 0.0
    %5245 = vmatpush1.msra.mxu0 0.0
    %5246 = vmatprep.subr.mxu0 0.0
    %5247 = vmatpush1.msra.mxu0 0.0
    %5248 = vmatprep.subr.mxu0 0.0
    %5249 = vmatpush1.msra.mxu0 0.0
    %5250 = vmatprep.subr.mxu0 0.0
    %5251 = vmatpush1.msra.mxu0 0.0
    %5252 = vmatprep.subr.mxu0 0.0
    %5253 = vmatpush1.msra.mxu0 0.0
    %5254 = vmatprep.subr.mxu0 0.0
    %5255 = vmatpush1.msra.mxu0 0.0
    %5256 = vmatprep.subr.mxu0 0.0
    %5257 = vmatpush1.msra.mxu0 0.0
    %5258 = vmatprep.subr.mxu0 0.0
    %5259 = vmatpush1.msra.mxu0 0.0
    %5260 = vmatprep.subr.mxu0 0.0
    %5261 = vmatpush1.msra.mxu0 0.0
    %5262 = vmatprep.subr.mxu0 0.0
    %5263 = vmatpush1.msra.mxu0 0.0
    %5264 = vmatprep.subr.mxu0 0.0
    %5265 = vmatpush1.msra.mxu0 0.0
    %5266 = vmatprep.subr.mxu0 0.0
    %5267 = vmatpush1.msra.mxu0 0.0
    %5268 = vmatprep.subr.mxu0 0.0
    %5269 = vmatpush1.msra.mxu0 0.0
    %5270 = vmatprep.subr.mxu0 0.0
    %5271 = vmatpush1.msra.mxu0 0.0
    %5272 = vmatprep.subr.mxu0 0.0
    %5273 = vmatpush1.msra.mxu0 0.0
    %5274 = vmatprep.subr.mxu0 0.0
    %5275 = vmatpush1.msra.mxu0 0.0
    %5276 = vmatprep.subr.mxu0 0.0
    %5277 = vmatpush1.msra.mxu0 0.0
    %5278 = vmatprep.subr.mxu0 0.0
    %5279 = vmatpush1.msra.mxu0 0.0
    %5280 = vmatprep.subr.mxu0 0.0
    %5281 = vmatpush1.msra.mxu0 0.0
    %5282 = vmatprep.subr.mxu0 0.0
    %5283 = vmatpush1.msra.mxu0 0.0
    %5284 = vmatprep.subr.mxu0 0.0
    %5285 = vmatpush1.msra.mxu0 0.0
    %5286 = vmatprep.subr.mxu0 0.0
    %5287 = vmatpush1.msra.mxu0 0.0
    %5288 = vmatprep.subr.mxu0 0.0
    %5289 = vmatpush1.msra.mxu0 0.0
    %5290 = vmatprep.subr.mxu0 0.0
    %5291 = vmatpush1.msra.mxu0 0.0
    %5292 = vmatprep.subr.mxu0 0.0
    %5293 = vmatpush1.msra.mxu0 0.0
    %5294 = vmatprep.subr.mxu0 0.0
    %5295 = vmatpush1.msra.mxu0 0.0
    %5296 = vmatprep.subr.mxu0 0.0
    %5297 = vmatpush1.msra.mxu0 0.0
    %5298 = vmatprep.subr.mxu0 0.0
    %5299 = vmatpush1.msra.mxu0 0.0
    %5300 = vmatprep.mubr.f32.mxu0 0.0
    %v5301 = vand.u32 %v5061, 4294901760
    %v5302 = vsub.f32 %v5061, %v5301
    %5303 = vmatmul.mubr.f32.gmra.mrb[0].mxu0 %v5302
    %v5304 = vpop.f32.mrb[0].mxu0
    %v5305 = vadd.f32 %v5225, %v5304
    %v5306 = vpop.f32.mrb[0].mxu0
    %5307 = vmatprep.mubr.f32.mxu0 0.0
    %v5308 = vand.u32 %v5064, 4294901760
    %v5309 = vsub.f32 %v5064, %v5308
    %5310 = vmatmul.mubr.f32.gmra.mrb[0].mxu0 %v5309
    %v5311 = vpop.f32.mrb[0].mxu0
    %v5312 = vadd.f32 %v5231, %v5311
    %v5313 = vpop.f32.mrb[0].mxu0
    %5314 = vdwg.mxu0
    %5315 = vmatprep.subr.mxu0 0.0
    %v5316 = vand.u32 %v4054, 4294901760
    %5317 = vmatpush1.msra.mxu0 %v5316
    %5318 = vmatprep.subr.mxu0 0.0
    %5319 = vmatpush1.msra.mxu0 0.0
    %5320 = vmatprep.subr.mxu0 0.0
    %5321 = vmatpush1.msra.mxu0 0.0
    %5322 = vmatprep.subr.mxu0 0.0
    %5323 = vmatpush1.msra.mxu0 0.0
    %5324 = vmatprep.subr.mxu0 0.0
    %5325 = vmatpush1.msra.mxu0 0.0
    %5326 = vmatprep.subr.mxu0 0.0
    %5327 = vmatpush1.msra.mxu0 0.0
    %5328 = vmatprep.subr.mxu0 0.0
    %5329 = vmatpush1.msra.mxu0 0.0
    %5330 = vmatprep.subr.mxu0 0.0
    %5331 = vmatpush1.msra.mxu0 0.0
    %5332 = vmatprep.subr.mxu0 0.0
    %5333 = vmatpush1.msra.mxu0 0.0
    %5334 = vmatprep.subr.mxu0 0.0
    %5335 = vmatpush1.msra.mxu0 0.0
    %5336 = vmatprep.subr.mxu0 0.0
    %5337 = vmatpush1.msra.mxu0 0.0
    %5338 = vmatprep.subr.mxu0 0.0
    %5339 = vmatpush1.msra.mxu0 0.0
    %5340 = vmatprep.subr.mxu0 0.0
    %5341 = vmatpush1.msra.mxu0 0.0
    %5342 = vmatprep.subr.mxu0 0.0
    %5343 = vmatpush1.msra.mxu0 0.0
    %5344 = vmatprep.subr.mxu0 0.0
    %5345 = vmatpush1.msra.mxu0 0.0
    %5346 = vmatprep.subr.mxu0 0.0
    %5347 = vmatpush1.msra.mxu0 0.0
    %5348 = vmatprep.subr.mxu0 0.0
    %5349 = vmatpush1.msra.mxu0 0.0
    %5350 = vmatprep.subr.mxu0 0.0
    %5351 = vmatpush1.msra.mxu0 0.0
    %5352 = vmatprep.subr.mxu0 0.0
    %5353 = vmatpush1.msra.mxu0 0.0
    %5354 = vmatprep.subr.mxu0 0.0
    %5355 = vmatpush1.msra.mxu0 0.0
    %5356 = vmatprep.subr.mxu0 0.0
    %5357 = vmatpush1.msra.mxu0 0.0
    %5358 = vmatprep.subr.mxu0 0.0
    %5359 = vmatpush1.msra.mxu0 0.0
    %5360 = vmatprep.subr.mxu0 0.0
    %5361 = vmatpush1.msra.mxu0 0.0
    %5362 = vmatprep.subr.mxu0 0.0
    %5363 = vmatpush1.msra.mxu0 0.0
    %5364 = vmatprep.subr.mxu0 0.0
    %5365 = vmatpush1.msra.mxu0 0.0
    %5366 = vmatprep.subr.mxu0 0.0
    %5367 = vmatpush1.msra.mxu0 0.0
    %5368 = vmatprep.subr.mxu0 0.0
    %5369 = vmatpush1.msra.mxu0 0.0
    %5370 = vmatprep.subr.mxu0 0.0
    %5371 = vmatpush1.msra.mxu0 0.0
    %5372 = vmatprep.subr.mxu0 0.0
    %5373 = vmatpush1.msra.mxu0 0.0
    %5374 = vmatprep.subr.mxu0 0.0
    %5375 = vmatpush1.msra.mxu0 0.0
    %5376 = vmatprep.subr.mxu0 0.0
    %5377 = vmatpush1.msra.mxu0 0.0
    %5378 = vmatprep.subr.mxu0 0.0
    %5379 = vmatpush1.msra.mxu0 0.0
    %5380 = vmatprep.mubr.f32.mxu0 0.0
    %v5381 = vand.u32 %v5061, 4294901760
    %v5382 = vsub.f32 %v5061, %v5381
    %v5383 = vand.u32 %v5382, 4294901760
    %5384 = vmatmul.mubr.f32.gmra.mrb[0].mxu0 %v5383
    %v5385 = vpop.f32.mrb[0].mxu0
    %v5386 = vadd.f32 %v5305, %v5385
    %v5387 = vpop.f32.mrb[0].mxu0
    %5388 = vmatprep.mubr.f32.mxu0 0.0
    %v5389 = vand.u32 %v5064, 4294901760
    %v5390 = vsub.f32 %v5064, %v5389
    %v5391 = vand.u32 %v5390, 4294901760
    %5392 = vmatmul.mubr.f32.gmra.mrb[0].mxu0 %v5391
    %v5393 = vpop.f32.mrb[0].mxu0
    %v5394 = vadd.f32 %v5312, %v5393
    %v5395 = vpop.f32.mrb[0].mxu0
    %5396 = vdwg.mxu0
    %5397 = vmatprep.subr.mxu0 0.0
    %v5398 = vand.u32 %v4054, 4294901760
    %v5399 = vsub.f32 %v4054, %v5398
    %v5400 = vand.u32 %v5399, 4294901760
    %5401 = vmatpush1.msra.mxu0 %v5400
    %5402 = vmatprep.subr.mxu0 0.0
    %5403 = vmatpush1.msra.mxu0 0.0
    %5404 = vmatprep.subr.mxu0 0.0
    %5405 = vmatpush1.msra.mxu0 0.0
    %5406 = vmatprep.subr.mxu0 0.0
    %5407 = vmatpush1.msra.mxu0 0.0
    %5408 = vmatprep.subr.mxu0 0.0
    %5409 = vmatpush1.msra.mxu0 0.0
    %5410 = vmatprep.subr.mxu0 0.0
    %5411 = vmatpush1.msra.mxu0 0.0
    %5412 = vmatprep.subr.mxu0 0.0
    %5413 = vmatpush1.msra.mxu0 0.0
    %5414 = vmatprep.subr.mxu0 0.0
    %5415 = vmatpush1.msra.mxu0 0.0
    %5416 = vmatprep.subr.mxu0 0.0
    %5417 = vmatpush1.msra.mxu0 0.0
    %5418 = vmatprep.subr.mxu0 0.0
    %5419 = vmatpush1.msra.mxu0 0.0
    %5420 = vmatprep.subr.mxu0 0.0
    %5421 = vmatpush1.msra.mxu0 0.0
    %5422 = vmatprep.subr.mxu0 0.0
    %5423 = vmatpush1.msra.mxu0 0.0
    %5424 = vmatprep.subr.mxu0 0.0
    %5425 = vmatpush1.msra.mxu0 0.0
    %5426 = vmatprep.subr.mxu0 0.0
    %5427 = vmatpush1.msra.mxu0 0.0
    %5428 = vmatprep.subr.mxu0 0.0
    %5429 = vmatpush1.msra.mxu0 0.0
    %5430 = vmatprep.subr.mxu0 0.0
    %5431 = vmatpush1.msra.mxu0 0.0
    %5432 = vmatprep.subr.mxu0 0.0
    %5433 = vmatpush1.msra.mxu0 0.0
    %5434 = vmatprep.subr.mxu0 0.0
    %5435 = vmatpush1.msra.mxu0 0.0
    %5436 = vmatprep.subr.mxu0 0.0
    %5437 = vmatpush1.msra.mxu0 0.0
    %5438 = vmatprep.subr.mxu0 0.0
    %5439 = vmatpush1.msra.mxu0 0.0
    %5440 = vmatprep.subr.mxu0 0.0
    %5441 = vmatpush1.msra.mxu0 0.0
    %5442 = vmatprep.subr.mxu0 0.0
    %5443 = vmatpush1.msra.mxu0 0.0
    %5444 = vmatprep.subr.mxu0 0.0
    %5445 = vmatpush1.msra.mxu0 0.0
    %5446 = vmatprep.subr.mxu0 0.0
    %5447 = vmatpush1.msra.mxu0 0.0
    %5448 = vmatprep.subr.mxu0 0.0
    %5449 = vmatpush1.msra.mxu0 0.0
    %5450 = vmatprep.subr.mxu0 0.0
    %5451 = vmatpush1.msra.mxu0 0.0
    %5452 = vmatprep.subr.mxu0 0.0
    %5453 = vmatpush1.msra.mxu0 0.0
    %5454 = vmatprep.subr.mxu0 0.0
    %5455 = vmatpush1.msra.mxu0 0.0
    %5456 = vmatprep.subr.mxu0 0.0
    %5457 = vmatpush1.msra.mxu0 0.0
    %5458 = vmatprep.subr.mxu0 0.0
    %5459 = vmatpush1.msra.mxu0 0.0
    %5460 = vmatprep.subr.mxu0 0.0
    %5461 = vmatpush1.msra.mxu0 0.0
    %5462 = vmatprep.subr.mxu0 0.0
    %5463 = vmatpush1.msra.mxu0 0.0
    %5464 = vmatprep.mubr.f32.mxu0 0.0
    %v5465 = vand.u32 %v5061, 4294901760
    %5466 = vmatmul.mubr.f32.gmra.mrb[0].mxu0 %v5465
    %v5467 = vpop.f32.mrb[0].mxu0
    %v5468 = vadd.f32 %v5386, %v5467
    %v5469 = vpop.f32.mrb[0].mxu0
    %5470 = vmatprep.mubr.f32.mxu0 0.0
    %v5471 = vand.u32 %v5064, 4294901760
    %5472 = vmatmul.mubr.f32.gmra.mrb[0].mxu0 %v5471
    %v5473 = vpop.f32.mrb[0].mxu0
    %v5474 = vadd.f32 %v5394, %v5473
    %v5475 = vpop.f32.mrb[0].mxu0
    %5476 = vdwg.mxu0
    %5477 = vmatprep.subr.mxu0 0.0
    %v5478 = vand.u32 %v4054, 4294901760
    %5479 = vmatpush1.msra.mxu0 %v5478
    %5480 = vmatprep.subr.mxu0 0.0
    %5481 = vmatpush1.msra.mxu0 0.0
    %5482 = vmatprep.subr.mxu0 0.0
    %5483 = vmatpush1.msra.mxu0 0.0
    %5484 = vmatprep.subr.mxu0 0.0
    %5485 = vmatpush1.msra.mxu0 0.0
    %5486 = vmatprep.subr.mxu0 0.0
    %5487 = vmatpush1.msra.mxu0 0.0
    %5488 = vmatprep.subr.mxu0 0.0
    %5489 = vmatpush1.msra.mxu0 0.0
    %5490 = vmatprep.subr.mxu0 0.0
    %5491 = vmatpush1.msra.mxu0 0.0
    %5492 = vmatprep.subr.mxu0 0.0
    %5493 = vmatpush1.msra.mxu0 0.0
    %5494 = vmatprep.subr.mxu0 0.0
    %5495 = vmatpush1.msra.mxu0 0.0
    %5496 = vmatprep.subr.mxu0 0.0
    %5497 = vmatpush1.msra.mxu0 0.0
    %5498 = vmatprep.subr.mxu0 0.0
    %5499 = vmatpush1.msra.mxu0 0.0
    %5500 = vmatprep.subr.mxu0 0.0
    %5501 = vmatpush1.msra.mxu0 0.0
    %5502 = vmatprep.subr.mxu0 0.0
    %5503 = vmatpush1.msra.mxu0 0.0
    %5504 = vmatprep.subr.mxu0 0.0
    %5505 = vmatpush1.msra.mxu0 0.0
    %5506 = vmatprep.subr.mxu0 0.0
    %5507 = vmatpush1.msra.mxu0 0.0
    %5508 = vmatprep.subr.mxu0 0.0
    %5509 = vmatpush1.msra.mxu0 0.0
    %5510 = vmatprep.subr.mxu0 0.0
    %5511 = vmatpush1.msra.mxu0 0.0
    %5512 = vmatprep.subr.mxu0 0.0
    %5513 = vmatpush1.msra.mxu0 0.0
    %5514 = vmatprep.subr.mxu0 0.0
    %5515 = vmatpush1.msra.mxu0 0.0
    %5516 = vmatprep.subr.mxu0 0.0
    %5517 = vmatpush1.msra.mxu0 0.0
    %5518 = vmatprep.subr.mxu0 0.0
    %5519 = vmatpush1.msra.mxu0 0.0
    %5520 = vmatprep.subr.mxu0 0.0
    %5521 = vmatpush1.msra.mxu0 0.0
    %5522 = vmatprep.subr.mxu0 0.0
    %5523 = vmatpush1.msra.mxu0 0.0
    %5524 = vmatprep.subr.mxu0 0.0
    %5525 = vmatpush1.msra.mxu0 0.0
    %5526 = vmatprep.subr.mxu0 0.0
    %5527 = vmatpush1.msra.mxu0 0.0
    %5528 = vmatprep.subr.mxu0 0.0
    %5529 = vmatpush1.msra.mxu0 0.0
    %5530 = vmatprep.subr.mxu0 0.0
    %5531 = vmatpush1.msra.mxu0 0.0
    %5532 = vmatprep.subr.mxu0 0.0
    %5533 = vmatpush1.msra.mxu0 0.0
    %5534 = vmatprep.subr.mxu0 0.0
    %5535 = vmatpush1.msra.mxu0 0.0
    %5536 = vmatprep.subr.mxu0 0.0
    %5537 = vmatpush1.msra.mxu0 0.0
    %5538 = vmatprep.subr.mxu0 0.0
    %5539 = vmatpush1.msra.mxu0 0.0
    %5540 = vmatprep.subr.mxu0 0.0
    %5541 = vmatpush1.msra.mxu0 0.0
    %5542 = vmatprep.mubr.f32.mxu0 0.0
    %v5543 = vand.u32 %v5061, 4294901760
    %5544 = vmatmul.mubr.f32.gmra.mrb[0].mxu0 %v5543
    %v5545 = vpop.f32.mrb[0].mxu0
    %v5546 = vadd.f32 %v5468, %v5545
    %v5547 = vpop.f32.mrb[0].mxu0
    %5548 = vmatprep.mubr.f32.mxu0 0.0
    %v5549 = vand.u32 %v5064, 4294901760
    %5550 = vmatmul.mubr.f32.gmra.mrb[0].mxu0 %v5549
    %v5551 = vpop.f32.mrb[0].mxu0
    %v5552 = vadd.f32 %v5474, %v5551
    %v5553 = vpop.f32.mrb[0].mxu0
    %5554 = vdwg.mxu0
    %5555 = vmatprep.subr.mxu0 0.0
    %v5556 = vand.u32 %v4058, 4294901760
    %5557 = vmatpush1.msra.mxu0 %v5556
    %5558 = vmatprep.subr.mxu0 0.0
    %5559 = vmatpush1.msra.mxu0 0.0
    %5560 = vmatprep.subr.mxu0 0.0
    %5561 = vmatpush1.msra.mxu0 0.0
    %5562 = vmatprep.subr.mxu0 0.0
    %5563 = vmatpush1.msra.mxu0 0.0
    %5564 = vmatprep.subr.mxu0 0.0
    %5565 = vmatpush1.msra.mxu0 0.0
    %5566 = vmatprep.subr.mxu0 0.0
    %5567 = vmatpush1.msra.mxu0 0.0
    %5568 = vmatprep.subr.mxu0 0.0
    %5569 = vmatpush1.msra.mxu0 0.0
    %5570 = vmatprep.subr.mxu0 0.0
    %5571 = vmatpush1.msra.mxu0 0.0
    %5572 = vmatprep.subr.mxu0 0.0
    %5573 = vmatpush1.msra.mxu0 0.0
    %5574 = vmatprep.subr.mxu0 0.0
    %5575 = vmatpush1.msra.mxu0 0.0
    %5576 = vmatprep.subr.mxu0 0.0
    %5577 = vmatpush1.msra.mxu0 0.0
    %5578 = vmatprep.subr.mxu0 0.0
    %5579 = vmatpush1.msra.mxu0 0.0
    %5580 = vmatprep.subr.mxu0 0.0
    %5581 = vmatpush1.msra.mxu0 0.0
    %5582 = vmatprep.subr.mxu0 0.0
    %5583 = vmatpush1.msra.mxu0 0.0
    %5584 = vmatprep.subr.mxu0 0.0
    %5585 = vmatpush1.msra.mxu0 0.0
    %5586 = vmatprep.subr.mxu0 0.0
    %5587 = vmatpush1.msra.mxu0 0.0
    %5588 = vmatprep.subr.mxu0 0.0
    %5589 = vmatpush1.msra.mxu0 0.0
    %5590 = vmatprep.subr.mxu0 0.0
    %5591 = vmatpush1.msra.mxu0 0.0
    %5592 = vmatprep.subr.mxu0 0.0
    %5593 = vmatpush1.msra.mxu0 0.0
    %5594 = vmatprep.subr.mxu0 0.0
    %5595 = vmatpush1.msra.mxu0 0.0
    %5596 = vmatprep.subr.mxu0 0.0
    %5597 = vmatpush1.msra.mxu0 0.0
    %5598 = vmatprep.subr.mxu0 0.0
    %5599 = vmatpush1.msra.mxu0 0.0
    %5600 = vmatprep.subr.mxu0 0.0
    %5601 = vmatpush1.msra.mxu0 0.0
    %5602 = vmatprep.subr.mxu0 0.0
    %5603 = vmatpush1.msra.mxu0 0.0
    %5604 = vmatprep.subr.mxu0 0.0
    %5605 = vmatpush1.msra.mxu0 0.0
    %5606 = vmatprep.subr.mxu0 0.0
    %5607 = vmatpush1.msra.mxu0 0.0
    %5608 = vmatprep.subr.mxu0 0.0
    %5609 = vmatpush1.msra.mxu0 0.0
    %5610 = vmatprep.subr.mxu0 0.0
    %5611 = vmatpush1.msra.mxu0 0.0
    %5612 = vmatprep.subr.mxu0 0.0
    %5613 = vmatpush1.msra.mxu0 0.0
    %5614 = vmatprep.subr.mxu0 0.0
    %5615 = vmatpush1.msra.mxu0 0.0
    %5616 = vmatprep.subr.mxu0 0.0
    %5617 = vmatpush1.msra.mxu0 0.0
    %5618 = vmatprep.subr.mxu0 0.0
    %5619 = vmatpush1.msra.mxu0 0.0
    %5620 = vmatprep.mubr.f32.mxu0 0.0
    %v5621 = vand.u32 %v5061, 4294901760
    %v5622 = vsub.f32 %v5061, %v5621
    %v5623 = vand.u32 %v5622, 4294901760
    %v5624 = vsub.f32 %v5622, %v5623
    %v5625 = vand.u32 %v5624, 4294901760
    %5626 = vmatmul.mubr.f32.gmra.mrb[0].mxu0 %v5625
    %v5627 = vpop.f32.mrb[0].mxu0
    %v5628 = vadd.f32 0.0, %v5627
    %v5629 = vpop.f32.mrb[0].mxu0
    %5630 = vmatprep.mubr.f32.mxu0 0.0
    %v5631 = vand.u32 %v5064, 4294901760
    %v5632 = vsub.f32 %v5064, %v5631
    %v5633 = vand.u32 %v5632, 4294901760
    %v5634 = vsub.f32 %v5632, %v5633
    %v5635 = vand.u32 %v5634, 4294901760
    %5636 = vmatmul.mubr.f32.gmra.mrb[0].mxu0 %v5635
    %v5637 = vpop.f32.mrb[0].mxu0
    %v5638 = vadd.f32 0.0, %v5637
    %v5639 = vpop.f32.mrb[0].mxu0
    %5640 = vdwg.mxu0
    %5641 = vmatprep.subr.mxu0 0.0
    %v5642 = vand.u32 %v4058, 4294901760
    %v5643 = vsub.f32 %v4058, %v5642
    %v5644 = vand.u32 %v5643, 4294901760
    %v5645 = vsub.f32 %v5643, %v5644
    %v5646 = vand.u32 %v5645, 4294901760
    %5647 = vmatpush1.msra.mxu0 %v5646
    %5648 = vmatprep.subr.mxu0 0.0
    %5649 = vmatpush1.msra.mxu0 0.0
    %5650 = vmatprep.subr.mxu0 0.0
    %5651 = vmatpush1.msra.mxu0 0.0
    %5652 = vmatprep.subr.mxu0 0.0
    %5653 = vmatpush1.msra.mxu0 0.0
    %5654 = vmatprep.subr.mxu0 0.0
    %5655 = vmatpush1.msra.mxu0 0.0
    %5656 = vmatprep.subr.mxu0 0.0
    %5657 = vmatpush1.msra.mxu0 0.0
    %5658 = vmatprep.subr.mxu0 0.0
    %5659 = vmatpush1.msra.mxu0 0.0
    %5660 = vmatprep.subr.mxu0 0.0
    %5661 = vmatpush1.msra.mxu0 0.0
    %5662 = vmatprep.subr.mxu0 0.0
    %5663 = vmatpush1.msra.mxu0 0.0
    %5664 = vmatprep.subr.mxu0 0.0
    %5665 = vmatpush1.msra.mxu0 0.0
    %5666 = vmatprep.subr.mxu0 0.0
    %5667 = vmatpush1.msra.mxu0 0.0
    %5668 = vmatprep.subr.mxu0 0.0
    %5669 = vmatpush1.msra.mxu0 0.0
    %5670 = vmatprep.subr.mxu0 0.0
    %5671 = vmatpush1.msra.mxu0 0.0
    %5672 = vmatprep.subr.mxu0 0.0
    %5673 = vmatpush1.msra.mxu0 0.0
    %5674 = vmatprep.subr.mxu0 0.0
    %5675 = vmatpush1.msra.mxu0 0.0
    %5676 = vmatprep.subr.mxu0 0.0
    %5677 = vmatpush1.msra.mxu0 0.0
    %5678 = vmatprep.subr.mxu0 0.0
    %5679 = vmatpush1.msra.mxu0 0.0
    %5680 = vmatprep.subr.mxu0 0.0
    %5681 = vmatpush1.msra.mxu0 0.0
    %5682 = vmatprep.subr.mxu0 0.0
    %5683 = vmatpush1.msra.mxu0 0.0
    %5684 = vmatprep.subr.mxu0 0.0
    %5685 = vmatpush1.msra.mxu0 0.0
    %5686 = vmatprep.subr.mxu0 0.0
    %5687 = vmatpush1.msra.mxu0 0.0
    %5688 = vmatprep.subr.mxu0 0.0
    %5689 = vmatpush1.msra.mxu0 0.0
    %5690 = vmatprep.subr.mxu0 0.0
    %5691 = vmatpush1.msra.mxu0 0.0
    %5692 = vmatprep.subr.mxu0 0.0
    %5693 = vmatpush1.msra.mxu0 0.0
    %5694 = vmatprep.subr.mxu0 0.0
    %5695 = vmatpush1.msra.mxu0 0.0
    %5696 = vmatprep.subr.mxu0 0.0
    %5697 = vmatpush1.msra.mxu0 0.0
    %5698 = vmatprep.subr.mxu0 0.0
    %5699 = vmatpush1.msra.mxu0 0.0
    %5700 = vmatprep.subr.mxu0 0.0
    %5701 = vmatpush1.msra.mxu0 0.0
    %5702 = vmatprep.subr.mxu0 0.0
    %5703 = vmatpush1.msra.mxu0 0.0
    %5704 = vmatprep.subr.mxu0 0.0
    %5705 = vmatpush1.msra.mxu0 0.0
    %5706 = vmatprep.subr.mxu0 0.0
    %5707 = vmatpush1.msra.mxu0 0.0
    %5708 = vmatprep.subr.mxu0 0.0
    %5709 = vmatpush1.msra.mxu0 0.0
    %5710 = vmatprep.mubr.f32.mxu0 0.0
    %v5711 = vand.u32 %v5061, 4294901760
    %5712 = vmatmul.mubr.f32.gmra.mrb[0].mxu0 %v5711
    %v5713 = vpop.f32.mrb[0].mxu0
    %v5714 = vadd.f32 %v5628, %v5713
    %v5715 = vpop.f32.mrb[0].mxu0
    %5716 = vmatprep.mubr.f32.mxu0 0.0
    %v5717 = vand.u32 %v5064, 4294901760
    %5718 = vmatmul.mubr.f32.gmra.mrb[0].mxu0 %v5717
    %v5719 = vpop.f32.mrb[0].mxu0
    %v5720 = vadd.f32 %v5638, %v5719
    %v5721 = vpop.f32.mrb[0].mxu0
    %5722 = vdwg.mxu0
    %5723 = vmatprep.subr.mxu0 0.0
    %v5724 = vand.u32 %v4058, 4294901760
    %v5725 = vsub.f32 %v4058, %v5724
    %5726 = vmatpush1.msra.mxu0 %v5725
    %5727 = vmatprep.subr.mxu0 0.0
    %5728 = vmatpush1.msra.mxu0 0.0
    %5729 = vmatprep.subr.mxu0 0.0
    %5730 = vmatpush1.msra.mxu0 0.0
    %5731 = vmatprep.subr.mxu0 0.0
    %5732 = vmatpush1.msra.mxu0 0.0
    %5733 = vmatprep.subr.mxu0 0.0
    %5734 = vmatpush1.msra.mxu0 0.0
    %5735 = vmatprep.subr.mxu0 0.0
    %5736 = vmatpush1.msra.mxu0 0.0
    %5737 = vmatprep.subr.mxu0 0.0
    %5738 = vmatpush1.msra.mxu0 0.0
    %5739 = vmatprep.subr.mxu0 0.0
    %5740 = vmatpush1.msra.mxu0 0.0
    %5741 = vmatprep.subr.mxu0 0.0
    %5742 = vmatpush1.msra.mxu0 0.0
    %5743 = vmatprep.subr.mxu0 0.0
    %5744 = vmatpush1.msra.mxu0 0.0
    %5745 = vmatprep.subr.mxu0 0.0
    %5746 = vmatpush1.msra.mxu0 0.0
    %5747 = vmatprep.subr.mxu0 0.0
    %5748 = vmatpush1.msra.mxu0 0.0
    %5749 = vmatprep.subr.mxu0 0.0
    %5750 = vmatpush1.msra.mxu0 0.0
    %5751 = vmatprep.subr.mxu0 0.0
    %5752 = vmatpush1.msra.mxu0 0.0
    %5753 = vmatprep.subr.mxu0 0.0
    %5754 = vmatpush1.msra.mxu0 0.0
    %5755 = vmatprep.subr.mxu0 0.0
    %5756 = vmatpush1.msra.mxu0 0.0
    %5757 = vmatprep.subr.mxu0 0.0
    %5758 = vmatpush1.msra.mxu0 0.0
    %5759 = vmatprep.subr.mxu0 0.0
    %5760 = vmatpush1.msra.mxu0 0.0
    %5761 = vmatprep.subr.mxu0 0.0
    %5762 = vmatpush1.msra.mxu0 0.0
    %5763 = vmatprep.subr.mxu0 0.0
    %5764 = vmatpush1.msra.mxu0 0.0
    %5765 = vmatprep.subr.mxu0 0.0
    %5766 = vmatpush1.msra.mxu0 0.0
    %5767 = vmatprep.subr.mxu0 0.0
    %5768 = vmatpush1.msra.mxu0 0.0
    %5769 = vmatprep.subr.mxu0 0.0
    %5770 = vmatpush1.msra.mxu0 0.0
    %5771 = vmatprep.subr.mxu0 0.0
    %5772 = vmatpush1.msra.mxu0 0.0
    %5773 = vmatprep.subr.mxu0 0.0
    %5774 = vmatpush1.msra.mxu0 0.0
    %5775 = vmatprep.subr.mxu0 0.0
    %5776 = vmatpush1.msra.mxu0 0.0
    %5777 = vmatprep.subr.mxu0 0.0
    %5778 = vmatpush1.msra.mxu0 0.0
    %5779 = vmatprep.subr.mxu0 0.0
    %5780 = vmatpush1.msra.mxu0 0.0
    %5781 = vmatprep.subr.mxu0 0.0
    %5782 = vmatpush1.msra.mxu0 0.0
    %5783 = vmatprep.subr.mxu0 0.0
    %5784 = vmatpush1.msra.mxu0 0.0
    %5785 = vmatprep.subr.mxu0 0.0
    %5786 = vmatpush1.msra.mxu0 0.0
    %5787 = vmatprep.subr.mxu0 0.0
    %5788 = vmatpush1.msra.mxu0 0.0
    %5789 = vmatprep.mubr.f32.mxu0 0.0
    %v5790 = vand.u32 %v5061, 4294901760
    %v5791 = vsub.f32 %v5061, %v5790
    %5792 = vmatmul.mubr.f32.gmra.mrb[0].mxu0 %v5791
    %v5793 = vpop.f32.mrb[0].mxu0
    %v5794 = vadd.f32 %v5714, %v5793
    %v5795 = vpop.f32.mrb[0].mxu0
    %5796 = vmatprep.mubr.f32.mxu0 0.0
    %v5797 = vand.u32 %v5064, 4294901760
    %v5798 = vsub.f32 %v5064, %v5797
    %5799 = vmatmul.mubr.f32.gmra.mrb[0].mxu0 %v5798
    %v5800 = vpop.f32.mrb[0].mxu0
    %v5801 = vadd.f32 %v5720, %v5800
    %v5802 = vpop.f32.mrb[0].mxu0
    %5803 = vdwg.mxu0
    %5804 = vmatprep.subr.mxu0 0.0
    %v5805 = vand.u32 %v4058, 4294901760
    %5806 = vmatpush1.msra.mxu0 %v5805
    %5807 = vmatprep.subr.mxu0 0.0
    %5808 = vmatpush1.msra.mxu0 0.0
    %5809 = vmatprep.subr.mxu0 0.0
    %5810 = vmatpush1.msra.mxu0 0.0
    %5811 = vmatprep.subr.mxu0 0.0
    %5812 = vmatpush1.msra.mxu0 0.0
    %5813 = vmatprep.subr.mxu0 0.0
    %5814 = vmatpush1.msra.mxu0 0.0
    %5815 = vmatprep.subr.mxu0 0.0
    %5816 = vmatpush1.msra.mxu0 0.0
    %5817 = vmatprep.subr.mxu0 0.0
    %5818 = vmatpush1.msra.mxu0 0.0
    %5819 = vmatprep.subr.mxu0 0.0
    %5820 = vmatpush1.msra.mxu0 0.0
    %5821 = vmatprep.subr.mxu0 0.0
    %5822 = vmatpush1.msra.mxu0 0.0
    %5823 = vmatprep.subr.mxu0 0.0
    %5824 = vmatpush1.msra.mxu0 0.0
    %5825 = vmatprep.subr.mxu0 0.0
    %5826 = vmatpush1.msra.mxu0 0.0
    %5827 = vmatprep.subr.mxu0 0.0
    %5828 = vmatpush1.msra.mxu0 0.0
    %5829 = vmatprep.subr.mxu0 0.0
    %5830 = vmatpush1.msra.mxu0 0.0
    %5831 = vmatprep.subr.mxu0 0.0
    %5832 = vmatpush1.msra.mxu0 0.0
    %5833 = vmatprep.subr.mxu0 0.0
    %5834 = vmatpush1.msra.mxu0 0.0
    %5835 = vmatprep.subr.mxu0 0.0
    %5836 = vmatpush1.msra.mxu0 0.0
    %5837 = vmatprep.subr.mxu0 0.0
    %5838 = vmatpush1.msra.mxu0 0.0
    %5839 = vmatprep.subr.mxu0 0.0
    %5840 = vmatpush1.msra.mxu0 0.0
    %5841 = vmatprep.subr.mxu0 0.0
    %5842 = vmatpush1.msra.mxu0 0.0
    %5843 = vmatprep.subr.mxu0 0.0
    %5844 = vmatpush1.msra.mxu0 0.0
    %5845 = vmatprep.subr.mxu0 0.0
    %5846 = vmatpush1.msra.mxu0 0.0
    %5847 = vmatprep.subr.mxu0 0.0
    %5848 = vmatpush1.msra.mxu0 0.0
    %5849 = vmatprep.subr.mxu0 0.0
    %5850 = vmatpush1.msra.mxu0 0.0
    %5851 = vmatprep.subr.mxu0 0.0
    %5852 = vmatpush1.msra.mxu0 0.0
    %5853 = vmatprep.subr.mxu0 0.0
    %5854 = vmatpush1.msra.mxu0 0.0
    %5855 = vmatprep.subr.mxu0 0.0
    %5856 = vmatpush1.msra.mxu0 0.0
    %5857 = vmatprep.subr.mxu0 0.0
    %5858 = vmatpush1.msra.mxu0 0.0
    %5859 = vmatprep.subr.mxu0 0.0
    %5860 = vmatpush1.msra.mxu0 0.0
    %5861 = vmatprep.subr.mxu0 0.0
    %5862 = vmatpush1.msra.mxu0 0.0
    %5863 = vmatprep.subr.mxu0 0.0
    %5864 = vmatpush1.msra.mxu0 0.0
    %5865 = vmatprep.subr.mxu0 0.0
    %5866 = vmatpush1.msra.mxu0 0.0
    %5867 = vmatprep.subr.mxu0 0.0
    %5868 = vmatpush1.msra.mxu0 0.0
    %5869 = vmatprep.mubr.f32.mxu0 0.0
    %v5870 = vand.u32 %v5061, 4294901760
    %v5871 = vsub.f32 %v5061, %v5870
    %v5872 = vand.u32 %v5871, 4294901760
    %5873 = vmatmul.mubr.f32.gmra.mrb[0].mxu0 %v5872
    %v5874 = vpop.f32.mrb[0].mxu0
    %v5875 = vadd.f32 %v5794, %v5874
    %v5876 = vpop.f32.mrb[0].mxu0
    %5877 = vmatprep.mubr.f32.mxu0 0.0
    %v5878 = vand.u32 %v5064, 4294901760
    %v5879 = vsub.f32 %v5064, %v5878
    %v5880 = vand.u32 %v5879, 4294901760
    %5881 = vmatmul.mubr.f32.gmra.mrb[0].mxu0 %v5880
    %v5882 = vpop.f32.mrb[0].mxu0
    %v5883 = vadd.f32 %v5801, %v5882
    %v5884 = vpop.f32.mrb[0].mxu0
    %5885 = vdwg.mxu0
    %5886 = vmatprep.subr.mxu0 0.0
    %v5887 = vand.u32 %v4058, 4294901760
    %v5888 = vsub.f32 %v4058, %v5887
    %v5889 = vand.u32 %v5888, 4294901760
    %5890 = vmatpush1.msra.mxu0 %v5889
    %5891 = vmatprep.subr.mxu0 0.0
    %5892 = vmatpush1.msra.mxu0 0.0
    %5893 = vmatprep.subr.mxu0 0.0
    %5894 = vmatpush1.msra.mxu0 0.0
    %5895 = vmatprep.subr.mxu0 0.0
    %5896 = vmatpush1.msra.mxu0 0.0
    %5897 = vmatprep.subr.mxu0 0.0
    %5898 = vmatpush1.msra.mxu0 0.0
    %5899 = vmatprep.subr.mxu0 0.0
    %5900 = vmatpush1.msra.mxu0 0.0
    %5901 = vmatprep.subr.mxu0 0.0
    %5902 = vmatpush1.msra.mxu0 0.0
    %5903 = vmatprep.subr.mxu0 0.0
    %5904 = vmatpush1.msra.mxu0 0.0
    %5905 = vmatprep.subr.mxu0 0.0
    %5906 = vmatpush1.msra.mxu0 0.0
    %5907 = vmatprep.subr.mxu0 0.0
    %5908 = vmatpush1.msra.mxu0 0.0
    %5909 = vmatprep.subr.mxu0 0.0
    %5910 = vmatpush1.msra.mxu0 0.0
    %5911 = vmatprep.subr.mxu0 0.0
    %5912 = vmatpush1.msra.mxu0 0.0
    %5913 = vmatprep.subr.mxu0 0.0
    %5914 = vmatpush1.msra.mxu0 0.0
    %5915 = vmatprep.subr.mxu0 0.0
    %5916 = vmatpush1.msra.mxu0 0.0
    %5917 = vmatprep.subr.mxu0 0.0
    %5918 = vmatpush1.msra.mxu0 0.0
    %5919 = vmatprep.subr.mxu0 0.0
    %5920 = vmatpush1.msra.mxu0 0.0
    %5921 = vmatprep.subr.mxu0 0.0
    %5922 = vmatpush1.msra.mxu0 0.0
    %5923 = vmatprep.subr.mxu0 0.0
    %5924 = vmatpush1.msra.mxu0 0.0
    %5925 = vmatprep.subr.mxu0 0.0
    %5926 = vmatpush1.msra.mxu0 0.0
    %5927 = vmatprep.subr.mxu0 0.0
    %5928 = vmatpush1.msra.mxu0 0.0
    %5929 = vmatprep.subr.mxu0 0.0
    %5930 = vmatpush1.msra.mxu0 0.0
    %5931 = vmatprep.subr.mxu0 0.0
    %5932 = vmatpush1.msra.mxu0 0.0
    %5933 = vmatprep.subr.mxu0 0.0
    %5934 = vmatpush1.msra.mxu0 0.0
    %5935 = vmatprep.subr.mxu0 0.0
    %5936 = vmatpush1.msra.mxu0 0.0
    %5937 = vmatprep.subr.mxu0 0.0
    %5938 = vmatpush1.msra.mxu0 0.0
    %5939 = vmatprep.subr.mxu0 0.0
    %5940 = vmatpush1.msra.mxu0 0.0
    %5941 = vmatprep.subr.mxu0 0.0
    %5942 = vmatpush1.msra.mxu0 0.0
    %5943 = vmatprep.subr.mxu0 0.0
    %5944 = vmatpush1.msra.mxu0 0.0
    %5945 = vmatprep.subr.mxu0 0.0
    %5946 = vmatpush1.msra.mxu0 0.0
    %5947 = vmatprep.subr.mxu0 0.0
    %5948 = vmatpush1.msra.mxu0 0.0
    %5949 = vmatprep.subr.mxu0 0.0
    %5950 = vmatpush1.msra.mxu0 0.0
    %5951 = vmatprep.subr.mxu0 0.0
    %5952 = vmatpush1.msra.mxu0 0.0
    %5953 = vmatprep.mubr.f32.mxu0 0.0
    %v5954 = vand.u32 %v5061, 4294901760
    %5955 = vmatmul.mubr.f32.gmra.mrb[0].mxu0 %v5954
    %v5956 = vpop.f32.mrb[0].mxu0
    %v5957 = vadd.f32 %v5875, %v5956
    %v5958 = vpop.f32.mrb[0].mxu0
    %5959 = vmatprep.mubr.f32.mxu0 0.0
    %v5960 = vand.u32 %v5064, 4294901760
    %5961 = vmatmul.mubr.f32.gmra.mrb[0].mxu0 %v5960
    %v5962 = vpop.f32.mrb[0].mxu0
    %v5963 = vadd.f32 %v5883, %v5962
    %v5964 = vpop.f32.mrb[0].mxu0
    %5965 = vdwg.mxu0
    %5966 = vmatprep.subr.mxu0 0.0
    %v5967 = vand.u32 %v4058, 4294901760
    %5968 = vmatpush1.msra.mxu0 %v5967
    %5969 = vmatprep.subr.mxu0 0.0
    %5970 = vmatpush1.msra.mxu0 0.0
    %5971 = vmatprep.subr.mxu0 0.0
    %5972 = vmatpush1.msra.mxu0 0.0
    %5973 = vmatprep.subr.mxu0 0.0
    %5974 = vmatpush1.msra.mxu0 0.0
    %5975 = vmatprep.subr.mxu0 0.0
    %5976 = vmatpush1.msra.mxu0 0.0
    %5977 = vmatprep.subr.mxu0 0.0
    %5978 = vmatpush1.msra.mxu0 0.0
    %5979 = vmatprep.subr.mxu0 0.0
    %5980 = vmatpush1.msra.mxu0 0.0
    %5981 = vmatprep.subr.mxu0 0.0
    %5982 = vmatpush1.msra.mxu0 0.0
    %5983 = vmatprep.subr.mxu0 0.0
    %5984 = vmatpush1.msra.mxu0 0.0
    %5985 = vmatprep.subr.mxu0 0.0
    %5986 = vmatpush1.msra.mxu0 0.0
    %5987 = vmatprep.subr.mxu0 0.0
    %5988 = vmatpush1.msra.mxu0 0.0
    %5989 = vmatprep.subr.mxu0 0.0
    %5990 = vmatpush1.msra.mxu0 0.0
    %5991 = vmatprep.subr.mxu0 0.0
    %5992 = vmatpush1.msra.mxu0 0.0
    %5993 = vmatprep.subr.mxu0 0.0
    %5994 = vmatpush1.msra.mxu0 0.0
    %5995 = vmatprep.subr.mxu0 0.0
    %5996 = vmatpush1.msra.mxu0 0.0
    %5997 = vmatprep.subr.mxu0 0.0
    %5998 = vmatpush1.msra.mxu0 0.0
    %5999 = vmatprep.subr.mxu0 0.0
    %6000 = vmatpush1.msra.mxu0 0.0
    %6001 = vmatprep.subr.mxu0 0.0
    %6002 = vmatpush1.msra.mxu0 0.0
    %6003 = vmatprep.subr.mxu0 0.0
    %6004 = vmatpush1.msra.mxu0 0.0
    %6005 = vmatprep.subr.mxu0 0.0
    %6006 = vmatpush1.msra.mxu0 0.0
    %6007 = vmatprep.subr.mxu0 0.0
    %6008 = vmatpush1.msra.mxu0 0.0
    %6009 = vmatprep.subr.mxu0 0.0
    %6010 = vmatpush1.msra.mxu0 0.0
    %6011 = vmatprep.subr.mxu0 0.0
    %6012 = vmatpush1.msra.mxu0 0.0
    %6013 = vmatprep.subr.mxu0 0.0
    %6014 = vmatpush1.msra.mxu0 0.0
    %6015 = vmatprep.subr.mxu0 0.0
    %6016 = vmatpush1.msra.mxu0 0.0
    %6017 = vmatprep.subr.mxu0 0.0
    %6018 = vmatpush1.msra.mxu0 0.0
    %6019 = vmatprep.subr.mxu0 0.0
    %6020 = vmatpush1.msra.mxu0 0.0
    %6021 = vmatprep.subr.mxu0 0.0
    %6022 = vmatpush1.msra.mxu0 0.0
    %6023 = vmatprep.subr.mxu0 0.0
    %6024 = vmatpush1.msra.mxu0 0.0
    %6025 = vmatprep.subr.mxu0 0.0
    %6026 = vmatpush1.msra.mxu0 0.0
    %6027 = vmatprep.subr.mxu0 0.0
    %6028 = vmatpush1.msra.mxu0 0.0
    %6029 = vmatprep.subr.mxu0 0.0
    %6030 = vmatpush1.msra.mxu0 0.0
    %6031 = vmatprep.mubr.f32.mxu0 0.0
    %v6032 = vand.u32 %v5061, 4294901760
    %6033 = vmatmul.mubr.f32.gmra.mrb[0].mxu0 %v6032
    %v6034 = vpop.f32.mrb[0].mxu0
    %v6035 = vadd.f32 %v5957, %v6034
    %v6036 = vpop.f32.mrb[0].mxu0
    %6037 = vmatprep.mubr.f32.mxu0 0.0
    %v6038 = vand.u32 %v5064, 4294901760
    %6039 = vmatmul.mubr.f32.gmra.mrb[0].mxu0 %v6038
    %v6040 = vpop.f32.mrb[0].mxu0
    %v6041 = vadd.f32 %v5963, %v6040
    %v6042 = vpop.f32.mrb[0].mxu0
    %6043 = vdwg.mxu0
    %6044 = vmatprep.subr.mxu0 0.0
    %v6045 = vand.u32 %v4060, 4294901760
    %6046 = vmatpush1.msra.mxu0 %v6045
    %6047 = vmatprep.subr.mxu0 0.0
    %6048 = vmatpush1.msra.mxu0 0.0
    %6049 = vmatprep.subr.mxu0 0.0
    %6050 = vmatpush1.msra.mxu0 0.0
    %6051 = vmatprep.subr.mxu0 0.0
    %6052 = vmatpush1.msra.mxu0 0.0
    %6053 = vmatprep.subr.mxu0 0.0
    %6054 = vmatpush1.msra.mxu0 0.0
    %6055 = vmatprep.subr.mxu0 0.0
    %6056 = vmatpush1.msra.mxu0 0.0
    %6057 = vmatprep.subr.mxu0 0.0
    %6058 = vmatpush1.msra.mxu0 0.0
    %6059 = vmatprep.subr.mxu0 0.0
    %6060 = vmatpush1.msra.mxu0 0.0
    %6061 = vmatprep.subr.mxu0 0.0
    %6062 = vmatpush1.msra.mxu0 0.0
    %6063 = vmatprep.subr.mxu0 0.0
    %6064 = vmatpush1.msra.mxu0 0.0
    %6065 = vmatprep.subr.mxu0 0.0
    %6066 = vmatpush1.msra.mxu0 0.0
    %6067 = vmatprep.subr.mxu0 0.0
    %6068 = vmatpush1.msra.mxu0 0.0
    %6069 = vmatprep.subr.mxu0 0.0
    %6070 = vmatpush1.msra.mxu0 0.0
    %6071 = vmatprep.subr.mxu0 0.0
    %6072 = vmatpush1.msra.mxu0 0.0
    %6073 = vmatprep.subr.mxu0 0.0
    %6074 = vmatpush1.msra.mxu0 0.0
    %6075 = vmatprep.subr.mxu0 0.0
    %6076 = vmatpush1.msra.mxu0 0.0
    %6077 = vmatprep.subr.mxu0 0.0
    %6078 = vmatpush1.msra.mxu0 0.0
    %6079 = vmatprep.subr.mxu0 0.0
    %6080 = vmatpush1.msra.mxu0 0.0
    %6081 = vmatprep.subr.mxu0 0.0
    %6082 = vmatpush1.msra.mxu0 0.0
    %6083 = vmatprep.subr.mxu0 0.0
    %6084 = vmatpush1.msra.mxu0 0.0
    %6085 = vmatprep.subr.mxu0 0.0
    %6086 = vmatpush1.msra.mxu0 0.0
    %6087 = vmatprep.subr.mxu0 0.0
    %6088 = vmatpush1.msra.mxu0 0.0
    %6089 = vmatprep.subr.mxu0 0.0
    %6090 = vmatpush1.msra.mxu0 0.0
    %6091 = vmatprep.subr.mxu0 0.0
    %6092 = vmatpush1.msra.mxu0 0.0
    %6093 = vmatprep.subr.mxu0 0.0
    %6094 = vmatpush1.msra.mxu0 0.0
    %6095 = vmatprep.subr.mxu0 0.0
    %6096 = vmatpush1.msra.mxu0 0.0
    %6097 = vmatprep.subr.mxu0 0.0
    %6098 = vmatpush1.msra.mxu0 0.0
    %6099 = vmatprep.subr.mxu0 0.0
    %6100 = vmatpush1.msra.mxu0 0.0
    %6101 = vmatprep.subr.mxu0 0.0
    %6102 = vmatpush1.msra.mxu0 0.0
    %6103 = vmatprep.subr.mxu0 0.0
    %6104 = vmatpush1.msra.mxu0 0.0
    %6105 = vmatprep.subr.mxu0 0.0
    %6106 = vmatpush1.msra.mxu0 0.0
    %6107 = vmatprep.subr.mxu0 0.0
    %6108 = vmatpush1.msra.mxu0 0.0
    %6109 = vmatprep.mubr.f32.mxu0 0.0
    %v6110 = vand.u32 %v5061, 4294901760
    %v6111 = vsub.f32 %v5061, %v6110
    %v6112 = vand.u32 %v6111, 4294901760
    %v6113 = vsub.f32 %v6111, %v6112
    %v6114 = vand.u32 %v6113, 4294901760
    %6115 = vmatmul.mubr.f32.gmra.mrb[0].mxu0 %v6114
    %v6116 = vpop.f32.mrb[0].mxu0
    %v6117 = vadd.f32 0.0, %v6116
    %v6118 = vpop.f32.mrb[0].mxu0
    %6119 = vmatprep.mubr.f32.mxu0 0.0
    %v6120 = vand.u32 %v5064, 4294901760
    %v6121 = vsub.f32 %v5064, %v6120
    %v6122 = vand.u32 %v6121, 4294901760
    %v6123 = vsub.f32 %v6121, %v6122
    %v6124 = vand.u32 %v6123, 4294901760
    %6125 = vmatmul.mubr.f32.gmra.mrb[0].mxu0 %v6124
    %v6126 = vpop.f32.mrb[0].mxu0
    %v6127 = vadd.f32 0.0, %v6126
    %v6128 = vpop.f32.mrb[0].mxu0
    %6129 = vdwg.mxu0
    %6130 = vmatprep.subr.mxu0 0.0
    %v6131 = vand.u32 %v4060, 4294901760
    %v6132 = vsub.f32 %v4060, %v6131
    %v6133 = vand.u32 %v6132, 4294901760
    %v6134 = vsub.f32 %v6132, %v6133
    %v6135 = vand.u32 %v6134, 4294901760
    %6136 = vmatpush1.msra.mxu0 %v6135
    %6137 = vmatprep.subr.mxu0 0.0
    %6138 = vmatpush1.msra.mxu0 0.0
    %6139 = vmatprep.subr.mxu0 0.0
    %6140 = vmatpush1.msra.mxu0 0.0
    %6141 = vmatprep.subr.mxu0 0.0
    %6142 = vmatpush1.msra.mxu0 0.0
    %6143 = vmatprep.subr.mxu0 0.0
    %6144 = vmatpush1.msra.mxu0 0.0
    %6145 = vmatprep.subr.mxu0 0.0
    %6146 = vmatpush1.msra.mxu0 0.0
    %6147 = vmatprep.subr.mxu0 0.0
    %6148 = vmatpush1.msra.mxu0 0.0
    %6149 = vmatprep.subr.mxu0 0.0
    %6150 = vmatpush1.msra.mxu0 0.0
    %6151 = vmatprep.subr.mxu0 0.0
    %6152 = vmatpush1.msra.mxu0 0.0
    %6153 = vmatprep.subr.mxu0 0.0
    %6154 = vmatpush1.msra.mxu0 0.0
    %6155 = vmatprep.subr.mxu0 0.0
    %6156 = vmatpush1.msra.mxu0 0.0
    %6157 = vmatprep.subr.mxu0 0.0
    %6158 = vmatpush1.msra.mxu0 0.0
    %6159 = vmatprep.subr.mxu0 0.0
    %6160 = vmatpush1.msra.mxu0 0.0
    %6161 = vmatprep.subr.mxu0 0.0
    %6162 = vmatpush1.msra.mxu0 0.0
    %6163 = vmatprep.subr.mxu0 0.0
    %6164 = vmatpush1.msra.mxu0 0.0
    %6165 = vmatprep.subr.mxu0 0.0
    %6166 = vmatpush1.msra.mxu0 0.0
    %6167 = vmatprep.subr.mxu0 0.0
    %6168 = vmatpush1.msra.mxu0 0.0
    %6169 = vmatprep.subr.mxu0 0.0
    %6170 = vmatpush1.msra.mxu0 0.0
    %6171 = vmatprep.subr.mxu0 0.0
    %6172 = vmatpush1.msra.mxu0 0.0
    %6173 = vmatprep.subr.mxu0 0.0
    %6174 = vmatpush1.msra.mxu0 0.0
    %6175 = vmatprep.subr.mxu0 0.0
    %6176 = vmatpush1.msra.mxu0 0.0
    %6177 = vmatprep.subr.mxu0 0.0
    %6178 = vmatpush1.msra.mxu0 0.0
    %6179 = vmatprep.subr.mxu0 0.0
    %6180 = vmatpush1.msra.mxu0 0.0
    %6181 = vmatprep.subr.mxu0 0.0
    %6182 = vmatpush1.msra.mxu0 0.0
    %6183 = vmatprep.subr.mxu0 0.0
    %6184 = vmatpush1.msra.mxu0 0.0
    %6185 = vmatprep.subr.mxu0 0.0
    %6186 = vmatpush1.msra.mxu0 0.0
    %6187 = vmatprep.subr.mxu0 0.0
    %6188 = vmatpush1.msra.mxu0 0.0
    %6189 = vmatprep.subr.mxu0 0.0
    %6190 = vmatpush1.msra.mxu0 0.0
    %6191 = vmatprep.subr.mxu0 0.0
    %6192 = vmatpush1.msra.mxu0 0.0
    %6193 = vmatprep.subr.mxu0 0.0
    %6194 = vmatpush1.msra.mxu0 0.0
    %6195 = vmatprep.subr.mxu0 0.0
    %6196 = vmatpush1.msra.mxu0 0.0
    %6197 = vmatprep.subr.mxu0 0.0
    %6198 = vmatpush1.msra.mxu0 0.0
    %6199 = vmatprep.mubr.f32.mxu0 0.0
    %v6200 = vand.u32 %v5061, 4294901760
    %6201 = vmatmul.mubr.f32.gmra.mrb[0].mxu0 %v6200
    %v6202 = vpop.f32.mrb[0].mxu0
    %v6203 = vadd.f32 %v6117, %v6202
    %v6204 = vpop.f32.mrb[0].mxu0
    %6205 = vmatprep.mubr.f32.mxu0 0.0
    %v6206 = vand.u32 %v5064, 4294901760
    %6207 = vmatmul.mubr.f32.gmra.mrb[0].mxu0 %v6206
    %v6208 = vpop.f32.mrb[0].mxu0
    %v6209 = vadd.f32 %v6127, %v6208
    %v6210 = vpop.f32.mrb[0].mxu0
    %6211 = vdwg.mxu0
    %6212 = vmatprep.subr.mxu0 0.0
    %v6213 = vand.u32 %v4060, 4294901760
    %v6214 = vsub.f32 %v4060, %v6213
    %6215 = vmatpush1.msra.mxu0 %v6214
    %6216 = vmatprep.subr.mxu0 0.0
    %6217 = vmatpush1.msra.mxu0 0.0
    %6218 = vmatprep.subr.mxu0 0.0
    %6219 = vmatpush1.msra.mxu0 0.0
    %6220 = vmatprep.subr.mxu0 0.0
    %6221 = vmatpush1.msra.mxu0 0.0
    %6222 = vmatprep.subr.mxu0 0.0
    %6223 = vmatpush1.msra.mxu0 0.0
    %6224 = vmatprep.subr.mxu0 0.0
    %6225 = vmatpush1.msra.mxu0 0.0
    %6226 = vmatprep.subr.mxu0 0.0
    %6227 = vmatpush1.msra.mxu0 0.0
    %6228 = vmatprep.subr.mxu0 0.0
    %6229 = vmatpush1.msra.mxu0 0.0
    %6230 = vmatprep.subr.mxu0 0.0
    %6231 = vmatpush1.msra.mxu0 0.0
    %6232 = vmatprep.subr.mxu0 0.0
    %6233 = vmatpush1.msra.mxu0 0.0
    %6234 = vmatprep.subr.mxu0 0.0
    %6235 = vmatpush1.msra.mxu0 0.0
    %6236 = vmatprep.subr.mxu0 0.0
    %6237 = vmatpush1.msra.mxu0 0.0
    %6238 = vmatprep.subr.mxu0 0.0
    %6239 = vmatpush1.msra.mxu0 0.0
    %6240 = vmatprep.subr.mxu0 0.0
    %6241 = vmatpush1.msra.mxu0 0.0
    %6242 = vmatprep.subr.mxu0 0.0
    %6243 = vmatpush1.msra.mxu0 0.0
    %6244 = vmatprep.subr.mxu0 0.0
    %6245 = vmatpush1.msra.mxu0 0.0
    %6246 = vmatprep.subr.mxu0 0.0
    %6247 = vmatpush1.msra.mxu0 0.0
    %6248 = vmatprep.subr.mxu0 0.0
    %6249 = vmatpush1.msra.mxu0 0.0
    %6250 = vmatprep.subr.mxu0 0.0
    %6251 = vmatpush1.msra.mxu0 0.0
    %6252 = vmatprep.subr.mxu0 0.0
    %6253 = vmatpush1.msra.mxu0 0.0
    %6254 = vmatprep.subr.mxu0 0.0
    %6255 = vmatpush1.msra.mxu0 0.0
    %6256 = vmatprep.subr.mxu0 0.0
    %6257 = vmatpush1.msra.mxu0 0.0
    %6258 = vmatprep.subr.mxu0 0.0
    %6259 = vmatpush1.msra.mxu0 0.0
    %6260 = vmatprep.subr.mxu0 0.0
    %6261 = vmatpush1.msra.mxu0 0.0
    %6262 = vmatprep.subr.mxu0 0.0
    %6263 = vmatpush1.msra.mxu0 0.0
    %6264 = vmatprep.subr.mxu0 0.0
    %6265 = vmatpush1.msra.mxu0 0.0
    %6266 = vmatprep.subr.mxu0 0.0
    %6267 = vmatpush1.msra.mxu0 0.0
    %6268 = vmatprep.subr.mxu0 0.0
    %6269 = vmatpush1.msra.mxu0 0.0
    %6270 = vmatprep.subr.mxu0 0.0
    %6271 = vmatpush1.msra.mxu0 0.0
    %6272 = vmatprep.subr.mxu0 0.0
    %6273 = vmatpush1.msra.mxu0 0.0
    %6274 = vmatprep.subr.mxu0 0.0
    %6275 = vmatpush1.msra.mxu0 0.0
    %6276 = vmatprep.subr.mxu0 0.0
    %6277 = vmatpush1.msra.mxu0 0.0
    %6278 = vmatprep.mubr.f32.mxu0 0.0
    %v6279 = vand.u32 %v5061, 4294901760
    %v6280 = vsub.f32 %v5061, %v6279
    %6281 = vmatmul.mubr.f32.gmra.mrb[0].mxu0 %v6280
    %v6282 = vpop.f32.mrb[0].mxu0
    %v6283 = vadd.f32 %v6203, %v6282
    %v6284 = vpop.f32.mrb[0].mxu0
    %6285 = vmatprep.mubr.f32.mxu0 0.0
    %v6286 = vand.u32 %v5064, 4294901760
    %v6287 = vsub.f32 %v5064, %v6286
    %6288 = vmatmul.mubr.f32.gmra.mrb[0].mxu0 %v6287
    %v6289 = vpop.f32.mrb[0].mxu0
    %v6290 = vadd.f32 %v6209, %v6289
    %v6291 = vpop.f32.mrb[0].mxu0
    %6292 = vdwg.mxu0
    %6293 = vmatprep.subr.mxu0 0.0
    %v6294 = vand.u32 %v4060, 4294901760
    %6295 = vmatpush1.msra.mxu0 %v6294
    %6296 = vmatprep.subr.mxu0 0.0
    %6297 = vmatpush1.msra.mxu0 0.0
    %6298 = vmatprep.subr.mxu0 0.0
    %6299 = vmatpush1.msra.mxu0 0.0
    %6300 = vmatprep.subr.mxu0 0.0
    %6301 = vmatpush1.msra.mxu0 0.0
    %6302 = vmatprep.subr.mxu0 0.0
    %6303 = vmatpush1.msra.mxu0 0.0
    %6304 = vmatprep.subr.mxu0 0.0
    %6305 = vmatpush1.msra.mxu0 0.0
    %6306 = vmatprep.subr.mxu0 0.0
    %6307 = vmatpush1.msra.mxu0 0.0
    %6308 = vmatprep.subr.mxu0 0.0
    %6309 = vmatpush1.msra.mxu0 0.0
    %6310 = vmatprep.subr.mxu0 0.0
    %6311 = vmatpush1.msra.mxu0 0.0
    %6312 = vmatprep.subr.mxu0 0.0
    %6313 = vmatpush1.msra.mxu0 0.0
    %6314 = vmatprep.subr.mxu0 0.0
    %6315 = vmatpush1.msra.mxu0 0.0
    %6316 = vmatprep.subr.mxu0 0.0
    %6317 = vmatpush1.msra.mxu0 0.0
    %6318 = vmatprep.subr.mxu0 0.0
    %6319 = vmatpush1.msra.mxu0 0.0
    %6320 = vmatprep.subr.mxu0 0.0
    %6321 = vmatpush1.msra.mxu0 0.0
    %6322 = vmatprep.subr.mxu0 0.0
    %6323 = vmatpush1.msra.mxu0 0.0
    %6324 = vmatprep.subr.mxu0 0.0
    %6325 = vmatpush1.msra.mxu0 0.0
    %6326 = vmatprep.subr.mxu0 0.0
    %6327 = vmatpush1.msra.mxu0 0.0
    %6328 = vmatprep.subr.mxu0 0.0
    %6329 = vmatpush1.msra.mxu0 0.0
    %6330 = vmatprep.subr.mxu0 0.0
    %6331 = vmatpush1.msra.mxu0 0.0
    %6332 = vmatprep.subr.mxu0 0.0
    %6333 = vmatpush1.msra.mxu0 0.0
    %6334 = vmatprep.subr.mxu0 0.0
    %6335 = vmatpush1.msra.mxu0 0.0
    %6336 = vmatprep.subr.mxu0 0.0
    %6337 = vmatpush1.msra.mxu0 0.0
    %6338 = vmatprep.subr.mxu0 0.0
    %6339 = vmatpush1.msra.mxu0 0.0
    %6340 = vmatprep.subr.mxu0 0.0
    %6341 = vmatpush1.msra.mxu0 0.0
    %6342 = vmatprep.subr.mxu0 0.0
    %6343 = vmatpush1.msra.mxu0 0.0
    %6344 = vmatprep.subr.mxu0 0.0
    %6345 = vmatpush1.msra.mxu0 0.0
    %6346 = vmatprep.subr.mxu0 0.0
    %6347 = vmatpush1.msra.mxu0 0.0
    %6348 = vmatprep.subr.mxu0 0.0
    %6349 = vmatpush1.msra.mxu0 0.0
    %6350 = vmatprep.subr.mxu0 0.0
    %6351 = vmatpush1.msra.mxu0 0.0
    %6352 = vmatprep.subr.mxu0 0.0
    %6353 = vmatpush1.msra.mxu0 0.0
    %6354 = vmatprep.subr.mxu0 0.0
    %6355 = vmatpush1.msra.mxu0 0.0
    %6356 = vmatprep.subr.mxu0 0.0
    %6357 = vmatpush1.msra.mxu0 0.0
    %6358 = vmatprep.mubr.f32.mxu0 0.0
    %v6359 = vand.u32 %v5061, 4294901760
    %v6360 = vsub.f32 %v5061, %v6359
    %v6361 = vand.u32 %v6360, 4294901760
    %6362 = vmatmul.mubr.f32.gmra.mrb[0].mxu0 %v6361
    %v6363 = vpop.f32.mrb[0].mxu0
    %v6364 = vadd.f32 %v6283, %v6363
    %v6365 = vpop.f32.mrb[0].mxu0
    %6366 = vmatprep.mubr.f32.mxu0 0.0
    %v6367 = vand.u32 %v5064, 4294901760
    %v6368 = vsub.f32 %v5064, %v6367
    %v6369 = vand.u32 %v6368, 4294901760
    %6370 = vmatmul.mubr.f32.gmra.mrb[0].mxu0 %v6369
    %v6371 = vpop.f32.mrb[0].mxu0
    %v6372 = vadd.f32 %v6290, %v6371
    %v6373 = vpop.f32.mrb[0].mxu0
    %6374 = vdwg.mxu0
    %6375 = vmatprep.subr.mxu0 0.0
    %v6376 = vand.u32 %v4060, 4294901760
    %v6377 = vsub.f32 %v4060, %v6376
    %v6378 = vand.u32 %v6377, 4294901760
    %6379 = vmatpush1.msra.mxu0 %v6378
    %6380 = vmatprep.subr.mxu0 0.0
    %6381 = vmatpush1.msra.mxu0 0.0
    %6382 = vmatprep.subr.mxu0 0.0
    %6383 = vmatpush1.msra.mxu0 0.0
    %6384 = vmatprep.subr.mxu0 0.0
    %6385 = vmatpush1.msra.mxu0 0.0
    %6386 = vmatprep.subr.mxu0 0.0
    %6387 = vmatpush1.msra.mxu0 0.0
    %6388 = vmatprep.subr.mxu0 0.0
    %6389 = vmatpush1.msra.mxu0 0.0
    %6390 = vmatprep.subr.mxu0 0.0
    %6391 = vmatpush1.msra.mxu0 0.0
    %6392 = vmatprep.subr.mxu0 0.0
    %6393 = vmatpush1.msra.mxu0 0.0
    %6394 = vmatprep.subr.mxu0 0.0
    %6395 = vmatpush1.msra.mxu0 0.0
    %6396 = vmatprep.subr.mxu0 0.0
    %6397 = vmatpush1.msra.mxu0 0.0
    %6398 = vmatprep.subr.mxu0 0.0
    %6399 = vmatpush1.msra.mxu0 0.0
    %6400 = vmatprep.subr.mxu0 0.0
    %6401 = vmatpush1.msra.mxu0 0.0
    %6402 = vmatprep.subr.mxu0 0.0
    %6403 = vmatpush1.msra.mxu0 0.0
    %6404 = vmatprep.subr.mxu0 0.0
    %6405 = vmatpush1.msra.mxu0 0.0
    %6406 = vmatprep.subr.mxu0 0.0
    %6407 = vmatpush1.msra.mxu0 0.0
    %6408 = vmatprep.subr.mxu0 0.0
    %6409 = vmatpush1.msra.mxu0 0.0
    %6410 = vmatprep.subr.mxu0 0.0
    %6411 = vmatpush1.msra.mxu0 0.0
    %6412 = vmatprep.subr.mxu0 0.0
    %6413 = vmatpush1.msra.mxu0 0.0
    %6414 = vmatprep.subr.mxu0 0.0
    %6415 = vmatpush1.msra.mxu0 0.0
    %6416 = vmatprep.subr.mxu0 0.0
    %6417 = vmatpush1.msra.mxu0 0.0
    %6418 = vmatprep.subr.mxu0 0.0
    %6419 = vmatpush1.msra.mxu0 0.0
    %6420 = vmatprep.subr.mxu0 0.0
    %6421 = vmatpush1.msra.mxu0 0.0
    %6422 = vmatprep.subr.mxu0 0.0
    %6423 = vmatpush1.msra.mxu0 0.0
    %6424 = vmatprep.subr.mxu0 0.0
    %6425 = vmatpush1.msra.mxu0 0.0
    %6426 = vmatprep.subr.mxu0 0.0
    %6427 = vmatpush1.msra.mxu0 0.0
    %6428 = vmatprep.subr.mxu0 0.0
    %6429 = vmatpush1.msra.mxu0 0.0
    %6430 = vmatprep.subr.mxu0 0.0
    %6431 = vmatpush1.msra.mxu0 0.0
    %6432 = vmatprep.subr.mxu0 0.0
    %6433 = vmatpush1.msra.mxu0 0.0
    %6434 = vmatprep.subr.mxu0 0.0
    %6435 = vmatpush1.msra.mxu0 0.0
    %6436 = vmatprep.subr.mxu0 0.0
    %6437 = vmatpush1.msra.mxu0 0.0
    %6438 = vmatprep.subr.mxu0 0.0
    %6439 = vmatpush1.msra.mxu0 0.0
    %6440 = vmatprep.subr.mxu0 0.0
    %6441 = vmatpush1.msra.mxu0 0.0
    %6442 = vmatprep.mubr.f32.mxu0 0.0
    %v6443 = vand.u32 %v5061, 4294901760
    %6444 = vmatmul.mubr.f32.gmra.mrb[0].mxu0 %v6443
    %v6445 = vpop.f32.mrb[0].mxu0
    %v6446 = vadd.f32 %v6364, %v6445
    %v6447 = vpop.f32.mrb[0].mxu0
    %6448 = vmatprep.mubr.f32.mxu0 0.0
    %v6449 = vand.u32 %v5064, 4294901760
    %6450 = vmatmul.mubr.f32.gmra.mrb[0].mxu0 %v6449
    %v6451 = vpop.f32.mrb[0].mxu0
    %v6452 = vadd.f32 %v6372, %v6451
    %v6453 = vpop.f32.mrb[0].mxu0
    %6454 = vdwg.mxu0
    %6455 = vmatprep.subr.mxu0 0.0
    %v6456 = vand.u32 %v4060, 4294901760
    %6457 = vmatpush1.msra.mxu0 %v6456
    %6458 = vmatprep.subr.mxu0 0.0
    %6459 = vmatpush1.msra.mxu0 0.0
    %6460 = vmatprep.subr.mxu0 0.0
    %6461 = vmatpush1.msra.mxu0 0.0
    %6462 = vmatprep.subr.mxu0 0.0
    %6463 = vmatpush1.msra.mxu0 0.0
    %6464 = vmatprep.subr.mxu0 0.0
    %6465 = vmatpush1.msra.mxu0 0.0
    %6466 = vmatprep.subr.mxu0 0.0
    %6467 = vmatpush1.msra.mxu0 0.0
    %6468 = vmatprep.subr.mxu0 0.0
    %6469 = vmatpush1.msra.mxu0 0.0
    %6470 = vmatprep.subr.mxu0 0.0
    %6471 = vmatpush1.msra.mxu0 0.0
    %6472 = vmatprep.subr.mxu0 0.0
    %6473 = vmatpush1.msra.mxu0 0.0
    %6474 = vmatprep.subr.mxu0 0.0
    %6475 = vmatpush1.msra.mxu0 0.0
    %6476 = vmatprep.subr.mxu0 0.0
    %6477 = vmatpush1.msra.mxu0 0.0
    %6478 = vmatprep.subr.mxu0 0.0
    %6479 = vmatpush1.msra.mxu0 0.0
    %6480 = vmatprep.subr.mxu0 0.0
    %6481 = vmatpush1.msra.mxu0 0.0
    %6482 = vmatprep.subr.mxu0 0.0
    %6483 = vmatpush1.msra.mxu0 0.0
    %6484 = vmatprep.subr.mxu0 0.0
    %6485 = vmatpush1.msra.mxu0 0.0
    %6486 = vmatprep.subr.mxu0 0.0
    %6487 = vmatpush1.msra.mxu0 0.0
    %6488 = vmatprep.subr.mxu0 0.0
    %6489 = vmatpush1.msra.mxu0 0.0
    %6490 = vmatprep.subr.mxu0 0.0
    %6491 = vmatpush1.msra.mxu0 0.0
    %6492 = vmatprep.subr.mxu0 0.0
    %6493 = vmatpush1.msra.mxu0 0.0
    %6494 = vmatprep.subr.mxu0 0.0
    %6495 = vmatpush1.msra.mxu0 0.0
    %6496 = vmatprep.subr.mxu0 0.0
    %6497 = vmatpush1.msra.mxu0 0.0
    %6498 = vmatprep.subr.mxu0 0.0
    %6499 = vmatpush1.msra.mxu0 0.0
    %6500 = vmatprep.subr.mxu0 0.0
    %6501 = vmatpush1.msra.mxu0 0.0
    %6502 = vmatprep.subr.mxu0 0.0
    %6503 = vmatpush1.msra.mxu0 0.0
    %6504 = vmatprep.subr.mxu0 0.0
    %6505 = vmatpush1.msra.mxu0 0.0
    %6506 = vmatprep.subr.mxu0 0.0
    %6507 = vmatpush1.msra.mxu0 0.0
    %6508 = vmatprep.subr.mxu0 0.0
    %6509 = vmatpush1.msra.mxu0 0.0
    %6510 = vmatprep.subr.mxu0 0.0
    %6511 = vmatpush1.msra.mxu0 0.0
    %6512 = vmatprep.subr.mxu0 0.0
    %6513 = vmatpush1.msra.mxu0 0.0
    %6514 = vmatprep.subr.mxu0 0.0
    %6515 = vmatpush1.msra.mxu0 0.0
    %6516 = vmatprep.subr.mxu0 0.0
    %6517 = vmatpush1.msra.mxu0 0.0
    %6518 = vmatprep.subr.mxu0 0.0
    %6519 = vmatpush1.msra.mxu0 0.0
    %6520 = vmatprep.mubr.f32.mxu0 0.0
    %v6521 = vand.u32 %v5061, 4294901760
    %6522 = vmatmul.mubr.f32.gmra.mrb[0].mxu0 %v6521
    %v6523 = vpop.f32.mrb[0].mxu0
    %v6524 = vadd.f32 %v6446, %v6523
    %v6525 = vpop.f32.mrb[0].mxu0
    %6526 = vmatprep.mubr.f32.mxu0 0.0
    %v6527 = vand.u32 %v5064, 4294901760
    %6528 = vmatmul.mubr.f32.gmra.mrb[0].mxu0 %v6527
    %v6529 = vpop.f32.mrb[0].mxu0
    %v6530 = vadd.f32 %v6452, %v6529
    %v6531 = vpop.f32.mrb[0].mxu0
    %6532 = vdwg.mxu0
    %6533 = vmatprep.subr.mxu0 0.0
    %v6534 = vand.u32 %v4062, 4294901760
    %6535 = vmatpush1.msra.mxu0 %v6534
    %6536 = vmatprep.subr.mxu0 0.0
    %6537 = vmatpush1.msra.mxu0 0.0
    %6538 = vmatprep.subr.mxu0 0.0
    %6539 = vmatpush1.msra.mxu0 0.0
    %6540 = vmatprep.subr.mxu0 0.0
    %6541 = vmatpush1.msra.mxu0 0.0
    %6542 = vmatprep.subr.mxu0 0.0
    %6543 = vmatpush1.msra.mxu0 0.0
    %6544 = vmatprep.subr.mxu0 0.0
    %6545 = vmatpush1.msra.mxu0 0.0
    %6546 = vmatprep.subr.mxu0 0.0
    %6547 = vmatpush1.msra.mxu0 0.0
    %6548 = vmatprep.subr.mxu0 0.0
    %6549 = vmatpush1.msra.mxu0 0.0
    %6550 = vmatprep.subr.mxu0 0.0
    %6551 = vmatpush1.msra.mxu0 0.0
    %6552 = vmatprep.subr.mxu0 0.0
    %6553 = vmatpush1.msra.mxu0 0.0
    %6554 = vmatprep.subr.mxu0 0.0
    %6555 = vmatpush1.msra.mxu0 0.0
    %6556 = vmatprep.subr.mxu0 0.0
    %6557 = vmatpush1.msra.mxu0 0.0
    %6558 = vmatprep.subr.mxu0 0.0
    %6559 = vmatpush1.msra.mxu0 0.0
    %6560 = vmatprep.subr.mxu0 0.0
    %6561 = vmatpush1.msra.mxu0 0.0
    %6562 = vmatprep.subr.mxu0 0.0
    %6563 = vmatpush1.msra.mxu0 0.0
    %6564 = vmatprep.subr.mxu0 0.0
    %6565 = vmatpush1.msra.mxu0 0.0
    %6566 = vmatprep.subr.mxu0 0.0
    %6567 = vmatpush1.msra.mxu0 0.0
    %6568 = vmatprep.subr.mxu0 0.0
    %6569 = vmatpush1.msra.mxu0 0.0
    %6570 = vmatprep.subr.mxu0 0.0
    %6571 = vmatpush1.msra.mxu0 0.0
    %6572 = vmatprep.subr.mxu0 0.0
    %6573 = vmatpush1.msra.mxu0 0.0
    %6574 = vmatprep.subr.mxu0 0.0
    %6575 = vmatpush1.msra.mxu0 0.0
    %6576 = vmatprep.subr.mxu0 0.0
    %6577 = vmatpush1.msra.mxu0 0.0
    %6578 = vmatprep.subr.mxu0 0.0
    %6579 = vmatpush1.msra.mxu0 0.0
    %6580 = vmatprep.subr.mxu0 0.0
    %6581 = vmatpush1.msra.mxu0 0.0
    %6582 = vmatprep.subr.mxu0 0.0
    %6583 = vmatpush1.msra.mxu0 0.0
    %6584 = vmatprep.subr.mxu0 0.0
    %6585 = vmatpush1.msra.mxu0 0.0
    %6586 = vmatprep.subr.mxu0 0.0
    %6587 = vmatpush1.msra.mxu0 0.0
    %6588 = vmatprep.subr.mxu0 0.0
    %6589 = vmatpush1.msra.mxu0 0.0
    %6590 = vmatprep.subr.mxu0 0.0
    %6591 = vmatpush1.msra.mxu0 0.0
    %6592 = vmatprep.subr.mxu0 0.0
    %6593 = vmatpush1.msra.mxu0 0.0
    %6594 = vmatprep.subr.mxu0 0.0
    %6595 = vmatpush1.msra.mxu0 0.0
    %6596 = vmatprep.subr.mxu0 0.0
    %6597 = vmatpush1.msra.mxu0 0.0
    %6598 = vmatprep.mubr.f32.mxu0 0.0
    %v6599 = vand.u32 %v5061, 4294901760
    %v6600 = vsub.f32 %v5061, %v6599
    %v6601 = vand.u32 %v6600, 4294901760
    %v6602 = vsub.f32 %v6600, %v6601
    %v6603 = vand.u32 %v6602, 4294901760
    %6604 = vmatmul.mubr.f32.gmra.mrb[0].mxu0 %v6603
    %v6605 = vpop.f32.mrb[0].mxu0
    %v6606 = vadd.f32 0.0, %v6605
    %v6607 = vpop.f32.mrb[0].mxu0
    %6608 = vmatprep.mubr.f32.mxu0 0.0
    %v6609 = vand.u32 %v5064, 4294901760
    %v6610 = vsub.f32 %v5064, %v6609
    %v6611 = vand.u32 %v6610, 4294901760
    %v6612 = vsub.f32 %v6610, %v6611
    %v6613 = vand.u32 %v6612, 4294901760
    %6614 = vmatmul.mubr.f32.gmra.mrb[0].mxu0 %v6613
    %v6615 = vpop.f32.mrb[0].mxu0
    %v6616 = vadd.f32 0.0, %v6615
    %v6617 = vpop.f32.mrb[0].mxu0
    %6618 = vdwg.mxu0
    %6619 = vmatprep.subr.mxu0 0.0
    %v6620 = vand.u32 %v4062, 4294901760
    %v6621 = vsub.f32 %v4062, %v6620
    %v6622 = vand.u32 %v6621, 4294901760
    %v6623 = vsub.f32 %v6621, %v6622
    %v6624 = vand.u32 %v6623, 4294901760
    %6625 = vmatpush1.msra.mxu0 %v6624
    %6626 = vmatprep.subr.mxu0 0.0
    %6627 = vmatpush1.msra.mxu0 0.0
    %6628 = vmatprep.subr.mxu0 0.0
    %6629 = vmatpush1.msra.mxu0 0.0
    %6630 = vmatprep.subr.mxu0 0.0
    %6631 = vmatpush1.msra.mxu0 0.0
    %6632 = vmatprep.subr.mxu0 0.0
    %6633 = vmatpush1.msra.mxu0 0.0
    %6634 = vmatprep.subr.mxu0 0.0
    %6635 = vmatpush1.msra.mxu0 0.0
    %6636 = vmatprep.subr.mxu0 0.0
    %6637 = vmatpush1.msra.mxu0 0.0
    %6638 = vmatprep.subr.mxu0 0.0
    %6639 = vmatpush1.msra.mxu0 0.0
    %6640 = vmatprep.subr.mxu0 0.0
    %6641 = vmatpush1.msra.mxu0 0.0
    %6642 = vmatprep.subr.mxu0 0.0
    %6643 = vmatpush1.msra.mxu0 0.0
    %6644 = vmatprep.subr.mxu0 0.0
    %6645 = vmatpush1.msra.mxu0 0.0
    %6646 = vmatprep.subr.mxu0 0.0
    %6647 = vmatpush1.msra.mxu0 0.0
    %6648 = vmatprep.subr.mxu0 0.0
    %6649 = vmatpush1.msra.mxu0 0.0
    %6650 = vmatprep.subr.mxu0 0.0
    %6651 = vmatpush1.msra.mxu0 0.0
    %6652 = vmatprep.subr.mxu0 0.0
    %6653 = vmatpush1.msra.mxu0 0.0
    %6654 = vmatprep.subr.mxu0 0.0
    %6655 = vmatpush1.msra.mxu0 0.0
    %6656 = vmatprep.subr.mxu0 0.0
    %6657 = vmatpush1.msra.mxu0 0.0
    %6658 = vmatprep.subr.mxu0 0.0
    %6659 = vmatpush1.msra.mxu0 0.0
    %6660 = vmatprep.subr.mxu0 0.0
    %6661 = vmatpush1.msra.mxu0 0.0
    %6662 = vmatprep.subr.mxu0 0.0
    %6663 = vmatpush1.msra.mxu0 0.0
    %6664 = vmatprep.subr.mxu0 0.0
    %6665 = vmatpush1.msra.mxu0 0.0
    %6666 = vmatprep.subr.mxu0 0.0
    %6667 = vmatpush1.msra.mxu0 0.0
    %6668 = vmatprep.subr.mxu0 0.0
    %6669 = vmatpush1.msra.mxu0 0.0
    %6670 = vmatprep.subr.mxu0 0.0
    %6671 = vmatpush1.msra.mxu0 0.0
    %6672 = vmatprep.subr.mxu0 0.0
    %6673 = vmatpush1.msra.mxu0 0.0
    %6674 = vmatprep.subr.mxu0 0.0
    %6675 = vmatpush1.msra.mxu0 0.0
    %6676 = vmatprep.subr.mxu0 0.0
    %6677 = vmatpush1.msra.mxu0 0.0
    %6678 = vmatprep.subr.mxu0 0.0
    %6679 = vmatpush1.msra.mxu0 0.0
    %6680 = vmatprep.subr.mxu0 0.0
    %6681 = vmatpush1.msra.mxu0 0.0
    %6682 = vmatprep.subr.mxu0 0.0
    %6683 = vmatpush1.msra.mxu0 0.0
    %6684 = vmatprep.subr.mxu0 0.0
    %6685 = vmatpush1.msra.mxu0 0.0
    %6686 = vmatprep.subr.mxu0 0.0
    %6687 = vmatpush1.msra.mxu0 0.0
    %6688 = vmatprep.mubr.f32.mxu0 0.0
    %v6689 = vand.u32 %v5061, 4294901760
    %6690 = vmatmul.mubr.f32.gmra.mrb[0].mxu0 %v6689
    %v6691 = vpop.f32.mrb[0].mxu0
    %v6692 = vadd.f32 %v6606, %v6691
    %v6693 = vpop.f32.mrb[0].mxu0
    %6694 = vmatprep.mubr.f32.mxu0 0.0
    %v6695 = vand.u32 %v5064, 4294901760
    %6696 = vmatmul.mubr.f32.gmra.mrb[0].mxu0 %v6695
    %v6697 = vpop.f32.mrb[0].mxu0
    %v6698 = vadd.f32 %v6616, %v6697
    %v6699 = vpop.f32.mrb[0].mxu0
    %6700 = vdwg.mxu0
    %6701 = vmatprep.subr.mxu0 0.0
    %v6702 = vand.u32 %v4062, 4294901760
    %v6703 = vsub.f32 %v4062, %v6702
    %6704 = vmatpush1.msra.mxu0 %v6703
    %6705 = vmatprep.subr.mxu0 0.0
    %6706 = vmatpush1.msra.mxu0 0.0
    %6707 = vmatprep.subr.mxu0 0.0
    %6708 = vmatpush1.msra.mxu0 0.0
    %6709 = vmatprep.subr.mxu0 0.0
    %6710 = vmatpush1.msra.mxu0 0.0
    %6711 = vmatprep.subr.mxu0 0.0
    %6712 = vmatpush1.msra.mxu0 0.0
    %6713 = vmatprep.subr.mxu0 0.0
    %6714 = vmatpush1.msra.mxu0 0.0
    %6715 = vmatprep.subr.mxu0 0.0
    %6716 = vmatpush1.msra.mxu0 0.0
    %6717 = vmatprep.subr.mxu0 0.0
    %6718 = vmatpush1.msra.mxu0 0.0
    %6719 = vmatprep.subr.mxu0 0.0
    %6720 = vmatpush1.msra.mxu0 0.0
    %6721 = vmatprep.subr.mxu0 0.0
    %6722 = vmatpush1.msra.mxu0 0.0
    %6723 = vmatprep.subr.mxu0 0.0
    %6724 = vmatpush1.msra.mxu0 0.0
    %6725 = vmatprep.subr.mxu0 0.0
    %6726 = vmatpush1.msra.mxu0 0.0
    %6727 = vmatprep.subr.mxu0 0.0
    %6728 = vmatpush1.msra.mxu0 0.0
    %6729 = vmatprep.subr.mxu0 0.0
    %6730 = vmatpush1.msra.mxu0 0.0
    %6731 = vmatprep.subr.mxu0 0.0
    %6732 = vmatpush1.msra.mxu0 0.0
    %6733 = vmatprep.subr.mxu0 0.0
    %6734 = vmatpush1.msra.mxu0 0.0
    %6735 = vmatprep.subr.mxu0 0.0
    %6736 = vmatpush1.msra.mxu0 0.0
    %6737 = vmatprep.subr.mxu0 0.0
    %6738 = vmatpush1.msra.mxu0 0.0
    %6739 = vmatprep.subr.mxu0 0.0
    %6740 = vmatpush1.msra.mxu0 0.0
    %6741 = vmatprep.subr.mxu0 0.0
    %6742 = vmatpush1.msra.mxu0 0.0
    %6743 = vmatprep.subr.mxu0 0.0
    %6744 = vmatpush1.msra.mxu0 0.0
    %6745 = vmatprep.subr.mxu0 0.0
    %6746 = vmatpush1.msra.mxu0 0.0
    %6747 = vmatprep.subr.mxu0 0.0
    %6748 = vmatpush1.msra.mxu0 0.0
    %6749 = vmatprep.subr.mxu0 0.0
    %6750 = vmatpush1.msra.mxu0 0.0
    %6751 = vmatprep.subr.mxu0 0.0
    %6752 = vmatpush1.msra.mxu0 0.0
    %6753 = vmatprep.subr.mxu0 0.0
    %6754 = vmatpush1.msra.mxu0 0.0
    %6755 = vmatprep.subr.mxu0 0.0
    %6756 = vmatpush1.msra.mxu0 0.0
    %6757 = vmatprep.subr.mxu0 0.0
    %6758 = vmatpush1.msra.mxu0 0.0
    %6759 = vmatprep.subr.mxu0 0.0
    %6760 = vmatpush1.msra.mxu0 0.0
    %6761 = vmatprep.subr.mxu0 0.0
    %6762 = vmatpush1.msra.mxu0 0.0
    %6763 = vmatprep.subr.mxu0 0.0
    %6764 = vmatpush1.msra.mxu0 0.0
    %6765 = vmatprep.subr.mxu0 0.0
    %6766 = vmatpush1.msra.mxu0 0.0
    %6767 = vmatprep.mubr.f32.mxu0 0.0
    %v6768 = vand.u32 %v5061, 4294901760
    %v6769 = vsub.f32 %v5061, %v6768
    %6770 = vmatmul.mubr.f32.gmra.mrb[0].mxu0 %v6769
    %v6771 = vpop.f32.mrb[0].mxu0
    %v6772 = vadd.f32 %v6692, %v6771
    %v6773 = vpop.f32.mrb[0].mxu0
    %6774 = vmatprep.mubr.f32.mxu0 0.0
    %v6775 = vand.u32 %v5064, 4294901760
    %v6776 = vsub.f32 %v5064, %v6775
    %6777 = vmatmul.mubr.f32.gmra.mrb[0].mxu0 %v6776
    %v6778 = vpop.f32.mrb[0].mxu0
    %v6779 = vadd.f32 %v6698, %v6778
    %v6780 = vpop.f32.mrb[0].mxu0
    %6781 = vdwg.mxu0
    %6782 = vmatprep.subr.mxu0 0.0
    %v6783 = vand.u32 %v4062, 4294901760
    %6784 = vmatpush1.msra.mxu0 %v6783
    %6785 = vmatprep.subr.mxu0 0.0
    %6786 = vmatpush1.msra.mxu0 0.0
    %6787 = vmatprep.subr.mxu0 0.0
    %6788 = vmatpush1.msra.mxu0 0.0
    %6789 = vmatprep.subr.mxu0 0.0
    %6790 = vmatpush1.msra.mxu0 0.0
    %6791 = vmatprep.subr.mxu0 0.0
    %6792 = vmatpush1.msra.mxu0 0.0
    %6793 = vmatprep.subr.mxu0 0.0
    %6794 = vmatpush1.msra.mxu0 0.0
    %6795 = vmatprep.subr.mxu0 0.0
    %6796 = vmatpush1.msra.mxu0 0.0
    %6797 = vmatprep.subr.mxu0 0.0
    %6798 = vmatpush1.msra.mxu0 0.0
    %6799 = vmatprep.subr.mxu0 0.0
    %6800 = vmatpush1.msra.mxu0 0.0
    %6801 = vmatprep.subr.mxu0 0.0
    %6802 = vmatpush1.msra.mxu0 0.0
    %6803 = vmatprep.subr.mxu0 0.0
    %6804 = vmatpush1.msra.mxu0 0.0
    %6805 = vmatprep.subr.mxu0 0.0
    %6806 = vmatpush1.msra.mxu0 0.0
    %6807 = vmatprep.subr.mxu0 0.0
    %6808 = vmatpush1.msra.mxu0 0.0
    %6809 = vmatprep.subr.mxu0 0.0
    %6810 = vmatpush1.msra.mxu0 0.0
    %6811 = vmatprep.subr.mxu0 0.0
    %6812 = vmatpush1.msra.mxu0 0.0
    %6813 = vmatprep.subr.mxu0 0.0
    %6814 = vmatpush1.msra.mxu0 0.0
    %6815 = vmatprep.subr.mxu0 0.0
    %6816 = vmatpush1.msra.mxu0 0.0
    %6817 = vmatprep.subr.mxu0 0.0
    %6818 = vmatpush1.msra.mxu0 0.0
    %6819 = vmatprep.subr.mxu0 0.0
    %6820 = vmatpush1.msra.mxu0 0.0
    %6821 = vmatprep.subr.mxu0 0.0
    %6822 = vmatpush1.msra.mxu0 0.0
    %6823 = vmatprep.subr.mxu0 0.0
    %6824 = vmatpush1.msra.mxu0 0.0
    %6825 = vmatprep.subr.mxu0 0.0
    %6826 = vmatpush1.msra.mxu0 0.0
    %6827 = vmatprep.subr.mxu0 0.0
    %6828 = vmatpush1.msra.mxu0 0.0
    %6829 = vmatprep.subr.mxu0 0.0
    %6830 = vmatpush1.msra.mxu0 0.0
    %6831 = vmatprep.subr.mxu0 0.0
    %6832 = vmatpush1.msra.mxu0 0.0
    %6833 = vmatprep.subr.mxu0 0.0
    %6834 = vmatpush1.msra.mxu0 0.0
    %6835 = vmatprep.subr.mxu0 0.0
    %6836 = vmatpush1.msra.mxu0 0.0
    %6837 = vmatprep.subr.mxu0 0.0
    %6838 = vmatpush1.msra.mxu0 0.0
    %6839 = vmatprep.subr.mxu0 0.0
    %6840 = vmatpush1.msra.mxu0 0.0
    %6841 = vmatprep.subr.mxu0 0.0
    %6842 = vmatpush1.msra.mxu0 0.0
    %6843 = vmatprep.subr.mxu0 0.0
    %6844 = vmatpush1.msra.mxu0 0.0
    %6845 = vmatprep.subr.mxu0 0.0
    %6846 = vmatpush1.msra.mxu0 0.0
    %6847 = vmatprep.mubr.f32.mxu0 0.0
    %v6848 = vand.u32 %v5061, 4294901760
    %v6849 = vsub.f32 %v5061, %v6848
    %v6850 = vand.u32 %v6849, 4294901760
    %6851 = vmatmul.mubr.f32.gmra.mrb[0].mxu0 %v6850
    %v6852 = vpop.f32.mrb[0].mxu0
    %v6853 = vadd.f32 %v6772, %v6852
    %v6854 = vpop.f32.mrb[0].mxu0
    %6855 = vmatprep.mubr.f32.mxu0 0.0
    %v6856 = vand.u32 %v5064, 4294901760
    %v6857 = vsub.f32 %v5064, %v6856
    %v6858 = vand.u32 %v6857, 4294901760
    %6859 = vmatmul.mubr.f32.gmra.mrb[0].mxu0 %v6858
    %v6860 = vpop.f32.mrb[0].mxu0
    %v6861 = vadd.f32 %v6779, %v6860
    %v6862 = vpop.f32.mrb[0].mxu0
    %6863 = vdwg.mxu0
    %6864 = vmatprep.subr.mxu0 0.0
    %v6865 = vand.u32 %v4062, 4294901760
    %v6866 = vsub.f32 %v4062, %v6865
    %v6867 = vand.u32 %v6866, 4294901760
    %6868 = vmatpush1.msra.mxu0 %v6867
    %6869 = vmatprep.subr.mxu0 0.0
    %6870 = vmatpush1.msra.mxu0 0.0
    %6871 = vmatprep.subr.mxu0 0.0
    %6872 = vmatpush1.msra.mxu0 0.0
    %6873 = vmatprep.subr.mxu0 0.0
    %6874 = vmatpush1.msra.mxu0 0.0
    %6875 = vmatprep.subr.mxu0 0.0
    %6876 = vmatpush1.msra.mxu0 0.0
    %6877 = vmatprep.subr.mxu0 0.0
    %6878 = vmatpush1.msra.mxu0 0.0
    %6879 = vmatprep.subr.mxu0 0.0
    %6880 = vmatpush1.msra.mxu0 0.0
    %6881 = vmatprep.subr.mxu0 0.0
    %6882 = vmatpush1.msra.mxu0 0.0
    %6883 = vmatprep.subr.mxu0 0.0
    %6884 = vmatpush1.msra.mxu0 0.0
    %6885 = vmatprep.subr.mxu0 0.0
    %6886 = vmatpush1.msra.mxu0 0.0
    %6887 = vmatprep.subr.mxu0 0.0
    %6888 = vmatpush1.msra.mxu0 0.0
    %6889 = vmatprep.subr.mxu0 0.0
    %6890 = vmatpush1.msra.mxu0 0.0
    %6891 = vmatprep.subr.mxu0 0.0
    %6892 = vmatpush1.msra.mxu0 0.0
    %6893 = vmatprep.subr.mxu0 0.0
    %6894 = vmatpush1.msra.mxu0 0.0
    %6895 = vmatprep.subr.mxu0 0.0
    %6896 = vmatpush1.msra.mxu0 0.0
    %6897 = vmatprep.subr.mxu0 0.0
    %6898 = vmatpush1.msra.mxu0 0.0
    %6899 = vmatprep.subr.mxu0 0.0
    %6900 = vmatpush1.msra.mxu0 0.0
    %6901 = vmatprep.subr.mxu0 0.0
    %6902 = vmatpush1.msra.mxu0 0.0
    %6903 = vmatprep.subr.mxu0 0.0
    %6904 = vmatpush1.msra.mxu0 0.0
    %6905 = vmatprep.subr.mxu0 0.0
    %6906 = vmatpush1.msra.mxu0 0.0
    %6907 = vmatprep.subr.mxu0 0.0
    %6908 = vmatpush1.msra.mxu0 0.0
    %6909 = vmatprep.subr.mxu0 0.0
    %6910 = vmatpush1.msra.mxu0 0.0
    %6911 = vmatprep.subr.mxu0 0.0
    %6912 = vmatpush1.msra.mxu0 0.0
    %6913 = vmatprep.subr.mxu0 0.0
    %6914 = vmatpush1.msra.mxu0 0.0
    %6915 = vmatprep.subr.mxu0 0.0
    %6916 = vmatpush1.msra.mxu0 0.0
    %6917 = vmatprep.subr.mxu0 0.0
    %6918 = vmatpush1.msra.mxu0 0.0
    %6919 = vmatprep.subr.mxu0 0.0
    %6920 = vmatpush1.msra.mxu0 0.0
    %6921 = vmatprep.subr.mxu0 0.0
    %6922 = vmatpush1.msra.mxu0 0.0
    %6923 = vmatprep.subr.mxu0 0.0
    %6924 = vmatpush1.msra.mxu0 0.0
    %6925 = vmatprep.subr.mxu0 0.0
    %6926 = vmatpush1.msra.mxu0 0.0
    %6927 = vmatprep.subr.mxu0 0.0
    %6928 = vmatpush1.msra.mxu0 0.0
    %6929 = vmatprep.subr.mxu0 0.0
    %6930 = vmatpush1.msra.mxu0 0.0
    %6931 = vmatprep.mubr.f32.mxu0 0.0
    %v6932 = vand.u32 %v5061, 4294901760
    %6933 = vmatmul.mubr.f32.gmra.mrb[0].mxu0 %v6932
    %v6934 = vpop.f32.mrb[0].mxu0
    %v6935 = vadd.f32 %v6853, %v6934
    %v6936 = vpop.f32.mrb[0].mxu0
    %6937 = vmatprep.mubr.f32.mxu0 0.0
    %v6938 = vand.u32 %v5064, 4294901760
    %6939 = vmatmul.mubr.f32.gmra.mrb[0].mxu0 %v6938
    %v6940 = vpop.f32.mrb[0].mxu0
    %v6941 = vadd.f32 %v6861, %v6940
    %v6942 = vpop.f32.mrb[0].mxu0
    %6943 = vdwg.mxu0
    %6944 = vmatprep.subr.mxu0 0.0
    %v6945 = vand.u32 %v4062, 4294901760
    %6946 = vmatpush1.msra.mxu0 %v6945
    %6947 = vmatprep.subr.mxu0 0.0
    %6948 = vmatpush1.msra.mxu0 0.0
    %6949 = vmatprep.subr.mxu0 0.0
    %6950 = vmatpush1.msra.mxu0 0.0
    %6951 = vmatprep.subr.mxu0 0.0
    %6952 = vmatpush1.msra.mxu0 0.0
    %6953 = vmatprep.subr.mxu0 0.0
    %6954 = vmatpush1.msra.mxu0 0.0
    %6955 = vmatprep.subr.mxu0 0.0
    %6956 = vmatpush1.msra.mxu0 0.0
    %6957 = vmatprep.subr.mxu0 0.0
    %6958 = vmatpush1.msra.mxu0 0.0
    %6959 = vmatprep.subr.mxu0 0.0
    %6960 = vmatpush1.msra.mxu0 0.0
    %6961 = vmatprep.subr.mxu0 0.0
    %6962 = vmatpush1.msra.mxu0 0.0
    %6963 = vmatprep.subr.mxu0 0.0
    %6964 = vmatpush1.msra.mxu0 0.0
    %6965 = vmatprep.subr.mxu0 0.0
    %6966 = vmatpush1.msra.mxu0 0.0
    %6967 = vmatprep.subr.mxu0 0.0
    %6968 = vmatpush1.msra.mxu0 0.0
    %6969 = vmatprep.subr.mxu0 0.0
    %6970 = vmatpush1.msra.mxu0 0.0
    %6971 = vmatprep.subr.mxu0 0.0
    %6972 = vmatpush1.msra.mxu0 0.0
    %6973 = vmatprep.subr.mxu0 0.0
    %6974 = vmatpush1.msra.mxu0 0.0
    %6975 = vmatprep.subr.mxu0 0.0
    %6976 = vmatpush1.msra.mxu0 0.0
    %6977 = vmatprep.subr.mxu0 0.0
    %6978 = vmatpush1.msra.mxu0 0.0
    %6979 = vmatprep.subr.mxu0 0.0
    %6980 = vmatpush1.msra.mxu0 0.0
    %6981 = vmatprep.subr.mxu0 0.0
    %6982 = vmatpush1.msra.mxu0 0.0
    %6983 = vmatprep.subr.mxu0 0.0
    %6984 = vmatpush1.msra.mxu0 0.0
    %6985 = vmatprep.subr.mxu0 0.0
    %6986 = vmatpush1.msra.mxu0 0.0
    %6987 = vmatprep.subr.mxu0 0.0
    %6988 = vmatpush1.msra.mxu0 0.0
    %6989 = vmatprep.subr.mxu0 0.0
    %6990 = vmatpush1.msra.mxu0 0.0
    %6991 = vmatprep.subr.mxu0 0.0
    %6992 = vmatpush1.msra.mxu0 0.0
    %6993 = vmatprep.subr.mxu0 0.0
    %6994 = vmatpush1.msra.mxu0 0.0
    %6995 = vmatprep.subr.mxu0 0.0
    %6996 = vmatpush1.msra.mxu0 0.0
    %6997 = vmatprep.subr.mxu0 0.0
    %6998 = vmatpush1.msra.mxu0 0.0
    %6999 = vmatprep.subr.mxu0 0.0
    %7000 = vmatpush1.msra.mxu0 0.0
    %7001 = vmatprep.subr.mxu0 0.0
    %7002 = vmatpush1.msra.mxu0 0.0
    %7003 = vmatprep.subr.mxu0 0.0
    %7004 = vmatpush1.msra.mxu0 0.0
    %7005 = vmatprep.subr.mxu0 0.0
    %7006 = vmatpush1.msra.mxu0 0.0
    %7007 = vmatprep.subr.mxu0 0.0
    %7008 = vmatpush1.msra.mxu0 0.0
    %7009 = vmatprep.mubr.f32.mxu0 0.0
    %v7010 = vand.u32 %v5061, 4294901760
    %7011 = vmatmul.mubr.f32.gmra.mrb[0].mxu0 %v7010
    %v7012 = vpop.f32.mrb[0].mxu0
    %v7013 = vadd.f32 %v6935, %v7012
    %v7014 = vpop.f32.mrb[0].mxu0
    %7015 = vmatprep.mubr.f32.mxu0 0.0
    %v7016 = vand.u32 %v5064, 4294901760
    %7017 = vmatmul.mubr.f32.gmra.mrb[0].mxu0 %v7016
    %v7018 = vpop.f32.mrb[0].mxu0
    %v7019 = vadd.f32 %v6941, %v7018
    %v7020 = vpop.f32.mrb[0].mxu0
    %7021 = vdwg.mxu0
    %v7023 = vsel %vm569, %v6035, 0
    %v7026 = vsel %vm569, %v6041, 0
    %v7029 = vsel %vm569, %v6524, 0
    %v7032 = vsel %vm569, %v6530, 0
    %7034 = vmatprep.subr.mxu0 0.0
    %v7035 = vand.u32 %v7029, 4294901760
    %7036 = vmatpush1.xpose.msra.mxu0 %v7035
    %7037 = vmatprep.subr.mxu0 0.0
    %v7038 = vand.u32 %v7032, 4294901760
    %7039 = vmatpush1.xpose.msra.mxu0 %v7038
    %7040 = vmatprep.subr.mxu0 0.0
    %7041 = vmatpush1.xpose.msra.mxu0 0.0
    %7042 = vmatprep.subr.mxu0 0.0
    %7043 = vmatpush1.xpose.msra.mxu0 0.0
    %7044 = vmatprep.subr.mxu0 0.0
    %7045 = vmatpush1.xpose.msra.mxu0 0.0
    %7046 = vmatprep.subr.mxu0 0.0
    %7047 = vmatpush1.xpose.msra.mxu0 0.0
    %7048 = vmatprep.subr.mxu0 0.0
    %7049 = vmatpush1.xpose.msra.mxu0 0.0
    %7050 = vmatprep.subr.mxu0 0.0
    %7051 = vmatpush1.xpose.msra.mxu0 0.0
    %7052 = vmatprep.subr.mxu0 0.0
    %7053 = vmatpush1.xpose.msra.mxu0 0.0
    %7054 = vmatprep.subr.mxu0 0.0
    %7055 = vmatpush1.xpose.msra.mxu0 0.0
    %7056 = vmatprep.subr.mxu0 0.0
    %7057 = vmatpush1.xpose.msra.mxu0 0.0
    %7058 = vmatprep.subr.mxu0 0.0
    %7059 = vmatpush1.xpose.msra.mxu0 0.0
    %7060 = vmatprep.subr.mxu0 0.0
    %7061 = vmatpush1.xpose.msra.mxu0 0.0
    %7062 = vmatprep.subr.mxu0 0.0
    %7063 = vmatpush1.xpose.msra.mxu0 0.0
    %7064 = vmatprep.subr.mxu0 0.0
    %7065 = vmatpush1.xpose.msra.mxu0 0.0
    %7066 = vmatprep.subr.mxu0 0.0
    %7067 = vmatpush1.xpose.msra.mxu0 0.0
    %7068 = vmatprep.subr.mxu0 0.0
    %7069 = vmatpush1.xpose.msra.mxu0 0.0
    %7070 = vmatprep.subr.mxu0 0.0
    %7071 = vmatpush1.xpose.msra.mxu0 0.0
    %7072 = vmatprep.subr.mxu0 0.0
    %7073 = vmatpush1.xpose.msra.mxu0 0.0
    %7074 = vmatprep.subr.mxu0 0.0
    %7075 = vmatpush1.xpose.msra.mxu0 0.0
    %7076 = vmatprep.subr.mxu0 0.0
    %7077 = vmatpush1.xpose.msra.mxu0 0.0
    %7078 = vmatprep.subr.mxu0 0.0
    %7079 = vmatpush1.xpose.msra.mxu0 0.0
    %7080 = vmatprep.subr.mxu0 0.0
    %7081 = vmatpush1.xpose.msra.mxu0 0.0
    %7082 = vmatprep.subr.mxu0 0.0
    %7083 = vmatpush1.xpose.msra.mxu0 0.0
    %7084 = vmatprep.subr.mxu0 0.0
    %7085 = vmatpush1.xpose.msra.mxu0 0.0
    %7086 = vmatprep.subr.mxu0 0.0
    %7087 = vmatpush1.xpose.msra.mxu0 0.0
    %7088 = vmatprep.subr.mxu0 0.0
    %7089 = vmatpush1.xpose.msra.mxu0 0.0
    %7090 = vmatprep.subr.mxu0 0.0
    %7091 = vmatpush1.xpose.msra.mxu0 0.0
    %7092 = vmatprep.subr.mxu0 0.0
    %7093 = vmatpush1.xpose.msra.mxu0 0.0
    %7094 = vmatprep.subr.mxu0 0.0
    %7095 = vmatpush1.xpose.msra.mxu0 0.0
    %7096 = vmatprep.subr.mxu0 0.0
    %7097 = vmatpush1.xpose.msra.mxu0 0.0
    %7098 = vmatprep.subr.mxu0 0.0
    %7099 = vmatpush1.xpose.msra.mxu0 0.0
    %7100 = vmatprep.mubr.f32.mxu0 0.0
    %v7101 = vand.u32 %v7023, 4294901760
    %v7102 = vsub.f32 %v7023, %v7101
    %v7103 = vand.u32 %v7102, 4294901760
    %v7104 = vsub.f32 %v7102, %v7103
    %v7105 = vand.u32 %v7104, 4294901760
    %7106 = vmatmul.mubr.f32.gmra.mrb[0].mxu0 %v7105
    %v7107 = vpop.f32.mrb[0].mxu0
    %v7108 = vadd.f32 0.0, %v7107
    %v7109 = vpop.f32.mrb[0].mxu0
    %7110 = vmatprep.mubr.f32.mxu0 0.0
    %v7111 = vand.u32 %v7026, 4294901760
    %v7112 = vsub.f32 %v7026, %v7111
    %v7113 = vand.u32 %v7112, 4294901760
    %v7114 = vsub.f32 %v7112, %v7113
    %v7115 = vand.u32 %v7114, 4294901760
    %7116 = vmatmul.mubr.f32.gmra.mrb[0].mxu0 %v7115
    %v7117 = vpop.f32.mrb[0].mxu0
    %v7118 = vadd.f32 0.0, %v7117
    %v7119 = vpop.f32.mrb[0].mxu0
    %7120 = vdwg.mxu0
    %7121 = vmatprep.subr.mxu0 0.0
    %v7122 = vand.u32 %v7029, 4294901760
    %v7123 = vsub.f32 %v7029, %v7122
    %v7124 = vand.u32 %v7123, 4294901760
    %v7125 = vsub.f32 %v7123, %v7124
    %v7126 = vand.u32 %v7125, 4294901760
    %7127 = vmatpush1.xpose.msra.mxu0 %v7126
    %7128 = vmatprep.subr.mxu0 0.0
    %v7129 = vand.u32 %v7032, 4294901760
    %v7130 = vsub.f32 %v7032, %v7129
    %v7131 = vand.u32 %v7130, 4294901760
    %v7132 = vsub.f32 %v7130, %v7131
    %v7133 = vand.u32 %v7132, 4294901760
    %7134 = vmatpush1.xpose.msra.mxu0 %v7133
    %7135 = vmatprep.subr.mxu0 0.0
    %7136 = vmatpush1.xpose.msra.mxu0 0.0
    %7137 = vmatprep.subr.mxu0 0.0
    %7138 = vmatpush1.xpose.msra.mxu0 0.0
    %7139 = vmatprep.subr.mxu0 0.0
    %7140 = vmatpush1.xpose.msra.mxu0 0.0
    %7141 = vmatprep.subr.mxu0 0.0
    %7142 = vmatpush1.xpose.msra.mxu0 0.0
    %7143 = vmatprep.subr.mxu0 0.0
    %7144 = vmatpush1.xpose.msra.mxu0 0.0
    %7145 = vmatprep.subr.mxu0 0.0
    %7146 = vmatpush1.xpose.msra.mxu0 0.0
    %7147 = vmatprep.subr.mxu0 0.0
    %7148 = vmatpush1.xpose.msra.mxu0 0.0
    %7149 = vmatprep.subr.mxu0 0.0
    %7150 = vmatpush1.xpose.msra.mxu0 0.0
    %7151 = vmatprep.subr.mxu0 0.0
    %7152 = vmatpush1.xpose.msra.mxu0 0.0
    %7153 = vmatprep.subr.mxu0 0.0
    %7154 = vmatpush1.xpose.msra.mxu0 0.0
    %7155 = vmatprep.subr.mxu0 0.0
    %7156 = vmatpush1.xpose.msra.mxu0 0.0
    %7157 = vmatprep.subr.mxu0 0.0
    %7158 = vmatpush1.xpose.msra.mxu0 0.0
    %7159 = vmatprep.subr.mxu0 0.0
    %7160 = vmatpush1.xpose.msra.mxu0 0.0
    %7161 = vmatprep.subr.mxu0 0.0
    %7162 = vmatpush1.xpose.msra.mxu0 0.0
    %7163 = vmatprep.subr.mxu0 0.0
    %7164 = vmatpush1.xpose.msra.mxu0 0.0
    %7165 = vmatprep.subr.mxu0 0.0
    %7166 = vmatpush1.xpose.msra.mxu0 0.0
    %7167 = vmatprep.subr.mxu0 0.0
    %7168 = vmatpush1.xpose.msra.mxu0 0.0
    %7169 = vmatprep.subr.mxu0 0.0
    %7170 = vmatpush1.xpose.msra.mxu0 0.0
    %7171 = vmatprep.subr.mxu0 0.0
    %7172 = vmatpush1.xpose.msra.mxu0 0.0
    %7173 = vmatprep.subr.mxu0 0.0
    %7174 = vmatpush1.xpose.msra.mxu0 0.0
    %7175 = vmatprep.subr.mxu0 0.0
    %7176 = vmatpush1.xpose.msra.mxu0 0.0
    %7177 = vmatprep.subr.mxu0 0.0
    %7178 = vmatpush1.xpose.msra.mxu0 0.0
    %7179 = vmatprep.subr.mxu0 0.0
    %7180 = vmatpush1.xpose.msra.mxu0 0.0
    %7181 = vmatprep.subr.mxu0 0.0
    %7182 = vmatpush1.xpose.msra.mxu0 0.0
    %7183 = vmatprep.subr.mxu0 0.0
    %7184 = vmatpush1.xpose.msra.mxu0 0.0
    %7185 = vmatprep.subr.mxu0 0.0
    %7186 = vmatpush1.xpose.msra.mxu0 0.0
    %7187 = vmatprep.subr.mxu0 0.0
    %7188 = vmatpush1.xpose.msra.mxu0 0.0
    %7189 = vmatprep.subr.mxu0 0.0
    %7190 = vmatpush1.xpose.msra.mxu0 0.0
    %7191 = vmatprep.subr.mxu0 0.0
    %7192 = vmatpush1.xpose.msra.mxu0 0.0
    %7193 = vmatprep.subr.mxu0 0.0
    %7194 = vmatpush1.xpose.msra.mxu0 0.0
    %7195 = vmatprep.mubr.f32.mxu0 0.0
    %v7196 = vand.u32 %v7023, 4294901760
    %7197 = vmatmul.mubr.f32.gmra.mrb[0].mxu0 %v7196
    %v7198 = vpop.f32.mrb[0].mxu0
    %v7199 = vadd.f32 %v7108, %v7198
    %v7200 = vpop.f32.mrb[0].mxu0
    %7201 = vmatprep.mubr.f32.mxu0 0.0
    %v7202 = vand.u32 %v7026, 4294901760
    %7203 = vmatmul.mubr.f32.gmra.mrb[0].mxu0 %v7202
    %v7204 = vpop.f32.mrb[0].mxu0
    %v7205 = vadd.f32 %v7118, %v7204
    %v7206 = vpop.f32.mrb[0].mxu0
    %7207 = vdwg.mxu0
    %7208 = vmatprep.subr.mxu0 0.0
    %v7209 = vand.u32 %v7029, 4294901760
    %v7210 = vsub.f32 %v7029, %v7209
    %7211 = vmatpush1.xpose.msra.mxu0 %v7210
    %7212 = vmatprep.subr.mxu0 0.0
    %v7213 = vand.u32 %v7032, 4294901760
    %v7214 = vsub.f32 %v7032, %v7213
    %7215 = vmatpush1.xpose.msra.mxu0 %v7214
    %7216 = vmatprep.subr.mxu0 0.0
    %7217 = vmatpush1.xpose.msra.mxu0 0.0
    %7218 = vmatprep.subr.mxu0 0.0
    %7219 = vmatpush1.xpose.msra.mxu0 0.0
    %7220 = vmatprep.subr.mxu0 0.0
    %7221 = vmatpush1.xpose.msra.mxu0 0.0
    %7222 = vmatprep.subr.mxu0 0.0
    %7223 = vmatpush1.xpose.msra.mxu0 0.0
    %7224 = vmatprep.subr.mxu0 0.0
    %7225 = vmatpush1.xpose.msra.mxu0 0.0
    %7226 = vmatprep.subr.mxu0 0.0
    %7227 = vmatpush1.xpose.msra.mxu0 0.0
    %7228 = vmatprep.subr.mxu0 0.0
    %7229 = vmatpush1.xpose.msra.mxu0 0.0
    %7230 = vmatprep.subr.mxu0 0.0
    %7231 = vmatpush1.xpose.msra.mxu0 0.0
    %7232 = vmatprep.subr.mxu0 0.0
    %7233 = vmatpush1.xpose.msra.mxu0 0.0
    %7234 = vmatprep.subr.mxu0 0.0
    %7235 = vmatpush1.xpose.msra.mxu0 0.0
    %7236 = vmatprep.subr.mxu0 0.0
    %7237 = vmatpush1.xpose.msra.mxu0 0.0
    %7238 = vmatprep.subr.mxu0 0.0
    %7239 = vmatpush1.xpose.msra.mxu0 0.0
    %7240 = vmatprep.subr.mxu0 0.0
    %7241 = vmatpush1.xpose.msra.mxu0 0.0
    %7242 = vmatprep.subr.mxu0 0.0
    %7243 = vmatpush1.xpose.msra.mxu0 0.0
    %7244 = vmatprep.subr.mxu0 0.0
    %7245 = vmatpush1.xpose.msra.mxu0 0.0
    %7246 = vmatprep.subr.mxu0 0.0
    %7247 = vmatpush1.xpose.msra.mxu0 0.0
    %7248 = vmatprep.subr.mxu0 0.0
    %7249 = vmatpush1.xpose.msra.mxu0 0.0
    %7250 = vmatprep.subr.mxu0 0.0
    %7251 = vmatpush1.xpose.msra.mxu0 0.0
    %7252 = vmatprep.subr.mxu0 0.0
    %7253 = vmatpush1.xpose.msra.mxu0 0.0
    %7254 = vmatprep.subr.mxu0 0.0
    %7255 = vmatpush1.xpose.msra.mxu0 0.0
    %7256 = vmatprep.subr.mxu0 0.0
    %7257 = vmatpush1.xpose.msra.mxu0 0.0
    %7258 = vmatprep.subr.mxu0 0.0
    %7259 = vmatpush1.xpose.msra.mxu0 0.0
    %7260 = vmatprep.subr.mxu0 0.0
    %7261 = vmatpush1.xpose.msra.mxu0 0.0
    %7262 = vmatprep.subr.mxu0 0.0
    %7263 = vmatpush1.xpose.msra.mxu0 0.0
    %7264 = vmatprep.subr.mxu0 0.0
    %7265 = vmatpush1.xpose.msra.mxu0 0.0
    %7266 = vmatprep.subr.mxu0 0.0
    %7267 = vmatpush1.xpose.msra.mxu0 0.0
    %7268 = vmatprep.subr.mxu0 0.0
    %7269 = vmatpush1.xpose.msra.mxu0 0.0
    %7270 = vmatprep.subr.mxu0 0.0
    %7271 = vmatpush1.xpose.msra.mxu0 0.0
    %7272 = vmatprep.subr.mxu0 0.0
    %7273 = vmatpush1.xpose.msra.mxu0 0.0
    %7274 = vmatprep.subr.mxu0 0.0
    %7275 = vmatpush1.xpose.msra.mxu0 0.0
    %7276 = vmatprep.mubr.f32.mxu0 0.0
    %v7277 = vand.u32 %v7023, 4294901760
    %v7278 = vsub.f32 %v7023, %v7277
    %7279 = vmatmul.mubr.f32.gmra.mrb[0].mxu0 %v7278
    %v7280 = vpop.f32.mrb[0].mxu0
    %v7281 = vadd.f32 %v7199, %v7280
    %v7282 = vpop.f32.mrb[0].mxu0
    %7283 = vmatprep.mubr.f32.mxu0 0.0
    %v7284 = vand.u32 %v7026, 4294901760
    %v7285 = vsub.f32 %v7026, %v7284
    %7286 = vmatmul.mubr.f32.gmra.mrb[0].mxu0 %v7285
    %v7287 = vpop.f32.mrb[0].mxu0
    %v7288 = vadd.f32 %v7205, %v7287
    %v7289 = vpop.f32.mrb[0].mxu0
    %7290 = vdwg.mxu0
    %7291 = vmatprep.subr.mxu0 0.0
    %v7292 = vand.u32 %v7029, 4294901760
    %7293 = vmatpush1.xpose.msra.mxu0 %v7292
    %7294 = vmatprep.subr.mxu0 0.0
    %v7295 = vand.u32 %v7032, 4294901760
    %7296 = vmatpush1.xpose.msra.mxu0 %v7295
    %7297 = vmatprep.subr.mxu0 0.0
    %7298 = vmatpush1.xpose.msra.mxu0 0.0
    %7299 = vmatprep.subr.mxu0 0.0
    %7300 = vmatpush1.xpose.msra.mxu0 0.0
    %7301 = vmatprep.subr.mxu0 0.0
    %7302 = vmatpush1.xpose.msra.mxu0 0.0
    %7303 = vmatprep.subr.mxu0 0.0
    %7304 = vmatpush1.xpose.msra.mxu0 0.0
    %7305 = vmatprep.subr.mxu0 0.0
    %7306 = vmatpush1.xpose.msra.mxu0 0.0
    %7307 = vmatprep.subr.mxu0 0.0
    %7308 = vmatpush1.xpose.msra.mxu0 0.0
    %7309 = vmatprep.subr.mxu0 0.0
    %7310 = vmatpush1.xpose.msra.mxu0 0.0
    %7311 = vmatprep.subr.mxu0 0.0
    %7312 = vmatpush1.xpose.msra.mxu0 0.0
    %7313 = vmatprep.subr.mxu0 0.0
    %7314 = vmatpush1.xpose.msra.mxu0 0.0
    %7315 = vmatprep.subr.mxu0 0.0
    %7316 = vmatpush1.xpose.msra.mxu0 0.0
    %7317 = vmatprep.subr.mxu0 0.0
    %7318 = vmatpush1.xpose.msra.mxu0 0.0
    %7319 = vmatprep.subr.mxu0 0.0
    %7320 = vmatpush1.xpose.msra.mxu0 0.0
    %7321 = vmatprep.subr.mxu0 0.0
    %7322 = vmatpush1.xpose.msra.mxu0 0.0
    %7323 = vmatprep.subr.mxu0 0.0
    %7324 = vmatpush1.xpose.msra.mxu0 0.0
    %7325 = vmatprep.subr.mxu0 0.0
    %7326 = vmatpush1.xpose.msra.mxu0 0.0
    %7327 = vmatprep.subr.mxu0 0.0
    %7328 = vmatpush1.xpose.msra.mxu0 0.0
    %7329 = vmatprep.subr.mxu0 0.0
    %7330 = vmatpush1.xpose.msra.mxu0 0.0
    %7331 = vmatprep.subr.mxu0 0.0
    %7332 = vmatpush1.xpose.msra.mxu0 0.0
    %7333 = vmatprep.subr.mxu0 0.0
    %7334 = vmatpush1.xpose.msra.mxu0 0.0
    %7335 = vmatprep.subr.mxu0 0.0
    %7336 = vmatpush1.xpose.msra.mxu0 0.0
    %7337 = vmatprep.subr.mxu0 0.0
    %7338 = vmatpush1.xpose.msra.mxu0 0.0
    %7339 = vmatprep.subr.mxu0 0.0
    %7340 = vmatpush1.xpose.msra.mxu0 0.0
    %7341 = vmatprep.subr.mxu0 0.0
    %7342 = vmatpush1.xpose.msra.mxu0 0.0
    %7343 = vmatprep.subr.mxu0 0.0
    %7344 = vmatpush1.xpose.msra.mxu0 0.0
    %7345 = vmatprep.subr.mxu0 0.0
    %7346 = vmatpush1.xpose.msra.mxu0 0.0
    %7347 = vmatprep.subr.mxu0 0.0
    %7348 = vmatpush1.xpose.msra.mxu0 0.0
    %7349 = vmatprep.subr.mxu0 0.0
    %7350 = vmatpush1.xpose.msra.mxu0 0.0
    %7351 = vmatprep.subr.mxu0 0.0
    %7352 = vmatpush1.xpose.msra.mxu0 0.0
    %7353 = vmatprep.subr.mxu0 0.0
    %7354 = vmatpush1.xpose.msra.mxu0 0.0
    %7355 = vmatprep.subr.mxu0 0.0
    %7356 = vmatpush1.xpose.msra.mxu0 0.0
    %7357 = vmatprep.mubr.f32.mxu0 0.0
    %v7358 = vand.u32 %v7023, 4294901760
    %v7359 = vsub.f32 %v7023, %v7358
    %v7360 = vand.u32 %v7359, 4294901760
    %7361 = vmatmul.mubr.f32.gmra.mrb[0].mxu0 %v7360
    %v7362 = vpop.f32.mrb[0].mxu0
    %v7363 = vadd.f32 %v7281, %v7362
    %v7364 = vpop.f32.mrb[0].mxu0
    %7365 = vmatprep.mubr.f32.mxu0 0.0
    %v7366 = vand.u32 %v7026, 4294901760
    %v7367 = vsub.f32 %v7026, %v7366
    %v7368 = vand.u32 %v7367, 4294901760
    %7369 = vmatmul.mubr.f32.gmra.mrb[0].mxu0 %v7368
    %v7370 = vpop.f32.mrb[0].mxu0
    %v7371 = vadd.f32 %v7288, %v7370
    %v7372 = vpop.f32.mrb[0].mxu0
    %7373 = vdwg.mxu0
    %7374 = vmatprep.subr.mxu0 0.0
    %v7375 = vand.u32 %v7029, 4294901760
    %v7376 = vsub.f32 %v7029, %v7375
    %v7377 = vand.u32 %v7376, 4294901760
    %7378 = vmatpush1.xpose.msra.mxu0 %v7377
    %7379 = vmatprep.subr.mxu0 0.0
    %v7380 = vand.u32 %v7032, 4294901760
    %v7381 = vsub.f32 %v7032, %v7380
    %v7382 = vand.u32 %v7381, 4294901760
    %7383 = vmatpush1.xpose.msra.mxu0 %v7382
    %7384 = vmatprep.subr.mxu0 0.0
    %7385 = vmatpush1.xpose.msra.mxu0 0.0
    %7386 = vmatprep.subr.mxu0 0.0
    %7387 = vmatpush1.xpose.msra.mxu0 0.0
    %7388 = vmatprep.subr.mxu0 0.0
    %7389 = vmatpush1.xpose.msra.mxu0 0.0
    %7390 = vmatprep.subr.mxu0 0.0
    %7391 = vmatpush1.xpose.msra.mxu0 0.0
    %7392 = vmatprep.subr.mxu0 0.0
    %7393 = vmatpush1.xpose.msra.mxu0 0.0
    %7394 = vmatprep.subr.mxu0 0.0
    %7395 = vmatpush1.xpose.msra.mxu0 0.0
    %7396 = vmatprep.subr.mxu0 0.0
    %7397 = vmatpush1.xpose.msra.mxu0 0.0
    %7398 = vmatprep.subr.mxu0 0.0
    %7399 = vmatpush1.xpose.msra.mxu0 0.0
    %7400 = vmatprep.subr.mxu0 0.0
    %7401 = vmatpush1.xpose.msra.mxu0 0.0
    %7402 = vmatprep.subr.mxu0 0.0
    %7403 = vmatpush1.xpose.msra.mxu0 0.0
    %7404 = vmatprep.subr.mxu0 0.0
    %7405 = vmatpush1.xpose.msra.mxu0 0.0
    %7406 = vmatprep.subr.mxu0 0.0
    %7407 = vmatpush1.xpose.msra.mxu0 0.0
    %7408 = vmatprep.subr.mxu0 0.0
    %7409 = vmatpush1.xpose.msra.mxu0 0.0
    %7410 = vmatprep.subr.mxu0 0.0
    %7411 = vmatpush1.xpose.msra.mxu0 0.0
    %7412 = vmatprep.subr.mxu0 0.0
    %7413 = vmatpush1.xpose.msra.mxu0 0.0
    %7414 = vmatprep.subr.mxu0 0.0
    %7415 = vmatpush1.xpose.msra.mxu0 0.0
    %7416 = vmatprep.subr.mxu0 0.0
    %7417 = vmatpush1.xpose.msra.mxu0 0.0
    %7418 = vmatprep.subr.mxu0 0.0
    %7419 = vmatpush1.xpose.msra.mxu0 0.0
    %7420 = vmatprep.subr.mxu0 0.0
    %7421 = vmatpush1.xpose.msra.mxu0 0.0
    %7422 = vmatprep.subr.mxu0 0.0
    %7423 = vmatpush1.xpose.msra.mxu0 0.0
    %7424 = vmatprep.subr.mxu0 0.0
    %7425 = vmatpush1.xpose.msra.mxu0 0.0
    %7426 = vmatprep.subr.mxu0 0.0
    %7427 = vmatpush1.xpose.msra.mxu0 0.0
    %7428 = vmatprep.subr.mxu0 0.0
    %7429 = vmatpush1.xpose.msra.mxu0 0.0
    %7430 = vmatprep.subr.mxu0 0.0
    %7431 = vmatpush1.xpose.msra.mxu0 0.0
    %7432 = vmatprep.subr.mxu0 0.0
    %7433 = vmatpush1.xpose.msra.mxu0 0.0
    %7434 = vmatprep.subr.mxu0 0.0
    %7435 = vmatpush1.xpose.msra.mxu0 0.0
    %7436 = vmatprep.subr.mxu0 0.0
    %7437 = vmatpush1.xpose.msra.mxu0 0.0
    %7438 = vmatprep.subr.mxu0 0.0
    %7439 = vmatpush1.xpose.msra.mxu0 0.0
    %7440 = vmatprep.subr.mxu0 0.0
    %7441 = vmatpush1.xpose.msra.mxu0 0.0
    %7442 = vmatprep.subr.mxu0 0.0
    %7443 = vmatpush1.xpose.msra.mxu0 0.0
    %7444 = vmatprep.mubr.f32.mxu0 0.0
    %v7445 = vand.u32 %v7023, 4294901760
    %7446 = vmatmul.mubr.f32.gmra.mrb[0].mxu0 %v7445
    %v7447 = vpop.f32.mrb[0].mxu0
    %v7448 = vadd.f32 %v7363, %v7447
    %v7449 = vpop.f32.mrb[0].mxu0
    %7450 = vmatprep.mubr.f32.mxu0 0.0
    %v7451 = vand.u32 %v7026, 4294901760
    %7452 = vmatmul.mubr.f32.gmra.mrb[0].mxu0 %v7451
    %v7453 = vpop.f32.mrb[0].mxu0
    %v7454 = vadd.f32 %v7371, %v7453
    %v7455 = vpop.f32.mrb[0].mxu0
    %7456 = vdwg.mxu0
    %7457 = vmatprep.subr.mxu0 0.0
    %v7458 = vand.u32 %v7029, 4294901760
    %7459 = vmatpush1.xpose.msra.mxu0 %v7458
    %7460 = vmatprep.subr.mxu0 0.0
    %v7461 = vand.u32 %v7032, 4294901760
    %7462 = vmatpush1.xpose.msra.mxu0 %v7461
    %7463 = vmatprep.subr.mxu0 0.0
    %7464 = vmatpush1.xpose.msra.mxu0 0.0
    %7465 = vmatprep.subr.mxu0 0.0
    %7466 = vmatpush1.xpose.msra.mxu0 0.0
    %7467 = vmatprep.subr.mxu0 0.0
    %7468 = vmatpush1.xpose.msra.mxu0 0.0
    %7469 = vmatprep.subr.mxu0 0.0
    %7470 = vmatpush1.xpose.msra.mxu0 0.0
    %7471 = vmatprep.subr.mxu0 0.0
    %7472 = vmatpush1.xpose.msra.mxu0 0.0
    %7473 = vmatprep.subr.mxu0 0.0
    %7474 = vmatpush1.xpose.msra.mxu0 0.0
    %7475 = vmatprep.subr.mxu0 0.0
    %7476 = vmatpush1.xpose.msra.mxu0 0.0
    %7477 = vmatprep.subr.mxu0 0.0
    %7478 = vmatpush1.xpose.msra.mxu0 0.0
    %7479 = vmatprep.subr.mxu0 0.0
    %7480 = vmatpush1.xpose.msra.mxu0 0.0
    %7481 = vmatprep.subr.mxu0 0.0
    %7482 = vmatpush1.xpose.msra.mxu0 0.0
    %7483 = vmatprep.subr.mxu0 0.0
    %7484 = vmatpush1.xpose.msra.mxu0 0.0
    %7485 = vmatprep.subr.mxu0 0.0
    %7486 = vmatpush1.xpose.msra.mxu0 0.0
    %7487 = vmatprep.subr.mxu0 0.0
    %7488 = vmatpush1.xpose.msra.mxu0 0.0
    %7489 = vmatprep.subr.mxu0 0.0
    %7490 = vmatpush1.xpose.msra.mxu0 0.0
    %7491 = vmatprep.subr.mxu0 0.0
    %7492 = vmatpush1.xpose.msra.mxu0 0.0
    %7493 = vmatprep.subr.mxu0 0.0
    %7494 = vmatpush1.xpose.msra.mxu0 0.0
    %7495 = vmatprep.subr.mxu0 0.0
    %7496 = vmatpush1.xpose.msra.mxu0 0.0
    %7497 = vmatprep.subr.mxu0 0.0
    %7498 = vmatpush1.xpose.msra.mxu0 0.0
    %7499 = vmatprep.subr.mxu0 0.0
    %7500 = vmatpush1.xpose.msra.mxu0 0.0
    %7501 = vmatprep.subr.mxu0 0.0
    %7502 = vmatpush1.xpose.msra.mxu0 0.0
    %7503 = vmatprep.subr.mxu0 0.0
    %7504 = vmatpush1.xpose.msra.mxu0 0.0
    %7505 = vmatprep.subr.mxu0 0.0
    %7506 = vmatpush1.xpose.msra.mxu0 0.0
    %7507 = vmatprep.subr.mxu0 0.0
    %7508 = vmatpush1.xpose.msra.mxu0 0.0
    %7509 = vmatprep.subr.mxu0 0.0
    %7510 = vmatpush1.xpose.msra.mxu0 0.0
    %7511 = vmatprep.subr.mxu0 0.0
    %7512 = vmatpush1.xpose.msra.mxu0 0.0
    %7513 = vmatprep.subr.mxu0 0.0
    %7514 = vmatpush1.xpose.msra.mxu0 0.0
    %7515 = vmatprep.subr.mxu0 0.0
    %7516 = vmatpush1.xpose.msra.mxu0 0.0
    %7517 = vmatprep.subr.mxu0 0.0
    %7518 = vmatpush1.xpose.msra.mxu0 0.0
    %7519 = vmatprep.subr.mxu0 0.0
    %7520 = vmatpush1.xpose.msra.mxu0 0.0
    %7521 = vmatprep.subr.mxu0 0.0
    %7522 = vmatpush1.xpose.msra.mxu0 0.0
    %7523 = vmatprep.mubr.f32.mxu0 0.0
    %v7524 = vand.u32 %v7023, 4294901760
    %7525 = vmatmul.mubr.f32.gmra.mrb[0].mxu0 %v7524
    %v7526 = vpop.f32.mrb[0].mxu0
    %v7527 = vadd.f32 %v7448, %v7526
    %v7528 = vpop.f32.mrb[0].mxu0
    %7529 = vmatprep.mubr.f32.mxu0 0.0
    %v7530 = vand.u32 %v7026, 4294901760
    %7531 = vmatmul.mubr.f32.gmra.mrb[0].mxu0 %v7530
    %v7532 = vpop.f32.mrb[0].mxu0
    %v7533 = vadd.f32 %v7454, %v7532
    %v7534 = vpop.f32.mrb[0].mxu0
    %7535 = vdwg.mxu0
    %v7536 = vmul.f32 %v7527, %v49
    %v7537 = vmul.f32 %v7533, %v50
    %v7539 = vsel %vm60, %v7536, 0
    %v7542 = vsel %vm60, %v7537, 0
    %7544 = vmatprep.subr.mxu0 0.0
    %v7545 = vand.u32 %v7013, 4294901760
    %7546 = vmatpush1.msra.mxu0 %v7545
    %7547 = vmatprep.subr.mxu0 0.0
    %v7548 = vand.u32 %v7019, 4294901760
    %7549 = vmatpush1.msra.mxu0 %v7548
    %7550 = vmatprep.subr.mxu0 0.0
    %7551 = vmatpush1.msra.mxu0 0.0
    %7552 = vmatprep.subr.mxu0 0.0
    %7553 = vmatpush1.msra.mxu0 0.0
    %7554 = vmatprep.subr.mxu0 0.0
    %7555 = vmatpush1.msra.mxu0 0.0
    %7556 = vmatprep.subr.mxu0 0.0
    %7557 = vmatpush1.msra.mxu0 0.0
    %7558 = vmatprep.subr.mxu0 0.0
    %7559 = vmatpush1.msra.mxu0 0.0
    %7560 = vmatprep.subr.mxu0 0.0
    %7561 = vmatpush1.msra.mxu0 0.0
    %7562 = vmatprep.subr.mxu0 0.0
    %7563 = vmatpush1.msra.mxu0 0.0
    %7564 = vmatprep.subr.mxu0 0.0
    %7565 = vmatpush1.msra.mxu0 0.0
    %7566 = vmatprep.subr.mxu0 0.0
    %7567 = vmatpush1.msra.mxu0 0.0
    %7568 = vmatprep.subr.mxu0 0.0
    %7569 = vmatpush1.msra.mxu0 0.0
    %7570 = vmatprep.subr.mxu0 0.0
    %7571 = vmatpush1.msra.mxu0 0.0
    %7572 = vmatprep.subr.mxu0 0.0
    %7573 = vmatpush1.msra.mxu0 0.0
    %7574 = vmatprep.subr.mxu0 0.0
    %7575 = vmatpush1.msra.mxu0 0.0
    %7576 = vmatprep.subr.mxu0 0.0
    %7577 = vmatpush1.msra.mxu0 0.0
    %7578 = vmatprep.subr.mxu0 0.0
    %7579 = vmatpush1.msra.mxu0 0.0
    %7580 = vmatprep.subr.mxu0 0.0
    %7581 = vmatpush1.msra.mxu0 0.0
    %7582 = vmatprep.subr.mxu0 0.0
    %7583 = vmatpush1.msra.mxu0 0.0
    %7584 = vmatprep.subr.mxu0 0.0
    %7585 = vmatpush1.msra.mxu0 0.0
    %7586 = vmatprep.subr.mxu0 0.0
    %7587 = vmatpush1.msra.mxu0 0.0
    %7588 = vmatprep.subr.mxu0 0.0
    %7589 = vmatpush1.msra.mxu0 0.0
    %7590 = vmatprep.subr.mxu0 0.0
    %7591 = vmatpush1.msra.mxu0 0.0
    %7592 = vmatprep.subr.mxu0 0.0
    %7593 = vmatpush1.msra.mxu0 0.0
    %7594 = vmatprep.subr.mxu0 0.0
    %7595 = vmatpush1.msra.mxu0 0.0
    %7596 = vmatprep.subr.mxu0 0.0
    %7597 = vmatpush1.msra.mxu0 0.0
    %7598 = vmatprep.subr.mxu0 0.0
    %7599 = vmatpush1.msra.mxu0 0.0
    %7600 = vmatprep.subr.mxu0 0.0
    %7601 = vmatpush1.msra.mxu0 0.0
    %7602 = vmatprep.subr.mxu0 0.0
    %7603 = vmatpush1.msra.mxu0 0.0
    %7604 = vmatprep.subr.mxu0 0.0
    %7605 = vmatpush1.msra.mxu0 0.0
    %7606 = vmatprep.subr.mxu0 0.0
    %7607 = vmatpush1.msra.mxu0 0.0
    %7608 = vmatprep.subr.mxu0 0.0
    %7609 = vmatpush1.msra.mxu0 0.0
    %7610 = vmatprep.mubr.f32.mxu0 0.0
    %v7611 = vand.u32 %v7539, 4294901760
    %v7612 = vsub.f32 %v7539, %v7611
    %v7613 = vand.u32 %v7612, 4294901760
    %v7614 = vsub.f32 %v7612, %v7613
    %v7615 = vand.u32 %v7614, 4294901760
    %7616 = vmatmul.mubr.f32.gmra.mrb[0].mxu0 %v7615
    %v7617 = vpop.f32.mrb[0].mxu0
    %v7618 = vadd.f32 0.0, %v7617
    %v7619 = vpop.f32.mrb[0].mxu0
    %7620 = vmatprep.mubr.f32.mxu0 0.0
    %v7621 = vand.u32 %v7542, 4294901760
    %v7622 = vsub.f32 %v7542, %v7621
    %v7623 = vand.u32 %v7622, 4294901760
    %v7624 = vsub.f32 %v7622, %v7623
    %v7625 = vand.u32 %v7624, 4294901760
    %7626 = vmatmul.mubr.f32.gmra.mrb[0].mxu0 %v7625
    %v7627 = vpop.f32.mrb[0].mxu0
    %v7628 = vadd.f32 0.0, %v7627
    %v7629 = vpop.f32.mrb[0].mxu0
    %7630 = vdwg.mxu0
    %7631 = vmatprep.subr.mxu0 0.0
    %v7632 = vand.u32 %v7013, 4294901760
    %v7633 = vsub.f32 %v7013, %v7632
    %v7634 = vand.u32 %v7633, 4294901760
    %v7635 = vsub.f32 %v7633, %v7634
    %v7636 = vand.u32 %v7635, 4294901760
    %7637 = vmatpush1.msra.mxu0 %v7636
    %7638 = vmatprep.subr.mxu0 0.0
    %v7639 = vand.u32 %v7019, 4294901760
    %v7640 = vsub.f32 %v7019, %v7639
    %v7641 = vand.u32 %v7640, 4294901760
    %v7642 = vsub.f32 %v7640, %v7641
    %v7643 = vand.u32 %v7642, 4294901760
    %7644 = vmatpush1.msra.mxu0 %v7643
    %7645 = vmatprep.subr.mxu0 0.0
    %7646 = vmatpush1.msra.mxu0 0.0
    %7647 = vmatprep.subr.mxu0 0.0
    %7648 = vmatpush1.msra.mxu0 0.0
    %7649 = vmatprep.subr.mxu0 0.0
    %7650 = vmatpush1.msra.mxu0 0.0
    %7651 = vmatprep.subr.mxu0 0.0
    %7652 = vmatpush1.msra.mxu0 0.0
    %7653 = vmatprep.subr.mxu0 0.0
    %7654 = vmatpush1.msra.mxu0 0.0
    %7655 = vmatprep.subr.mxu0 0.0
    %7656 = vmatpush1.msra.mxu0 0.0
    %7657 = vmatprep.subr.mxu0 0.0
    %7658 = vmatpush1.msra.mxu0 0.0
    %7659 = vmatprep.subr.mxu0 0.0
    %7660 = vmatpush1.msra.mxu0 0.0
    %7661 = vmatprep.subr.mxu0 0.0
    %7662 = vmatpush1.msra.mxu0 0.0
    %7663 = vmatprep.subr.mxu0 0.0
    %7664 = vmatpush1.msra.mxu0 0.0
    %7665 = vmatprep.subr.mxu0 0.0
    %7666 = vmatpush1.msra.mxu0 0.0
    %7667 = vmatprep.subr.mxu0 0.0
    %7668 = vmatpush1.msra.mxu0 0.0
    %7669 = vmatprep.subr.mxu0 0.0
    %7670 = vmatpush1.msra.mxu0 0.0
    %7671 = vmatprep.subr.mxu0 0.0
    %7672 = vmatpush1.msra.mxu0 0.0
    %7673 = vmatprep.subr.mxu0 0.0
    %7674 = vmatpush1.msra.mxu0 0.0
    %7675 = vmatprep.subr.mxu0 0.0
    %7676 = vmatpush1.msra.mxu0 0.0
    %7677 = vmatprep.subr.mxu0 0.0
    %7678 = vmatpush1.msra.mxu0 0.0
    %7679 = vmatprep.subr.mxu0 0.0
    %7680 = vmatpush1.msra.mxu0 0.0
    %7681 = vmatprep.subr.mxu0 0.0
    %7682 = vmatpush1.msra.mxu0 0.0
    %7683 = vmatprep.subr.mxu0 0.0
    %7684 = vmatpush1.msra.mxu0 0.0
    %7685 = vmatprep.subr.mxu0 0.0
    %7686 = vmatpush1.msra.mxu0 0.0
    %7687 = vmatprep.subr.mxu0 0.0
    %7688 = vmatpush1.msra.mxu0 0.0
    %7689 = vmatprep.subr.mxu0 0.0
    %7690 = vmatpush1.msra.mxu0 0.0
    %7691 = vmatprep.subr.mxu0 0.0
    %7692 = vmatpush1.msra.mxu0 0.0
    %7693 = vmatprep.subr.mxu0 0.0
    %7694 = vmatpush1.msra.mxu0 0.0
    %7695 = vmatprep.subr.mxu0 0.0
    %7696 = vmatpush1.msra.mxu0 0.0
    %7697 = vmatprep.subr.mxu0 0.0
    %7698 = vmatpush1.msra.mxu0 0.0
    %7699 = vmatprep.subr.mxu0 0.0
    %7700 = vmatpush1.msra.mxu0 0.0
    %7701 = vmatprep.subr.mxu0 0.0
    %7702 = vmatpush1.msra.mxu0 0.0
    %7703 = vmatprep.subr.mxu0 0.0
    %7704 = vmatpush1.msra.mxu0 0.0
    %7705 = vmatprep.mubr.f32.mxu0 0.0
    %v7706 = vand.u32 %v7539, 4294901760
    %7707 = vmatmul.mubr.f32.gmra.mrb[0].mxu0 %v7706
    %v7708 = vpop.f32.mrb[0].mxu0
    %v7709 = vadd.f32 %v7618, %v7708
    %v7710 = vpop.f32.mrb[0].mxu0
    %7711 = vmatprep.mubr.f32.mxu0 0.0
    %v7712 = vand.u32 %v7542, 4294901760
    %7713 = vmatmul.mubr.f32.gmra.mrb[0].mxu0 %v7712
    %v7714 = vpop.f32.mrb[0].mxu0
    %v7715 = vadd.f32 %v7628, %v7714
    %v7716 = vpop.f32.mrb[0].mxu0
    %7717 = vdwg.mxu0
    %7718 = vmatprep.subr.mxu0 0.0
    %v7719 = vand.u32 %v7013, 4294901760
    %v7720 = vsub.f32 %v7013, %v7719
    %7721 = vmatpush1.msra.mxu0 %v7720
    %7722 = vmatprep.subr.mxu0 0.0
    %v7723 = vand.u32 %v7019, 4294901760
    %v7724 = vsub.f32 %v7019, %v7723
    %7725 = vmatpush1.msra.mxu0 %v7724
    %7726 = vmatprep.subr.mxu0 0.0
    %7727 = vmatpush1.msra.mxu0 0.0
    %7728 = vmatprep.subr.mxu0 0.0
    %7729 = vmatpush1.msra.mxu0 0.0
    %7730 = vmatprep.subr.mxu0 0.0
    %7731 = vmatpush1.msra.mxu0 0.0
    %7732 = vmatprep.subr.mxu0 0.0
    %7733 = vmatpush1.msra.mxu0 0.0
    %7734 = vmatprep.subr.mxu0 0.0
    %7735 = vmatpush1.msra.mxu0 0.0
    %7736 = vmatprep.subr.mxu0 0.0
    %7737 = vmatpush1.msra.mxu0 0.0
    %7738 = vmatprep.subr.mxu0 0.0
    %7739 = vmatpush1.msra.mxu0 0.0
    %7740 = vmatprep.subr.mxu0 0.0
    %7741 = vmatpush1.msra.mxu0 0.0
    %7742 = vmatprep.subr.mxu0 0.0
    %7743 = vmatpush1.msra.mxu0 0.0
    %7744 = vmatprep.subr.mxu0 0.0
    %7745 = vmatpush1.msra.mxu0 0.0
    %7746 = vmatprep.subr.mxu0 0.0
    %7747 = vmatpush1.msra.mxu0 0.0
    %7748 = vmatprep.subr.mxu0 0.0
    %7749 = vmatpush1.msra.mxu0 0.0
    %7750 = vmatprep.subr.mxu0 0.0
    %7751 = vmatpush1.msra.mxu0 0.0
    %7752 = vmatprep.subr.mxu0 0.0
    %7753 = vmatpush1.msra.mxu0 0.0
    %7754 = vmatprep.subr.mxu0 0.0
    %7755 = vmatpush1.msra.mxu0 0.0
    %7756 = vmatprep.subr.mxu0 0.0
    %7757 = vmatpush1.msra.mxu0 0.0
    %7758 = vmatprep.subr.mxu0 0.0
    %7759 = vmatpush1.msra.mxu0 0.0
    %7760 = vmatprep.subr.mxu0 0.0
    %7761 = vmatpush1.msra.mxu0 0.0
    %7762 = vmatprep.subr.mxu0 0.0
    %7763 = vmatpush1.msra.mxu0 0.0
    %7764 = vmatprep.subr.mxu0 0.0
    %7765 = vmatpush1.msra.mxu0 0.0
    %7766 = vmatprep.subr.mxu0 0.0
    %7767 = vmatpush1.msra.mxu0 0.0
    %7768 = vmatprep.subr.mxu0 0.0
    %7769 = vmatpush1.msra.mxu0 0.0
    %7770 = vmatprep.subr.mxu0 0.0
    %7771 = vmatpush1.msra.mxu0 0.0
    %7772 = vmatprep.subr.mxu0 0.0
    %7773 = vmatpush1.msra.mxu0 0.0
    %7774 = vmatprep.subr.mxu0 0.0
    %7775 = vmatpush1.msra.mxu0 0.0
    %7776 = vmatprep.subr.mxu0 0.0
    %7777 = vmatpush1.msra.mxu0 0.0
    %7778 = vmatprep.subr.mxu0 0.0
    %7779 = vmatpush1.msra.mxu0 0.0
    %7780 = vmatprep.subr.mxu0 0.0
    %7781 = vmatpush1.msra.mxu0 0.0
    %7782 = vmatprep.subr.mxu0 0.0
    %7783 = vmatpush1.msra.mxu0 0.0
    %7784 = vmatprep.subr.mxu0 0.0
    %7785 = vmatpush1.msra.mxu0 0.0
    %7786 = vmatprep.mubr.f32.mxu0 0.0
    %v7787 = vand.u32 %v7539, 4294901760
    %v7788 = vsub.f32 %v7539, %v7787
    %7789 = vmatmul.mubr.f32.gmra.mrb[0].mxu0 %v7788
    %v7790 = vpop.f32.mrb[0].mxu0
    %v7791 = vadd.f32 %v7709, %v7790
    %v7792 = vpop.f32.mrb[0].mxu0
    %7793 = vmatprep.mubr.f32.mxu0 0.0
    %v7794 = vand.u32 %v7542, 4294901760
    %v7795 = vsub.f32 %v7542, %v7794
    %7796 = vmatmul.mubr.f32.gmra.mrb[0].mxu0 %v7795
    %v7797 = vpop.f32.mrb[0].mxu0
    %v7798 = vadd.f32 %v7715, %v7797
    %v7799 = vpop.f32.mrb[0].mxu0
    %7800 = vdwg.mxu0
    %7801 = vmatprep.subr.mxu0 0.0
    %v7802 = vand.u32 %v7013, 4294901760
    %7803 = vmatpush1.msra.mxu0 %v7802
    %7804 = vmatprep.subr.mxu0 0.0
    %v7805 = vand.u32 %v7019, 4294901760
    %7806 = vmatpush1.msra.mxu0 %v7805
    %7807 = vmatprep.subr.mxu0 0.0
    %7808 = vmatpush1.msra.mxu0 0.0
    %7809 = vmatprep.subr.mxu0 0.0
    %7810 = vmatpush1.msra.mxu0 0.0
    %7811 = vmatprep.subr.mxu0 0.0
    %7812 = vmatpush1.msra.mxu0 0.0
    %7813 = vmatprep.subr.mxu0 0.0
    %7814 = vmatpush1.msra.mxu0 0.0
    %7815 = vmatprep.subr.mxu0 0.0
    %7816 = vmatpush1.msra.mxu0 0.0
    %7817 = vmatprep.subr.mxu0 0.0
    %7818 = vmatpush1.msra.mxu0 0.0
    %7819 = vmatprep.subr.mxu0 0.0
    %7820 = vmatpush1.msra.mxu0 0.0
    %7821 = vmatprep.subr.mxu0 0.0
    %7822 = vmatpush1.msra.mxu0 0.0
    %7823 = vmatprep.subr.mxu0 0.0
    %7824 = vmatpush1.msra.mxu0 0.0
    %7825 = vmatprep.subr.mxu0 0.0
    %7826 = vmatpush1.msra.mxu0 0.0
    %7827 = vmatprep.subr.mxu0 0.0
    %7828 = vmatpush1.msra.mxu0 0.0
    %7829 = vmatprep.subr.mxu0 0.0
    %7830 = vmatpush1.msra.mxu0 0.0
    %7831 = vmatprep.subr.mxu0 0.0
    %7832 = vmatpush1.msra.mxu0 0.0
    %7833 = vmatprep.subr.mxu0 0.0
    %7834 = vmatpush1.msra.mxu0 0.0
    %7835 = vmatprep.subr.mxu0 0.0
    %7836 = vmatpush1.msra.mxu0 0.0
    %7837 = vmatprep.subr.mxu0 0.0
    %7838 = vmatpush1.msra.mxu0 0.0
    %7839 = vmatprep.subr.mxu0 0.0
    %7840 = vmatpush1.msra.mxu0 0.0
    %7841 = vmatprep.subr.mxu0 0.0
    %7842 = vmatpush1.msra.mxu0 0.0
    %7843 = vmatprep.subr.mxu0 0.0
    %7844 = vmatpush1.msra.mxu0 0.0
    %7845 = vmatprep.subr.mxu0 0.0
    %7846 = vmatpush1.msra.mxu0 0.0
    %7847 = vmatprep.subr.mxu0 0.0
    %7848 = vmatpush1.msra.mxu0 0.0
    %7849 = vmatprep.subr.mxu0 0.0
    %7850 = vmatpush1.msra.mxu0 0.0
    %7851 = vmatprep.subr.mxu0 0.0
    %7852 = vmatpush1.msra.mxu0 0.0
    %7853 = vmatprep.subr.mxu0 0.0
    %7854 = vmatpush1.msra.mxu0 0.0
    %7855 = vmatprep.subr.mxu0 0.0
    %7856 = vmatpush1.msra.mxu0 0.0
    %7857 = vmatprep.subr.mxu0 0.0
    %7858 = vmatpush1.msra.mxu0 0.0
    %7859 = vmatprep.subr.mxu0 0.0
    %7860 = vmatpush1.msra.mxu0 0.0
    %7861 = vmatprep.subr.mxu0 0.0
    %7862 = vmatpush1.msra.mxu0 0.0
    %7863 = vmatprep.subr.mxu0 0.0
    %7864 = vmatpush1.msra.mxu0 0.0
    %7865 = vmatprep.subr.mxu0 0.0
    %7866 = vmatpush1.msra.mxu0 0.0
    %7867 = vmatprep.mubr.f32.mxu0 0.0
    %v7868 = vand.u32 %v7539, 4294901760
    %v7869 = vsub.f32 %v7539, %v7868
    %v7870 = vand.u32 %v7869, 4294901760
    %7871 = vmatmul.mubr.f32.gmra.mrb[0].mxu0 %v7870
    %v7872 = vpop.f32.mrb[0].mxu0
    %v7873 = vadd.f32 %v7791, %v7872
    %v7874 = vpop.f32.mrb[0].mxu0
    %7875 = vmatprep.mubr.f32.mxu0 0.0
    %v7876 = vand.u32 %v7542, 4294901760
    %v7877 = vsub.f32 %v7542, %v7876
    %v7878 = vand.u32 %v7877, 4294901760
    %7879 = vmatmul.mubr.f32.gmra.mrb[0].mxu0 %v7878
    %v7880 = vpop.f32.mrb[0].mxu0
    %v7881 = vadd.f32 %v7798, %v7880
    %v7882 = vpop.f32.mrb[0].mxu0
    %7883 = vdwg.mxu0
    %7884 = vmatprep.subr.mxu0 0.0
    %v7885 = vand.u32 %v7013, 4294901760
    %v7886 = vsub.f32 %v7013, %v7885
    %v7887 = vand.u32 %v7886, 4294901760
    %7888 = vmatpush1.msra.mxu0 %v7887
    %7889 = vmatprep.subr.mxu0 0.0
    %v7890 = vand.u32 %v7019, 4294901760
    %v7891 = vsub.f32 %v7019, %v7890
    %v7892 = vand.u32 %v7891, 4294901760
    %7893 = vmatpush1.msra.mxu0 %v7892
    %7894 = vmatprep.subr.mxu0 0.0
    %7895 = vmatpush1.msra.mxu0 0.0
    %7896 = vmatprep.subr.mxu0 0.0
    %7897 = vmatpush1.msra.mxu0 0.0
    %7898 = vmatprep.subr.mxu0 0.0
    %7899 = vmatpush1.msra.mxu0 0.0
    %7900 = vmatprep.subr.mxu0 0.0
    %7901 = vmatpush1.msra.mxu0 0.0
    %7902 = vmatprep.subr.mxu0 0.0
    %7903 = vmatpush1.msra.mxu0 0.0
    %7904 = vmatprep.subr.mxu0 0.0
    %7905 = vmatpush1.msra.mxu0 0.0
    %7906 = vmatprep.subr.mxu0 0.0
    %7907 = vmatpush1.msra.mxu0 0.0
    %7908 = vmatprep.subr.mxu0 0.0
    %7909 = vmatpush1.msra.mxu0 0.0
    %7910 = vmatprep.subr.mxu0 0.0
    %7911 = vmatpush1.msra.mxu0 0.0
    %7912 = vmatprep.subr.mxu0 0.0
    %7913 = vmatpush1.msra.mxu0 0.0
    %7914 = vmatprep.subr.mxu0 0.0
    %7915 = vmatpush1.msra.mxu0 0.0
    %7916 = vmatprep.subr.mxu0 0.0
    %7917 = vmatpush1.msra.mxu0 0.0
    %7918 = vmatprep.subr.mxu0 0.0
    %7919 = vmatpush1.msra.mxu0 0.0
    %7920 = vmatprep.subr.mxu0 0.0
    %7921 = vmatpush1.msra.mxu0 0.0
    %7922 = vmatprep.subr.mxu0 0.0
    %7923 = vmatpush1.msra.mxu0 0.0
    %7924 = vmatprep.subr.mxu0 0.0
    %7925 = vmatpush1.msra.mxu0 0.0
    %7926 = vmatprep.subr.mxu0 0.0
    %7927 = vmatpush1.msra.mxu0 0.0
    %7928 = vmatprep.subr.mxu0 0.0
    %7929 = vmatpush1.msra.mxu0 0.0
    %7930 = vmatprep.subr.mxu0 0.0
    %7931 = vmatpush1.msra.mxu0 0.0
    %7932 = vmatprep.subr.mxu0 0.0
    %7933 = vmatpush1.msra.mxu0 0.0
    %7934 = vmatprep.subr.mxu0 0.0
    %7935 = vmatpush1.msra.mxu0 0.0
    %7936 = vmatprep.subr.mxu0 0.0
    %7937 = vmatpush1.msra.mxu0 0.0
    %7938 = vmatprep.subr.mxu0 0.0
    %7939 = vmatpush1.msra.mxu0 0.0
    %7940 = vmatprep.subr.mxu0 0.0
    %7941 = vmatpush1.msra.mxu0 0.0
    %7942 = vmatprep.subr.mxu0 0.0
    %7943 = vmatpush1.msra.mxu0 0.0
    %7944 = vmatprep.subr.mxu0 0.0
    %7945 = vmatpush1.msra.mxu0 0.0
    %7946 = vmatprep.subr.mxu0 0.0
    %7947 = vmatpush1.msra.mxu0 0.0
    %7948 = vmatprep.subr.mxu0 0.0
    %7949 = vmatpush1.msra.mxu0 0.0
    %7950 = vmatprep.subr.mxu0 0.0
    %7951 = vmatpush1.msra.mxu0 0.0
    %7952 = vmatprep.subr.mxu0 0.0
    %7953 = vmatpush1.msra.mxu0 0.0
    %7954 = vmatprep.mubr.f32.mxu0 0.0
    %v7955 = vand.u32 %v7539, 4294901760
    %7956 = vmatmul.mubr.f32.gmra.mrb[0].mxu0 %v7955
    %v7957 = vpop.f32.mrb[0].mxu0
    %v7958 = vadd.f32 %v7873, %v7957
    %v7959 = vpop.f32.mrb[0].mxu0
    %7960 = vmatprep.mubr.f32.mxu0 0.0
    %v7961 = vand.u32 %v7542, 4294901760
    %7962 = vmatmul.mubr.f32.gmra.mrb[0].mxu0 %v7961
    %v7963 = vpop.f32.mrb[0].mxu0
    %v7964 = vadd.f32 %v7881, %v7963
    %v7965 = vpop.f32.mrb[0].mxu0
    %7966 = vdwg.mxu0
    %7967 = vmatprep.subr.mxu0 0.0
    %v7968 = vand.u32 %v7013, 4294901760
    %7969 = vmatpush1.msra.mxu0 %v7968
    %7970 = vmatprep.subr.mxu0 0.0
    %v7971 = vand.u32 %v7019, 4294901760
    %7972 = vmatpush1.msra.mxu0 %v7971
    %7973 = vmatprep.subr.mxu0 0.0
    %7974 = vmatpush1.msra.mxu0 0.0
    %7975 = vmatprep.subr.mxu0 0.0
    %7976 = vmatpush1.msra.mxu0 0.0
    %7977 = vmatprep.subr.mxu0 0.0
    %7978 = vmatpush1.msra.mxu0 0.0
    %7979 = vmatprep.subr.mxu0 0.0
    %7980 = vmatpush1.msra.mxu0 0.0
    %7981 = vmatprep.subr.mxu0 0.0
    %7982 = vmatpush1.msra.mxu0 0.0
    %7983 = vmatprep.subr.mxu0 0.0
    %7984 = vmatpush1.msra.mxu0 0.0
    %7985 = vmatprep.subr.mxu0 0.0
    %7986 = vmatpush1.msra.mxu0 0.0
    %7987 = vmatprep.subr.mxu0 0.0
    %7988 = vmatpush1.msra.mxu0 0.0
    %7989 = vmatprep.subr.mxu0 0.0
    %7990 = vmatpush1.msra.mxu0 0.0
    %7991 = vmatprep.subr.mxu0 0.0
    %7992 = vmatpush1.msra.mxu0 0.0
    %7993 = vmatprep.subr.mxu0 0.0
    %7994 = vmatpush1.msra.mxu0 0.0
    %7995 = vmatprep.subr.mxu0 0.0
    %7996 = vmatpush1.msra.mxu0 0.0
    %7997 = vmatprep.subr.mxu0 0.0
    %7998 = vmatpush1.msra.mxu0 0.0
    %7999 = vmatprep.subr.mxu0 0.0
    %8000 = vmatpush1.msra.mxu0 0.0
    %8001 = vmatprep.subr.mxu0 0.0
    %8002 = vmatpush1.msra.mxu0 0.0
    %8003 = vmatprep.subr.mxu0 0.0
    %8004 = vmatpush1.msra.mxu0 0.0
    %8005 = vmatprep.subr.mxu0 0.0
    %8006 = vmatpush1.msra.mxu0 0.0
    %8007 = vmatprep.subr.mxu0 0.0
    %8008 = vmatpush1.msra.mxu0 0.0
    %8009 = vmatprep.subr.mxu0 0.0
    %8010 = vmatpush1.msra.mxu0 0.0
    %8011 = vmatprep.subr.mxu0 0.0
    %8012 = vmatpush1.msra.mxu0 0.0
    %8013 = vmatprep.subr.mxu0 0.0
    %8014 = vmatpush1.msra.mxu0 0.0
    %8015 = vmatprep.subr.mxu0 0.0
    %8016 = vmatpush1.msra.mxu0 0.0
    %8017 = vmatprep.subr.mxu0 0.0
    %8018 = vmatpush1.msra.mxu0 0.0
    %8019 = vmatprep.subr.mxu0 0.0
    %8020 = vmatpush1.msra.mxu0 0.0
    %8021 = vmatprep.subr.mxu0 0.0
    %8022 = vmatpush1.msra.mxu0 0.0
    %8023 = vmatprep.subr.mxu0 0.0
    %8024 = vmatpush1.msra.mxu0 0.0
    %8025 = vmatprep.subr.mxu0 0.0
    %8026 = vmatpush1.msra.mxu0 0.0
    %8027 = vmatprep.subr.mxu0 0.0
    %8028 = vmatpush1.msra.mxu0 0.0
    %8029 = vmatprep.subr.mxu0 0.0
    %8030 = vmatpush1.msra.mxu0 0.0
    %8031 = vmatprep.subr.mxu0 0.0
    %8032 = vmatpush1.msra.mxu0 0.0
    %8033 = vmatprep.mubr.f32.mxu0 0.0
    %v8034 = vand.u32 %v7539, 4294901760
    %8035 = vmatmul.mubr.f32.gmra.mrb[0].mxu0 %v8034
    %v8036 = vpop.f32.mrb[0].mxu0
    %v8037 = vadd.f32 %v7958, %v8036
    %v8038 = vpop.f32.mrb[0].mxu0
    %8039 = vmatprep.mubr.f32.mxu0 0.0
    %v8040 = vand.u32 %v7542, 4294901760
    %8041 = vmatmul.mubr.f32.gmra.mrb[0].mxu0 %v8040
    %v8042 = vpop.f32.mrb[0].mxu0
    %v8043 = vadd.f32 %v7964, %v8042
    %v8044 = vpop.f32.mrb[0].mxu0
    %8045 = vdwg.mxu0
    %v8046 = vsub.f32 %v5546, %v8037
    %v8047 = vsub.f32 %v5552, %v8043
    %s8048 = scalar_lea.vmem [#allocation4], 80
    %v8049 = vld [vmem:[%s8048] sm:$0xff]
    %s8050 = scalar_lea.vmem [#allocation4], 88
    %v8051 = vld [vmem:[%s8050] sm:$0xff]
    %s8052 = scalar_lea.vmem [#allocation4], 96
    %v8053 = vld [vmem:[%s8052] sm:$0xff]
    %s8054 = scalar_lea.vmem [#allocation4], 104
    %v8055 = vld [vmem:[%s8054] sm:$0xff]
    %s8056 = scalar_lea.vmem [#allocation4], 112
    %v8057 = vld [vmem:[%s8056] sm:$0xff]
    %8058 = vmatprep.subr.mxu0 0.0
    %v8059 = vand.u32 %v8046, 4294901760
    %8060 = vmatpush1.msra.mxu0 %v8059
    %8061 = vmatprep.subr.mxu0 0.0
    %v8062 = vand.u32 %v8047, 4294901760
    %8063 = vmatpush1.msra.mxu0 %v8062
    %8064 = vmatprep.subr.mxu0 0.0
    %8065 = vmatpush1.msra.mxu0 0.0
    %8066 = vmatprep.subr.mxu0 0.0
    %8067 = vmatpush1.msra.mxu0 0.0
    %8068 = vmatprep.subr.mxu0 0.0
    %8069 = vmatpush1.msra.mxu0 0.0
    %8070 = vmatprep.subr.mxu0 0.0
    %8071 = vmatpush1.msra.mxu0 0.0
    %8072 = vmatprep.subr.mxu0 0.0
    %8073 = vmatpush1.msra.mxu0 0.0
    %8074 = vmatprep.subr.mxu0 0.0
    %8075 = vmatpush1.msra.mxu0 0.0
    %8076 = vmatprep.subr.mxu0 0.0
    %8077 = vmatpush1.msra.mxu0 0.0
    %8078 = vmatprep.subr.mxu0 0.0
    %8079 = vmatpush1.msra.mxu0 0.0
    %8080 = vmatprep.subr.mxu0 0.0
    %8081 = vmatpush1.msra.mxu0 0.0
    %8082 = vmatprep.subr.mxu0 0.0
    %8083 = vmatpush1.msra.mxu0 0.0
    %8084 = vmatprep.subr.mxu0 0.0
    %8085 = vmatpush1.msra.mxu0 0.0
    %8086 = vmatprep.subr.mxu0 0.0
    %8087 = vmatpush1.msra.mxu0 0.0
    %8088 = vmatprep.subr.mxu0 0.0
    %8089 = vmatpush1.msra.mxu0 0.0
    %8090 = vmatprep.subr.mxu0 0.0
    %8091 = vmatpush1.msra.mxu0 0.0
    %8092 = vmatprep.subr.mxu0 0.0
    %8093 = vmatpush1.msra.mxu0 0.0
    %8094 = vmatprep.subr.mxu0 0.0
    %8095 = vmatpush1.msra.mxu0 0.0
    %8096 = vmatprep.subr.mxu0 0.0
    %8097 = vmatpush1.msra.mxu0 0.0
    %8098 = vmatprep.subr.mxu0 0.0
    %8099 = vmatpush1.msra.mxu0 0.0
    %8100 = vmatprep.subr.mxu0 0.0
    %8101 = vmatpush1.msra.mxu0 0.0
    %8102 = vmatprep.subr.mxu0 0.0
    %8103 = vmatpush1.msra.mxu0 0.0
    %8104 = vmatprep.subr.mxu0 0.0
    %8105 = vmatpush1.msra.mxu0 0.0
    %8106 = vmatprep.subr.mxu0 0.0
    %8107 = vmatpush1.msra.mxu0 0.0
    %8108 = vmatprep.subr.mxu0 0.0
    %8109 = vmatpush1.msra.mxu0 0.0
    %8110 = vmatprep.subr.mxu0 0.0
    %8111 = vmatpush1.msra.mxu0 0.0
    %8112 = vmatprep.subr.mxu0 0.0
    %8113 = vmatpush1.msra.mxu0 0.0
    %8114 = vmatprep.subr.mxu0 0.0
    %8115 = vmatpush1.msra.mxu0 0.0
    %8116 = vmatprep.subr.mxu0 0.0
    %8117 = vmatpush1.msra.mxu0 0.0
    %8118 = vmatprep.subr.mxu0 0.0
    %8119 = vmatpush1.msra.mxu0 0.0
    %8120 = vmatprep.subr.mxu0 0.0
    %8121 = vmatpush1.msra.mxu0 0.0
    %8122 = vmatprep.subr.mxu0 0.0
    %8123 = vmatpush1.msra.mxu0 0.0
    %8124 = vmatprep.mubr.f32.mxu0 0.0
    %v8125 = vand.u32 %v62, 4294901760
    %v8126 = vsub.f32 %v62, %v8125
    %v8127 = vand.u32 %v8126, 4294901760
    %v8128 = vsub.f32 %v8126, %v8127
    %v8129 = vand.u32 %v8128, 4294901760
    %8130 = vmatmul.mubr.f32.gmra.mrb[0].mxu0 %v8129
    %v8131 = vpop.f32.mrb[0].mxu0
    %v8132 = vadd.f32 0.0, %v8131
    %v8133 = vpop.f32.mrb[0].mxu0
    %8134 = vmatprep.mubr.f32.mxu0 0.0
    %v8135 = vand.u32 %v65, 4294901760
    %v8136 = vsub.f32 %v65, %v8135
    %v8137 = vand.u32 %v8136, 4294901760
    %v8138 = vsub.f32 %v8136, %v8137
    %v8139 = vand.u32 %v8138, 4294901760
    %8140 = vmatmul.mubr.f32.gmra.mrb[0].mxu0 %v8139
    %v8141 = vpop.f32.mrb[0].mxu0
    %v8142 = vadd.f32 0.0, %v8141
    %v8143 = vpop.f32.mrb[0].mxu0
    %8144 = vdwg.mxu0
    %8145 = vmatprep.subr.mxu0 0.0
    %v8146 = vand.u32 %v8046, 4294901760
    %v8147 = vsub.f32 %v8046, %v8146
    %v8148 = vand.u32 %v8147, 4294901760
    %v8149 = vsub.f32 %v8147, %v8148
    %v8150 = vand.u32 %v8149, 4294901760
    %8151 = vmatpush1.msra.mxu0 %v8150
    %8152 = vmatprep.subr.mxu0 0.0
    %v8153 = vand.u32 %v8047, 4294901760
    %v8154 = vsub.f32 %v8047, %v8153
    %v8155 = vand.u32 %v8154, 4294901760
    %v8156 = vsub.f32 %v8154, %v8155
    %v8157 = vand.u32 %v8156, 4294901760
    %8158 = vmatpush1.msra.mxu0 %v8157
    %8159 = vmatprep.subr.mxu0 0.0
    %8160 = vmatpush1.msra.mxu0 0.0
    %8161 = vmatprep.subr.mxu0 0.0
    %8162 = vmatpush1.msra.mxu0 0.0
    %8163 = vmatprep.subr.mxu0 0.0
    %8164 = vmatpush1.msra.mxu0 0.0
    %8165 = vmatprep.subr.mxu0 0.0
    %8166 = vmatpush1.msra.mxu0 0.0
    %8167 = vmatprep.subr.mxu0 0.0
    %8168 = vmatpush1.msra.mxu0 0.0
    %8169 = vmatprep.subr.mxu0 0.0
    %8170 = vmatpush1.msra.mxu0 0.0
    %8171 = vmatprep.subr.mxu0 0.0
    %8172 = vmatpush1.msra.mxu0 0.0
    %8173 = vmatprep.subr.mxu0 0.0
    %8174 = vmatpush1.msra.mxu0 0.0
    %8175 = vmatprep.subr.mxu0 0.0
    %8176 = vmatpush1.msra.mxu0 0.0
    %8177 = vmatprep.subr.mxu0 0.0
    %8178 = vmatpush1.msra.mxu0 0.0
    %8179 = vmatprep.subr.mxu0 0.0
    %8180 = vmatpush1.msra.mxu0 0.0
    %8181 = vmatprep.subr.mxu0 0.0
    %8182 = vmatpush1.msra.mxu0 0.0
    %8183 = vmatprep.subr.mxu0 0.0
    %8184 = vmatpush1.msra.mxu0 0.0
    %8185 = vmatprep.subr.mxu0 0.0
    %8186 = vmatpush1.msra.mxu0 0.0
    %8187 = vmatprep.subr.mxu0 0.0
    %8188 = vmatpush1.msra.mxu0 0.0
    %8189 = vmatprep.subr.mxu0 0.0
    %8190 = vmatpush1.msra.mxu0 0.0
    %8191 = vmatprep.subr.mxu0 0.0
    %8192 = vmatpush1.msra.mxu0 0.0
    %8193 = vmatprep.subr.mxu0 0.0
    %8194 = vmatpush1.msra.mxu0 0.0
    %8195 = vmatprep.subr.mxu0 0.0
    %8196 = vmatpush1.msra.mxu0 0.0
    %8197 = vmatprep.subr.mxu0 0.0
    %8198 = vmatpush1.msra.mxu0 0.0
    %8199 = vmatprep.subr.mxu0 0.0
    %8200 = vmatpush1.msra.mxu0 0.0
    %8201 = vmatprep.subr.mxu0 0.0
    %8202 = vmatpush1.msra.mxu0 0.0
    %8203 = vmatprep.subr.mxu0 0.0
    %8204 = vmatpush1.msra.mxu0 0.0
    %8205 = vmatprep.subr.mxu0 0.0
    %8206 = vmatpush1.msra.mxu0 0.0
    %8207 = vmatprep.subr.mxu0 0.0
    %8208 = vmatpush1.msra.mxu0 0.0
    %8209 = vmatprep.subr.mxu0 0.0
    %8210 = vmatpush1.msra.mxu0 0.0
    %8211 = vmatprep.subr.mxu0 0.0
    %8212 = vmatpush1.msra.mxu0 0.0
    %8213 = vmatprep.subr.mxu0 0.0
    %8214 = vmatpush1.msra.mxu0 0.0
    %8215 = vmatprep.subr.mxu0 0.0
    %8216 = vmatpush1.msra.mxu0 0.0
    %8217 = vmatprep.subr.mxu0 0.0
    %8218 = vmatpush1.msra.mxu0 0.0
    %8219 = vmatprep.mubr.f32.mxu0 0.0
    %v8220 = vand.u32 %v62, 4294901760
    %8221 = vmatmul.mubr.f32.gmra.mrb[0].mxu0 %v8220
    %v8222 = vpop.f32.mrb[0].mxu0
    %v8223 = vadd.f32 %v8132, %v8222
    %v8224 = vpop.f32.mrb[0].mxu0
    %8225 = vmatprep.mubr.f32.mxu0 0.0
    %v8226 = vand.u32 %v65, 4294901760
    %8227 = vmatmul.mubr.f32.gmra.mrb[0].mxu0 %v8226
    %v8228 = vpop.f32.mrb[0].mxu0
    %v8229 = vadd.f32 %v8142, %v8228
    %v8230 = vpop.f32.mrb[0].mxu0
    %8231 = vdwg.mxu0
    %8232 = vmatprep.subr.mxu0 0.0
    %v8233 = vand.u32 %v8046, 4294901760
    %v8234 = vsub.f32 %v8046, %v8233
    %8235 = vmatpush1.msra.mxu0 %v8234
    %8236 = vmatprep.subr.mxu0 0.0
    %v8237 = vand.u32 %v8047, 4294901760
    %v8238 = vsub.f32 %v8047, %v8237
    %8239 = vmatpush1.msra.mxu0 %v8238
    %8240 = vmatprep.subr.mxu0 0.0
    %8241 = vmatpush1.msra.mxu0 0.0
    %8242 = vmatprep.subr.mxu0 0.0
    %8243 = vmatpush1.msra.mxu0 0.0
    %8244 = vmatprep.subr.mxu0 0.0
    %8245 = vmatpush1.msra.mxu0 0.0
    %8246 = vmatprep.subr.mxu0 0.0
    %8247 = vmatpush1.msra.mxu0 0.0
    %8248 = vmatprep.subr.mxu0 0.0
    %8249 = vmatpush1.msra.mxu0 0.0
    %8250 = vmatprep.subr.mxu0 0.0
    %8251 = vmatpush1.msra.mxu0 0.0
    %8252 = vmatprep.subr.mxu0 0.0
    %8253 = vmatpush1.msra.mxu0 0.0
    %8254 = vmatprep.subr.mxu0 0.0
    %8255 = vmatpush1.msra.mxu0 0.0
    %8256 = vmatprep.subr.mxu0 0.0
    %8257 = vmatpush1.msra.mxu0 0.0
    %8258 = vmatprep.subr.mxu0 0.0
    %8259 = vmatpush1.msra.mxu0 0.0
    %8260 = vmatprep.subr.mxu0 0.0
    %8261 = vmatpush1.msra.mxu0 0.0
    %8262 = vmatprep.subr.mxu0 0.0
    %8263 = vmatpush1.msra.mxu0 0.0
    %8264 = vmatprep.subr.mxu0 0.0
    %8265 = vmatpush1.msra.mxu0 0.0
    %8266 = vmatprep.subr.mxu0 0.0
    %8267 = vmatpush1.msra.mxu0 0.0
    %8268 = vmatprep.subr.mxu0 0.0
    %8269 = vmatpush1.msra.mxu0 0.0
    %8270 = vmatprep.subr.mxu0 0.0
    %8271 = vmatpush1.msra.mxu0 0.0
    %8272 = vmatprep.subr.mxu0 0.0
    %8273 = vmatpush1.msra.mxu0 0.0
    %8274 = vmatprep.subr.mxu0 0.0
    %8275 = vmatpush1.msra.mxu0 0.0
    %8276 = vmatprep.subr.mxu0 0.0
    %8277 = vmatpush1.msra.mxu0 0.0
    %8278 = vmatprep.subr.mxu0 0.0
    %8279 = vmatpush1.msra.mxu0 0.0
    %8280 = vmatprep.subr.mxu0 0.0
    %8281 = vmatpush1.msra.mxu0 0.0
    %8282 = vmatprep.subr.mxu0 0.0
    %8283 = vmatpush1.msra.mxu0 0.0
    %8284 = vmatprep.subr.mxu0 0.0
    %8285 = vmatpush1.msra.mxu0 0.0
    %8286 = vmatprep.subr.mxu0 0.0
    %8287 = vmatpush1.msra.mxu0 0.0
    %8288 = vmatprep.subr.mxu0 0.0
    %8289 = vmatpush1.msra.mxu0 0.0
    %8290 = vmatprep.subr.mxu0 0.0
    %8291 = vmatpush1.msra.mxu0 0.0
    %8292 = vmatprep.subr.mxu0 0.0
    %8293 = vmatpush1.msra.mxu0 0.0
    %8294 = vmatprep.subr.mxu0 0.0
    %8295 = vmatpush1.msra.mxu0 0.0
    %8296 = vmatprep.subr.mxu0 0.0
    %8297 = vmatpush1.msra.mxu0 0.0
    %8298 = vmatprep.subr.mxu0 0.0
    %8299 = vmatpush1.msra.mxu0 0.0
    %8300 = vmatprep.mubr.f32.mxu0 0.0
    %v8301 = vand.u32 %v62, 4294901760
    %v8302 = vsub.f32 %v62, %v8301
    %8303 = vmatmul.mubr.f32.gmra.mrb[0].mxu0 %v8302
    %v8304 = vpop.f32.mrb[0].mxu0
    %v8305 = vadd.f32 %v8223, %v8304
    %v8306 = vpop.f32.mrb[0].mxu0
    %8307 = vmatprep.mubr.f32.mxu0 0.0
    %v8308 = vand.u32 %v65, 4294901760
    %v8309 = vsub.f32 %v65, %v8308
    %8310 = vmatmul.mubr.f32.gmra.mrb[0].mxu0 %v8309
    %v8311 = vpop.f32.mrb[0].mxu0
    %v8312 = vadd.f32 %v8229, %v8311
    %v8313 = vpop.f32.mrb[0].mxu0
    %8314 = vdwg.mxu0
    %8315 = vmatprep.subr.mxu0 0.0
    %v8316 = vand.u32 %v8046, 4294901760
    %8317 = vmatpush1.msra.mxu0 %v8316
    %8318 = vmatprep.subr.mxu0 0.0
    %v8319 = vand.u32 %v8047, 4294901760
    %8320 = vmatpush1.msra.mxu0 %v8319
    %8321 = vmatprep.subr.mxu0 0.0
    %8322 = vmatpush1.msra.mxu0 0.0
    %8323 = vmatprep.subr.mxu0 0.0
    %8324 = vmatpush1.msra.mxu0 0.0
    %8325 = vmatprep.subr.mxu0 0.0
    %8326 = vmatpush1.msra.mxu0 0.0
    %8327 = vmatprep.subr.mxu0 0.0
    %8328 = vmatpush1.msra.mxu0 0.0
    %8329 = vmatprep.subr.mxu0 0.0
    %8330 = vmatpush1.msra.mxu0 0.0
    %8331 = vmatprep.subr.mxu0 0.0
    %8332 = vmatpush1.msra.mxu0 0.0
    %8333 = vmatprep.subr.mxu0 0.0
    %8334 = vmatpush1.msra.mxu0 0.0
    %8335 = vmatprep.subr.mxu0 0.0
    %8336 = vmatpush1.msra.mxu0 0.0
    %8337 = vmatprep.subr.mxu0 0.0
    %8338 = vmatpush1.msra.mxu0 0.0
    %8339 = vmatprep.subr.mxu0 0.0
    %8340 = vmatpush1.msra.mxu0 0.0
    %8341 = vmatprep.subr.mxu0 0.0
    %8342 = vmatpush1.msra.mxu0 0.0
    %8343 = vmatprep.subr.mxu0 0.0
    %8344 = vmatpush1.msra.mxu0 0.0
    %8345 = vmatprep.subr.mxu0 0.0
    %8346 = vmatpush1.msra.mxu0 0.0
    %8347 = vmatprep.subr.mxu0 0.0
    %8348 = vmatpush1.msra.mxu0 0.0
    %8349 = vmatprep.subr.mxu0 0.0
    %8350 = vmatpush1.msra.mxu0 0.0
    %8351 = vmatprep.subr.mxu0 0.0
    %8352 = vmatpush1.msra.mxu0 0.0
    %8353 = vmatprep.subr.mxu0 0.0
    %8354 = vmatpush1.msra.mxu0 0.0
    %8355 = vmatprep.subr.mxu0 0.0
    %8356 = vmatpush1.msra.mxu0 0.0
    %8357 = vmatprep.subr.mxu0 0.0
    %8358 = vmatpush1.msra.mxu0 0.0
    %8359 = vmatprep.subr.mxu0 0.0
    %8360 = vmatpush1.msra.mxu0 0.0
    %8361 = vmatprep.subr.mxu0 0.0
    %8362 = vmatpush1.msra.mxu0 0.0
    %8363 = vmatprep.subr.mxu0 0.0
    %8364 = vmatpush1.msra.mxu0 0.0
    %8365 = vmatprep.subr.mxu0 0.0
    %8366 = vmatpush1.msra.mxu0 0.0
    %8367 = vmatprep.subr.mxu0 0.0
    %8368 = vmatpush1.msra.mxu0 0.0
    %8369 = vmatprep.subr.mxu0 0.0
    %8370 = vmatpush1.msra.mxu0 0.0
    %8371 = vmatprep.subr.mxu0 0.0
    %8372 = vmatpush1.msra.mxu0 0.0
    %8373 = vmatprep.subr.mxu0 0.0
    %8374 = vmatpush1.msra.mxu0 0.0
    %8375 = vmatprep.subr.mxu0 0.0
    %8376 = vmatpush1.msra.mxu0 0.0
    %8377 = vmatprep.subr.mxu0 0.0
    %8378 = vmatpush1.msra.mxu0 0.0
    %8379 = vmatprep.subr.mxu0 0.0
    %8380 = vmatpush1.msra.mxu0 0.0
    %8381 = vmatprep.mubr.f32.mxu0 0.0
    %v8382 = vand.u32 %v62, 4294901760
    %v8383 = vsub.f32 %v62, %v8382
    %v8384 = vand.u32 %v8383, 4294901760
    %8385 = vmatmul.mubr.f32.gmra.mrb[0].mxu0 %v8384
    %v8386 = vpop.f32.mrb[0].mxu0
    %v8387 = vadd.f32 %v8305, %v8386
    %v8388 = vpop.f32.mrb[0].mxu0
    %8389 = vmatprep.mubr.f32.mxu0 0.0
    %v8390 = vand.u32 %v65, 4294901760
    %v8391 = vsub.f32 %v65, %v8390
    %v8392 = vand.u32 %v8391, 4294901760
    %8393 = vmatmul.mubr.f32.gmra.mrb[0].mxu0 %v8392
    %v8394 = vpop.f32.mrb[0].mxu0
    %v8395 = vadd.f32 %v8312, %v8394
    %v8396 = vpop.f32.mrb[0].mxu0
    %8397 = vdwg.mxu0
    %8398 = vmatprep.subr.mxu0 0.0
    %v8399 = vand.u32 %v8046, 4294901760
    %v8400 = vsub.f32 %v8046, %v8399
    %v8401 = vand.u32 %v8400, 4294901760
    %8402 = vmatpush1.msra.mxu0 %v8401
    %8403 = vmatprep.subr.mxu0 0.0
    %v8404 = vand.u32 %v8047, 4294901760
    %v8405 = vsub.f32 %v8047, %v8404
    %v8406 = vand.u32 %v8405, 4294901760
    %8407 = vmatpush1.msra.mxu0 %v8406
    %8408 = vmatprep.subr.mxu0 0.0
    %8409 = vmatpush1.msra.mxu0 0.0
    %8410 = vmatprep.subr.mxu0 0.0
    %8411 = vmatpush1.msra.mxu0 0.0
    %8412 = vmatprep.subr.mxu0 0.0
    %8413 = vmatpush1.msra.mxu0 0.0
    %8414 = vmatprep.subr.mxu0 0.0
    %8415 = vmatpush1.msra.mxu0 0.0
    %8416 = vmatprep.subr.mxu0 0.0
    %8417 = vmatpush1.msra.mxu0 0.0
    %8418 = vmatprep.subr.mxu0 0.0
    %8419 = vmatpush1.msra.mxu0 0.0
    %8420 = vmatprep.subr.mxu0 0.0
    %8421 = vmatpush1.msra.mxu0 0.0
    %8422 = vmatprep.subr.mxu0 0.0
    %8423 = vmatpush1.msra.mxu0 0.0
    %8424 = vmatprep.subr.mxu0 0.0
    %8425 = vmatpush1.msra.mxu0 0.0
    %8426 = vmatprep.subr.mxu0 0.0
    %8427 = vmatpush1.msra.mxu0 0.0
    %8428 = vmatprep.subr.mxu0 0.0
    %8429 = vmatpush1.msra.mxu0 0.0
    %8430 = vmatprep.subr.mxu0 0.0
    %8431 = vmatpush1.msra.mxu0 0.0
    %8432 = vmatprep.subr.mxu0 0.0
    %8433 = vmatpush1.msra.mxu0 0.0
    %8434 = vmatprep.subr.mxu0 0.0
    %8435 = vmatpush1.msra.mxu0 0.0
    %8436 = vmatprep.subr.mxu0 0.0
    %8437 = vmatpush1.msra.mxu0 0.0
    %8438 = vmatprep.subr.mxu0 0.0
    %8439 = vmatpush1.msra.mxu0 0.0
    %8440 = vmatprep.subr.mxu0 0.0
    %8441 = vmatpush1.msra.mxu0 0.0
    %8442 = vmatprep.subr.mxu0 0.0
    %8443 = vmatpush1.msra.mxu0 0.0
    %8444 = vmatprep.subr.mxu0 0.0
    %8445 = vmatpush1.msra.mxu0 0.0
    %8446 = vmatprep.subr.mxu0 0.0
    %8447 = vmatpush1.msra.mxu0 0.0
    %8448 = vmatprep.subr.mxu0 0.0
    %8449 = vmatpush1.msra.mxu0 0.0
    %8450 = vmatprep.subr.mxu0 0.0
    %8451 = vmatpush1.msra.mxu0 0.0
    %8452 = vmatprep.subr.mxu0 0.0
    %8453 = vmatpush1.msra.mxu0 0.0
    %8454 = vmatprep.subr.mxu0 0.0
    %8455 = vmatpush1.msra.mxu0 0.0
    %8456 = vmatprep.subr.mxu0 0.0
    %8457 = vmatpush1.msra.mxu0 0.0
    %8458 = vmatprep.subr.mxu0 0.0
    %8459 = vmatpush1.msra.mxu0 0.0
    %8460 = vmatprep.subr.mxu0 0.0
    %8461 = vmatpush1.msra.mxu0 0.0
    %8462 = vmatprep.subr.mxu0 0.0
    %8463 = vmatpush1.msra.mxu0 0.0
    %8464 = vmatprep.subr.mxu0 0.0
    %8465 = vmatpush1.msra.mxu0 0.0
    %8466 = vmatprep.subr.mxu0 0.0
    %8467 = vmatpush1.msra.mxu0 0.0
    %8468 = vmatprep.mubr.f32.mxu0 0.0
    %v8469 = vand.u32 %v62, 4294901760
    %8470 = vmatmul.mubr.f32.gmra.mrb[0].mxu0 %v8469
    %v8471 = vpop.f32.mrb[0].mxu0
    %v8472 = vadd.f32 %v8387, %v8471
    %v8473 = vpop.f32.mrb[0].mxu0
    %8474 = vmatprep.mubr.f32.mxu0 0.0
    %v8475 = vand.u32 %v65, 4294901760
    %8476 = vmatmul.mubr.f32.gmra.mrb[0].mxu0 %v8475
    %v8477 = vpop.f32.mrb[0].mxu0
    %v8478 = vadd.f32 %v8395, %v8477
    %v8479 = vpop.f32.mrb[0].mxu0
    %8480 = vdwg.mxu0
    %8481 = vmatprep.subr.mxu0 0.0
    %v8482 = vand.u32 %v8046, 4294901760
    %8483 = vmatpush1.msra.mxu0 %v8482
    %8484 = vmatprep.subr.mxu0 0.0
    %v8485 = vand.u32 %v8047, 4294901760
    %8486 = vmatpush1.msra.mxu0 %v8485
    %8487 = vmatprep.subr.mxu0 0.0
    %8488 = vmatpush1.msra.mxu0 0.0
    %8489 = vmatprep.subr.mxu0 0.0
    %8490 = vmatpush1.msra.mxu0 0.0
    %8491 = vmatprep.subr.mxu0 0.0
    %8492 = vmatpush1.msra.mxu0 0.0
    %8493 = vmatprep.subr.mxu0 0.0
    %8494 = vmatpush1.msra.mxu0 0.0
    %8495 = vmatprep.subr.mxu0 0.0
    %8496 = vmatpush1.msra.mxu0 0.0
    %8497 = vmatprep.subr.mxu0 0.0
    %8498 = vmatpush1.msra.mxu0 0.0
    %8499 = vmatprep.subr.mxu0 0.0
    %8500 = vmatpush1.msra.mxu0 0.0
    %8501 = vmatprep.subr.mxu0 0.0
    %8502 = vmatpush1.msra.mxu0 0.0
    %8503 = vmatprep.subr.mxu0 0.0
    %8504 = vmatpush1.msra.mxu0 0.0
    %8505 = vmatprep.subr.mxu0 0.0
    %8506 = vmatpush1.msra.mxu0 0.0
    %8507 = vmatprep.subr.mxu0 0.0
    %8508 = vmatpush1.msra.mxu0 0.0
    %8509 = vmatprep.subr.mxu0 0.0
    %8510 = vmatpush1.msra.mxu0 0.0
    %8511 = vmatprep.subr.mxu0 0.0
    %8512 = vmatpush1.msra.mxu0 0.0
    %8513 = vmatprep.subr.mxu0 0.0
    %8514 = vmatpush1.msra.mxu0 0.0
    %8515 = vmatprep.subr.mxu0 0.0
    %8516 = vmatpush1.msra.mxu0 0.0
    %8517 = vmatprep.subr.mxu0 0.0
    %8518 = vmatpush1.msra.mxu0 0.0
    %8519 = vmatprep.subr.mxu0 0.0
    %8520 = vmatpush1.msra.mxu0 0.0
    %8521 = vmatprep.subr.mxu0 0.0
    %8522 = vmatpush1.msra.mxu0 0.0
    %8523 = vmatprep.subr.mxu0 0.0
    %8524 = vmatpush1.msra.mxu0 0.0
    %8525 = vmatprep.subr.mxu0 0.0
    %8526 = vmatpush1.msra.mxu0 0.0
    %8527 = vmatprep.subr.mxu0 0.0
    %8528 = vmatpush1.msra.mxu0 0.0
    %8529 = vmatprep.subr.mxu0 0.0
    %8530 = vmatpush1.msra.mxu0 0.0
    %8531 = vmatprep.subr.mxu0 0.0
    %8532 = vmatpush1.msra.mxu0 0.0
    %8533 = vmatprep.subr.mxu0 0.0
    %8534 = vmatpush1.msra.mxu0 0.0
    %8535 = vmatprep.subr.mxu0 0.0
    %8536 = vmatpush1.msra.mxu0 0.0
    %8537 = vmatprep.subr.mxu0 0.0
    %8538 = vmatpush1.msra.mxu0 0.0
    %8539 = vmatprep.subr.mxu0 0.0
    %8540 = vmatpush1.msra.mxu0 0.0
    %8541 = vmatprep.subr.mxu0 0.0
    %8542 = vmatpush1.msra.mxu0 0.0
    %8543 = vmatprep.subr.mxu0 0.0
    %8544 = vmatpush1.msra.mxu0 0.0
    %8545 = vmatprep.subr.mxu0 0.0
    %8546 = vmatpush1.msra.mxu0 0.0
    %8547 = vmatprep.mubr.f32.mxu0 0.0
    %v8548 = vand.u32 %v62, 4294901760
    %8549 = vmatmul.mubr.f32.gmra.mrb[0].mxu0 %v8548
    %v8550 = vpop.f32.mrb[0].mxu0
    %v8551 = vadd.f32 %v8472, %v8550
    %v8552 = vpop.f32.mrb[0].mxu0
    %8553 = vmatprep.mubr.f32.mxu0 0.0
    %v8554 = vand.u32 %v65, 4294901760
    %8555 = vmatmul.mubr.f32.gmra.mrb[0].mxu0 %v8554
    %v8556 = vpop.f32.mrb[0].mxu0
    %v8557 = vadd.f32 %v8478, %v8556
    %v8558 = vpop.f32.mrb[0].mxu0
    %8559 = vdwg.mxu0
    %v8561 = vsel %vm569, %v8551, 0
    %v8564 = vsel %vm569, %v8557, 0
    %8566 = vmatprep.subr.mxu0 0.0
    %v8567 = vand.u32 %v8051, 4294901760
    %8568 = vmatpush1.msra.mxu0 %v8567
    %8569 = vmatprep.subr.mxu0 0.0
    %8570 = vmatpush1.msra.mxu0 0.0
    %8571 = vmatprep.subr.mxu0 0.0
    %8572 = vmatpush1.msra.mxu0 0.0
    %8573 = vmatprep.subr.mxu0 0.0
    %8574 = vmatpush1.msra.mxu0 0.0
    %8575 = vmatprep.subr.mxu0 0.0
    %8576 = vmatpush1.msra.mxu0 0.0
    %8577 = vmatprep.subr.mxu0 0.0
    %8578 = vmatpush1.msra.mxu0 0.0
    %8579 = vmatprep.subr.mxu0 0.0
    %8580 = vmatpush1.msra.mxu0 0.0
    %8581 = vmatprep.subr.mxu0 0.0
    %8582 = vmatpush1.msra.mxu0 0.0
    %8583 = vmatprep.subr.mxu0 0.0
    %8584 = vmatpush1.msra.mxu0 0.0
    %8585 = vmatprep.subr.mxu0 0.0
    %8586 = vmatpush1.msra.mxu0 0.0
    %8587 = vmatprep.subr.mxu0 0.0
    %8588 = vmatpush1.msra.mxu0 0.0
    %8589 = vmatprep.subr.mxu0 0.0
    %8590 = vmatpush1.msra.mxu0 0.0
    %8591 = vmatprep.subr.mxu0 0.0
    %8592 = vmatpush1.msra.mxu0 0.0
    %8593 = vmatprep.subr.mxu0 0.0
    %8594 = vmatpush1.msra.mxu0 0.0
    %8595 = vmatprep.subr.mxu0 0.0
    %8596 = vmatpush1.msra.mxu0 0.0
    %8597 = vmatprep.subr.mxu0 0.0
    %8598 = vmatpush1.msra.mxu0 0.0
    %8599 = vmatprep.subr.mxu0 0.0
    %8600 = vmatpush1.msra.mxu0 0.0
    %8601 = vmatprep.subr.mxu0 0.0
    %8602 = vmatpush1.msra.mxu0 0.0
    %8603 = vmatprep.subr.mxu0 0.0
    %8604 = vmatpush1.msra.mxu0 0.0
    %8605 = vmatprep.subr.mxu0 0.0
    %8606 = vmatpush1.msra.mxu0 0.0
    %8607 = vmatprep.subr.mxu0 0.0
    %8608 = vmatpush1.msra.mxu0 0.0
    %8609 = vmatprep.subr.mxu0 0.0
    %8610 = vmatpush1.msra.mxu0 0.0
    %8611 = vmatprep.subr.mxu0 0.0
    %8612 = vmatpush1.msra.mxu0 0.0
    %8613 = vmatprep.subr.mxu0 0.0
    %8614 = vmatpush1.msra.mxu0 0.0
    %8615 = vmatprep.subr.mxu0 0.0
    %8616 = vmatpush1.msra.mxu0 0.0
    %8617 = vmatprep.subr.mxu0 0.0
    %8618 = vmatpush1.msra.mxu0 0.0
    %8619 = vmatprep.subr.mxu0 0.0
    %8620 = vmatpush1.msra.mxu0 0.0
    %8621 = vmatprep.subr.mxu0 0.0
    %8622 = vmatpush1.msra.mxu0 0.0
    %8623 = vmatprep.subr.mxu0 0.0
    %8624 = vmatpush1.msra.mxu0 0.0
    %8625 = vmatprep.subr.mxu0 0.0
    %8626 = vmatpush1.msra.mxu0 0.0
    %8627 = vmatprep.subr.mxu0 0.0
    %8628 = vmatpush1.msra.mxu0 0.0
    %8629 = vmatprep.subr.mxu0 0.0
    %8630 = vmatpush1.msra.mxu0 0.0
    %8631 = vmatprep.mubr.f32.mxu0 0.0
    %v8632 = vand.u32 %v8561, 4294901760
    %v8633 = vsub.f32 %v8561, %v8632
    %v8634 = vand.u32 %v8633, 4294901760
    %v8635 = vsub.f32 %v8633, %v8634
    %v8636 = vand.u32 %v8635, 4294901760
    %8637 = vmatmul.mubr.f32.gmra.mrb[0].mxu0 %v8636
    %v8638 = vpop.f32.mrb[0].mxu0
    %v8639 = vadd.f32 0.0, %v8638
    %v8640 = vpop.f32.mrb[0].mxu0
    %8641 = vmatprep.mubr.f32.mxu0 0.0
    %v8642 = vand.u32 %v8564, 4294901760
    %v8643 = vsub.f32 %v8564, %v8642
    %v8644 = vand.u32 %v8643, 4294901760
    %v8645 = vsub.f32 %v8643, %v8644
    %v8646 = vand.u32 %v8645, 4294901760
    %8647 = vmatmul.mubr.f32.gmra.mrb[0].mxu0 %v8646
    %v8648 = vpop.f32.mrb[0].mxu0
    %v8649 = vadd.f32 0.0, %v8648
    %v8650 = vpop.f32.mrb[0].mxu0
    %8651 = vdwg.mxu0
    %8652 = vmatprep.subr.mxu0 0.0
    %v8653 = vand.u32 %v8051, 4294901760
    %v8654 = vsub.f32 %v8051, %v8653
    %v8655 = vand.u32 %v8654, 4294901760
    %v8656 = vsub.f32 %v8654, %v8655
    %v8657 = vand.u32 %v8656, 4294901760
    %8658 = vmatpush1.msra.mxu0 %v8657
    %8659 = vmatprep.subr.mxu0 0.0
    %8660 = vmatpush1.msra.mxu0 0.0
    %8661 = vmatprep.subr.mxu0 0.0
    %8662 = vmatpush1.msra.mxu0 0.0
    %8663 = vmatprep.subr.mxu0 0.0
    %8664 = vmatpush1.msra.mxu0 0.0
    %8665 = vmatprep.subr.mxu0 0.0
    %8666 = vmatpush1.msra.mxu0 0.0
    %8667 = vmatprep.subr.mxu0 0.0
    %8668 = vmatpush1.msra.mxu0 0.0
    %8669 = vmatprep.subr.mxu0 0.0
    %8670 = vmatpush1.msra.mxu0 0.0
    %8671 = vmatprep.subr.mxu0 0.0
    %8672 = vmatpush1.msra.mxu0 0.0
    %8673 = vmatprep.subr.mxu0 0.0
    %8674 = vmatpush1.msra.mxu0 0.0
    %8675 = vmatprep.subr.mxu0 0.0
    %8676 = vmatpush1.msra.mxu0 0.0
    %8677 = vmatprep.subr.mxu0 0.0
    %8678 = vmatpush1.msra.mxu0 0.0
    %8679 = vmatprep.subr.mxu0 0.0
    %8680 = vmatpush1.msra.mxu0 0.0
    %8681 = vmatprep.subr.mxu0 0.0
    %8682 = vmatpush1.msra.mxu0 0.0
    %8683 = vmatprep.subr.mxu0 0.0
    %8684 = vmatpush1.msra.mxu0 0.0
    %8685 = vmatprep.subr.mxu0 0.0
    %8686 = vmatpush1.msra.mxu0 0.0
    %8687 = vmatprep.subr.mxu0 0.0
    %8688 = vmatpush1.msra.mxu0 0.0
    %8689 = vmatprep.subr.mxu0 0.0
    %8690 = vmatpush1.msra.mxu0 0.0
    %8691 = vmatprep.subr.mxu0 0.0
    %8692 = vmatpush1.msra.mxu0 0.0
    %8693 = vmatprep.subr.mxu0 0.0
    %8694 = vmatpush1.msra.mxu0 0.0
    %8695 = vmatprep.subr.mxu0 0.0
    %8696 = vmatpush1.msra.mxu0 0.0
    %8697 = vmatprep.subr.mxu0 0.0
    %8698 = vmatpush1.msra.mxu0 0.0
    %8699 = vmatprep.subr.mxu0 0.0
    %8700 = vmatpush1.msra.mxu0 0.0
    %8701 = vmatprep.subr.mxu0 0.0
    %8702 = vmatpush1.msra.mxu0 0.0
    %8703 = vmatprep.subr.mxu0 0.0
    %8704 = vmatpush1.msra.mxu0 0.0
    %8705 = vmatprep.subr.mxu0 0.0
    %8706 = vmatpush1.msra.mxu0 0.0
    %8707 = vmatprep.subr.mxu0 0.0
    %8708 = vmatpush1.msra.mxu0 0.0
    %8709 = vmatprep.subr.mxu0 0.0
    %8710 = vmatpush1.msra.mxu0 0.0
    %8711 = vmatprep.subr.mxu0 0.0
    %8712 = vmatpush1.msra.mxu0 0.0
    %8713 = vmatprep.subr.mxu0 0.0
    %8714 = vmatpush1.msra.mxu0 0.0
    %8715 = vmatprep.subr.mxu0 0.0
    %8716 = vmatpush1.msra.mxu0 0.0
    %8717 = vmatprep.subr.mxu0 0.0
    %8718 = vmatpush1.msra.mxu0 0.0
    %8719 = vmatprep.subr.mxu0 0.0
    %8720 = vmatpush1.msra.mxu0 0.0
    %8721 = vmatprep.mubr.f32.mxu0 0.0
    %v8722 = vand.u32 %v8561, 4294901760
    %8723 = vmatmul.mubr.f32.gmra.mrb[0].mxu0 %v8722
    %v8724 = vpop.f32.mrb[0].mxu0
    %v8725 = vadd.f32 %v8639, %v8724
    %v8726 = vpop.f32.mrb[0].mxu0
    %8727 = vmatprep.mubr.f32.mxu0 0.0
    %v8728 = vand.u32 %v8564, 4294901760
    %8729 = vmatmul.mubr.f32.gmra.mrb[0].mxu0 %v8728
    %v8730 = vpop.f32.mrb[0].mxu0
    %v8731 = vadd.f32 %v8649, %v8730
    %v8732 = vpop.f32.mrb[0].mxu0
    %8733 = vdwg.mxu0
    %8734 = vmatprep.subr.mxu0 0.0
    %v8735 = vand.u32 %v8051, 4294901760
    %v8736 = vsub.f32 %v8051, %v8735
    %8737 = vmatpush1.msra.mxu0 %v8736
    %8738 = vmatprep.subr.mxu0 0.0
    %8739 = vmatpush1.msra.mxu0 0.0
    %8740 = vmatprep.subr.mxu0 0.0
    %8741 = vmatpush1.msra.mxu0 0.0
    %8742 = vmatprep.subr.mxu0 0.0
    %8743 = vmatpush1.msra.mxu0 0.0
    %8744 = vmatprep.subr.mxu0 0.0
    %8745 = vmatpush1.msra.mxu0 0.0
    %8746 = vmatprep.subr.mxu0 0.0
    %8747 = vmatpush1.msra.mxu0 0.0
    %8748 = vmatprep.subr.mxu0 0.0
    %8749 = vmatpush1.msra.mxu0 0.0
    %8750 = vmatprep.subr.mxu0 0.0
    %8751 = vmatpush1.msra.mxu0 0.0
    %8752 = vmatprep.subr.mxu0 0.0
    %8753 = vmatpush1.msra.mxu0 0.0
    %8754 = vmatprep.subr.mxu0 0.0
    %8755 = vmatpush1.msra.mxu0 0.0
    %8756 = vmatprep.subr.mxu0 0.0
    %8757 = vmatpush1.msra.mxu0 0.0
    %8758 = vmatprep.subr.mxu0 0.0
    %8759 = vmatpush1.msra.mxu0 0.0
    %8760 = vmatprep.subr.mxu0 0.0
    %8761 = vmatpush1.msra.mxu0 0.0
    %8762 = vmatprep.subr.mxu0 0.0
    %8763 = vmatpush1.msra.mxu0 0.0
    %8764 = vmatprep.subr.mxu0 0.0
    %8765 = vmatpush1.msra.mxu0 0.0
    %8766 = vmatprep.subr.mxu0 0.0
    %8767 = vmatpush1.msra.mxu0 0.0
    %8768 = vmatprep.subr.mxu0 0.0
    %8769 = vmatpush1.msra.mxu0 0.0
    %8770 = vmatprep.subr.mxu0 0.0
    %8771 = vmatpush1.msra.mxu0 0.0
    %8772 = vmatprep.subr.mxu0 0.0
    %8773 = vmatpush1.msra.mxu0 0.0
    %8774 = vmatprep.subr.mxu0 0.0
    %8775 = vmatpush1.msra.mxu0 0.0
    %8776 = vmatprep.subr.mxu0 0.0
    %8777 = vmatpush1.msra.mxu0 0.0
    %8778 = vmatprep.subr.mxu0 0.0
    %8779 = vmatpush1.msra.mxu0 0.0
    %8780 = vmatprep.subr.mxu0 0.0
    %8781 = vmatpush1.msra.mxu0 0.0
    %8782 = vmatprep.subr.mxu0 0.0
    %8783 = vmatpush1.msra.mxu0 0.0
    %8784 = vmatprep.subr.mxu0 0.0
    %8785 = vmatpush1.msra.mxu0 0.0
    %8786 = vmatprep.subr.mxu0 0.0
    %8787 = vmatpush1.msra.mxu0 0.0
    %8788 = vmatprep.subr.mxu0 0.0
    %8789 = vmatpush1.msra.mxu0 0.0
    %8790 = vmatprep.subr.mxu0 0.0
    %8791 = vmatpush1.msra.mxu0 0.0
    %8792 = vmatprep.subr.mxu0 0.0
    %8793 = vmatpush1.msra.mxu0 0.0
    %8794 = vmatprep.subr.mxu0 0.0
    %8795 = vmatpush1.msra.mxu0 0.0
    %8796 = vmatprep.subr.mxu0 0.0
    %8797 = vmatpush1.msra.mxu0 0.0
    %8798 = vmatprep.subr.mxu0 0.0
    %8799 = vmatpush1.msra.mxu0 0.0
    %8800 = vmatprep.mubr.f32.mxu0 0.0
    %v8801 = vand.u32 %v8561, 4294901760
    %v8802 = vsub.f32 %v8561, %v8801
    %8803 = vmatmul.mubr.f32.gmra.mrb[0].mxu0 %v8802
    %v8804 = vpop.f32.mrb[0].mxu0
    %v8805 = vadd.f32 %v8725, %v8804
    %v8806 = vpop.f32.mrb[0].mxu0
    %8807 = vmatprep.mubr.f32.mxu0 0.0
    %v8808 = vand.u32 %v8564, 4294901760
    %v8809 = vsub.f32 %v8564, %v8808
    %8810 = vmatmul.mubr.f32.gmra.mrb[0].mxu0 %v8809
    %v8811 = vpop.f32.mrb[0].mxu0
    %v8812 = vadd.f32 %v8731, %v8811
    %v8813 = vpop.f32.mrb[0].mxu0
    %8814 = vdwg.mxu0
    %8815 = vmatprep.subr.mxu0 0.0
    %v8816 = vand.u32 %v8051, 4294901760
    %8817 = vmatpush1.msra.mxu0 %v8816
    %8818 = vmatprep.subr.mxu0 0.0
    %8819 = vmatpush1.msra.mxu0 0.0
    %8820 = vmatprep.subr.mxu0 0.0
    %8821 = vmatpush1.msra.mxu0 0.0
    %8822 = vmatprep.subr.mxu0 0.0
    %8823 = vmatpush1.msra.mxu0 0.0
    %8824 = vmatprep.subr.mxu0 0.0
    %8825 = vmatpush1.msra.mxu0 0.0
    %8826 = vmatprep.subr.mxu0 0.0
    %8827 = vmatpush1.msra.mxu0 0.0
    %8828 = vmatprep.subr.mxu0 0.0
    %8829 = vmatpush1.msra.mxu0 0.0
    %8830 = vmatprep.subr.mxu0 0.0
    %8831 = vmatpush1.msra.mxu0 0.0
    %8832 = vmatprep.subr.mxu0 0.0
    %8833 = vmatpush1.msra.mxu0 0.0
    %8834 = vmatprep.subr.mxu0 0.0
    %8835 = vmatpush1.msra.mxu0 0.0
    %8836 = vmatprep.subr.mxu0 0.0
    %8837 = vmatpush1.msra.mxu0 0.0
    %8838 = vmatprep.subr.mxu0 0.0
    %8839 = vmatpush1.msra.mxu0 0.0
    %8840 = vmatprep.subr.mxu0 0.0
    %8841 = vmatpush1.msra.mxu0 0.0
    %8842 = vmatprep.subr.mxu0 0.0
    %8843 = vmatpush1.msra.mxu0 0.0
    %8844 = vmatprep.subr.mxu0 0.0
    %8845 = vmatpush1.msra.mxu0 0.0
    %8846 = vmatprep.subr.mxu0 0.0
    %8847 = vmatpush1.msra.mxu0 0.0
    %8848 = vmatprep.subr.mxu0 0.0
    %8849 = vmatpush1.msra.mxu0 0.0
    %8850 = vmatprep.subr.mxu0 0.0
    %8851 = vmatpush1.msra.mxu0 0.0
    %8852 = vmatprep.subr.mxu0 0.0
    %8853 = vmatpush1.msra.mxu0 0.0
    %8854 = vmatprep.subr.mxu0 0.0
    %8855 = vmatpush1.msra.mxu0 0.0
    %8856 = vmatprep.subr.mxu0 0.0
    %8857 = vmatpush1.msra.mxu0 0.0
    %8858 = vmatprep.subr.mxu0 0.0
    %8859 = vmatpush1.msra.mxu0 0.0
    %8860 = vmatprep.subr.mxu0 0.0
    %8861 = vmatpush1.msra.mxu0 0.0
    %8862 = vmatprep.subr.mxu0 0.0
    %8863 = vmatpush1.msra.mxu0 0.0
    %8864 = vmatprep.subr.mxu0 0.0
    %8865 = vmatpush1.msra.mxu0 0.0
    %8866 = vmatprep.subr.mxu0 0.0
    %8867 = vmatpush1.msra.mxu0 0.0
    %8868 = vmatprep.subr.mxu0 0.0
    %8869 = vmatpush1.msra.mxu0 0.0
    %8870 = vmatprep.subr.mxu0 0.0
    %8871 = vmatpush1.msra.mxu0 0.0
    %8872 = vmatprep.subr.mxu0 0.0
    %8873 = vmatpush1.msra.mxu0 0.0
    %8874 = vmatprep.subr.mxu0 0.0
    %8875 = vmatpush1.msra.mxu0 0.0
    %8876 = vmatprep.subr.mxu0 0.0
    %8877 = vmatpush1.msra.mxu0 0.0
    %8878 = vmatprep.subr.mxu0 0.0
    %8879 = vmatpush1.msra.mxu0 0.0
    %8880 = vmatprep.mubr.f32.mxu0 0.0
    %v8881 = vand.u32 %v8561, 4294901760
    %v8882 = vsub.f32 %v8561, %v8881
    %v8883 = vand.u32 %v8882, 4294901760
    %8884 = vmatmul.mubr.f32.gmra.mrb[0].mxu0 %v8883
    %v8885 = vpop.f32.mrb[0].mxu0
    %v8886 = vadd.f32 %v8805, %v8885
    %v8887 = vpop.f32.mrb[0].mxu0
    %8888 = vmatprep.mubr.f32.mxu0 0.0
    %v8889 = vand.u32 %v8564, 4294901760
    %v8890 = vsub.f32 %v8564, %v8889
    %v8891 = vand.u32 %v8890, 4294901760
    %8892 = vmatmul.mubr.f32.gmra.mrb[0].mxu0 %v8891
    %v8893 = vpop.f32.mrb[0].mxu0
    %v8894 = vadd.f32 %v8812, %v8893
    %v8895 = vpop.f32.mrb[0].mxu0
    %8896 = vdwg.mxu0
    %8897 = vmatprep.subr.mxu0 0.0
    %v8898 = vand.u32 %v8051, 4294901760
    %v8899 = vsub.f32 %v8051, %v8898
    %v8900 = vand.u32 %v8899, 4294901760
    %8901 = vmatpush1.msra.mxu0 %v8900
    %8902 = vmatprep.subr.mxu0 0.0
    %8903 = vmatpush1.msra.mxu0 0.0
    %8904 = vmatprep.subr.mxu0 0.0
    %8905 = vmatpush1.msra.mxu0 0.0
    %8906 = vmatprep.subr.mxu0 0.0
    %8907 = vmatpush1.msra.mxu0 0.0
    %8908 = vmatprep.subr.mxu0 0.0
    %8909 = vmatpush1.msra.mxu0 0.0
    %8910 = vmatprep.subr.mxu0 0.0
    %8911 = vmatpush1.msra.mxu0 0.0
    %8912 = vmatprep.subr.mxu0 0.0
    %8913 = vmatpush1.msra.mxu0 0.0
    %8914 = vmatprep.subr.mxu0 0.0
    %8915 = vmatpush1.msra.mxu0 0.0
    %8916 = vmatprep.subr.mxu0 0.0
    %8917 = vmatpush1.msra.mxu0 0.0
    %8918 = vmatprep.subr.mxu0 0.0
    %8919 = vmatpush1.msra.mxu0 0.0
    %8920 = vmatprep.subr.mxu0 0.0
    %8921 = vmatpush1.msra.mxu0 0.0
    %8922 = vmatprep.subr.mxu0 0.0
    %8923 = vmatpush1.msra.mxu0 0.0
    %8924 = vmatprep.subr.mxu0 0.0
    %8925 = vmatpush1.msra.mxu0 0.0
    %8926 = vmatprep.subr.mxu0 0.0
    %8927 = vmatpush1.msra.mxu0 0.0
    %8928 = vmatprep.subr.mxu0 0.0
    %8929 = vmatpush1.msra.mxu0 0.0
    %8930 = vmatprep.subr.mxu0 0.0
    %8931 = vmatpush1.msra.mxu0 0.0
    %8932 = vmatprep.subr.mxu0 0.0
    %8933 = vmatpush1.msra.mxu0 0.0
    %8934 = vmatprep.subr.mxu0 0.0
    %8935 = vmatpush1.msra.mxu0 0.0
    %8936 = vmatprep.subr.mxu0 0.0
    %8937 = vmatpush1.msra.mxu0 0.0
    %8938 = vmatprep.subr.mxu0 0.0
    %8939 = vmatpush1.msra.mxu0 0.0
    %8940 = vmatprep.subr.mxu0 0.0
    %8941 = vmatpush1.msra.mxu0 0.0
    %8942 = vmatprep.subr.mxu0 0.0
    %8943 = vmatpush1.msra.mxu0 0.0
    %8944 = vmatprep.subr.mxu0 0.0
    %8945 = vmatpush1.msra.mxu0 0.0
    %8946 = vmatprep.subr.mxu0 0.0
    %8947 = vmatpush1.msra.mxu0 0.0
    %8948 = vmatprep.subr.mxu0 0.0
    %8949 = vmatpush1.msra.mxu0 0.0
    %8950 = vmatprep.subr.mxu0 0.0
    %8951 = vmatpush1.msra.mxu0 0.0
    %8952 = vmatprep.subr.mxu0 0.0
    %8953 = vmatpush1.msra.mxu0 0.0
    %8954 = vmatprep.subr.mxu0 0.0
    %8955 = vmatpush1.msra.mxu0 0.0
    %8956 = vmatprep.subr.mxu0 0.0
    %8957 = vmatpush1.msra.mxu0 0.0
    %8958 = vmatprep.subr.mxu0 0.0
    %8959 = vmatpush1.msra.mxu0 0.0
    %8960 = vmatprep.subr.mxu0 0.0
    %8961 = vmatpush1.msra.mxu0 0.0
    %8962 = vmatprep.subr.mxu0 0.0
    %8963 = vmatpush1.msra.mxu0 0.0
    %8964 = vmatprep.mubr.f32.mxu0 0.0
    %v8965 = vand.u32 %v8561, 4294901760
    %8966 = vmatmul.mubr.f32.gmra.mrb[0].mxu0 %v8965
    %v8967 = vpop.f32.mrb[0].mxu0
    %v8968 = vadd.f32 %v8886, %v8967
    %v8969 = vpop.f32.mrb[0].mxu0
    %8970 = vmatprep.mubr.f32.mxu0 0.0
    %v8971 = vand.u32 %v8564, 4294901760
    %8972 = vmatmul.mubr.f32.gmra.mrb[0].mxu0 %v8971
    %v8973 = vpop.f32.mrb[0].mxu0
    %v8974 = vadd.f32 %v8894, %v8973
    %v8975 = vpop.f32.mrb[0].mxu0
    %8976 = vdwg.mxu0
    %8977 = vmatprep.subr.mxu0 0.0
    %v8978 = vand.u32 %v8051, 4294901760
    %8979 = vmatpush1.msra.mxu0 %v8978
    %8980 = vmatprep.subr.mxu0 0.0
    %8981 = vmatpush1.msra.mxu0 0.0
    %8982 = vmatprep.subr.mxu0 0.0
    %8983 = vmatpush1.msra.mxu0 0.0
    %8984 = vmatprep.subr.mxu0 0.0
    %8985 = vmatpush1.msra.mxu0 0.0
    %8986 = vmatprep.subr.mxu0 0.0
    %8987 = vmatpush1.msra.mxu0 0.0
    %8988 = vmatprep.subr.mxu0 0.0
    %8989 = vmatpush1.msra.mxu0 0.0
    %8990 = vmatprep.subr.mxu0 0.0
    %8991 = vmatpush1.msra.mxu0 0.0
    %8992 = vmatprep.subr.mxu0 0.0
    %8993 = vmatpush1.msra.mxu0 0.0
    %8994 = vmatprep.subr.mxu0 0.0
    %8995 = vmatpush1.msra.mxu0 0.0
    %8996 = vmatprep.subr.mxu0 0.0
    %8997 = vmatpush1.msra.mxu0 0.0
    %8998 = vmatprep.subr.mxu0 0.0
    %8999 = vmatpush1.msra.mxu0 0.0
    %9000 = vmatprep.subr.mxu0 0.0
    %9001 = vmatpush1.msra.mxu0 0.0
    %9002 = vmatprep.subr.mxu0 0.0
    %9003 = vmatpush1.msra.mxu0 0.0
    %9004 = vmatprep.subr.mxu0 0.0
    %9005 = vmatpush1.msra.mxu0 0.0
    %9006 = vmatprep.subr.mxu0 0.0
    %9007 = vmatpush1.msra.mxu0 0.0
    %9008 = vmatprep.subr.mxu0 0.0
    %9009 = vmatpush1.msra.mxu0 0.0
    %9010 = vmatprep.subr.mxu0 0.0
    %9011 = vmatpush1.msra.mxu0 0.0
    %9012 = vmatprep.subr.mxu0 0.0
    %9013 = vmatpush1.msra.mxu0 0.0
    %9014 = vmatprep.subr.mxu0 0.0
    %9015 = vmatpush1.msra.mxu0 0.0
    %9016 = vmatprep.subr.mxu0 0.0
    %9017 = vmatpush1.msra.mxu0 0.0
    %9018 = vmatprep.subr.mxu0 0.0
    %9019 = vmatpush1.msra.mxu0 0.0
    %9020 = vmatprep.subr.mxu0 0.0
    %9021 = vmatpush1.msra.mxu0 0.0
    %9022 = vmatprep.subr.mxu0 0.0
    %9023 = vmatpush1.msra.mxu0 0.0
    %9024 = vmatprep.subr.mxu0 0.0
    %9025 = vmatpush1.msra.mxu0 0.0
    %9026 = vmatprep.subr.mxu0 0.0
    %9027 = vmatpush1.msra.mxu0 0.0
    %9028 = vmatprep.subr.mxu0 0.0
    %9029 = vmatpush1.msra.mxu0 0.0
    %9030 = vmatprep.subr.mxu0 0.0
    %9031 = vmatpush1.msra.mxu0 0.0
    %9032 = vmatprep.subr.mxu0 0.0
    %9033 = vmatpush1.msra.mxu0 0.0
    %9034 = vmatprep.subr.mxu0 0.0
    %9035 = vmatpush1.msra.mxu0 0.0
    %9036 = vmatprep.subr.mxu0 0.0
    %9037 = vmatpush1.msra.mxu0 0.0
    %9038 = vmatprep.subr.mxu0 0.0
    %9039 = vmatpush1.msra.mxu0 0.0
    %9040 = vmatprep.subr.mxu0 0.0
    %9041 = vmatpush1.msra.mxu0 0.0
    %9042 = vmatprep.mubr.f32.mxu0 0.0
    %v9043 = vand.u32 %v8561, 4294901760
    %9044 = vmatmul.mubr.f32.gmra.mrb[0].mxu0 %v9043
    %v9045 = vpop.f32.mrb[0].mxu0
    %v9046 = vadd.f32 %v8968, %v9045
    %v9047 = vpop.f32.mrb[0].mxu0
    %9048 = vmatprep.mubr.f32.mxu0 0.0
    %v9049 = vand.u32 %v8564, 4294901760
    %9050 = vmatmul.mubr.f32.gmra.mrb[0].mxu0 %v9049
    %v9051 = vpop.f32.mrb[0].mxu0
    %v9052 = vadd.f32 %v8974, %v9051
    %v9053 = vpop.f32.mrb[0].mxu0
    %9054 = vdwg.mxu0
    %v9056 = vsel %vm569, %v8046, 0
    %v9059 = vsel %vm569, %v8047, 0
    %9061 = vmatprep.subr.mxu0 0.0
    %v9062 = vand.u32 %v8049, 4294901760
    %9063 = vmatpush1.msra.mxu0 %v9062
    %9064 = vmatprep.subr.mxu0 0.0
    %9065 = vmatpush1.msra.mxu0 0.0
    %9066 = vmatprep.subr.mxu0 0.0
    %9067 = vmatpush1.msra.mxu0 0.0
    %9068 = vmatprep.subr.mxu0 0.0
    %9069 = vmatpush1.msra.mxu0 0.0
    %9070 = vmatprep.subr.mxu0 0.0
    %9071 = vmatpush1.msra.mxu0 0.0
    %9072 = vmatprep.subr.mxu0 0.0
    %9073 = vmatpush1.msra.mxu0 0.0
    %9074 = vmatprep.subr.mxu0 0.0
    %9075 = vmatpush1.msra.mxu0 0.0
    %9076 = vmatprep.subr.mxu0 0.0
    %9077 = vmatpush1.msra.mxu0 0.0
    %9078 = vmatprep.subr.mxu0 0.0
    %9079 = vmatpush1.msra.mxu0 0.0
    %9080 = vmatprep.subr.mxu0 0.0
    %9081 = vmatpush1.msra.mxu0 0.0
    %9082 = vmatprep.subr.mxu0 0.0
    %9083 = vmatpush1.msra.mxu0 0.0
    %9084 = vmatprep.subr.mxu0 0.0
    %9085 = vmatpush1.msra.mxu0 0.0
    %9086 = vmatprep.subr.mxu0 0.0
    %9087 = vmatpush1.msra.mxu0 0.0
    %9088 = vmatprep.subr.mxu0 0.0
    %9089 = vmatpush1.msra.mxu0 0.0
    %9090 = vmatprep.subr.mxu0 0.0
    %9091 = vmatpush1.msra.mxu0 0.0
    %9092 = vmatprep.subr.mxu0 0.0
    %9093 = vmatpush1.msra.mxu0 0.0
    %9094 = vmatprep.subr.mxu0 0.0
    %9095 = vmatpush1.msra.mxu0 0.0
    %9096 = vmatprep.subr.mxu0 0.0
    %9097 = vmatpush1.msra.mxu0 0.0
    %9098 = vmatprep.subr.mxu0 0.0
    %9099 = vmatpush1.msra.mxu0 0.0
    %9100 = vmatprep.subr.mxu0 0.0
    %9101 = vmatpush1.msra.mxu0 0.0
    %9102 = vmatprep.subr.mxu0 0.0
    %9103 = vmatpush1.msra.mxu0 0.0
    %9104 = vmatprep.subr.mxu0 0.0
    %9105 = vmatpush1.msra.mxu0 0.0
    %9106 = vmatprep.subr.mxu0 0.0
    %9107 = vmatpush1.msra.mxu0 0.0
    %9108 = vmatprep.subr.mxu0 0.0
    %9109 = vmatpush1.msra.mxu0 0.0
    %9110 = vmatprep.subr.mxu0 0.0
    %9111 = vmatpush1.msra.mxu0 0.0
    %9112 = vmatprep.subr.mxu0 0.0
    %9113 = vmatpush1.msra.mxu0 0.0
    %9114 = vmatprep.subr.mxu0 0.0
    %9115 = vmatpush1.msra.mxu0 0.0
    %9116 = vmatprep.subr.mxu0 0.0
    %9117 = vmatpush1.msra.mxu0 0.0
    %9118 = vmatprep.subr.mxu0 0.0
    %9119 = vmatpush1.msra.mxu0 0.0
    %9120 = vmatprep.subr.mxu0 0.0
    %9121 = vmatpush1.msra.mxu0 0.0
    %9122 = vmatprep.subr.mxu0 0.0
    %9123 = vmatpush1.msra.mxu0 0.0
    %9124 = vmatprep.subr.mxu0 0.0
    %9125 = vmatpush1.msra.mxu0 0.0
    %9126 = vmatprep.mubr.f32.mxu0 0.0
    %v9127 = vand.u32 %v9056, 4294901760
    %v9128 = vsub.f32 %v9056, %v9127
    %v9129 = vand.u32 %v9128, 4294901760
    %v9130 = vsub.f32 %v9128, %v9129
    %v9131 = vand.u32 %v9130, 4294901760
    %9132 = vmatmul.mubr.f32.gmra.mrb[0].mxu0 %v9131
    %v9133 = vpop.f32.mrb[0].mxu0
    %v9134 = vadd.f32 %v9046, %v9133
    %v9135 = vpop.f32.mrb[0].mxu0
    %9136 = vmatprep.mubr.f32.mxu0 0.0
    %v9137 = vand.u32 %v9059, 4294901760
    %v9138 = vsub.f32 %v9059, %v9137
    %v9139 = vand.u32 %v9138, 4294901760
    %v9140 = vsub.f32 %v9138, %v9139
    %v9141 = vand.u32 %v9140, 4294901760
    %9142 = vmatmul.mubr.f32.gmra.mrb[0].mxu0 %v9141
    %v9143 = vpop.f32.mrb[0].mxu0
    %v9144 = vadd.f32 %v9052, %v9143
    %v9145 = vpop.f32.mrb[0].mxu0
    %9146 = vdwg.mxu0
    %9147 = vmatprep.subr.mxu0 0.0
    %v9148 = vand.u32 %v8049, 4294901760
    %v9149 = vsub.f32 %v8049, %v9148
    %v9150 = vand.u32 %v9149, 4294901760
    %v9151 = vsub.f32 %v9149, %v9150
    %v9152 = vand.u32 %v9151, 4294901760
    %9153 = vmatpush1.msra.mxu0 %v9152
    %9154 = vmatprep.subr.mxu0 0.0
    %9155 = vmatpush1.msra.mxu0 0.0
    %9156 = vmatprep.subr.mxu0 0.0
    %9157 = vmatpush1.msra.mxu0 0.0
    %9158 = vmatprep.subr.mxu0 0.0
    %9159 = vmatpush1.msra.mxu0 0.0
    %9160 = vmatprep.subr.mxu0 0.0
    %9161 = vmatpush1.msra.mxu0 0.0
    %9162 = vmatprep.subr.mxu0 0.0
    %9163 = vmatpush1.msra.mxu0 0.0
    %9164 = vmatprep.subr.mxu0 0.0
    %9165 = vmatpush1.msra.mxu0 0.0
    %9166 = vmatprep.subr.mxu0 0.0
    %9167 = vmatpush1.msra.mxu0 0.0
    %9168 = vmatprep.subr.mxu0 0.0
    %9169 = vmatpush1.msra.mxu0 0.0
    %9170 = vmatprep.subr.mxu0 0.0
    %9171 = vmatpush1.msra.mxu0 0.0
    %9172 = vmatprep.subr.mxu0 0.0
    %9173 = vmatpush1.msra.mxu0 0.0
    %9174 = vmatprep.subr.mxu0 0.0
    %9175 = vmatpush1.msra.mxu0 0.0
    %9176 = vmatprep.subr.mxu0 0.0
    %9177 = vmatpush1.msra.mxu0 0.0
    %9178 = vmatprep.subr.mxu0 0.0
    %9179 = vmatpush1.msra.mxu0 0.0
    %9180 = vmatprep.subr.mxu0 0.0
    %9181 = vmatpush1.msra.mxu0 0.0
    %9182 = vmatprep.subr.mxu0 0.0
    %9183 = vmatpush1.msra.mxu0 0.0
    %9184 = vmatprep.subr.mxu0 0.0
    %9185 = vmatpush1.msra.mxu0 0.0
    %9186 = vmatprep.subr.mxu0 0.0
    %9187 = vmatpush1.msra.mxu0 0.0
    %9188 = vmatprep.subr.mxu0 0.0
    %9189 = vmatpush1.msra.mxu0 0.0
    %9190 = vmatprep.subr.mxu0 0.0
    %9191 = vmatpush1.msra.mxu0 0.0
    %9192 = vmatprep.subr.mxu0 0.0
    %9193 = vmatpush1.msra.mxu0 0.0
    %9194 = vmatprep.subr.mxu0 0.0
    %9195 = vmatpush1.msra.mxu0 0.0
    %9196 = vmatprep.subr.mxu0 0.0
    %9197 = vmatpush1.msra.mxu0 0.0
    %9198 = vmatprep.subr.mxu0 0.0
    %9199 = vmatpush1.msra.mxu0 0.0
    %9200 = vmatprep.subr.mxu0 0.0
    %9201 = vmatpush1.msra.mxu0 0.0
    %9202 = vmatprep.subr.mxu0 0.0
    %9203 = vmatpush1.msra.mxu0 0.0
    %9204 = vmatprep.subr.mxu0 0.0
    %9205 = vmatpush1.msra.mxu0 0.0
    %9206 = vmatprep.subr.mxu0 0.0
    %9207 = vmatpush1.msra.mxu0 0.0
    %9208 = vmatprep.subr.mxu0 0.0
    %9209 = vmatpush1.msra.mxu0 0.0
    %9210 = vmatprep.subr.mxu0 0.0
    %9211 = vmatpush1.msra.mxu0 0.0
    %9212 = vmatprep.subr.mxu0 0.0
    %9213 = vmatpush1.msra.mxu0 0.0
    %9214 = vmatprep.subr.mxu0 0.0
    %9215 = vmatpush1.msra.mxu0 0.0
    %9216 = vmatprep.mubr.f32.mxu0 0.0
    %v9217 = vand.u32 %v9056, 4294901760
    %9218 = vmatmul.mubr.f32.gmra.mrb[0].mxu0 %v9217
    %v9219 = vpop.f32.mrb[0].mxu0
    %v9220 = vadd.f32 %v9134, %v9219
    %v9221 = vpop.f32.mrb[0].mxu0
    %9222 = vmatprep.mubr.f32.mxu0 0.0
    %v9223 = vand.u32 %v9059, 4294901760
    %9224 = vmatmul.mubr.f32.gmra.mrb[0].mxu0 %v9223
    %v9225 = vpop.f32.mrb[0].mxu0
    %v9226 = vadd.f32 %v9144, %v9225
    %v9227 = vpop.f32.mrb[0].mxu0
    %9228 = vdwg.mxu0
    %9229 = vmatprep.subr.mxu0 0.0
    %v9230 = vand.u32 %v8049, 4294901760
    %v9231 = vsub.f32 %v8049, %v9230
    %9232 = vmatpush1.msra.mxu0 %v9231
    %9233 = vmatprep.subr.mxu0 0.0
    %9234 = vmatpush1.msra.mxu0 0.0
    %9235 = vmatprep.subr.mxu0 0.0
    %9236 = vmatpush1.msra.mxu0 0.0
    %9237 = vmatprep.subr.mxu0 0.0
    %9238 = vmatpush1.msra.mxu0 0.0
    %9239 = vmatprep.subr.mxu0 0.0
    %9240 = vmatpush1.msra.mxu0 0.0
    %9241 = vmatprep.subr.mxu0 0.0
    %9242 = vmatpush1.msra.mxu0 0.0
    %9243 = vmatprep.subr.mxu0 0.0
    %9244 = vmatpush1.msra.mxu0 0.0
    %9245 = vmatprep.subr.mxu0 0.0
    %9246 = vmatpush1.msra.mxu0 0.0
    %9247 = vmatprep.subr.mxu0 0.0
    %9248 = vmatpush1.msra.mxu0 0.0
    %9249 = vmatprep.subr.mxu0 0.0
    %9250 = vmatpush1.msra.mxu0 0.0
    %9251 = vmatprep.subr.mxu0 0.0
    %9252 = vmatpush1.msra.mxu0 0.0
    %9253 = vmatprep.subr.mxu0 0.0
    %9254 = vmatpush1.msra.mxu0 0.0
    %9255 = vmatprep.subr.mxu0 0.0
    %9256 = vmatpush1.msra.mxu0 0.0
    %9257 = vmatprep.subr.mxu0 0.0
    %9258 = vmatpush1.msra.mxu0 0.0
    %9259 = vmatprep.subr.mxu0 0.0
    %9260 = vmatpush1.msra.mxu0 0.0
    %9261 = vmatprep.subr.mxu0 0.0
    %9262 = vmatpush1.msra.mxu0 0.0
    %9263 = vmatprep.subr.mxu0 0.0
    %9264 = vmatpush1.msra.mxu0 0.0
    %9265 = vmatprep.subr.mxu0 0.0
    %9266 = vmatpush1.msra.mxu0 0.0
    %9267 = vmatprep.subr.mxu0 0.0
    %9268 = vmatpush1.msra.mxu0 0.0
    %9269 = vmatprep.subr.mxu0 0.0
    %9270 = vmatpush1.msra.mxu0 0.0
    %9271 = vmatprep.subr.mxu0 0.0
    %9272 = vmatpush1.msra.mxu0 0.0
    %9273 = vmatprep.subr.mxu0 0.0
    %9274 = vmatpush1.msra.mxu0 0.0
    %9275 = vmatprep.subr.mxu0 0.0
    %9276 = vmatpush1.msra.mxu0 0.0
    %9277 = vmatprep.subr.mxu0 0.0
    %9278 = vmatpush1.msra.mxu0 0.0
    %9279 = vmatprep.subr.mxu0 0.0
    %9280 = vmatpush1.msra.mxu0 0.0
    %9281 = vmatprep.subr.mxu0 0.0
    %9282 = vmatpush1.msra.mxu0 0.0
    %9283 = vmatprep.subr.mxu0 0.0
    %9284 = vmatpush1.msra.mxu0 0.0
    %9285 = vmatprep.subr.mxu0 0.0
    %9286 = vmatpush1.msra.mxu0 0.0
    %9287 = vmatprep.subr.mxu0 0.0
    %9288 = vmatpush1.msra.mxu0 0.0
    %9289 = vmatprep.subr.mxu0 0.0
    %9290 = vmatpush1.msra.mxu0 0.0
    %9291 = vmatprep.subr.mxu0 0.0
    %9292 = vmatpush1.msra.mxu0 0.0
    %9293 = vmatprep.subr.mxu0 0.0
    %9294 = vmatpush1.msra.mxu0 0.0
    %9295 = vmatprep.mubr.f32.mxu0 0.0
    %v9296 = vand.u32 %v9056, 4294901760
    %v9297 = vsub.f32 %v9056, %v9296
    %9298 = vmatmul.mubr.f32.gmra.mrb[0].mxu0 %v9297
    %v9299 = vpop.f32.mrb[0].mxu0
    %v9300 = vadd.f32 %v9220, %v9299
    %v9301 = vpop.f32.mrb[0].mxu0
    %9302 = vmatprep.mubr.f32.mxu0 0.0
    %v9303 = vand.u32 %v9059, 4294901760
    %v9304 = vsub.f32 %v9059, %v9303
    %9305 = vmatmul.mubr.f32.gmra.mrb[0].mxu0 %v9304
    %v9306 = vpop.f32.mrb[0].mxu0
    %v9307 = vadd.f32 %v9226, %v9306
    %v9308 = vpop.f32.mrb[0].mxu0
    %9309 = vdwg.mxu0
    %9310 = vmatprep.subr.mxu0 0.0
    %v9311 = vand.u32 %v8049, 4294901760
    %9312 = vmatpush1.msra.mxu0 %v9311
    %9313 = vmatprep.subr.mxu0 0.0
    %9314 = vmatpush1.msra.mxu0 0.0
    %9315 = vmatprep.subr.mxu0 0.0
    %9316 = vmatpush1.msra.mxu0 0.0
    %9317 = vmatprep.subr.mxu0 0.0
    %9318 = vmatpush1.msra.mxu0 0.0
    %9319 = vmatprep.subr.mxu0 0.0
    %9320 = vmatpush1.msra.mxu0 0.0
    %9321 = vmatprep.subr.mxu0 0.0
    %9322 = vmatpush1.msra.mxu0 0.0
    %9323 = vmatprep.subr.mxu0 0.0
    %9324 = vmatpush1.msra.mxu0 0.0
    %9325 = vmatprep.subr.mxu0 0.0
    %9326 = vmatpush1.msra.mxu0 0.0
    %9327 = vmatprep.subr.mxu0 0.0
    %9328 = vmatpush1.msra.mxu0 0.0
    %9329 = vmatprep.subr.mxu0 0.0
    %9330 = vmatpush1.msra.mxu0 0.0
    %9331 = vmatprep.subr.mxu0 0.0
    %9332 = vmatpush1.msra.mxu0 0.0
    %9333 = vmatprep.subr.mxu0 0.0
    %9334 = vmatpush1.msra.mxu0 0.0
    %9335 = vmatprep.subr.mxu0 0.0
    %9336 = vmatpush1.msra.mxu0 0.0
    %9337 = vmatprep.subr.mxu0 0.0
    %9338 = vmatpush1.msra.mxu0 0.0
    %9339 = vmatprep.subr.mxu0 0.0
    %9340 = vmatpush1.msra.mxu0 0.0
    %9341 = vmatprep.subr.mxu0 0.0
    %9342 = vmatpush1.msra.mxu0 0.0
    %9343 = vmatprep.subr.mxu0 0.0
    %9344 = vmatpush1.msra.mxu0 0.0
    %9345 = vmatprep.subr.mxu0 0.0
    %9346 = vmatpush1.msra.mxu0 0.0
    %9347 = vmatprep.subr.mxu0 0.0
    %9348 = vmatpush1.msra.mxu0 0.0
    %9349 = vmatprep.subr.mxu0 0.0
    %9350 = vmatpush1.msra.mxu0 0.0
    %9351 = vmatprep.subr.mxu0 0.0
    %9352 = vmatpush1.msra.mxu0 0.0
    %9353 = vmatprep.subr.mxu0 0.0
    %9354 = vmatpush1.msra.mxu0 0.0
    %9355 = vmatprep.subr.mxu0 0.0
    %9356 = vmatpush1.msra.mxu0 0.0
    %9357 = vmatprep.subr.mxu0 0.0
    %9358 = vmatpush1.msra.mxu0 0.0
    %9359 = vmatprep.subr.mxu0 0.0
    %9360 = vmatpush1.msra.mxu0 0.0
    %9361 = vmatprep.subr.mxu0 0.0
    %9362 = vmatpush1.msra.mxu0 0.0
    %9363 = vmatprep.subr.mxu0 0.0
    %9364 = vmatpush1.msra.mxu0 0.0
    %9365 = vmatprep.subr.mxu0 0.0
    %9366 = vmatpush1.msra.mxu0 0.0
    %9367 = vmatprep.subr.mxu0 0.0
    %9368 = vmatpush1.msra.mxu0 0.0
    %9369 = vmatprep.subr.mxu0 0.0
    %9370 = vmatpush1.msra.mxu0 0.0
    %9371 = vmatprep.subr.mxu0 0.0
    %9372 = vmatpush1.msra.mxu0 0.0
    %9373 = vmatprep.subr.mxu0 0.0
    %9374 = vmatpush1.msra.mxu0 0.0
    %9375 = vmatprep.mubr.f32.mxu0 0.0
    %v9376 = vand.u32 %v9056, 4294901760
    %v9377 = vsub.f32 %v9056, %v9376
    %v9378 = vand.u32 %v9377, 4294901760
    %9379 = vmatmul.mubr.f32.gmra.mrb[0].mxu0 %v9378
    %v9380 = vpop.f32.mrb[0].mxu0
    %v9381 = vadd.f32 %v9300, %v9380
    %v9382 = vpop.f32.mrb[0].mxu0
    %9383 = vmatprep.mubr.f32.mxu0 0.0
    %v9384 = vand.u32 %v9059, 4294901760
    %v9385 = vsub.f32 %v9059, %v9384
    %v9386 = vand.u32 %v9385, 4294901760
    %9387 = vmatmul.mubr.f32.gmra.mrb[0].mxu0 %v9386
    %v9388 = vpop.f32.mrb[0].mxu0
    %v9389 = vadd.f32 %v9307, %v9388
    %v9390 = vpop.f32.mrb[0].mxu0
    %9391 = vdwg.mxu0
    %9392 = vmatprep.subr.mxu0 0.0
    %v9393 = vand.u32 %v8049, 4294901760
    %v9394 = vsub.f32 %v8049, %v9393
    %v9395 = vand.u32 %v9394, 4294901760
    %9396 = vmatpush1.msra.mxu0 %v9395
    %9397 = vmatprep.subr.mxu0 0.0
    %9398 = vmatpush1.msra.mxu0 0.0
    %9399 = vmatprep.subr.mxu0 0.0
    %9400 = vmatpush1.msra.mxu0 0.0
    %9401 = vmatprep.subr.mxu0 0.0
    %9402 = vmatpush1.msra.mxu0 0.0
    %9403 = vmatprep.subr.mxu0 0.0
    %9404 = vmatpush1.msra.mxu0 0.0
    %9405 = vmatprep.subr.mxu0 0.0
    %9406 = vmatpush1.msra.mxu0 0.0
    %9407 = vmatprep.subr.mxu0 0.0
    %9408 = vmatpush1.msra.mxu0 0.0
    %9409 = vmatprep.subr.mxu0 0.0
    %9410 = vmatpush1.msra.mxu0 0.0
    %9411 = vmatprep.subr.mxu0 0.0
    %9412 = vmatpush1.msra.mxu0 0.0
    %9413 = vmatprep.subr.mxu0 0.0
    %9414 = vmatpush1.msra.mxu0 0.0
    %9415 = vmatprep.subr.mxu0 0.0
    %9416 = vmatpush1.msra.mxu0 0.0
    %9417 = vmatprep.subr.mxu0 0.0
    %9418 = vmatpush1.msra.mxu0 0.0
    %9419 = vmatprep.subr.mxu0 0.0
    %9420 = vmatpush1.msra.mxu0 0.0
    %9421 = vmatprep.subr.mxu0 0.0
    %9422 = vmatpush1.msra.mxu0 0.0
    %9423 = vmatprep.subr.mxu0 0.0
    %9424 = vmatpush1.msra.mxu0 0.0
    %9425 = vmatprep.subr.mxu0 0.0
    %9426 = vmatpush1.msra.mxu0 0.0
    %9427 = vmatprep.subr.mxu0 0.0
    %9428 = vmatpush1.msra.mxu0 0.0
    %9429 = vmatprep.subr.mxu0 0.0
    %9430 = vmatpush1.msra.mxu0 0.0
    %9431 = vmatprep.subr.mxu0 0.0
    %9432 = vmatpush1.msra.mxu0 0.0
    %9433 = vmatprep.subr.mxu0 0.0
    %9434 = vmatpush1.msra.mxu0 0.0
    %9435 = vmatprep.subr.mxu0 0.0
    %9436 = vmatpush1.msra.mxu0 0.0
    %9437 = vmatprep.subr.mxu0 0.0
    %9438 = vmatpush1.msra.mxu0 0.0
    %9439 = vmatprep.subr.mxu0 0.0
    %9440 = vmatpush1.msra.mxu0 0.0
    %9441 = vmatprep.subr.mxu0 0.0
    %9442 = vmatpush1.msra.mxu0 0.0
    %9443 = vmatprep.subr.mxu0 0.0
    %9444 = vmatpush1.msra.mxu0 0.0
    %9445 = vmatprep.subr.mxu0 0.0
    %9446 = vmatpush1.msra.mxu0 0.0
    %9447 = vmatprep.subr.mxu0 0.0
    %9448 = vmatpush1.msra.mxu0 0.0
    %9449 = vmatprep.subr.mxu0 0.0
    %9450 = vmatpush1.msra.mxu0 0.0
    %9451 = vmatprep.subr.mxu0 0.0
    %9452 = vmatpush1.msra.mxu0 0.0
    %9453 = vmatprep.subr.mxu0 0.0
    %9454 = vmatpush1.msra.mxu0 0.0
    %9455 = vmatprep.subr.mxu0 0.0
    %9456 = vmatpush1.msra.mxu0 0.0
    %9457 = vmatprep.subr.mxu0 0.0
    %9458 = vmatpush1.msra.mxu0 0.0
    %9459 = vmatprep.mubr.f32.mxu0 0.0
    %v9460 = vand.u32 %v9056, 4294901760
    %9461 = vmatmul.mubr.f32.gmra.mrb[0].mxu0 %v9460
    %v9462 = vpop.f32.mrb[0].mxu0
    %v9463 = vadd.f32 %v9381, %v9462
    %v9464 = vpop.f32.mrb[0].mxu0
    %9465 = vmatprep.mubr.f32.mxu0 0.0
    %v9466 = vand.u32 %v9059, 4294901760
    %9467 = vmatmul.mubr.f32.gmra.mrb[0].mxu0 %v9466
    %v9468 = vpop.f32.mrb[0].mxu0
    %v9469 = vadd.f32 %v9389, %v9468
    %v9470 = vpop.f32.mrb[0].mxu0
    %9471 = vdwg.mxu0
    %9472 = vmatprep.subr.mxu0 0.0
    %v9473 = vand.u32 %v8049, 4294901760
    %9474 = vmatpush1.msra.mxu0 %v9473
    %9475 = vmatprep.subr.mxu0 0.0
    %9476 = vmatpush1.msra.mxu0 0.0
    %9477 = vmatprep.subr.mxu0 0.0
    %9478 = vmatpush1.msra.mxu0 0.0
    %9479 = vmatprep.subr.mxu0 0.0
    %9480 = vmatpush1.msra.mxu0 0.0
    %9481 = vmatprep.subr.mxu0 0.0
    %9482 = vmatpush1.msra.mxu0 0.0
    %9483 = vmatprep.subr.mxu0 0.0
    %9484 = vmatpush1.msra.mxu0 0.0
    %9485 = vmatprep.subr.mxu0 0.0
    %9486 = vmatpush1.msra.mxu0 0.0
    %9487 = vmatprep.subr.mxu0 0.0
    %9488 = vmatpush1.msra.mxu0 0.0
    %9489 = vmatprep.subr.mxu0 0.0
    %9490 = vmatpush1.msra.mxu0 0.0
    %9491 = vmatprep.subr.mxu0 0.0
    %9492 = vmatpush1.msra.mxu0 0.0
    %9493 = vmatprep.subr.mxu0 0.0
    %9494 = vmatpush1.msra.mxu0 0.0
    %9495 = vmatprep.subr.mxu0 0.0
    %9496 = vmatpush1.msra.mxu0 0.0
    %9497 = vmatprep.subr.mxu0 0.0
    %9498 = vmatpush1.msra.mxu0 0.0
    %9499 = vmatprep.subr.mxu0 0.0
    %9500 = vmatpush1.msra.mxu0 0.0
    %9501 = vmatprep.subr.mxu0 0.0
    %9502 = vmatpush1.msra.mxu0 0.0
    %9503 = vmatprep.subr.mxu0 0.0
    %9504 = vmatpush1.msra.mxu0 0.0
    %9505 = vmatprep.subr.mxu0 0.0
    %9506 = vmatpush1.msra.mxu0 0.0
    %9507 = vmatprep.subr.mxu0 0.0
    %9508 = vmatpush1.msra.mxu0 0.0
    %9509 = vmatprep.subr.mxu0 0.0
    %9510 = vmatpush1.msra.mxu0 0.0
    %9511 = vmatprep.subr.mxu0 0.0
    %9512 = vmatpush1.msra.mxu0 0.0
    %9513 = vmatprep.subr.mxu0 0.0
    %9514 = vmatpush1.msra.mxu0 0.0
    %9515 = vmatprep.subr.mxu0 0.0
    %9516 = vmatpush1.msra.mxu0 0.0
    %9517 = vmatprep.subr.mxu0 0.0
    %9518 = vmatpush1.msra.mxu0 0.0
    %9519 = vmatprep.subr.mxu0 0.0
    %9520 = vmatpush1.msra.mxu0 0.0
    %9521 = vmatprep.subr.mxu0 0.0
    %9522 = vmatpush1.msra.mxu0 0.0
    %9523 = vmatprep.subr.mxu0 0.0
    %9524 = vmatpush1.msra.mxu0 0.0
    %9525 = vmatprep.subr.mxu0 0.0
    %9526 = vmatpush1.msra.mxu0 0.0
    %9527 = vmatprep.subr.mxu0 0.0
    %9528 = vmatpush1.msra.mxu0 0.0
    %9529 = vmatprep.subr.mxu0 0.0
    %9530 = vmatpush1.msra.mxu0 0.0
    %9531 = vmatprep.subr.mxu0 0.0
    %9532 = vmatpush1.msra.mxu0 0.0
    %9533 = vmatprep.subr.mxu0 0.0
    %9534 = vmatpush1.msra.mxu0 0.0
    %9535 = vmatprep.subr.mxu0 0.0
    %9536 = vmatpush1.msra.mxu0 0.0
    %9537 = vmatprep.mubr.f32.mxu0 0.0
    %v9538 = vand.u32 %v9056, 4294901760
    %9539 = vmatmul.mubr.f32.gmra.mrb[0].mxu0 %v9538
    %v9540 = vpop.f32.mrb[0].mxu0
    %v9541 = vadd.f32 %v9463, %v9540
    %v9542 = vpop.f32.mrb[0].mxu0
    %9543 = vmatprep.mubr.f32.mxu0 0.0
    %v9544 = vand.u32 %v9059, 4294901760
    %9545 = vmatmul.mubr.f32.gmra.mrb[0].mxu0 %v9544
    %v9546 = vpop.f32.mrb[0].mxu0
    %v9547 = vadd.f32 %v9469, %v9546
    %v9548 = vpop.f32.mrb[0].mxu0
    %9549 = vdwg.mxu0
    %9550 = vmatprep.subr.mxu0 0.0
    %v9551 = vand.u32 %v8053, 4294901760
    %9552 = vmatpush1.msra.mxu0 %v9551
    %9553 = vmatprep.subr.mxu0 0.0
    %9554 = vmatpush1.msra.mxu0 0.0
    %9555 = vmatprep.subr.mxu0 0.0
    %9556 = vmatpush1.msra.mxu0 0.0
    %9557 = vmatprep.subr.mxu0 0.0
    %9558 = vmatpush1.msra.mxu0 0.0
    %9559 = vmatprep.subr.mxu0 0.0
    %9560 = vmatpush1.msra.mxu0 0.0
    %9561 = vmatprep.subr.mxu0 0.0
    %9562 = vmatpush1.msra.mxu0 0.0
    %9563 = vmatprep.subr.mxu0 0.0
    %9564 = vmatpush1.msra.mxu0 0.0
    %9565 = vmatprep.subr.mxu0 0.0
    %9566 = vmatpush1.msra.mxu0 0.0
    %9567 = vmatprep.subr.mxu0 0.0
    %9568 = vmatpush1.msra.mxu0 0.0
    %9569 = vmatprep.subr.mxu0 0.0
    %9570 = vmatpush1.msra.mxu0 0.0
    %9571 = vmatprep.subr.mxu0 0.0
    %9572 = vmatpush1.msra.mxu0 0.0
    %9573 = vmatprep.subr.mxu0 0.0
    %9574 = vmatpush1.msra.mxu0 0.0
    %9575 = vmatprep.subr.mxu0 0.0
    %9576 = vmatpush1.msra.mxu0 0.0
    %9577 = vmatprep.subr.mxu0 0.0
    %9578 = vmatpush1.msra.mxu0 0.0
    %9579 = vmatprep.subr.mxu0 0.0
    %9580 = vmatpush1.msra.mxu0 0.0
    %9581 = vmatprep.subr.mxu0 0.0
    %9582 = vmatpush1.msra.mxu0 0.0
    %9583 = vmatprep.subr.mxu0 0.0
    %9584 = vmatpush1.msra.mxu0 0.0
    %9585 = vmatprep.subr.mxu0 0.0
    %9586 = vmatpush1.msra.mxu0 0.0
    %9587 = vmatprep.subr.mxu0 0.0
    %9588 = vmatpush1.msra.mxu0 0.0
    %9589 = vmatprep.subr.mxu0 0.0
    %9590 = vmatpush1.msra.mxu0 0.0
    %9591 = vmatprep.subr.mxu0 0.0
    %9592 = vmatpush1.msra.mxu0 0.0
    %9593 = vmatprep.subr.mxu0 0.0
    %9594 = vmatpush1.msra.mxu0 0.0
    %9595 = vmatprep.subr.mxu0 0.0
    %9596 = vmatpush1.msra.mxu0 0.0
    %9597 = vmatprep.subr.mxu0 0.0
    %9598 = vmatpush1.msra.mxu0 0.0
    %9599 = vmatprep.subr.mxu0 0.0
    %9600 = vmatpush1.msra.mxu0 0.0
    %9601 = vmatprep.subr.mxu0 0.0
    %9602 = vmatpush1.msra.mxu0 0.0
    %9603 = vmatprep.subr.mxu0 0.0
    %9604 = vmatpush1.msra.mxu0 0.0
    %9605 = vmatprep.subr.mxu0 0.0
    %9606 = vmatpush1.msra.mxu0 0.0
    %9607 = vmatprep.subr.mxu0 0.0
    %9608 = vmatpush1.msra.mxu0 0.0
    %9609 = vmatprep.subr.mxu0 0.0
    %9610 = vmatpush1.msra.mxu0 0.0
    %9611 = vmatprep.subr.mxu0 0.0
    %9612 = vmatpush1.msra.mxu0 0.0
    %9613 = vmatprep.subr.mxu0 0.0
    %9614 = vmatpush1.msra.mxu0 0.0
    %9615 = vmatprep.mubr.f32.mxu0 0.0
    %v9616 = vand.u32 %v9056, 4294901760
    %v9617 = vsub.f32 %v9056, %v9616
    %v9618 = vand.u32 %v9617, 4294901760
    %v9619 = vsub.f32 %v9617, %v9618
    %v9620 = vand.u32 %v9619, 4294901760
    %9621 = vmatmul.mubr.f32.gmra.mrb[0].mxu0 %v9620
    %v9622 = vpop.f32.mrb[0].mxu0
    %v9623 = vadd.f32 0.0, %v9622
    %v9624 = vpop.f32.mrb[0].mxu0
    %9625 = vmatprep.mubr.f32.mxu0 0.0
    %v9626 = vand.u32 %v9059, 4294901760
    %v9627 = vsub.f32 %v9059, %v9626
    %v9628 = vand.u32 %v9627, 4294901760
    %v9629 = vsub.f32 %v9627, %v9628
    %v9630 = vand.u32 %v9629, 4294901760
    %9631 = vmatmul.mubr.f32.gmra.mrb[0].mxu0 %v9630
    %v9632 = vpop.f32.mrb[0].mxu0
    %v9633 = vadd.f32 0.0, %v9632
    %v9634 = vpop.f32.mrb[0].mxu0
    %9635 = vdwg.mxu0
    %9636 = vmatprep.subr.mxu0 0.0
    %v9637 = vand.u32 %v8053, 4294901760
    %v9638 = vsub.f32 %v8053, %v9637
    %v9639 = vand.u32 %v9638, 4294901760
    %v9640 = vsub.f32 %v9638, %v9639
    %v9641 = vand.u32 %v9640, 4294901760
    %9642 = vmatpush1.msra.mxu0 %v9641
    %9643 = vmatprep.subr.mxu0 0.0
    %9644 = vmatpush1.msra.mxu0 0.0
    %9645 = vmatprep.subr.mxu0 0.0
    %9646 = vmatpush1.msra.mxu0 0.0
    %9647 = vmatprep.subr.mxu0 0.0
    %9648 = vmatpush1.msra.mxu0 0.0
    %9649 = vmatprep.subr.mxu0 0.0
    %9650 = vmatpush1.msra.mxu0 0.0
    %9651 = vmatprep.subr.mxu0 0.0
    %9652 = vmatpush1.msra.mxu0 0.0
    %9653 = vmatprep.subr.mxu0 0.0
    %9654 = vmatpush1.msra.mxu0 0.0
    %9655 = vmatprep.subr.mxu0 0.0
    %9656 = vmatpush1.msra.mxu0 0.0
    %9657 = vmatprep.subr.mxu0 0.0
    %9658 = vmatpush1.msra.mxu0 0.0
    %9659 = vmatprep.subr.mxu0 0.0
    %9660 = vmatpush1.msra.mxu0 0.0
    %9661 = vmatprep.subr.mxu0 0.0
    %9662 = vmatpush1.msra.mxu0 0.0
    %9663 = vmatprep.subr.mxu0 0.0
    %9664 = vmatpush1.msra.mxu0 0.0
    %9665 = vmatprep.subr.mxu0 0.0
    %9666 = vmatpush1.msra.mxu0 0.0
    %9667 = vmatprep.subr.mxu0 0.0
    %9668 = vmatpush1.msra.mxu0 0.0
    %9669 = vmatprep.subr.mxu0 0.0
    %9670 = vmatpush1.msra.mxu0 0.0
    %9671 = vmatprep.subr.mxu0 0.0
    %9672 = vmatpush1.msra.mxu0 0.0
    %9673 = vmatprep.subr.mxu0 0.0
    %9674 = vmatpush1.msra.mxu0 0.0
    %9675 = vmatprep.subr.mxu0 0.0
    %9676 = vmatpush1.msra.mxu0 0.0
    %9677 = vmatprep.subr.mxu0 0.0
    %9678 = vmatpush1.msra.mxu0 0.0
    %9679 = vmatprep.subr.mxu0 0.0
    %9680 = vmatpush1.msra.mxu0 0.0
    %9681 = vmatprep.subr.mxu0 0.0
    %9682 = vmatpush1.msra.mxu0 0.0
    %9683 = vmatprep.subr.mxu0 0.0
    %9684 = vmatpush1.msra.mxu0 0.0
    %9685 = vmatprep.subr.mxu0 0.0
    %9686 = vmatpush1.msra.mxu0 0.0
    %9687 = vmatprep.subr.mxu0 0.0
    %9688 = vmatpush1.msra.mxu0 0.0
    %9689 = vmatprep.subr.mxu0 0.0
    %9690 = vmatpush1.msra.mxu0 0.0
    %9691 = vmatprep.subr.mxu0 0.0
    %9692 = vmatpush1.msra.mxu0 0.0
    %9693 = vmatprep.subr.mxu0 0.0
    %9694 = vmatpush1.msra.mxu0 0.0
    %9695 = vmatprep.subr.mxu0 0.0
    %9696 = vmatpush1.msra.mxu0 0.0
    %9697 = vmatprep.subr.mxu0 0.0
    %9698 = vmatpush1.msra.mxu0 0.0
    %9699 = vmatprep.subr.mxu0 0.0
    %9700 = vmatpush1.msra.mxu0 0.0
    %9701 = vmatprep.subr.mxu0 0.0
    %9702 = vmatpush1.msra.mxu0 0.0
    %9703 = vmatprep.subr.mxu0 0.0
    %9704 = vmatpush1.msra.mxu0 0.0
    %9705 = vmatprep.mubr.f32.mxu0 0.0
    %v9706 = vand.u32 %v9056, 4294901760
    %9707 = vmatmul.mubr.f32.gmra.mrb[0].mxu0 %v9706
    %v9708 = vpop.f32.mrb[0].mxu0
    %v9709 = vadd.f32 %v9623, %v9708
    %v9710 = vpop.f32.mrb[0].mxu0
    %9711 = vmatprep.mubr.f32.mxu0 0.0
    %v9712 = vand.u32 %v9059, 4294901760
    %9713 = vmatmul.mubr.f32.gmra.mrb[0].mxu0 %v9712
    %v9714 = vpop.f32.mrb[0].mxu0
    %v9715 = vadd.f32 %v9633, %v9714
    %v9716 = vpop.f32.mrb[0].mxu0
    %9717 = vdwg.mxu0
    %9718 = vmatprep.subr.mxu0 0.0
    %v9719 = vand.u32 %v8053, 4294901760
    %v9720 = vsub.f32 %v8053, %v9719
    %9721 = vmatpush1.msra.mxu0 %v9720
    %9722 = vmatprep.subr.mxu0 0.0
    %9723 = vmatpush1.msra.mxu0 0.0
    %9724 = vmatprep.subr.mxu0 0.0
    %9725 = vmatpush1.msra.mxu0 0.0
    %9726 = vmatprep.subr.mxu0 0.0
    %9727 = vmatpush1.msra.mxu0 0.0
    %9728 = vmatprep.subr.mxu0 0.0
    %9729 = vmatpush1.msra.mxu0 0.0
    %9730 = vmatprep.subr.mxu0 0.0
    %9731 = vmatpush1.msra.mxu0 0.0
    %9732 = vmatprep.subr.mxu0 0.0
    %9733 = vmatpush1.msra.mxu0 0.0
    %9734 = vmatprep.subr.mxu0 0.0
    %9735 = vmatpush1.msra.mxu0 0.0
    %9736 = vmatprep.subr.mxu0 0.0
    %9737 = vmatpush1.msra.mxu0 0.0
    %9738 = vmatprep.subr.mxu0 0.0
    %9739 = vmatpush1.msra.mxu0 0.0
    %9740 = vmatprep.subr.mxu0 0.0
    %9741 = vmatpush1.msra.mxu0 0.0
    %9742 = vmatprep.subr.mxu0 0.0
    %9743 = vmatpush1.msra.mxu0 0.0
    %9744 = vmatprep.subr.mxu0 0.0
    %9745 = vmatpush1.msra.mxu0 0.0
    %9746 = vmatprep.subr.mxu0 0.0
    %9747 = vmatpush1.msra.mxu0 0.0
    %9748 = vmatprep.subr.mxu0 0.0
    %9749 = vmatpush1.msra.mxu0 0.0
    %9750 = vmatprep.subr.mxu0 0.0
    %9751 = vmatpush1.msra.mxu0 0.0
    %9752 = vmatprep.subr.mxu0 0.0
    %9753 = vmatpush1.msra.mxu0 0.0
    %9754 = vmatprep.subr.mxu0 0.0
    %9755 = vmatpush1.msra.mxu0 0.0
    %9756 = vmatprep.subr.mxu0 0.0
    %9757 = vmatpush1.msra.mxu0 0.0
    %9758 = vmatprep.subr.mxu0 0.0
    %9759 = vmatpush1.msra.mxu0 0.0
    %9760 = vmatprep.subr.mxu0 0.0
    %9761 = vmatpush1.msra.mxu0 0.0
    %9762 = vmatprep.subr.mxu0 0.0
    %9763 = vmatpush1.msra.mxu0 0.0
    %9764 = vmatprep.subr.mxu0 0.0
    %9765 = vmatpush1.msra.mxu0 0.0
    %9766 = vmatprep.subr.mxu0 0.0
    %9767 = vmatpush1.msra.mxu0 0.0
    %9768 = vmatprep.subr.mxu0 0.0
    %9769 = vmatpush1.msra.mxu0 0.0
    %9770 = vmatprep.subr.mxu0 0.0
    %9771 = vmatpush1.msra.mxu0 0.0
    %9772 = vmatprep.subr.mxu0 0.0
    %9773 = vmatpush1.msra.mxu0 0.0
    %9774 = vmatprep.subr.mxu0 0.0
    %9775 = vmatpush1.msra.mxu0 0.0
    %9776 = vmatprep.subr.mxu0 0.0
    %9777 = vmatpush1.msra.mxu0 0.0
    %9778 = vmatprep.subr.mxu0 0.0
    %9779 = vmatpush1.msra.mxu0 0.0
    %9780 = vmatprep.subr.mxu0 0.0
    %9781 = vmatpush1.msra.mxu0 0.0
    %9782 = vmatprep.subr.mxu0 0.0
    %9783 = vmatpush1.msra.mxu0 0.0
    %9784 = vmatprep.mubr.f32.mxu0 0.0
    %v9785 = vand.u32 %v9056, 4294901760
    %v9786 = vsub.f32 %v9056, %v9785
    %9787 = vmatmul.mubr.f32.gmra.mrb[0].mxu0 %v9786
    %v9788 = vpop.f32.mrb[0].mxu0
    %v9789 = vadd.f32 %v9709, %v9788
    %v9790 = vpop.f32.mrb[0].mxu0
    %9791 = vmatprep.mubr.f32.mxu0 0.0
    %v9792 = vand.u32 %v9059, 4294901760
    %v9793 = vsub.f32 %v9059, %v9792
    %9794 = vmatmul.mubr.f32.gmra.mrb[0].mxu0 %v9793
    %v9795 = vpop.f32.mrb[0].mxu0
    %v9796 = vadd.f32 %v9715, %v9795
    %v9797 = vpop.f32.mrb[0].mxu0
    %9798 = vdwg.mxu0
    %9799 = vmatprep.subr.mxu0 0.0
    %v9800 = vand.u32 %v8053, 4294901760
    %9801 = vmatpush1.msra.mxu0 %v9800
    %9802 = vmatprep.subr.mxu0 0.0
    %9803 = vmatpush1.msra.mxu0 0.0
    %9804 = vmatprep.subr.mxu0 0.0
    %9805 = vmatpush1.msra.mxu0 0.0
    %9806 = vmatprep.subr.mxu0 0.0
    %9807 = vmatpush1.msra.mxu0 0.0
    %9808 = vmatprep.subr.mxu0 0.0
    %9809 = vmatpush1.msra.mxu0 0.0
    %9810 = vmatprep.subr.mxu0 0.0
    %9811 = vmatpush1.msra.mxu0 0.0
    %9812 = vmatprep.subr.mxu0 0.0
    %9813 = vmatpush1.msra.mxu0 0.0
    %9814 = vmatprep.subr.mxu0 0.0
    %9815 = vmatpush1.msra.mxu0 0.0
    %9816 = vmatprep.subr.mxu0 0.0
    %9817 = vmatpush1.msra.mxu0 0.0
    %9818 = vmatprep.subr.mxu0 0.0
    %9819 = vmatpush1.msra.mxu0 0.0
    %9820 = vmatprep.subr.mxu0 0.0
    %9821 = vmatpush1.msra.mxu0 0.0
    %9822 = vmatprep.subr.mxu0 0.0
    %9823 = vmatpush1.msra.mxu0 0.0
    %9824 = vmatprep.subr.mxu0 0.0
    %9825 = vmatpush1.msra.mxu0 0.0
    %9826 = vmatprep.subr.mxu0 0.0
    %9827 = vmatpush1.msra.mxu0 0.0
    %9828 = vmatprep.subr.mxu0 0.0
    %9829 = vmatpush1.msra.mxu0 0.0
    %9830 = vmatprep.subr.mxu0 0.0
    %9831 = vmatpush1.msra.mxu0 0.0
    %9832 = vmatprep.subr.mxu0 0.0
    %9833 = vmatpush1.msra.mxu0 0.0
    %9834 = vmatprep.subr.mxu0 0.0
    %9835 = vmatpush1.msra.mxu0 0.0
    %9836 = vmatprep.subr.mxu0 0.0
    %9837 = vmatpush1.msra.mxu0 0.0
    %9838 = vmatprep.subr.mxu0 0.0
    %9839 = vmatpush1.msra.mxu0 0.0
    %9840 = vmatprep.subr.mxu0 0.0
    %9841 = vmatpush1.msra.mxu0 0.0
    %9842 = vmatprep.subr.mxu0 0.0
    %9843 = vmatpush1.msra.mxu0 0.0
    %9844 = vmatprep.subr.mxu0 0.0
    %9845 = vmatpush1.msra.mxu0 0.0
    %9846 = vmatprep.subr.mxu0 0.0
    %9847 = vmatpush1.msra.mxu0 0.0
    %9848 = vmatprep.subr.mxu0 0.0
    %9849 = vmatpush1.msra.mxu0 0.0
    %9850 = vmatprep.subr.mxu0 0.0
    %9851 = vmatpush1.msra.mxu0 0.0
    %9852 = vmatprep.subr.mxu0 0.0
    %9853 = vmatpush1.msra.mxu0 0.0
    %9854 = vmatprep.subr.mxu0 0.0
    %9855 = vmatpush1.msra.mxu0 0.0
    %9856 = vmatprep.subr.mxu0 0.0
    %9857 = vmatpush1.msra.mxu0 0.0
    %9858 = vmatprep.subr.mxu0 0.0
    %9859 = vmatpush1.msra.mxu0 0.0
    %9860 = vmatprep.subr.mxu0 0.0
    %9861 = vmatpush1.msra.mxu0 0.0
    %9862 = vmatprep.subr.mxu0 0.0
    %9863 = vmatpush1.msra.mxu0 0.0
    %9864 = vmatprep.mubr.f32.mxu0 0.0
    %v9865 = vand.u32 %v9056, 4294901760
    %v9866 = vsub.f32 %v9056, %v9865
    %v9867 = vand.u32 %v9866, 4294901760
    %9868 = vmatmul.mubr.f32.gmra.mrb[0].mxu0 %v9867
    %v9869 = vpop.f32.mrb[0].mxu0
    %v9870 = vadd.f32 %v9789, %v9869
    %v9871 = vpop.f32.mrb[0].mxu0
    %9872 = vmatprep.mubr.f32.mxu0 0.0
    %v9873 = vand.u32 %v9059, 4294901760
    %v9874 = vsub.f32 %v9059, %v9873
    %v9875 = vand.u32 %v9874, 4294901760
    %9876 = vmatmul.mubr.f32.gmra.mrb[0].mxu0 %v9875
    %v9877 = vpop.f32.mrb[0].mxu0
    %v9878 = vadd.f32 %v9796, %v9877
    %v9879 = vpop.f32.mrb[0].mxu0
    %9880 = vdwg.mxu0
    %9881 = vmatprep.subr.mxu0 0.0
    %v9882 = vand.u32 %v8053, 4294901760
    %v9883 = vsub.f32 %v8053, %v9882
    %v9884 = vand.u32 %v9883, 4294901760
    %9885 = vmatpush1.msra.mxu0 %v9884
    %9886 = vmatprep.subr.mxu0 0.0
    %9887 = vmatpush1.msra.mxu0 0.0
    %9888 = vmatprep.subr.mxu0 0.0
    %9889 = vmatpush1.msra.mxu0 0.0
    %9890 = vmatprep.subr.mxu0 0.0
    %9891 = vmatpush1.msra.mxu0 0.0
    %9892 = vmatprep.subr.mxu0 0.0
    %9893 = vmatpush1.msra.mxu0 0.0
    %9894 = vmatprep.subr.mxu0 0.0
    %9895 = vmatpush1.msra.mxu0 0.0
    %9896 = vmatprep.subr.mxu0 0.0
    %9897 = vmatpush1.msra.mxu0 0.0
    %9898 = vmatprep.subr.mxu0 0.0
    %9899 = vmatpush1.msra.mxu0 0.0
    %9900 = vmatprep.subr.mxu0 0.0
    %9901 = vmatpush1.msra.mxu0 0.0
    %9902 = vmatprep.subr.mxu0 0.0
    %9903 = vmatpush1.msra.mxu0 0.0
    %9904 = vmatprep.subr.mxu0 0.0
    %9905 = vmatpush1.msra.mxu0 0.0
    %9906 = vmatprep.subr.mxu0 0.0
    %9907 = vmatpush1.msra.mxu0 0.0
    %9908 = vmatprep.subr.mxu0 0.0
    %9909 = vmatpush1.msra.mxu0 0.0
    %9910 = vmatprep.subr.mxu0 0.0
    %9911 = vmatpush1.msra.mxu0 0.0
    %9912 = vmatprep.subr.mxu0 0.0
    %9913 = vmatpush1.msra.mxu0 0.0
    %9914 = vmatprep.subr.mxu0 0.0
    %9915 = vmatpush1.msra.mxu0 0.0
    %9916 = vmatprep.subr.mxu0 0.0
    %9917 = vmatpush1.msra.mxu0 0.0
    %9918 = vmatprep.subr.mxu0 0.0
    %9919 = vmatpush1.msra.mxu0 0.0
    %9920 = vmatprep.subr.mxu0 0.0
    %9921 = vmatpush1.msra.mxu0 0.0
    %9922 = vmatprep.subr.mxu0 0.0
    %9923 = vmatpush1.msra.mxu0 0.0
    %9924 = vmatprep.subr.mxu0 0.0
    %9925 = vmatpush1.msra.mxu0 0.0
    %9926 = vmatprep.subr.mxu0 0.0
    %9927 = vmatpush1.msra.mxu0 0.0
    %9928 = vmatprep.subr.mxu0 0.0
    %9929 = vmatpush1.msra.mxu0 0.0
    %9930 = vmatprep.subr.mxu0 0.0
    %9931 = vmatpush1.msra.mxu0 0.0
    %9932 = vmatprep.subr.mxu0 0.0
    %9933 = vmatpush1.msra.mxu0 0.0
    %9934 = vmatprep.subr.mxu0 0.0
    %9935 = vmatpush1.msra.mxu0 0.0
    %9936 = vmatprep.subr.mxu0 0.0
    %9937 = vmatpush1.msra.mxu0 0.0
    %9938 = vmatprep.subr.mxu0 0.0
    %9939 = vmatpush1.msra.mxu0 0.0
    %9940 = vmatprep.subr.mxu0 0.0
    %9941 = vmatpush1.msra.mxu0 0.0
    %9942 = vmatprep.subr.mxu0 0.0
    %9943 = vmatpush1.msra.mxu0 0.0
    %9944 = vmatprep.subr.mxu0 0.0
    %9945 = vmatpush1.msra.mxu0 0.0
    %9946 = vmatprep.subr.mxu0 0.0
    %9947 = vmatpush1.msra.mxu0 0.0
    %9948 = vmatprep.mubr.f32.mxu0 0.0
    %v9949 = vand.u32 %v9056, 4294901760
    %9950 = vmatmul.mubr.f32.gmra.mrb[0].mxu0 %v9949
    %v9951 = vpop.f32.mrb[0].mxu0
    %v9952 = vadd.f32 %v9870, %v9951
    %v9953 = vpop.f32.mrb[0].mxu0
    %9954 = vmatprep.mubr.f32.mxu0 0.0
    %v9955 = vand.u32 %v9059, 4294901760
    %9956 = vmatmul.mubr.f32.gmra.mrb[0].mxu0 %v9955
    %v9957 = vpop.f32.mrb[0].mxu0
    %v9958 = vadd.f32 %v9878, %v9957
    %v9959 = vpop.f32.mrb[0].mxu0
    %9960 = vdwg.mxu0
    %9961 = vmatprep.subr.mxu0 0.0
    %v9962 = vand.u32 %v8053, 4294901760
    %9963 = vmatpush1.msra.mxu0 %v9962
    %9964 = vmatprep.subr.mxu0 0.0
    %9965 = vmatpush1.msra.mxu0 0.0
    %9966 = vmatprep.subr.mxu0 0.0
    %9967 = vmatpush1.msra.mxu0 0.0
    %9968 = vmatprep.subr.mxu0 0.0
    %9969 = vmatpush1.msra.mxu0 0.0
    %9970 = vmatprep.subr.mxu0 0.0
    %9971 = vmatpush1.msra.mxu0 0.0
    %9972 = vmatprep.subr.mxu0 0.0
    %9973 = vmatpush1.msra.mxu0 0.0
    %9974 = vmatprep.subr.mxu0 0.0
    %9975 = vmatpush1.msra.mxu0 0.0
    %9976 = vmatprep.subr.mxu0 0.0
    %9977 = vmatpush1.msra.mxu0 0.0
    %9978 = vmatprep.subr.mxu0 0.0
    %9979 = vmatpush1.msra.mxu0 0.0
    %9980 = vmatprep.subr.mxu0 0.0
    %9981 = vmatpush1.msra.mxu0 0.0
    %9982 = vmatprep.subr.mxu0 0.0
    %9983 = vmatpush1.msra.mxu0 0.0
    %9984 = vmatprep.subr.mxu0 0.0
    %9985 = vmatpush1.msra.mxu0 0.0
    %9986 = vmatprep.subr.mxu0 0.0
    %9987 = vmatpush1.msra.mxu0 0.0
    %9988 = vmatprep.subr.mxu0 0.0
    %9989 = vmatpush1.msra.mxu0 0.0
    %9990 = vmatprep.subr.mxu0 0.0
    %9991 = vmatpush1.msra.mxu0 0.0
    %9992 = vmatprep.subr.mxu0 0.0
    %9993 = vmatpush1.msra.mxu0 0.0
    %9994 = vmatprep.subr.mxu0 0.0
    %9995 = vmatpush1.msra.mxu0 0.0
    %9996 = vmatprep.subr.mxu0 0.0
    %9997 = vmatpush1.msra.mxu0 0.0
    %9998 = vmatprep.subr.mxu0 0.0
    %9999 = vmatpush1.msra.mxu0 0.0
    %10000 = vmatprep.subr.mxu0 0.0
    %10001 = vmatpush1.msra.mxu0 0.0
    %10002 = vmatprep.subr.mxu0 0.0
    %10003 = vmatpush1.msra.mxu0 0.0
    %10004 = vmatprep.subr.mxu0 0.0
    %10005 = vmatpush1.msra.mxu0 0.0
    %10006 = vmatprep.subr.mxu0 0.0
    %10007 = vmatpush1.msra.mxu0 0.0
    %10008 = vmatprep.subr.mxu0 0.0
    %10009 = vmatpush1.msra.mxu0 0.0
    %10010 = vmatprep.subr.mxu0 0.0
    %10011 = vmatpush1.msra.mxu0 0.0
    %10012 = vmatprep.subr.mxu0 0.0
    %10013 = vmatpush1.msra.mxu0 0.0
    %10014 = vmatprep.subr.mxu0 0.0
    %10015 = vmatpush1.msra.mxu0 0.0
    %10016 = vmatprep.subr.mxu0 0.0
    %10017 = vmatpush1.msra.mxu0 0.0
    %10018 = vmatprep.subr.mxu0 0.0
    %10019 = vmatpush1.msra.mxu0 0.0
    %10020 = vmatprep.subr.mxu0 0.0
    %10021 = vmatpush1.msra.mxu0 0.0
    %10022 = vmatprep.subr.mxu0 0.0
    %10023 = vmatpush1.msra.mxu0 0.0
    %10024 = vmatprep.subr.mxu0 0.0
    %10025 = vmatpush1.msra.mxu0 0.0
    %10026 = vmatprep.mubr.f32.mxu0 0.0
    %v10027 = vand.u32 %v9056, 4294901760
    %10028 = vmatmul.mubr.f32.gmra.mrb[0].mxu0 %v10027
    %v10029 = vpop.f32.mrb[0].mxu0
    %v10030 = vadd.f32 %v9952, %v10029
    %v10031 = vpop.f32.mrb[0].mxu0
    %10032 = vmatprep.mubr.f32.mxu0 0.0
    %v10033 = vand.u32 %v9059, 4294901760
    %10034 = vmatmul.mubr.f32.gmra.mrb[0].mxu0 %v10033
    %v10035 = vpop.f32.mrb[0].mxu0
    %v10036 = vadd.f32 %v9958, %v10035
    %v10037 = vpop.f32.mrb[0].mxu0
    %10038 = vdwg.mxu0
    %10039 = vmatprep.subr.mxu0 0.0
    %v10040 = vand.u32 %v8055, 4294901760
    %10041 = vmatpush1.msra.mxu0 %v10040
    %10042 = vmatprep.subr.mxu0 0.0
    %10043 = vmatpush1.msra.mxu0 0.0
    %10044 = vmatprep.subr.mxu0 0.0
    %10045 = vmatpush1.msra.mxu0 0.0
    %10046 = vmatprep.subr.mxu0 0.0
    %10047 = vmatpush1.msra.mxu0 0.0
    %10048 = vmatprep.subr.mxu0 0.0
    %10049 = vmatpush1.msra.mxu0 0.0
    %10050 = vmatprep.subr.mxu0 0.0
    %10051 = vmatpush1.msra.mxu0 0.0
    %10052 = vmatprep.subr.mxu0 0.0
    %10053 = vmatpush1.msra.mxu0 0.0
    %10054 = vmatprep.subr.mxu0 0.0
    %10055 = vmatpush1.msra.mxu0 0.0
    %10056 = vmatprep.subr.mxu0 0.0
    %10057 = vmatpush1.msra.mxu0 0.0
    %10058 = vmatprep.subr.mxu0 0.0
    %10059 = vmatpush1.msra.mxu0 0.0
    %10060 = vmatprep.subr.mxu0 0.0
    %10061 = vmatpush1.msra.mxu0 0.0
    %10062 = vmatprep.subr.mxu0 0.0
    %10063 = vmatpush1.msra.mxu0 0.0
    %10064 = vmatprep.subr.mxu0 0.0
    %10065 = vmatpush1.msra.mxu0 0.0
    %10066 = vmatprep.subr.mxu0 0.0
    %10067 = vmatpush1.msra.mxu0 0.0
    %10068 = vmatprep.subr.mxu0 0.0
    %10069 = vmatpush1.msra.mxu0 0.0
    %10070 = vmatprep.subr.mxu0 0.0
    %10071 = vmatpush1.msra.mxu0 0.0
    %10072 = vmatprep.subr.mxu0 0.0
    %10073 = vmatpush1.msra.mxu0 0.0
    %10074 = vmatprep.subr.mxu0 0.0
    %10075 = vmatpush1.msra.mxu0 0.0
    %10076 = vmatprep.subr.mxu0 0.0
    %10077 = vmatpush1.msra.mxu0 0.0
    %10078 = vmatprep.subr.mxu0 0.0
    %10079 = vmatpush1.msra.mxu0 0.0
    %10080 = vmatprep.subr.mxu0 0.0
    %10081 = vmatpush1.msra.mxu0 0.0
    %10082 = vmatprep.subr.mxu0 0.0
    %10083 = vmatpush1.msra.mxu0 0.0
    %10084 = vmatprep.subr.mxu0 0.0
    %10085 = vmatpush1.msra.mxu0 0.0
    %10086 = vmatprep.subr.mxu0 0.0
    %10087 = vmatpush1.msra.mxu0 0.0
    %10088 = vmatprep.subr.mxu0 0.0
    %10089 = vmatpush1.msra.mxu0 0.0
    %10090 = vmatprep.subr.mxu0 0.0
    %10091 = vmatpush1.msra.mxu0 0.0
    %10092 = vmatprep.subr.mxu0 0.0
    %10093 = vmatpush1.msra.mxu0 0.0
    %10094 = vmatprep.subr.mxu0 0.0
    %10095 = vmatpush1.msra.mxu0 0.0
    %10096 = vmatprep.subr.mxu0 0.0
    %10097 = vmatpush1.msra.mxu0 0.0
    %10098 = vmatprep.subr.mxu0 0.0
    %10099 = vmatpush1.msra.mxu0 0.0
    %10100 = vmatprep.subr.mxu0 0.0
    %10101 = vmatpush1.msra.mxu0 0.0
    %10102 = vmatprep.subr.mxu0 0.0
    %10103 = vmatpush1.msra.mxu0 0.0
    %10104 = vmatprep.mubr.f32.mxu0 0.0
    %v10105 = vand.u32 %v9056, 4294901760
    %v10106 = vsub.f32 %v9056, %v10105
    %v10107 = vand.u32 %v10106, 4294901760
    %v10108 = vsub.f32 %v10106, %v10107
    %v10109 = vand.u32 %v10108, 4294901760
    %10110 = vmatmul.mubr.f32.gmra.mrb[0].mxu0 %v10109
    %v10111 = vpop.f32.mrb[0].mxu0
    %v10112 = vadd.f32 0.0, %v10111
    %v10113 = vpop.f32.mrb[0].mxu0
    %10114 = vmatprep.mubr.f32.mxu0 0.0
    %v10115 = vand.u32 %v9059, 4294901760
    %v10116 = vsub.f32 %v9059, %v10115
    %v10117 = vand.u32 %v10116, 4294901760
    %v10118 = vsub.f32 %v10116, %v10117
    %v10119 = vand.u32 %v10118, 4294901760
    %10120 = vmatmul.mubr.f32.gmra.mrb[0].mxu0 %v10119
    %v10121 = vpop.f32.mrb[0].mxu0
    %v10122 = vadd.f32 0.0, %v10121
    %v10123 = vpop.f32.mrb[0].mxu0
    %10124 = vdwg.mxu0
    %10125 = vmatprep.subr.mxu0 0.0
    %v10126 = vand.u32 %v8055, 4294901760
    %v10127 = vsub.f32 %v8055, %v10126
    %v10128 = vand.u32 %v10127, 4294901760
    %v10129 = vsub.f32 %v10127, %v10128
    %v10130 = vand.u32 %v10129, 4294901760
    %10131 = vmatpush1.msra.mxu0 %v10130
    %10132 = vmatprep.subr.mxu0 0.0
    %10133 = vmatpush1.msra.mxu0 0.0
    %10134 = vmatprep.subr.mxu0 0.0
    %10135 = vmatpush1.msra.mxu0 0.0
    %10136 = vmatprep.subr.mxu0 0.0
    %10137 = vmatpush1.msra.mxu0 0.0
    %10138 = vmatprep.subr.mxu0 0.0
    %10139 = vmatpush1.msra.mxu0 0.0
    %10140 = vmatprep.subr.mxu0 0.0
    %10141 = vmatpush1.msra.mxu0 0.0
    %10142 = vmatprep.subr.mxu0 0.0
    %10143 = vmatpush1.msra.mxu0 0.0
    %10144 = vmatprep.subr.mxu0 0.0
    %10145 = vmatpush1.msra.mxu0 0.0
    %10146 = vmatprep.subr.mxu0 0.0
    %10147 = vmatpush1.msra.mxu0 0.0
    %10148 = vmatprep.subr.mxu0 0.0
    %10149 = vmatpush1.msra.mxu0 0.0
    %10150 = vmatprep.subr.mxu0 0.0
    %10151 = vmatpush1.msra.mxu0 0.0
    %10152 = vmatprep.subr.mxu0 0.0
    %10153 = vmatpush1.msra.mxu0 0.0
    %10154 = vmatprep.subr.mxu0 0.0
    %10155 = vmatpush1.msra.mxu0 0.0
    %10156 = vmatprep.subr.mxu0 0.0
    %10157 = vmatpush1.msra.mxu0 0.0
    %10158 = vmatprep.subr.mxu0 0.0
    %10159 = vmatpush1.msra.mxu0 0.0
    %10160 = vmatprep.subr.mxu0 0.0
    %10161 = vmatpush1.msra.mxu0 0.0
    %10162 = vmatprep.subr.mxu0 0.0
    %10163 = vmatpush1.msra.mxu0 0.0
    %10164 = vmatprep.subr.mxu0 0.0
    %10165 = vmatpush1.msra.mxu0 0.0
    %10166 = vmatprep.subr.mxu0 0.0
    %10167 = vmatpush1.msra.mxu0 0.0
    %10168 = vmatprep.subr.mxu0 0.0
    %10169 = vmatpush1.msra.mxu0 0.0
    %10170 = vmatprep.subr.mxu0 0.0
    %10171 = vmatpush1.msra.mxu0 0.0
    %10172 = vmatprep.subr.mxu0 0.0
    %10173 = vmatpush1.msra.mxu0 0.0
    %10174 = vmatprep.subr.mxu0 0.0
    %10175 = vmatpush1.msra.mxu0 0.0
    %10176 = vmatprep.subr.mxu0 0.0
    %10177 = vmatpush1.msra.mxu0 0.0
    %10178 = vmatprep.subr.mxu0 0.0
    %10179 = vmatpush1.msra.mxu0 0.0
    %10180 = vmatprep.subr.mxu0 0.0
    %10181 = vmatpush1.msra.mxu0 0.0
    %10182 = vmatprep.subr.mxu0 0.0
    %10183 = vmatpush1.msra.mxu0 0.0
    %10184 = vmatprep.subr.mxu0 0.0
    %10185 = vmatpush1.msra.mxu0 0.0
    %10186 = vmatprep.subr.mxu0 0.0
    %10187 = vmatpush1.msra.mxu0 0.0
    %10188 = vmatprep.subr.mxu0 0.0
    %10189 = vmatpush1.msra.mxu0 0.0
    %10190 = vmatprep.subr.mxu0 0.0
    %10191 = vmatpush1.msra.mxu0 0.0
    %10192 = vmatprep.subr.mxu0 0.0
    %10193 = vmatpush1.msra.mxu0 0.0
    %10194 = vmatprep.mubr.f32.mxu0 0.0
    %v10195 = vand.u32 %v9056, 4294901760
    %10196 = vmatmul.mubr.f32.gmra.mrb[0].mxu0 %v10195
    %v10197 = vpop.f32.mrb[0].mxu0
    %v10198 = vadd.f32 %v10112, %v10197
    %v10199 = vpop.f32.mrb[0].mxu0
    %10200 = vmatprep.mubr.f32.mxu0 0.0
    %v10201 = vand.u32 %v9059, 4294901760
    %10202 = vmatmul.mubr.f32.gmra.mrb[0].mxu0 %v10201
    %v10203 = vpop.f32.mrb[0].mxu0
    %v10204 = vadd.f32 %v10122, %v10203
    %v10205 = vpop.f32.mrb[0].mxu0
    %10206 = vdwg.mxu0
    %10207 = vmatprep.subr.mxu0 0.0
    %v10208 = vand.u32 %v8055, 4294901760
    %v10209 = vsub.f32 %v8055, %v10208
    %10210 = vmatpush1.msra.mxu0 %v10209
    %10211 = vmatprep.subr.mxu0 0.0
    %10212 = vmatpush1.msra.mxu0 0.0
    %10213 = vmatprep.subr.mxu0 0.0
    %10214 = vmatpush1.msra.mxu0 0.0
    %10215 = vmatprep.subr.mxu0 0.0
    %10216 = vmatpush1.msra.mxu0 0.0
    %10217 = vmatprep.subr.mxu0 0.0
    %10218 = vmatpush1.msra.mxu0 0.0
    %10219 = vmatprep.subr.mxu0 0.0
    %10220 = vmatpush1.msra.mxu0 0.0
    %10221 = vmatprep.subr.mxu0 0.0
    %10222 = vmatpush1.msra.mxu0 0.0
    %10223 = vmatprep.subr.mxu0 0.0
    %10224 = vmatpush1.msra.mxu0 0.0
    %10225 = vmatprep.subr.mxu0 0.0
    %10226 = vmatpush1.msra.mxu0 0.0
    %10227 = vmatprep.subr.mxu0 0.0
    %10228 = vmatpush1.msra.mxu0 0.0
    %10229 = vmatprep.subr.mxu0 0.0
    %10230 = vmatpush1.msra.mxu0 0.0
    %10231 = vmatprep.subr.mxu0 0.0
    %10232 = vmatpush1.msra.mxu0 0.0
    %10233 = vmatprep.subr.mxu0 0.0
    %10234 = vmatpush1.msra.mxu0 0.0
    %10235 = vmatprep.subr.mxu0 0.0
    %10236 = vmatpush1.msra.mxu0 0.0
    %10237 = vmatprep.subr.mxu0 0.0
    %10238 = vmatpush1.msra.mxu0 0.0
    %10239 = vmatprep.subr.mxu0 0.0
    %10240 = vmatpush1.msra.mxu0 0.0
    %10241 = vmatprep.subr.mxu0 0.0
    %10242 = vmatpush1.msra.mxu0 0.0
    %10243 = vmatprep.subr.mxu0 0.0
    %10244 = vmatpush1.msra.mxu0 0.0
    %10245 = vmatprep.subr.mxu0 0.0
    %10246 = vmatpush1.msra.mxu0 0.0
    %10247 = vmatprep.subr.mxu0 0.0
    %10248 = vmatpush1.msra.mxu0 0.0
    %10249 = vmatprep.subr.mxu0 0.0
    %10250 = vmatpush1.msra.mxu0 0.0
    %10251 = vmatprep.subr.mxu0 0.0
    %10252 = vmatpush1.msra.mxu0 0.0
    %10253 = vmatprep.subr.mxu0 0.0
    %10254 = vmatpush1.msra.mxu0 0.0
    %10255 = vmatprep.subr.mxu0 0.0
    %10256 = vmatpush1.msra.mxu0 0.0
    %10257 = vmatprep.subr.mxu0 0.0
    %10258 = vmatpush1.msra.mxu0 0.0
    %10259 = vmatprep.subr.mxu0 0.0
    %10260 = vmatpush1.msra.mxu0 0.0
    %10261 = vmatprep.subr.mxu0 0.0
    %10262 = vmatpush1.msra.mxu0 0.0
    %10263 = vmatprep.subr.mxu0 0.0
    %10264 = vmatpush1.msra.mxu0 0.0
    %10265 = vmatprep.subr.mxu0 0.0
    %10266 = vmatpush1.msra.mxu0 0.0
    %10267 = vmatprep.subr.mxu0 0.0
    %10268 = vmatpush1.msra.mxu0 0.0
    %10269 = vmatprep.subr.mxu0 0.0
    %10270 = vmatpush1.msra.mxu0 0.0
    %10271 = vmatprep.subr.mxu0 0.0
    %10272 = vmatpush1.msra.mxu0 0.0
    %10273 = vmatprep.mubr.f32.mxu0 0.0
    %v10274 = vand.u32 %v9056, 4294901760
    %v10275 = vsub.f32 %v9056, %v10274
    %10276 = vmatmul.mubr.f32.gmra.mrb[0].mxu0 %v10275
    %v10277 = vpop.f32.mrb[0].mxu0
    %v10278 = vadd.f32 %v10198, %v10277
    %v10279 = vpop.f32.mrb[0].mxu0
    %10280 = vmatprep.mubr.f32.mxu0 0.0
    %v10281 = vand.u32 %v9059, 4294901760
    %v10282 = vsub.f32 %v9059, %v10281
    %10283 = vmatmul.mubr.f32.gmra.mrb[0].mxu0 %v10282
    %v10284 = vpop.f32.mrb[0].mxu0
    %v10285 = vadd.f32 %v10204, %v10284
    %v10286 = vpop.f32.mrb[0].mxu0
    %10287 = vdwg.mxu0
    %10288 = vmatprep.subr.mxu0 0.0
    %v10289 = vand.u32 %v8055, 4294901760
    %10290 = vmatpush1.msra.mxu0 %v10289
    %10291 = vmatprep.subr.mxu0 0.0
    %10292 = vmatpush1.msra.mxu0 0.0
    %10293 = vmatprep.subr.mxu0 0.0
    %10294 = vmatpush1.msra.mxu0 0.0
    %10295 = vmatprep.subr.mxu0 0.0
    %10296 = vmatpush1.msra.mxu0 0.0
    %10297 = vmatprep.subr.mxu0 0.0
    %10298 = vmatpush1.msra.mxu0 0.0
    %10299 = vmatprep.subr.mxu0 0.0
    %10300 = vmatpush1.msra.mxu0 0.0
    %10301 = vmatprep.subr.mxu0 0.0
    %10302 = vmatpush1.msra.mxu0 0.0
    %10303 = vmatprep.subr.mxu0 0.0
    %10304 = vmatpush1.msra.mxu0 0.0
    %10305 = vmatprep.subr.mxu0 0.0
    %10306 = vmatpush1.msra.mxu0 0.0
    %10307 = vmatprep.subr.mxu0 0.0
    %10308 = vmatpush1.msra.mxu0 0.0
    %10309 = vmatprep.subr.mxu0 0.0
    %10310 = vmatpush1.msra.mxu0 0.0
    %10311 = vmatprep.subr.mxu0 0.0
    %10312 = vmatpush1.msra.mxu0 0.0
    %10313 = vmatprep.subr.mxu0 0.0
    %10314 = vmatpush1.msra.mxu0 0.0
    %10315 = vmatprep.subr.mxu0 0.0
    %10316 = vmatpush1.msra.mxu0 0.0
    %10317 = vmatprep.subr.mxu0 0.0
    %10318 = vmatpush1.msra.mxu0 0.0
    %10319 = vmatprep.subr.mxu0 0.0
    %10320 = vmatpush1.msra.mxu0 0.0
    %10321 = vmatprep.subr.mxu0 0.0
    %10322 = vmatpush1.msra.mxu0 0.0
    %10323 = vmatprep.subr.mxu0 0.0
    %10324 = vmatpush1.msra.mxu0 0.0
    %10325 = vmatprep.subr.mxu0 0.0
    %10326 = vmatpush1.msra.mxu0 0.0
    %10327 = vmatprep.subr.mxu0 0.0
    %10328 = vmatpush1.msra.mxu0 0.0
    %10329 = vmatprep.subr.mxu0 0.0
    %10330 = vmatpush1.msra.mxu0 0.0
    %10331 = vmatprep.subr.mxu0 0.0
    %10332 = vmatpush1.msra.mxu0 0.0
    %10333 = vmatprep.subr.mxu0 0.0
    %10334 = vmatpush1.msra.mxu0 0.0
    %10335 = vmatprep.subr.mxu0 0.0
    %10336 = vmatpush1.msra.mxu0 0.0
    %10337 = vmatprep.subr.mxu0 0.0
    %10338 = vmatpush1.msra.mxu0 0.0
    %10339 = vmatprep.subr.mxu0 0.0
    %10340 = vmatpush1.msra.mxu0 0.0
    %10341 = vmatprep.subr.mxu0 0.0
    %10342 = vmatpush1.msra.mxu0 0.0
    %10343 = vmatprep.subr.mxu0 0.0
    %10344 = vmatpush1.msra.mxu0 0.0
    %10345 = vmatprep.subr.mxu0 0.0
    %10346 = vmatpush1.msra.mxu0 0.0
    %10347 = vmatprep.subr.mxu0 0.0
    %10348 = vmatpush1.msra.mxu0 0.0
    %10349 = vmatprep.subr.mxu0 0.0
    %10350 = vmatpush1.msra.mxu0 0.0
    %10351 = vmatprep.subr.mxu0 0.0
    %10352 = vmatpush1.msra.mxu0 0.0
    %10353 = vmatprep.mubr.f32.mxu0 0.0
    %v10354 = vand.u32 %v9056, 4294901760
    %v10355 = vsub.f32 %v9056, %v10354
    %v10356 = vand.u32 %v10355, 4294901760
    %10357 = vmatmul.mubr.f32.gmra.mrb[0].mxu0 %v10356
    %v10358 = vpop.f32.mrb[0].mxu0
    %v10359 = vadd.f32 %v10278, %v10358
    %v10360 = vpop.f32.mrb[0].mxu0
    %10361 = vmatprep.mubr.f32.mxu0 0.0
    %v10362 = vand.u32 %v9059, 4294901760
    %v10363 = vsub.f32 %v9059, %v10362
    %v10364 = vand.u32 %v10363, 4294901760
    %10365 = vmatmul.mubr.f32.gmra.mrb[0].mxu0 %v10364
    %v10366 = vpop.f32.mrb[0].mxu0
    %v10367 = vadd.f32 %v10285, %v10366
    %v10368 = vpop.f32.mrb[0].mxu0
    %10369 = vdwg.mxu0
    %10370 = vmatprep.subr.mxu0 0.0
    %v10371 = vand.u32 %v8055, 4294901760
    %v10372 = vsub.f32 %v8055, %v10371
    %v10373 = vand.u32 %v10372, 4294901760
    %10374 = vmatpush1.msra.mxu0 %v10373
    %10375 = vmatprep.subr.mxu0 0.0
    %10376 = vmatpush1.msra.mxu0 0.0
    %10377 = vmatprep.subr.mxu0 0.0
    %10378 = vmatpush1.msra.mxu0 0.0
    %10379 = vmatprep.subr.mxu0 0.0
    %10380 = vmatpush1.msra.mxu0 0.0
    %10381 = vmatprep.subr.mxu0 0.0
    %10382 = vmatpush1.msra.mxu0 0.0
    %10383 = vmatprep.subr.mxu0 0.0
    %10384 = vmatpush1.msra.mxu0 0.0
    %10385 = vmatprep.subr.mxu0 0.0
    %10386 = vmatpush1.msra.mxu0 0.0
    %10387 = vmatprep.subr.mxu0 0.0
    %10388 = vmatpush1.msra.mxu0 0.0
    %10389 = vmatprep.subr.mxu0 0.0
    %10390 = vmatpush1.msra.mxu0 0.0
    %10391 = vmatprep.subr.mxu0 0.0
    %10392 = vmatpush1.msra.mxu0 0.0
    %10393 = vmatprep.subr.mxu0 0.0
    %10394 = vmatpush1.msra.mxu0 0.0
    %10395 = vmatprep.subr.mxu0 0.0
    %10396 = vmatpush1.msra.mxu0 0.0
    %10397 = vmatprep.subr.mxu0 0.0
    %10398 = vmatpush1.msra.mxu0 0.0
    %10399 = vmatprep.subr.mxu0 0.0
    %10400 = vmatpush1.msra.mxu0 0.0
    %10401 = vmatprep.subr.mxu0 0.0
    %10402 = vmatpush1.msra.mxu0 0.0
    %10403 = vmatprep.subr.mxu0 0.0
    %10404 = vmatpush1.msra.mxu0 0.0
    %10405 = vmatprep.subr.mxu0 0.0
    %10406 = vmatpush1.msra.mxu0 0.0
    %10407 = vmatprep.subr.mxu0 0.0
    %10408 = vmatpush1.msra.mxu0 0.0
    %10409 = vmatprep.subr.mxu0 0.0
    %10410 = vmatpush1.msra.mxu0 0.0
    %10411 = vmatprep.subr.mxu0 0.0
    %10412 = vmatpush1.msra.mxu0 0.0
    %10413 = vmatprep.subr.mxu0 0.0
    %10414 = vmatpush1.msra.mxu0 0.0
    %10415 = vmatprep.subr.mxu0 0.0
    %10416 = vmatpush1.msra.mxu0 0.0
    %10417 = vmatprep.subr.mxu0 0.0
    %10418 = vmatpush1.msra.mxu0 0.0
    %10419 = vmatprep.subr.mxu0 0.0
    %10420 = vmatpush1.msra.mxu0 0.0
    %10421 = vmatprep.subr.mxu0 0.0
    %10422 = vmatpush1.msra.mxu0 0.0
    %10423 = vmatprep.subr.mxu0 0.0
    %10424 = vmatpush1.msra.mxu0 0.0
    %10425 = vmatprep.subr.mxu0 0.0
    %10426 = vmatpush1.msra.mxu0 0.0
    %10427 = vmatprep.subr.mxu0 0.0
    %10428 = vmatpush1.msra.mxu0 0.0
    %10429 = vmatprep.subr.mxu0 0.0
    %10430 = vmatpush1.msra.mxu0 0.0
    %10431 = vmatprep.subr.mxu0 0.0
    %10432 = vmatpush1.msra.mxu0 0.0
    %10433 = vmatprep.subr.mxu0 0.0
    %10434 = vmatpush1.msra.mxu0 0.0
    %10435 = vmatprep.subr.mxu0 0.0
    %10436 = vmatpush1.msra.mxu0 0.0
    %10437 = vmatprep.mubr.f32.mxu0 0.0
    %v10438 = vand.u32 %v9056, 4294901760
    %10439 = vmatmul.mubr.f32.gmra.mrb[0].mxu0 %v10438
    %v10440 = vpop.f32.mrb[0].mxu0
    %v10441 = vadd.f32 %v10359, %v10440
    %v10442 = vpop.f32.mrb[0].mxu0
    %10443 = vmatprep.mubr.f32.mxu0 0.0
    %v10444 = vand.u32 %v9059, 4294901760
    %10445 = vmatmul.mubr.f32.gmra.mrb[0].mxu0 %v10444
    %v10446 = vpop.f32.mrb[0].mxu0
    %v10447 = vadd.f32 %v10367, %v10446
    %v10448 = vpop.f32.mrb[0].mxu0
    %10449 = vdwg.mxu0
    %10450 = vmatprep.subr.mxu0 0.0
    %v10451 = vand.u32 %v8055, 4294901760
    %10452 = vmatpush1.msra.mxu0 %v10451
    %10453 = vmatprep.subr.mxu0 0.0
    %10454 = vmatpush1.msra.mxu0 0.0
    %10455 = vmatprep.subr.mxu0 0.0
    %10456 = vmatpush1.msra.mxu0 0.0
    %10457 = vmatprep.subr.mxu0 0.0
    %10458 = vmatpush1.msra.mxu0 0.0
    %10459 = vmatprep.subr.mxu0 0.0
    %10460 = vmatpush1.msra.mxu0 0.0
    %10461 = vmatprep.subr.mxu0 0.0
    %10462 = vmatpush1.msra.mxu0 0.0
    %10463 = vmatprep.subr.mxu0 0.0
    %10464 = vmatpush1.msra.mxu0 0.0
    %10465 = vmatprep.subr.mxu0 0.0
    %10466 = vmatpush1.msra.mxu0 0.0
    %10467 = vmatprep.subr.mxu0 0.0
    %10468 = vmatpush1.msra.mxu0 0.0
    %10469 = vmatprep.subr.mxu0 0.0
    %10470 = vmatpush1.msra.mxu0 0.0
    %10471 = vmatprep.subr.mxu0 0.0
    %10472 = vmatpush1.msra.mxu0 0.0
    %10473 = vmatprep.subr.mxu0 0.0
    %10474 = vmatpush1.msra.mxu0 0.0
    %10475 = vmatprep.subr.mxu0 0.0
    %10476 = vmatpush1.msra.mxu0 0.0
    %10477 = vmatprep.subr.mxu0 0.0
    %10478 = vmatpush1.msra.mxu0 0.0
    %10479 = vmatprep.subr.mxu0 0.0
    %10480 = vmatpush1.msra.mxu0 0.0
    %10481 = vmatprep.subr.mxu0 0.0
    %10482 = vmatpush1.msra.mxu0 0.0
    %10483 = vmatprep.subr.mxu0 0.0
    %10484 = vmatpush1.msra.mxu0 0.0
    %10485 = vmatprep.subr.mxu0 0.0
    %10486 = vmatpush1.msra.mxu0 0.0
    %10487 = vmatprep.subr.mxu0 0.0
    %10488 = vmatpush1.msra.mxu0 0.0
    %10489 = vmatprep.subr.mxu0 0.0
    %10490 = vmatpush1.msra.mxu0 0.0
    %10491 = vmatprep.subr.mxu0 0.0
    %10492 = vmatpush1.msra.mxu0 0.0
    %10493 = vmatprep.subr.mxu0 0.0
    %10494 = vmatpush1.msra.mxu0 0.0
    %10495 = vmatprep.subr.mxu0 0.0
    %10496 = vmatpush1.msra.mxu0 0.0
    %10497 = vmatprep.subr.mxu0 0.0
    %10498 = vmatpush1.msra.mxu0 0.0
    %10499 = vmatprep.subr.mxu0 0.0
    %10500 = vmatpush1.msra.mxu0 0.0
    %10501 = vmatprep.subr.mxu0 0.0
    %10502 = vmatpush1.msra.mxu0 0.0
    %10503 = vmatprep.subr.mxu0 0.0
    %10504 = vmatpush1.msra.mxu0 0.0
    %10505 = vmatprep.subr.mxu0 0.0
    %10506 = vmatpush1.msra.mxu0 0.0
    %10507 = vmatprep.subr.mxu0 0.0
    %10508 = vmatpush1.msra.mxu0 0.0
    %10509 = vmatprep.subr.mxu0 0.0
    %10510 = vmatpush1.msra.mxu0 0.0
    %10511 = vmatprep.subr.mxu0 0.0
    %10512 = vmatpush1.msra.mxu0 0.0
    %10513 = vmatprep.subr.mxu0 0.0
    %10514 = vmatpush1.msra.mxu0 0.0
    %10515 = vmatprep.mubr.f32.mxu0 0.0
    %v10516 = vand.u32 %v9056, 4294901760
    %10517 = vmatmul.mubr.f32.gmra.mrb[0].mxu0 %v10516
    %v10518 = vpop.f32.mrb[0].mxu0
    %v10519 = vadd.f32 %v10441, %v10518
    %v10520 = vpop.f32.mrb[0].mxu0
    %10521 = vmatprep.mubr.f32.mxu0 0.0
    %v10522 = vand.u32 %v9059, 4294901760
    %10523 = vmatmul.mubr.f32.gmra.mrb[0].mxu0 %v10522
    %v10524 = vpop.f32.mrb[0].mxu0
    %v10525 = vadd.f32 %v10447, %v10524
    %v10526 = vpop.f32.mrb[0].mxu0
    %10527 = vdwg.mxu0
    %10528 = vmatprep.subr.mxu0 0.0
    %v10529 = vand.u32 %v8057, 4294901760
    %10530 = vmatpush1.msra.mxu0 %v10529
    %10531 = vmatprep.subr.mxu0 0.0
    %10532 = vmatpush1.msra.mxu0 0.0
    %10533 = vmatprep.subr.mxu0 0.0
    %10534 = vmatpush1.msra.mxu0 0.0
    %10535 = vmatprep.subr.mxu0 0.0
    %10536 = vmatpush1.msra.mxu0 0.0
    %10537 = vmatprep.subr.mxu0 0.0
    %10538 = vmatpush1.msra.mxu0 0.0
    %10539 = vmatprep.subr.mxu0 0.0
    %10540 = vmatpush1.msra.mxu0 0.0
    %10541 = vmatprep.subr.mxu0 0.0
    %10542 = vmatpush1.msra.mxu0 0.0
    %10543 = vmatprep.subr.mxu0 0.0
    %10544 = vmatpush1.msra.mxu0 0.0
    %10545 = vmatprep.subr.mxu0 0.0
    %10546 = vmatpush1.msra.mxu0 0.0
    %10547 = vmatprep.subr.mxu0 0.0
    %10548 = vmatpush1.msra.mxu0 0.0
    %10549 = vmatprep.subr.mxu0 0.0
    %10550 = vmatpush1.msra.mxu0 0.0
    %10551 = vmatprep.subr.mxu0 0.0
    %10552 = vmatpush1.msra.mxu0 0.0
    %10553 = vmatprep.subr.mxu0 0.0
    %10554 = vmatpush1.msra.mxu0 0.0
    %10555 = vmatprep.subr.mxu0 0.0
    %10556 = vmatpush1.msra.mxu0 0.0
    %10557 = vmatprep.subr.mxu0 0.0
    %10558 = vmatpush1.msra.mxu0 0.0
    %10559 = vmatprep.subr.mxu0 0.0
    %10560 = vmatpush1.msra.mxu0 0.0
    %10561 = vmatprep.subr.mxu0 0.0
    %10562 = vmatpush1.msra.mxu0 0.0
    %10563 = vmatprep.subr.mxu0 0.0
    %10564 = vmatpush1.msra.mxu0 0.0
    %10565 = vmatprep.subr.mxu0 0.0
    %10566 = vmatpush1.msra.mxu0 0.0
    %10567 = vmatprep.subr.mxu0 0.0
    %10568 = vmatpush1.msra.mxu0 0.0
    %10569 = vmatprep.subr.mxu0 0.0
    %10570 = vmatpush1.msra.mxu0 0.0
    %10571 = vmatprep.subr.mxu0 0.0
    %10572 = vmatpush1.msra.mxu0 0.0
    %10573 = vmatprep.subr.mxu0 0.0
    %10574 = vmatpush1.msra.mxu0 0.0
    %10575 = vmatprep.subr.mxu0 0.0
    %10576 = vmatpush1.msra.mxu0 0.0
    %10577 = vmatprep.subr.mxu0 0.0
    %10578 = vmatpush1.msra.mxu0 0.0
    %10579 = vmatprep.subr.mxu0 0.0
    %10580 = vmatpush1.msra.mxu0 0.0
    %10581 = vmatprep.subr.mxu0 0.0
    %10582 = vmatpush1.msra.mxu0 0.0
    %10583 = vmatprep.subr.mxu0 0.0
    %10584 = vmatpush1.msra.mxu0 0.0
    %10585 = vmatprep.subr.mxu0 0.0
    %10586 = vmatpush1.msra.mxu0 0.0
    %10587 = vmatprep.subr.mxu0 0.0
    %10588 = vmatpush1.msra.mxu0 0.0
    %10589 = vmatprep.subr.mxu0 0.0
    %10590 = vmatpush1.msra.mxu0 0.0
    %10591 = vmatprep.subr.mxu0 0.0
    %10592 = vmatpush1.msra.mxu0 0.0
    %10593 = vmatprep.mubr.f32.mxu0 0.0
    %v10594 = vand.u32 %v9056, 4294901760
    %v10595 = vsub.f32 %v9056, %v10594
    %v10596 = vand.u32 %v10595, 4294901760
    %v10597 = vsub.f32 %v10595, %v10596
    %v10598 = vand.u32 %v10597, 4294901760
    %10599 = vmatmul.mubr.f32.gmra.mrb[0].mxu0 %v10598
    %v10600 = vpop.f32.mrb[0].mxu0
    %v10601 = vadd.f32 0.0, %v10600
    %v10602 = vpop.f32.mrb[0].mxu0
    %10603 = vmatprep.mubr.f32.mxu0 0.0
    %v10604 = vand.u32 %v9059, 4294901760
    %v10605 = vsub.f32 %v9059, %v10604
    %v10606 = vand.u32 %v10605, 4294901760
    %v10607 = vsub.f32 %v10605, %v10606
    %v10608 = vand.u32 %v10607, 4294901760
    %10609 = vmatmul.mubr.f32.gmra.mrb[0].mxu0 %v10608
    %v10610 = vpop.f32.mrb[0].mxu0
    %v10611 = vadd.f32 0.0, %v10610
    %v10612 = vpop.f32.mrb[0].mxu0
    %10613 = vdwg.mxu0
    %10614 = vmatprep.subr.mxu0 0.0
    %v10615 = vand.u32 %v8057, 4294901760
    %v10616 = vsub.f32 %v8057, %v10615
    %v10617 = vand.u32 %v10616, 4294901760
    %v10618 = vsub.f32 %v10616, %v10617
    %v10619 = vand.u32 %v10618, 4294901760
    %10620 = vmatpush1.msra.mxu0 %v10619
    %10621 = vmatprep.subr.mxu0 0.0
    %10622 = vmatpush1.msra.mxu0 0.0
    %10623 = vmatprep.subr.mxu0 0.0
    %10624 = vmatpush1.msra.mxu0 0.0
    %10625 = vmatprep.subr.mxu0 0.0
    %10626 = vmatpush1.msra.mxu0 0.0
    %10627 = vmatprep.subr.mxu0 0.0
    %10628 = vmatpush1.msra.mxu0 0.0
    %10629 = vmatprep.subr.mxu0 0.0
    %10630 = vmatpush1.msra.mxu0 0.0
    %10631 = vmatprep.subr.mxu0 0.0
    %10632 = vmatpush1.msra.mxu0 0.0
    %10633 = vmatprep.subr.mxu0 0.0
    %10634 = vmatpush1.msra.mxu0 0.0
    %10635 = vmatprep.subr.mxu0 0.0
    %10636 = vmatpush1.msra.mxu0 0.0
    %10637 = vmatprep.subr.mxu0 0.0
    %10638 = vmatpush1.msra.mxu0 0.0
    %10639 = vmatprep.subr.mxu0 0.0
    %10640 = vmatpush1.msra.mxu0 0.0
    %10641 = vmatprep.subr.mxu0 0.0
    %10642 = vmatpush1.msra.mxu0 0.0
    %10643 = vmatprep.subr.mxu0 0.0
    %10644 = vmatpush1.msra.mxu0 0.0
    %10645 = vmatprep.subr.mxu0 0.0
    %10646 = vmatpush1.msra.mxu0 0.0
    %10647 = vmatprep.subr.mxu0 0.0
    %10648 = vmatpush1.msra.mxu0 0.0
    %10649 = vmatprep.subr.mxu0 0.0
    %10650 = vmatpush1.msra.mxu0 0.0
    %10651 = vmatprep.subr.mxu0 0.0
    %10652 = vmatpush1.msra.mxu0 0.0
    %10653 = vmatprep.subr.mxu0 0.0
    %10654 = vmatpush1.msra.mxu0 0.0
    %10655 = vmatprep.subr.mxu0 0.0
    %10656 = vmatpush1.msra.mxu0 0.0
    %10657 = vmatprep.subr.mxu0 0.0
    %10658 = vmatpush1.msra.mxu0 0.0
    %10659 = vmatprep.subr.mxu0 0.0
    %10660 = vmatpush1.msra.mxu0 0.0
    %10661 = vmatprep.subr.mxu0 0.0
    %10662 = vmatpush1.msra.mxu0 0.0
    %10663 = vmatprep.subr.mxu0 0.0
    %10664 = vmatpush1.msra.mxu0 0.0
    %10665 = vmatprep.subr.mxu0 0.0
    %10666 = vmatpush1.msra.mxu0 0.0
    %10667 = vmatprep.subr.mxu0 0.0
    %10668 = vmatpush1.msra.mxu0 0.0
    %10669 = vmatprep.subr.mxu0 0.0
    %10670 = vmatpush1.msra.mxu0 0.0
    %10671 = vmatprep.subr.mxu0 0.0
    %10672 = vmatpush1.msra.mxu0 0.0
    %10673 = vmatprep.subr.mxu0 0.0
    %10674 = vmatpush1.msra.mxu0 0.0
    %10675 = vmatprep.subr.mxu0 0.0
    %10676 = vmatpush1.msra.mxu0 0.0
    %10677 = vmatprep.subr.mxu0 0.0
    %10678 = vmatpush1.msra.mxu0 0.0
    %10679 = vmatprep.subr.mxu0 0.0
    %10680 = vmatpush1.msra.mxu0 0.0
    %10681 = vmatprep.subr.mxu0 0.0
    %10682 = vmatpush1.msra.mxu0 0.0
    %10683 = vmatprep.mubr.f32.mxu0 0.0
    %v10684 = vand.u32 %v9056, 4294901760
    %10685 = vmatmul.mubr.f32.gmra.mrb[0].mxu0 %v10684
    %v10686 = vpop.f32.mrb[0].mxu0
    %v10687 = vadd.f32 %v10601, %v10686
    %v10688 = vpop.f32.mrb[0].mxu0
    %10689 = vmatprep.mubr.f32.mxu0 0.0
    %v10690 = vand.u32 %v9059, 4294901760
    %10691 = vmatmul.mubr.f32.gmra.mrb[0].mxu0 %v10690
    %v10692 = vpop.f32.mrb[0].mxu0
    %v10693 = vadd.f32 %v10611, %v10692
    %v10694 = vpop.f32.mrb[0].mxu0
    %10695 = vdwg.mxu0
    %10696 = vmatprep.subr.mxu0 0.0
    %v10697 = vand.u32 %v8057, 4294901760
    %v10698 = vsub.f32 %v8057, %v10697
    %10699 = vmatpush1.msra.mxu0 %v10698
    %10700 = vmatprep.subr.mxu0 0.0
    %10701 = vmatpush1.msra.mxu0 0.0
    %10702 = vmatprep.subr.mxu0 0.0
    %10703 = vmatpush1.msra.mxu0 0.0
    %10704 = vmatprep.subr.mxu0 0.0
    %10705 = vmatpush1.msra.mxu0 0.0
    %10706 = vmatprep.subr.mxu0 0.0
    %10707 = vmatpush1.msra.mxu0 0.0
    %10708 = vmatprep.subr.mxu0 0.0
    %10709 = vmatpush1.msra.mxu0 0.0
    %10710 = vmatprep.subr.mxu0 0.0
    %10711 = vmatpush1.msra.mxu0 0.0
    %10712 = vmatprep.subr.mxu0 0.0
    %10713 = vmatpush1.msra.mxu0 0.0
    %10714 = vmatprep.subr.mxu0 0.0
    %10715 = vmatpush1.msra.mxu0 0.0
    %10716 = vmatprep.subr.mxu0 0.0
    %10717 = vmatpush1.msra.mxu0 0.0
    %10718 = vmatprep.subr.mxu0 0.0
    %10719 = vmatpush1.msra.mxu0 0.0
    %10720 = vmatprep.subr.mxu0 0.0
    %10721 = vmatpush1.msra.mxu0 0.0
    %10722 = vmatprep.subr.mxu0 0.0
    %10723 = vmatpush1.msra.mxu0 0.0
    %10724 = vmatprep.subr.mxu0 0.0
    %10725 = vmatpush1.msra.mxu0 0.0
    %10726 = vmatprep.subr.mxu0 0.0
    %10727 = vmatpush1.msra.mxu0 0.0
    %10728 = vmatprep.subr.mxu0 0.0
    %10729 = vmatpush1.msra.mxu0 0.0
    %10730 = vmatprep.subr.mxu0 0.0
    %10731 = vmatpush1.msra.mxu0 0.0
    %10732 = vmatprep.subr.mxu0 0.0
    %10733 = vmatpush1.msra.mxu0 0.0
    %10734 = vmatprep.subr.mxu0 0.0
    %10735 = vmatpush1.msra.mxu0 0.0
    %10736 = vmatprep.subr.mxu0 0.0
    %10737 = vmatpush1.msra.mxu0 0.0
    %10738 = vmatprep.subr.mxu0 0.0
    %10739 = vmatpush1.msra.mxu0 0.0
    %10740 = vmatprep.subr.mxu0 0.0
    %10741 = vmatpush1.msra.mxu0 0.0
    %10742 = vmatprep.subr.mxu0 0.0
    %10743 = vmatpush1.msra.mxu0 0.0
    %10744 = vmatprep.subr.mxu0 0.0
    %10745 = vmatpush1.msra.mxu0 0.0
    %10746 = vmatprep.subr.mxu0 0.0
    %10747 = vmatpush1.msra.mxu0 0.0
    %10748 = vmatprep.subr.mxu0 0.0
    %10749 = vmatpush1.msra.mxu0 0.0
    %10750 = vmatprep.subr.mxu0 0.0
    %10751 = vmatpush1.msra.mxu0 0.0
    %10752 = vmatprep.subr.mxu0 0.0
    %10753 = vmatpush1.msra.mxu0 0.0
    %10754 = vmatprep.subr.mxu0 0.0
    %10755 = vmatpush1.msra.mxu0 0.0
    %10756 = vmatprep.subr.mxu0 0.0
    %10757 = vmatpush1.msra.mxu0 0.0
    %10758 = vmatprep.subr.mxu0 0.0
    %10759 = vmatpush1.msra.mxu0 0.0
    %10760 = vmatprep.subr.mxu0 0.0
    %10761 = vmatpush1.msra.mxu0 0.0
    %10762 = vmatprep.mubr.f32.mxu0 0.0
    %v10763 = vand.u32 %v9056, 4294901760
    %v10764 = vsub.f32 %v9056, %v10763
    %10765 = vmatmul.mubr.f32.gmra.mrb[0].mxu0 %v10764
    %v10766 = vpop.f32.mrb[0].mxu0
    %v10767 = vadd.f32 %v10687, %v10766
    %v10768 = vpop.f32.mrb[0].mxu0
    %10769 = vmatprep.mubr.f32.mxu0 0.0
    %v10770 = vand.u32 %v9059, 4294901760
    %v10771 = vsub.f32 %v9059, %v10770
    %10772 = vmatmul.mubr.f32.gmra.mrb[0].mxu0 %v10771
    %v10773 = vpop.f32.mrb[0].mxu0
    %v10774 = vadd.f32 %v10693, %v10773
    %v10775 = vpop.f32.mrb[0].mxu0
    %10776 = vdwg.mxu0
    %10777 = vmatprep.subr.mxu0 0.0
    %v10778 = vand.u32 %v8057, 4294901760
    %10779 = vmatpush1.msra.mxu0 %v10778
    %10780 = vmatprep.subr.mxu0 0.0
    %10781 = vmatpush1.msra.mxu0 0.0
    %10782 = vmatprep.subr.mxu0 0.0
    %10783 = vmatpush1.msra.mxu0 0.0
    %10784 = vmatprep.subr.mxu0 0.0
    %10785 = vmatpush1.msra.mxu0 0.0
    %10786 = vmatprep.subr.mxu0 0.0
    %10787 = vmatpush1.msra.mxu0 0.0
    %10788 = vmatprep.subr.mxu0 0.0
    %10789 = vmatpush1.msra.mxu0 0.0
    %10790 = vmatprep.subr.mxu0 0.0
    %10791 = vmatpush1.msra.mxu0 0.0
    %10792 = vmatprep.subr.mxu0 0.0
    %10793 = vmatpush1.msra.mxu0 0.0
    %10794 = vmatprep.subr.mxu0 0.0
    %10795 = vmatpush1.msra.mxu0 0.0
    %10796 = vmatprep.subr.mxu0 0.0
    %10797 = vmatpush1.msra.mxu0 0.0
    %10798 = vmatprep.subr.mxu0 0.0
    %10799 = vmatpush1.msra.mxu0 0.0
    %10800 = vmatprep.subr.mxu0 0.0
    %10801 = vmatpush1.msra.mxu0 0.0
    %10802 = vmatprep.subr.mxu0 0.0
    %10803 = vmatpush1.msra.mxu0 0.0
    %10804 = vmatprep.subr.mxu0 0.0
    %10805 = vmatpush1.msra.mxu0 0.0
    %10806 = vmatprep.subr.mxu0 0.0
    %10807 = vmatpush1.msra.mxu0 0.0
    %10808 = vmatprep.subr.mxu0 0.0
    %10809 = vmatpush1.msra.mxu0 0.0
    %10810 = vmatprep.subr.mxu0 0.0
    %10811 = vmatpush1.msra.mxu0 0.0
    %10812 = vmatprep.subr.mxu0 0.0
    %10813 = vmatpush1.msra.mxu0 0.0
    %10814 = vmatprep.subr.mxu0 0.0
    %10815 = vmatpush1.msra.mxu0 0.0
    %10816 = vmatprep.subr.mxu0 0.0
    %10817 = vmatpush1.msra.mxu0 0.0
    %10818 = vmatprep.subr.mxu0 0.0
    %10819 = vmatpush1.msra.mxu0 0.0
    %10820 = vmatprep.subr.mxu0 0.0
    %10821 = vmatpush1.msra.mxu0 0.0
    %10822 = vmatprep.subr.mxu0 0.0
    %10823 = vmatpush1.msra.mxu0 0.0
    %10824 = vmatprep.subr.mxu0 0.0
    %10825 = vmatpush1.msra.mxu0 0.0
    %10826 = vmatprep.subr.mxu0 0.0
    %10827 = vmatpush1.msra.mxu0 0.0
    %10828 = vmatprep.subr.mxu0 0.0
    %10829 = vmatpush1.msra.mxu0 0.0
    %10830 = vmatprep.subr.mxu0 0.0
    %10831 = vmatpush1.msra.mxu0 0.0
    %10832 = vmatprep.subr.mxu0 0.0
    %10833 = vmatpush1.msra.mxu0 0.0
    %10834 = vmatprep.subr.mxu0 0.0
    %10835 = vmatpush1.msra.mxu0 0.0
    %10836 = vmatprep.subr.mxu0 0.0
    %10837 = vmatpush1.msra.mxu0 0.0
    %10838 = vmatprep.subr.mxu0 0.0
    %10839 = vmatpush1.msra.mxu0 0.0
    %10840 = vmatprep.subr.mxu0 0.0
    %10841 = vmatpush1.msra.mxu0 0.0
    %10842 = vmatprep.mubr.f32.mxu0 0.0
    %v10843 = vand.u32 %v9056, 4294901760
    %v10844 = vsub.f32 %v9056, %v10843
    %v10845 = vand.u32 %v10844, 4294901760
    %10846 = vmatmul.mubr.f32.gmra.mrb[0].mxu0 %v10845
    %v10847 = vpop.f32.mrb[0].mxu0
    %v10848 = vadd.f32 %v10767, %v10847
    %v10849 = vpop.f32.mrb[0].mxu0
    %10850 = vmatprep.mubr.f32.mxu0 0.0
    %v10851 = vand.u32 %v9059, 4294901760
    %v10852 = vsub.f32 %v9059, %v10851
    %v10853 = vand.u32 %v10852, 4294901760
    %10854 = vmatmul.mubr.f32.gmra.mrb[0].mxu0 %v10853
    %v10855 = vpop.f32.mrb[0].mxu0
    %v10856 = vadd.f32 %v10774, %v10855
    %v10857 = vpop.f32.mrb[0].mxu0
    %10858 = vdwg.mxu0
    %10859 = vmatprep.subr.mxu0 0.0
    %v10860 = vand.u32 %v8057, 4294901760
    %v10861 = vsub.f32 %v8057, %v10860
    %v10862 = vand.u32 %v10861, 4294901760
    %10863 = vmatpush1.msra.mxu0 %v10862
    %10864 = vmatprep.subr.mxu0 0.0
    %10865 = vmatpush1.msra.mxu0 0.0
    %10866 = vmatprep.subr.mxu0 0.0
    %10867 = vmatpush1.msra.mxu0 0.0
    %10868 = vmatprep.subr.mxu0 0.0
    %10869 = vmatpush1.msra.mxu0 0.0
    %10870 = vmatprep.subr.mxu0 0.0
    %10871 = vmatpush1.msra.mxu0 0.0
    %10872 = vmatprep.subr.mxu0 0.0
    %10873 = vmatpush1.msra.mxu0 0.0
    %10874 = vmatprep.subr.mxu0 0.0
    %10875 = vmatpush1.msra.mxu0 0.0
    %10876 = vmatprep.subr.mxu0 0.0
    %10877 = vmatpush1.msra.mxu0 0.0
    %10878 = vmatprep.subr.mxu0 0.0
    %10879 = vmatpush1.msra.mxu0 0.0
    %10880 = vmatprep.subr.mxu0 0.0
    %10881 = vmatpush1.msra.mxu0 0.0
    %10882 = vmatprep.subr.mxu0 0.0
    %10883 = vmatpush1.msra.mxu0 0.0
    %10884 = vmatprep.subr.mxu0 0.0
    %10885 = vmatpush1.msra.mxu0 0.0
    %10886 = vmatprep.subr.mxu0 0.0
    %10887 = vmatpush1.msra.mxu0 0.0
    %10888 = vmatprep.subr.mxu0 0.0
    %10889 = vmatpush1.msra.mxu0 0.0
    %10890 = vmatprep.subr.mxu0 0.0
    %10891 = vmatpush1.msra.mxu0 0.0
    %10892 = vmatprep.subr.mxu0 0.0
    %10893 = vmatpush1.msra.mxu0 0.0
    %10894 = vmatprep.subr.mxu0 0.0
    %10895 = vmatpush1.msra.mxu0 0.0
    %10896 = vmatprep.subr.mxu0 0.0
    %10897 = vmatpush1.msra.mxu0 0.0
    %10898 = vmatprep.subr.mxu0 0.0
    %10899 = vmatpush1.msra.mxu0 0.0
    %10900 = vmatprep.subr.mxu0 0.0
    %10901 = vmatpush1.msra.mxu0 0.0
    %10902 = vmatprep.subr.mxu0 0.0
    %10903 = vmatpush1.msra.mxu0 0.0
    %10904 = vmatprep.subr.mxu0 0.0
    %10905 = vmatpush1.msra.mxu0 0.0
    %10906 = vmatprep.subr.mxu0 0.0
    %10907 = vmatpush1.msra.mxu0 0.0
    %10908 = vmatprep.subr.mxu0 0.0
    %10909 = vmatpush1.msra.mxu0 0.0
    %10910 = vmatprep.subr.mxu0 0.0
    %10911 = vmatpush1.msra.mxu0 0.0
    %10912 = vmatprep.subr.mxu0 0.0
    %10913 = vmatpush1.msra.mxu0 0.0
    %10914 = vmatprep.subr.mxu0 0.0
    %10915 = vmatpush1.msra.mxu0 0.0
    %10916 = vmatprep.subr.mxu0 0.0
    %10917 = vmatpush1.msra.mxu0 0.0
    %10918 = vmatprep.subr.mxu0 0.0
    %10919 = vmatpush1.msra.mxu0 0.0
    %10920 = vmatprep.subr.mxu0 0.0
    %10921 = vmatpush1.msra.mxu0 0.0
    %10922 = vmatprep.subr.mxu0 0.0
    %10923 = vmatpush1.msra.mxu0 0.0
    %10924 = vmatprep.subr.mxu0 0.0
    %10925 = vmatpush1.msra.mxu0 0.0
    %10926 = vmatprep.mubr.f32.mxu0 0.0
    %v10927 = vand.u32 %v9056, 4294901760
    %10928 = vmatmul.mubr.f32.gmra.mrb[0].mxu0 %v10927
    %v10929 = vpop.f32.mrb[0].mxu0
    %v10930 = vadd.f32 %v10848, %v10929
    %v10931 = vpop.f32.mrb[0].mxu0
    %10932 = vmatprep.mubr.f32.mxu0 0.0
    %v10933 = vand.u32 %v9059, 4294901760
    %10934 = vmatmul.mubr.f32.gmra.mrb[0].mxu0 %v10933
    %v10935 = vpop.f32.mrb[0].mxu0
    %v10936 = vadd.f32 %v10856, %v10935
    %v10937 = vpop.f32.mrb[0].mxu0
    %10938 = vdwg.mxu0
    %10939 = vmatprep.subr.mxu0 0.0
    %v10940 = vand.u32 %v8057, 4294901760
    %10941 = vmatpush1.msra.mxu0 %v10940
    %10942 = vmatprep.subr.mxu0 0.0
    %10943 = vmatpush1.msra.mxu0 0.0
    %10944 = vmatprep.subr.mxu0 0.0
    %10945 = vmatpush1.msra.mxu0 0.0
    %10946 = vmatprep.subr.mxu0 0.0
    %10947 = vmatpush1.msra.mxu0 0.0
    %10948 = vmatprep.subr.mxu0 0.0
    %10949 = vmatpush1.msra.mxu0 0.0
    %10950 = vmatprep.subr.mxu0 0.0
    %10951 = vmatpush1.msra.mxu0 0.0
    %10952 = vmatprep.subr.mxu0 0.0
    %10953 = vmatpush1.msra.mxu0 0.0
    %10954 = vmatprep.subr.mxu0 0.0
    %10955 = vmatpush1.msra.mxu0 0.0
    %10956 = vmatprep.subr.mxu0 0.0
    %10957 = vmatpush1.msra.mxu0 0.0
    %10958 = vmatprep.subr.mxu0 0.0
    %10959 = vmatpush1.msra.mxu0 0.0
    %10960 = vmatprep.subr.mxu0 0.0
    %10961 = vmatpush1.msra.mxu0 0.0
    %10962 = vmatprep.subr.mxu0 0.0
    %10963 = vmatpush1.msra.mxu0 0.0
    %10964 = vmatprep.subr.mxu0 0.0
    %10965 = vmatpush1.msra.mxu0 0.0
    %10966 = vmatprep.subr.mxu0 0.0
    %10967 = vmatpush1.msra.mxu0 0.0
    %10968 = vmatprep.subr.mxu0 0.0
    %10969 = vmatpush1.msra.mxu0 0.0
    %10970 = vmatprep.subr.mxu0 0.0
    %10971 = vmatpush1.msra.mxu0 0.0
    %10972 = vmatprep.subr.mxu0 0.0
    %10973 = vmatpush1.msra.mxu0 0.0
    %10974 = vmatprep.subr.mxu0 0.0
    %10975 = vmatpush1.msra.mxu0 0.0
    %10976 = vmatprep.subr.mxu0 0.0
    %10977 = vmatpush1.msra.mxu0 0.0
    %10978 = vmatprep.subr.mxu0 0.0
    %10979 = vmatpush1.msra.mxu0 0.0
    %10980 = vmatprep.subr.mxu0 0.0
    %10981 = vmatpush1.msra.mxu0 0.0
    %10982 = vmatprep.subr.mxu0 0.0
    %10983 = vmatpush1.msra.mxu0 0.0
    %10984 = vmatprep.subr.mxu0 0.0
    %10985 = vmatpush1.msra.mxu0 0.0
    %10986 = vmatprep.subr.mxu0 0.0
    %10987 = vmatpush1.msra.mxu0 0.0
    %10988 = vmatprep.subr.mxu0 0.0
    %10989 = vmatpush1.msra.mxu0 0.0
    %10990 = vmatprep.subr.mxu0 0.0
    %10991 = vmatpush1.msra.mxu0 0.0
    %10992 = vmatprep.subr.mxu0 0.0
    %10993 = vmatpush1.msra.mxu0 0.0
    %10994 = vmatprep.subr.mxu0 0.0
    %10995 = vmatpush1.msra.mxu0 0.0
    %10996 = vmatprep.subr.mxu0 0.0
    %10997 = vmatpush1.msra.mxu0 0.0
    %10998 = vmatprep.subr.mxu0 0.0
    %10999 = vmatpush1.msra.mxu0 0.0
    %11000 = vmatprep.subr.mxu0 0.0
    %11001 = vmatpush1.msra.mxu0 0.0
    %11002 = vmatprep.subr.mxu0 0.0
    %11003 = vmatpush1.msra.mxu0 0.0
    %11004 = vmatprep.mubr.f32.mxu0 0.0
    %v11005 = vand.u32 %v9056, 4294901760
    %11006 = vmatmul.mubr.f32.gmra.mrb[0].mxu0 %v11005
    %v11007 = vpop.f32.mrb[0].mxu0
    %v11008 = vadd.f32 %v10930, %v11007
    %v11009 = vpop.f32.mrb[0].mxu0
    %11010 = vmatprep.mubr.f32.mxu0 0.0
    %v11011 = vand.u32 %v9059, 4294901760
    %11012 = vmatmul.mubr.f32.gmra.mrb[0].mxu0 %v11011
    %v11013 = vpop.f32.mrb[0].mxu0
    %v11014 = vadd.f32 %v10936, %v11013
    %v11015 = vpop.f32.mrb[0].mxu0
    %11016 = vdwg.mxu0
    %v11018 = vsel %vm569, %v10030, 0
    %v11021 = vsel %vm569, %v10036, 0
    %v11024 = vsel %vm569, %v10519, 0
    %v11027 = vsel %vm569, %v10525, 0
    %11029 = vmatprep.subr.mxu0 0.0
    %v11030 = vand.u32 %v11024, 4294901760
    %11031 = vmatpush1.xpose.msra.mxu0 %v11030
    %11032 = vmatprep.subr.mxu0 0.0
    %v11033 = vand.u32 %v11027, 4294901760
    %11034 = vmatpush1.xpose.msra.mxu0 %v11033
    %11035 = vmatprep.subr.mxu0 0.0
    %11036 = vmatpush1.xpose.msra.mxu0 0.0
    %11037 = vmatprep.subr.mxu0 0.0
    %11038 = vmatpush1.xpose.msra.mxu0 0.0
    %11039 = vmatprep.subr.mxu0 0.0
    %11040 = vmatpush1.xpose.msra.mxu0 0.0
    %11041 = vmatprep.subr.mxu0 0.0
    %11042 = vmatpush1.xpose.msra.mxu0 0.0
    %11043 = vmatprep.subr.mxu0 0.0
    %11044 = vmatpush1.xpose.msra.mxu0 0.0
    %11045 = vmatprep.subr.mxu0 0.0
    %11046 = vmatpush1.xpose.msra.mxu0 0.0
    %11047 = vmatprep.subr.mxu0 0.0
    %11048 = vmatpush1.xpose.msra.mxu0 0.0
    %11049 = vmatprep.subr.mxu0 0.0
    %11050 = vmatpush1.xpose.msra.mxu0 0.0
    %11051 = vmatprep.subr.mxu0 0.0
    %11052 = vmatpush1.xpose.msra.mxu0 0.0
    %11053 = vmatprep.subr.mxu0 0.0
    %11054 = vmatpush1.xpose.msra.mxu0 0.0
    %11055 = vmatprep.subr.mxu0 0.0
    %11056 = vmatpush1.xpose.msra.mxu0 0.0
    %11057 = vmatprep.subr.mxu0 0.0
    %11058 = vmatpush1.xpose.msra.mxu0 0.0
    %11059 = vmatprep.subr.mxu0 0.0
    %11060 = vmatpush1.xpose.msra.mxu0 0.0
    %11061 = vmatprep.subr.mxu0 0.0
    %11062 = vmatpush1.xpose.msra.mxu0 0.0
    %11063 = vmatprep.subr.mxu0 0.0
    %11064 = vmatpush1.xpose.msra.mxu0 0.0
    %11065 = vmatprep.subr.mxu0 0.0
    %11066 = vmatpush1.xpose.msra.mxu0 0.0
    %11067 = vmatprep.subr.mxu0 0.0
    %11068 = vmatpush1.xpose.msra.mxu0 0.0
    %11069 = vmatprep.subr.mxu0 0.0
    %11070 = vmatpush1.xpose.msra.mxu0 0.0
    %11071 = vmatprep.subr.mxu0 0.0
    %11072 = vmatpush1.xpose.msra.mxu0 0.0
    %11073 = vmatprep.subr.mxu0 0.0
    %11074 = vmatpush1.xpose.msra.mxu0 0.0
    %11075 = vmatprep.subr.mxu0 0.0
    %11076 = vmatpush1.xpose.msra.mxu0 0.0
    %11077 = vmatprep.subr.mxu0 0.0
    %11078 = vmatpush1.xpose.msra.mxu0 0.0
    %11079 = vmatprep.subr.mxu0 0.0
    %11080 = vmatpush1.xpose.msra.mxu0 0.0
    %11081 = vmatprep.subr.mxu0 0.0
    %11082 = vmatpush1.xpose.msra.mxu0 0.0
    %11083 = vmatprep.subr.mxu0 0.0
    %11084 = vmatpush1.xpose.msra.mxu0 0.0
    %11085 = vmatprep.subr.mxu0 0.0
    %11086 = vmatpush1.xpose.msra.mxu0 0.0
    %11087 = vmatprep.subr.mxu0 0.0
    %11088 = vmatpush1.xpose.msra.mxu0 0.0
    %11089 = vmatprep.subr.mxu0 0.0
    %11090 = vmatpush1.xpose.msra.mxu0 0.0
    %11091 = vmatprep.subr.mxu0 0.0
    %11092 = vmatpush1.xpose.msra.mxu0 0.0
    %11093 = vmatprep.subr.mxu0 0.0
    %11094 = vmatpush1.xpose.msra.mxu0 0.0
    %11095 = vmatprep.mubr.f32.mxu0 0.0
    %v11096 = vand.u32 %v11018, 4294901760
    %v11097 = vsub.f32 %v11018, %v11096
    %v11098 = vand.u32 %v11097, 4294901760
    %v11099 = vsub.f32 %v11097, %v11098
    %v11100 = vand.u32 %v11099, 4294901760
    %11101 = vmatmul.mubr.f32.gmra.mrb[0].mxu0 %v11100
    %v11102 = vpop.f32.mrb[0].mxu0
    %v11103 = vadd.f32 0.0, %v11102
    %v11104 = vpop.f32.mrb[0].mxu0
    %11105 = vmatprep.mubr.f32.mxu0 0.0
    %v11106 = vand.u32 %v11021, 4294901760
    %v11107 = vsub.f32 %v11021, %v11106
    %v11108 = vand.u32 %v11107, 4294901760
    %v11109 = vsub.f32 %v11107, %v11108
    %v11110 = vand.u32 %v11109, 4294901760
    %11111 = vmatmul.mubr.f32.gmra.mrb[0].mxu0 %v11110
    %v11112 = vpop.f32.mrb[0].mxu0
    %v11113 = vadd.f32 0.0, %v11112
    %v11114 = vpop.f32.mrb[0].mxu0
    %11115 = vdwg.mxu0
    %11116 = vmatprep.subr.mxu0 0.0
    %v11117 = vand.u32 %v11024, 4294901760
    %v11118 = vsub.f32 %v11024, %v11117
    %v11119 = vand.u32 %v11118, 4294901760
    %v11120 = vsub.f32 %v11118, %v11119
    %v11121 = vand.u32 %v11120, 4294901760
    %11122 = vmatpush1.xpose.msra.mxu0 %v11121
    %11123 = vmatprep.subr.mxu0 0.0
    %v11124 = vand.u32 %v11027, 4294901760
    %v11125 = vsub.f32 %v11027, %v11124
    %v11126 = vand.u32 %v11125, 4294901760
    %v11127 = vsub.f32 %v11125, %v11126
    %v11128 = vand.u32 %v11127, 4294901760
    %11129 = vmatpush1.xpose.msra.mxu0 %v11128
    %11130 = vmatprep.subr.mxu0 0.0
    %11131 = vmatpush1.xpose.msra.mxu0 0.0
    %11132 = vmatprep.subr.mxu0 0.0
    %11133 = vmatpush1.xpose.msra.mxu0 0.0
    %11134 = vmatprep.subr.mxu0 0.0
    %11135 = vmatpush1.xpose.msra.mxu0 0.0
    %11136 = vmatprep.subr.mxu0 0.0
    %11137 = vmatpush1.xpose.msra.mxu0 0.0
    %11138 = vmatprep.subr.mxu0 0.0
    %11139 = vmatpush1.xpose.msra.mxu0 0.0
    %11140 = vmatprep.subr.mxu0 0.0
    %11141 = vmatpush1.xpose.msra.mxu0 0.0
    %11142 = vmatprep.subr.mxu0 0.0
    %11143 = vmatpush1.xpose.msra.mxu0 0.0
    %11144 = vmatprep.subr.mxu0 0.0
    %11145 = vmatpush1.xpose.msra.mxu0 0.0
    %11146 = vmatprep.subr.mxu0 0.0
    %11147 = vmatpush1.xpose.msra.mxu0 0.0
    %11148 = vmatprep.subr.mxu0 0.0
    %11149 = vmatpush1.xpose.msra.mxu0 0.0
    %11150 = vmatprep.subr.mxu0 0.0
    %11151 = vmatpush1.xpose.msra.mxu0 0.0
    %11152 = vmatprep.subr.mxu0 0.0
    %11153 = vmatpush1.xpose.msra.mxu0 0.0
    %11154 = vmatprep.subr.mxu0 0.0
    %11155 = vmatpush1.xpose.msra.mxu0 0.0
    %11156 = vmatprep.subr.mxu0 0.0
    %11157 = vmatpush1.xpose.msra.mxu0 0.0
    %11158 = vmatprep.subr.mxu0 0.0
    %11159 = vmatpush1.xpose.msra.mxu0 0.0
    %11160 = vmatprep.subr.mxu0 0.0
    %11161 = vmatpush1.xpose.msra.mxu0 0.0
    %11162 = vmatprep.subr.mxu0 0.0
    %11163 = vmatpush1.xpose.msra.mxu0 0.0
    %11164 = vmatprep.subr.mxu0 0.0
    %11165 = vmatpush1.xpose.msra.mxu0 0.0
    %11166 = vmatprep.subr.mxu0 0.0
    %11167 = vmatpush1.xpose.msra.mxu0 0.0
    %11168 = vmatprep.subr.mxu0 0.0
    %11169 = vmatpush1.xpose.msra.mxu0 0.0
    %11170 = vmatprep.subr.mxu0 0.0
    %11171 = vmatpush1.xpose.msra.mxu0 0.0
    %11172 = vmatprep.subr.mxu0 0.0
    %11173 = vmatpush1.xpose.msra.mxu0 0.0
    %11174 = vmatprep.subr.mxu0 0.0
    %11175 = vmatpush1.xpose.msra.mxu0 0.0
    %11176 = vmatprep.subr.mxu0 0.0
    %11177 = vmatpush1.xpose.msra.mxu0 0.0
    %11178 = vmatprep.subr.mxu0 0.0
    %11179 = vmatpush1.xpose.msra.mxu0 0.0
    %11180 = vmatprep.subr.mxu0 0.0
    %11181 = vmatpush1.xpose.msra.mxu0 0.0
    %11182 = vmatprep.subr.mxu0 0.0
    %11183 = vmatpush1.xpose.msra.mxu0 0.0
    %11184 = vmatprep.subr.mxu0 0.0
    %11185 = vmatpush1.xpose.msra.mxu0 0.0
    %11186 = vmatprep.subr.mxu0 0.0
    %11187 = vmatpush1.xpose.msra.mxu0 0.0
    %11188 = vmatprep.subr.mxu0 0.0
    %11189 = vmatpush1.xpose.msra.mxu0 0.0
    %11190 = vmatprep.mubr.f32.mxu0 0.0
    %v11191 = vand.u32 %v11018, 4294901760
    %11192 = vmatmul.mubr.f32.gmra.mrb[0].mxu0 %v11191
    %v11193 = vpop.f32.mrb[0].mxu0
    %v11194 = vadd.f32 %v11103, %v11193
    %v11195 = vpop.f32.mrb[0].mxu0
    %11196 = vmatprep.mubr.f32.mxu0 0.0
    %v11197 = vand.u32 %v11021, 4294901760
    %11198 = vmatmul.mubr.f32.gmra.mrb[0].mxu0 %v11197
    %v11199 = vpop.f32.mrb[0].mxu0
    %v11200 = vadd.f32 %v11113, %v11199
    %v11201 = vpop.f32.mrb[0].mxu0
    %11202 = vdwg.mxu0
    %11203 = vmatprep.subr.mxu0 0.0
    %v11204 = vand.u32 %v11024, 4294901760
    %v11205 = vsub.f32 %v11024, %v11204
    %11206 = vmatpush1.xpose.msra.mxu0 %v11205
    %11207 = vmatprep.subr.mxu0 0.0
    %v11208 = vand.u32 %v11027, 4294901760
    %v11209 = vsub.f32 %v11027, %v11208
    %11210 = vmatpush1.xpose.msra.mxu0 %v11209
    %11211 = vmatprep.subr.mxu0 0.0
    %11212 = vmatpush1.xpose.msra.mxu0 0.0
    %11213 = vmatprep.subr.mxu0 0.0
    %11214 = vmatpush1.xpose.msra.mxu0 0.0
    %11215 = vmatprep.subr.mxu0 0.0
    %11216 = vmatpush1.xpose.msra.mxu0 0.0
    %11217 = vmatprep.subr.mxu0 0.0
    %11218 = vmatpush1.xpose.msra.mxu0 0.0
    %11219 = vmatprep.subr.mxu0 0.0
    %11220 = vmatpush1.xpose.msra.mxu0 0.0
    %11221 = vmatprep.subr.mxu0 0.0
    %11222 = vmatpush1.xpose.msra.mxu0 0.0
    %11223 = vmatprep.subr.mxu0 0.0
    %11224 = vmatpush1.xpose.msra.mxu0 0.0
    %11225 = vmatprep.subr.mxu0 0.0
    %11226 = vmatpush1.xpose.msra.mxu0 0.0
    %11227 = vmatprep.subr.mxu0 0.0
    %11228 = vmatpush1.xpose.msra.mxu0 0.0
    %11229 = vmatprep.subr.mxu0 0.0
    %11230 = vmatpush1.xpose.msra.mxu0 0.0
    %11231 = vmatprep.subr.mxu0 0.0
    %11232 = vmatpush1.xpose.msra.mxu0 0.0
    %11233 = vmatprep.subr.mxu0 0.0
    %11234 = vmatpush1.xpose.msra.mxu0 0.0
    %11235 = vmatprep.subr.mxu0 0.0
    %11236 = vmatpush1.xpose.msra.mxu0 0.0
    %11237 = vmatprep.subr.mxu0 0.0
    %11238 = vmatpush1.xpose.msra.mxu0 0.0
    %11239 = vmatprep.subr.mxu0 0.0
    %11240 = vmatpush1.xpose.msra.mxu0 0.0
    %11241 = vmatprep.subr.mxu0 0.0
    %11242 = vmatpush1.xpose.msra.mxu0 0.0
    %11243 = vmatprep.subr.mxu0 0.0
    %11244 = vmatpush1.xpose.msra.mxu0 0.0
    %11245 = vmatprep.subr.mxu0 0.0
    %11246 = vmatpush1.xpose.msra.mxu0 0.0
    %11247 = vmatprep.subr.mxu0 0.0
    %11248 = vmatpush1.xpose.msra.mxu0 0.0
    %11249 = vmatprep.subr.mxu0 0.0
    %11250 = vmatpush1.xpose.msra.mxu0 0.0
    %11251 = vmatprep.subr.mxu0 0.0
    %11252 = vmatpush1.xpose.msra.mxu0 0.0
    %11253 = vmatprep.subr.mxu0 0.0
    %11254 = vmatpush1.xpose.msra.mxu0 0.0
    %11255 = vmatprep.subr.mxu0 0.0
    %11256 = vmatpush1.xpose.msra.mxu0 0.0
    %11257 = vmatprep.subr.mxu0 0.0
    %11258 = vmatpush1.xpose.msra.mxu0 0.0
    %11259 = vmatprep.subr.mxu0 0.0
    %11260 = vmatpush1.xpose.msra.mxu0 0.0
    %11261 = vmatprep.subr.mxu0 0.0
    %11262 = vmatpush1.xpose.msra.mxu0 0.0
    %11263 = vmatprep.subr.mxu0 0.0
    %11264 = vmatpush1.xpose.msra.mxu0 0.0
    %11265 = vmatprep.subr.mxu0 0.0
    %11266 = vmatpush1.xpose.msra.mxu0 0.0
    %11267 = vmatprep.subr.mxu0 0.0
    %11268 = vmatpush1.xpose.msra.mxu0 0.0
    %11269 = vmatprep.subr.mxu0 0.0
    %11270 = vmatpush1.xpose.msra.mxu0 0.0
    %11271 = vmatprep.mubr.f32.mxu0 0.0
    %v11272 = vand.u32 %v11018, 4294901760
    %v11273 = vsub.f32 %v11018, %v11272
    %11274 = vmatmul.mubr.f32.gmra.mrb[0].mxu0 %v11273
    %v11275 = vpop.f32.mrb[0].mxu0
    %v11276 = vadd.f32 %v11194, %v11275
    %v11277 = vpop.f32.mrb[0].mxu0
    %11278 = vmatprep.mubr.f32.mxu0 0.0
    %v11279 = vand.u32 %v11021, 4294901760
    %v11280 = vsub.f32 %v11021, %v11279
    %11281 = vmatmul.mubr.f32.gmra.mrb[0].mxu0 %v11280
    %v11282 = vpop.f32.mrb[0].mxu0
    %v11283 = vadd.f32 %v11200, %v11282
    %v11284 = vpop.f32.mrb[0].mxu0
    %11285 = vdwg.mxu0
    %11286 = vmatprep.subr.mxu0 0.0
    %v11287 = vand.u32 %v11024, 4294901760
    %11288 = vmatpush1.xpose.msra.mxu0 %v11287
    %11289 = vmatprep.subr.mxu0 0.0
    %v11290 = vand.u32 %v11027, 4294901760
    %11291 = vmatpush1.xpose.msra.mxu0 %v11290
    %11292 = vmatprep.subr.mxu0 0.0
    %11293 = vmatpush1.xpose.msra.mxu0 0.0
    %11294 = vmatprep.subr.mxu0 0.0
    %11295 = vmatpush1.xpose.msra.mxu0 0.0
    %11296 = vmatprep.subr.mxu0 0.0
    %11297 = vmatpush1.xpose.msra.mxu0 0.0
    %11298 = vmatprep.subr.mxu0 0.0
    %11299 = vmatpush1.xpose.msra.mxu0 0.0
    %11300 = vmatprep.subr.mxu0 0.0
    %11301 = vmatpush1.xpose.msra.mxu0 0.0
    %11302 = vmatprep.subr.mxu0 0.0
    %11303 = vmatpush1.xpose.msra.mxu0 0.0
    %11304 = vmatprep.subr.mxu0 0.0
    %11305 = vmatpush1.xpose.msra.mxu0 0.0
    %11306 = vmatprep.subr.mxu0 0.0
    %11307 = vmatpush1.xpose.msra.mxu0 0.0
    %11308 = vmatprep.subr.mxu0 0.0
    %11309 = vmatpush1.xpose.msra.mxu0 0.0
    %11310 = vmatprep.subr.mxu0 0.0
    %11311 = vmatpush1.xpose.msra.mxu0 0.0
    %11312 = vmatprep.subr.mxu0 0.0
    %11313 = vmatpush1.xpose.msra.mxu0 0.0
    %11314 = vmatprep.subr.mxu0 0.0
    %11315 = vmatpush1.xpose.msra.mxu0 0.0
    %11316 = vmatprep.subr.mxu0 0.0
    %11317 = vmatpush1.xpose.msra.mxu0 0.0
    %11318 = vmatprep.subr.mxu0 0.0
    %11319 = vmatpush1.xpose.msra.mxu0 0.0
    %11320 = vmatprep.subr.mxu0 0.0
    %11321 = vmatpush1.xpose.msra.mxu0 0.0
    %11322 = vmatprep.subr.mxu0 0.0
    %11323 = vmatpush1.xpose.msra.mxu0 0.0
    %11324 = vmatprep.subr.mxu0 0.0
    %11325 = vmatpush1.xpose.msra.mxu0 0.0
    %11326 = vmatprep.subr.mxu0 0.0
    %11327 = vmatpush1.xpose.msra.mxu0 0.0
    %11328 = vmatprep.subr.mxu0 0.0
    %11329 = vmatpush1.xpose.msra.mxu0 0.0
    %11330 = vmatprep.subr.mxu0 0.0
    %11331 = vmatpush1.xpose.msra.mxu0 0.0
    %11332 = vmatprep.subr.mxu0 0.0
    %11333 = vmatpush1.xpose.msra.mxu0 0.0
    %11334 = vmatprep.subr.mxu0 0.0
    %11335 = vmatpush1.xpose.msra.mxu0 0.0
    %11336 = vmatprep.subr.mxu0 0.0
    %11337 = vmatpush1.xpose.msra.mxu0 0.0
    %11338 = vmatprep.subr.mxu0 0.0
    %11339 = vmatpush1.xpose.msra.mxu0 0.0
    %11340 = vmatprep.subr.mxu0 0.0
    %11341 = vmatpush1.xpose.msra.mxu0 0.0
    %11342 = vmatprep.subr.mxu0 0.0
    %11343 = vmatpush1.xpose.msra.mxu0 0.0
    %11344 = vmatprep.subr.mxu0 0.0
    %11345 = vmatpush1.xpose.msra.mxu0 0.0
    %11346 = vmatprep.subr.mxu0 0.0
    %11347 = vmatpush1.xpose.msra.mxu0 0.0
    %11348 = vmatprep.subr.mxu0 0.0
    %11349 = vmatpush1.xpose.msra.mxu0 0.0
    %11350 = vmatprep.subr.mxu0 0.0
    %11351 = vmatpush1.xpose.msra.mxu0 0.0
    %11352 = vmatprep.mubr.f32.mxu0 0.0
    %v11353 = vand.u32 %v11018, 4294901760
    %v11354 = vsub.f32 %v11018, %v11353
    %v11355 = vand.u32 %v11354, 4294901760
    %11356 = vmatmul.mubr.f32.gmra.mrb[0].mxu0 %v11355
    %v11357 = vpop.f32.mrb[0].mxu0
    %v11358 = vadd.f32 %v11276, %v11357
    %v11359 = vpop.f32.mrb[0].mxu0
    %11360 = vmatprep.mubr.f32.mxu0 0.0
    %v11361 = vand.u32 %v11021, 4294901760
    %v11362 = vsub.f32 %v11021, %v11361
    %v11363 = vand.u32 %v11362, 4294901760
    %11364 = vmatmul.mubr.f32.gmra.mrb[0].mxu0 %v11363
    %v11365 = vpop.f32.mrb[0].mxu0
    %v11366 = vadd.f32 %v11283, %v11365
    %v11367 = vpop.f32.mrb[0].mxu0
    %11368 = vdwg.mxu0
    %11369 = vmatprep.subr.mxu0 0.0
    %v11370 = vand.u32 %v11024, 4294901760
    %v11371 = vsub.f32 %v11024, %v11370
    %v11372 = vand.u32 %v11371, 4294901760
    %11373 = vmatpush1.xpose.msra.mxu0 %v11372
    %11374 = vmatprep.subr.mxu0 0.0
    %v11375 = vand.u32 %v11027, 4294901760
    %v11376 = vsub.f32 %v11027, %v11375
    %v11377 = vand.u32 %v11376, 4294901760
    %11378 = vmatpush1.xpose.msra.mxu0 %v11377
    %11379 = vmatprep.subr.mxu0 0.0
    %11380 = vmatpush1.xpose.msra.mxu0 0.0
    %11381 = vmatprep.subr.mxu0 0.0
    %11382 = vmatpush1.xpose.msra.mxu0 0.0
    %11383 = vmatprep.subr.mxu0 0.0
    %11384 = vmatpush1.xpose.msra.mxu0 0.0
    %11385 = vmatprep.subr.mxu0 0.0
    %11386 = vmatpush1.xpose.msra.mxu0 0.0
    %11387 = vmatprep.subr.mxu0 0.0
    %11388 = vmatpush1.xpose.msra.mxu0 0.0
    %11389 = vmatprep.subr.mxu0 0.0
    %11390 = vmatpush1.xpose.msra.mxu0 0.0
    %11391 = vmatprep.subr.mxu0 0.0
    %11392 = vmatpush1.xpose.msra.mxu0 0.0
    %11393 = vmatprep.subr.mxu0 0.0
    %11394 = vmatpush1.xpose.msra.mxu0 0.0
    %11395 = vmatprep.subr.mxu0 0.0
    %11396 = vmatpush1.xpose.msra.mxu0 0.0
    %11397 = vmatprep.subr.mxu0 0.0
    %11398 = vmatpush1.xpose.msra.mxu0 0.0
    %11399 = vmatprep.subr.mxu0 0.0
    %11400 = vmatpush1.xpose.msra.mxu0 0.0
    %11401 = vmatprep.subr.mxu0 0.0
    %11402 = vmatpush1.xpose.msra.mxu0 0.0
    %11403 = vmatprep.subr.mxu0 0.0
    %11404 = vmatpush1.xpose.msra.mxu0 0.0
    %11405 = vmatprep.subr.mxu0 0.0
    %11406 = vmatpush1.xpose.msra.mxu0 0.0
    %11407 = vmatprep.subr.mxu0 0.0
    %11408 = vmatpush1.xpose.msra.mxu0 0.0
    %11409 = vmatprep.subr.mxu0 0.0
    %11410 = vmatpush1.xpose.msra.mxu0 0.0
    %11411 = vmatprep.subr.mxu0 0.0
    %11412 = vmatpush1.xpose.msra.mxu0 0.0
    %11413 = vmatprep.subr.mxu0 0.0
    %11414 = vmatpush1.xpose.msra.mxu0 0.0
    %11415 = vmatprep.subr.mxu0 0.0
    %11416 = vmatpush1.xpose.msra.mxu0 0.0
    %11417 = vmatprep.subr.mxu0 0.0
    %11418 = vmatpush1.xpose.msra.mxu0 0.0
    %11419 = vmatprep.subr.mxu0 0.0
    %11420 = vmatpush1.xpose.msra.mxu0 0.0
    %11421 = vmatprep.subr.mxu0 0.0
    %11422 = vmatpush1.xpose.msra.mxu0 0.0
    %11423 = vmatprep.subr.mxu0 0.0
    %11424 = vmatpush1.xpose.msra.mxu0 0.0
    %11425 = vmatprep.subr.mxu0 0.0
    %11426 = vmatpush1.xpose.msra.mxu0 0.0
    %11427 = vmatprep.subr.mxu0 0.0
    %11428 = vmatpush1.xpose.msra.mxu0 0.0
    %11429 = vmatprep.subr.mxu0 0.0
    %11430 = vmatpush1.xpose.msra.mxu0 0.0
    %11431 = vmatprep.subr.mxu0 0.0
    %11432 = vmatpush1.xpose.msra.mxu0 0.0
    %11433 = vmatprep.subr.mxu0 0.0
    %11434 = vmatpush1.xpose.msra.mxu0 0.0
    %11435 = vmatprep.subr.mxu0 0.0
    %11436 = vmatpush1.xpose.msra.mxu0 0.0
    %11437 = vmatprep.subr.mxu0 0.0
    %11438 = vmatpush1.xpose.msra.mxu0 0.0
    %11439 = vmatprep.mubr.f32.mxu0 0.0
    %v11440 = vand.u32 %v11018, 4294901760
    %11441 = vmatmul.mubr.f32.gmra.mrb[0].mxu0 %v11440
    %v11442 = vpop.f32.mrb[0].mxu0
    %v11443 = vadd.f32 %v11358, %v11442
    %v11444 = vpop.f32.mrb[0].mxu0
    %11445 = vmatprep.mubr.f32.mxu0 0.0
    %v11446 = vand.u32 %v11021, 4294901760
    %11447 = vmatmul.mubr.f32.gmra.mrb[0].mxu0 %v11446
    %v11448 = vpop.f32.mrb[0].mxu0
    %v11449 = vadd.f32 %v11366, %v11448
    %v11450 = vpop.f32.mrb[0].mxu0
    %11451 = vdwg.mxu0
    %11452 = vmatprep.subr.mxu0 0.0
    %v11453 = vand.u32 %v11024, 4294901760
    %11454 = vmatpush1.xpose.msra.mxu0 %v11453
    %11455 = vmatprep.subr.mxu0 0.0
    %v11456 = vand.u32 %v11027, 4294901760
    %11457 = vmatpush1.xpose.msra.mxu0 %v11456
    %11458 = vmatprep.subr.mxu0 0.0
    %11459 = vmatpush1.xpose.msra.mxu0 0.0
    %11460 = vmatprep.subr.mxu0 0.0
    %11461 = vmatpush1.xpose.msra.mxu0 0.0
    %11462 = vmatprep.subr.mxu0 0.0
    %11463 = vmatpush1.xpose.msra.mxu0 0.0
    %11464 = vmatprep.subr.mxu0 0.0
    %11465 = vmatpush1.xpose.msra.mxu0 0.0
    %11466 = vmatprep.subr.mxu0 0.0
    %11467 = vmatpush1.xpose.msra.mxu0 0.0
    %11468 = vmatprep.subr.mxu0 0.0
    %11469 = vmatpush1.xpose.msra.mxu0 0.0
    %11470 = vmatprep.subr.mxu0 0.0
    %11471 = vmatpush1.xpose.msra.mxu0 0.0
    %11472 = vmatprep.subr.mxu0 0.0
    %11473 = vmatpush1.xpose.msra.mxu0 0.0
    %11474 = vmatprep.subr.mxu0 0.0
    %11475 = vmatpush1.xpose.msra.mxu0 0.0
    %11476 = vmatprep.subr.mxu0 0.0
    %11477 = vmatpush1.xpose.msra.mxu0 0.0
    %11478 = vmatprep.subr.mxu0 0.0
    %11479 = vmatpush1.xpose.msra.mxu0 0.0
    %11480 = vmatprep.subr.mxu0 0.0
    %11481 = vmatpush1.xpose.msra.mxu0 0.0
    %11482 = vmatprep.subr.mxu0 0.0
    %11483 = vmatpush1.xpose.msra.mxu0 0.0
    %11484 = vmatprep.subr.mxu0 0.0
    %11485 = vmatpush1.xpose.msra.mxu0 0.0
    %11486 = vmatprep.subr.mxu0 0.0
    %11487 = vmatpush1.xpose.msra.mxu0 0.0
    %11488 = vmatprep.subr.mxu0 0.0
    %11489 = vmatpush1.xpose.msra.mxu0 0.0
    %11490 = vmatprep.subr.mxu0 0.0
    %11491 = vmatpush1.xpose.msra.mxu0 0.0
    %11492 = vmatprep.subr.mxu0 0.0
    %11493 = vmatpush1.xpose.msra.mxu0 0.0
    %11494 = vmatprep.subr.mxu0 0.0
    %11495 = vmatpush1.xpose.msra.mxu0 0.0
    %11496 = vmatprep.subr.mxu0 0.0
    %11497 = vmatpush1.xpose.msra.mxu0 0.0
    %11498 = vmatprep.subr.mxu0 0.0
    %11499 = vmatpush1.xpose.msra.mxu0 0.0
    %11500 = vmatprep.subr.mxu0 0.0
    %11501 = vmatpush1.xpose.msra.mxu0 0.0
    %11502 = vmatprep.subr.mxu0 0.0
    %11503 = vmatpush1.xpose.msra.mxu0 0.0
    %11504 = vmatprep.subr.mxu0 0.0
    %11505 = vmatpush1.xpose.msra.mxu0 0.0
    %11506 = vmatprep.subr.mxu0 0.0
    %11507 = vmatpush1.xpose.msra.mxu0 0.0
    %11508 = vmatprep.subr.mxu0 0.0
    %11509 = vmatpush1.xpose.msra.mxu0 0.0
    %11510 = vmatprep.subr.mxu0 0.0
    %11511 = vmatpush1.xpose.msra.mxu0 0.0
    %11512 = vmatprep.subr.mxu0 0.0
    %11513 = vmatpush1.xpose.msra.mxu0 0.0
    %11514 = vmatprep.subr.mxu0 0.0
    %11515 = vmatpush1.xpose.msra.mxu0 0.0
    %11516 = vmatprep.subr.mxu0 0.0
    %11517 = vmatpush1.xpose.msra.mxu0 0.0
    %11518 = vmatprep.mubr.f32.mxu0 0.0
    %v11519 = vand.u32 %v11018, 4294901760
    %11520 = vmatmul.mubr.f32.gmra.mrb[0].mxu0 %v11519
    %v11521 = vpop.f32.mrb[0].mxu0
    %v11522 = vadd.f32 %v11443, %v11521
    %v11523 = vpop.f32.mrb[0].mxu0
    %11524 = vmatprep.mubr.f32.mxu0 0.0
    %v11525 = vand.u32 %v11021, 4294901760
    %11526 = vmatmul.mubr.f32.gmra.mrb[0].mxu0 %v11525
    %v11527 = vpop.f32.mrb[0].mxu0
    %v11528 = vadd.f32 %v11449, %v11527
    %v11529 = vpop.f32.mrb[0].mxu0
    %11530 = vdwg.mxu0
    %v11531 = vmul.f32 %v11522, %v49
    %v11532 = vmul.f32 %v11528, %v50
    %v11534 = vsel %vm60, %v11531, 0
    %v11537 = vsel %vm60, %v11532, 0
    %11539 = vmatprep.subr.mxu0 0.0
    %v11540 = vand.u32 %v11008, 4294901760
    %11541 = vmatpush1.msra.mxu0 %v11540
    %11542 = vmatprep.subr.mxu0 0.0
    %v11543 = vand.u32 %v11014, 4294901760
    %11544 = vmatpush1.msra.mxu0 %v11543
    %11545 = vmatprep.subr.mxu0 0.0
    %11546 = vmatpush1.msra.mxu0 0.0
    %11547 = vmatprep.subr.mxu0 0.0
    %11548 = vmatpush1.msra.mxu0 0.0
    %11549 = vmatprep.subr.mxu0 0.0
    %11550 = vmatpush1.msra.mxu0 0.0
    %11551 = vmatprep.subr.mxu0 0.0
    %11552 = vmatpush1.msra.mxu0 0.0
    %11553 = vmatprep.subr.mxu0 0.0
    %11554 = vmatpush1.msra.mxu0 0.0
    %11555 = vmatprep.subr.mxu0 0.0
    %11556 = vmatpush1.msra.mxu0 0.0
    %11557 = vmatprep.subr.mxu0 0.0
    %11558 = vmatpush1.msra.mxu0 0.0
    %11559 = vmatprep.subr.mxu0 0.0
    %11560 = vmatpush1.msra.mxu0 0.0
    %11561 = vmatprep.subr.mxu0 0.0
    %11562 = vmatpush1.msra.mxu0 0.0
    %11563 = vmatprep.subr.mxu0 0.0
    %11564 = vmatpush1.msra.mxu0 0.0
    %11565 = vmatprep.subr.mxu0 0.0
    %11566 = vmatpush1.msra.mxu0 0.0
    %11567 = vmatprep.subr.mxu0 0.0
    %11568 = vmatpush1.msra.mxu0 0.0
    %11569 = vmatprep.subr.mxu0 0.0
    %11570 = vmatpush1.msra.mxu0 0.0
    %11571 = vmatprep.subr.mxu0 0.0
    %11572 = vmatpush1.msra.mxu0 0.0
    %11573 = vmatprep.subr.mxu0 0.0
    %11574 = vmatpush1.msra.mxu0 0.0
    %11575 = vmatprep.subr.mxu0 0.0
    %11576 = vmatpush1.msra.mxu0 0.0
    %11577 = vmatprep.subr.mxu0 0.0
    %11578 = vmatpush1.msra.mxu0 0.0
    %11579 = vmatprep.subr.mxu0 0.0
    %11580 = vmatpush1.msra.mxu0 0.0
    %11581 = vmatprep.subr.mxu0 0.0
    %11582 = vmatpush1.msra.mxu0 0.0
    %11583 = vmatprep.subr.mxu0 0.0
    %11584 = vmatpush1.msra.mxu0 0.0
    %11585 = vmatprep.subr.mxu0 0.0
    %11586 = vmatpush1.msra.mxu0 0.0
    %11587 = vmatprep.subr.mxu0 0.0
    %11588 = vmatpush1.msra.mxu0 0.0
    %11589 = vmatprep.subr.mxu0 0.0
    %11590 = vmatpush1.msra.mxu0 0.0
    %11591 = vmatprep.subr.mxu0 0.0
    %11592 = vmatpush1.msra.mxu0 0.0
    %11593 = vmatprep.subr.mxu0 0.0
    %11594 = vmatpush1.msra.mxu0 0.0
    %11595 = vmatprep.subr.mxu0 0.0
    %11596 = vmatpush1.msra.mxu0 0.0
    %11597 = vmatprep.subr.mxu0 0.0
    %11598 = vmatpush1.msra.mxu0 0.0
    %11599 = vmatprep.subr.mxu0 0.0
    %11600 = vmatpush1.msra.mxu0 0.0
    %11601 = vmatprep.subr.mxu0 0.0
    %11602 = vmatpush1.msra.mxu0 0.0
    %11603 = vmatprep.subr.mxu0 0.0
    %11604 = vmatpush1.msra.mxu0 0.0
    %11605 = vmatprep.mubr.f32.mxu0 0.0
    %v11606 = vand.u32 %v11534, 4294901760
    %v11607 = vsub.f32 %v11534, %v11606
    %v11608 = vand.u32 %v11607, 4294901760
    %v11609 = vsub.f32 %v11607, %v11608
    %v11610 = vand.u32 %v11609, 4294901760
    %11611 = vmatmul.mubr.f32.gmra.mrb[0].mxu0 %v11610
    %v11612 = vpop.f32.mrb[0].mxu0
    %v11613 = vadd.f32 0.0, %v11612
    %v11614 = vpop.f32.mrb[0].mxu0
    %11615 = vmatprep.mubr.f32.mxu0 0.0
    %v11616 = vand.u32 %v11537, 4294901760
    %v11617 = vsub.f32 %v11537, %v11616
    %v11618 = vand.u32 %v11617, 4294901760
    %v11619 = vsub.f32 %v11617, %v11618
    %v11620 = vand.u32 %v11619, 4294901760
    %11621 = vmatmul.mubr.f32.gmra.mrb[0].mxu0 %v11620
    %v11622 = vpop.f32.mrb[0].mxu0
    %v11623 = vadd.f32 0.0, %v11622
    %v11624 = vpop.f32.mrb[0].mxu0
    %11625 = vdwg.mxu0
    %11626 = vmatprep.subr.mxu0 0.0
    %v11627 = vand.u32 %v11008, 4294901760
    %v11628 = vsub.f32 %v11008, %v11627
    %v11629 = vand.u32 %v11628, 4294901760
    %v11630 = vsub.f32 %v11628, %v11629
    %v11631 = vand.u32 %v11630, 4294901760
    %11632 = vmatpush1.msra.mxu0 %v11631
    %11633 = vmatprep.subr.mxu0 0.0
    %v11634 = vand.u32 %v11014, 4294901760
    %v11635 = vsub.f32 %v11014, %v11634
    %v11636 = vand.u32 %v11635, 4294901760
    %v11637 = vsub.f32 %v11635, %v11636
    %v11638 = vand.u32 %v11637, 4294901760
    %11639 = vmatpush1.msra.mxu0 %v11638
    %11640 = vmatprep.subr.mxu0 0.0
    %11641 = vmatpush1.msra.mxu0 0.0
    %11642 = vmatprep.subr.mxu0 0.0
    %11643 = vmatpush1.msra.mxu0 0.0
    %11644 = vmatprep.subr.mxu0 0.0
    %11645 = vmatpush1.msra.mxu0 0.0
    %11646 = vmatprep.subr.mxu0 0.0
    %11647 = vmatpush1.msra.mxu0 0.0
    %11648 = vmatprep.subr.mxu0 0.0
    %11649 = vmatpush1.msra.mxu0 0.0
    %11650 = vmatprep.subr.mxu0 0.0
    %11651 = vmatpush1.msra.mxu0 0.0
    %11652 = vmatprep.subr.mxu0 0.0
    %11653 = vmatpush1.msra.mxu0 0.0
    %11654 = vmatprep.subr.mxu0 0.0
    %11655 = vmatpush1.msra.mxu0 0.0
    %11656 = vmatprep.subr.mxu0 0.0
    %11657 = vmatpush1.msra.mxu0 0.0
    %11658 = vmatprep.subr.mxu0 0.0
    %11659 = vmatpush1.msra.mxu0 0.0
    %11660 = vmatprep.subr.mxu0 0.0
    %11661 = vmatpush1.msra.mxu0 0.0
    %11662 = vmatprep.subr.mxu0 0.0
    %11663 = vmatpush1.msra.mxu0 0.0
    %11664 = vmatprep.subr.mxu0 0.0
    %11665 = vmatpush1.msra.mxu0 0.0
    %11666 = vmatprep.subr.mxu0 0.0
    %11667 = vmatpush1.msra.mxu0 0.0
    %11668 = vmatprep.subr.mxu0 0.0
    %11669 = vmatpush1.msra.mxu0 0.0
    %11670 = vmatprep.subr.mxu0 0.0
    %11671 = vmatpush1.msra.mxu0 0.0
    %11672 = vmatprep.subr.mxu0 0.0
    %11673 = vmatpush1.msra.mxu0 0.0
    %11674 = vmatprep.subr.mxu0 0.0
    %11675 = vmatpush1.msra.mxu0 0.0
    %11676 = vmatprep.subr.mxu0 0.0
    %11677 = vmatpush1.msra.mxu0 0.0
    %11678 = vmatprep.subr.mxu0 0.0
    %11679 = vmatpush1.msra.mxu0 0.0
    %11680 = vmatprep.subr.mxu0 0.0
    %11681 = vmatpush1.msra.mxu0 0.0
    %11682 = vmatprep.subr.mxu0 0.0
    %11683 = vmatpush1.msra.mxu0 0.0
    %11684 = vmatprep.subr.mxu0 0.0
    %11685 = vmatpush1.msra.mxu0 0.0
    %11686 = vmatprep.subr.mxu0 0.0
    %11687 = vmatpush1.msra.mxu0 0.0
    %11688 = vmatprep.subr.mxu0 0.0
    %11689 = vmatpush1.msra.mxu0 0.0
    %11690 = vmatprep.subr.mxu0 0.0
    %11691 = vmatpush1.msra.mxu0 0.0
    %11692 = vmatprep.subr.mxu0 0.0
    %11693 = vmatpush1.msra.mxu0 0.0
    %11694 = vmatprep.subr.mxu0 0.0
    %11695 = vmatpush1.msra.mxu0 0.0
    %11696 = vmatprep.subr.mxu0 0.0
    %11697 = vmatpush1.msra.mxu0 0.0
    %11698 = vmatprep.subr.mxu0 0.0
    %11699 = vmatpush1.msra.mxu0 0.0
    %11700 = vmatprep.mubr.f32.mxu0 0.0
    %v11701 = vand.u32 %v11534, 4294901760
    %11702 = vmatmul.mubr.f32.gmra.mrb[0].mxu0 %v11701
    %v11703 = vpop.f32.mrb[0].mxu0
    %v11704 = vadd.f32 %v11613, %v11703
    %v11705 = vpop.f32.mrb[0].mxu0
    %11706 = vmatprep.mubr.f32.mxu0 0.0
    %v11707 = vand.u32 %v11537, 4294901760
    %11708 = vmatmul.mubr.f32.gmra.mrb[0].mxu0 %v11707
    %v11709 = vpop.f32.mrb[0].mxu0
    %v11710 = vadd.f32 %v11623, %v11709
    %v11711 = vpop.f32.mrb[0].mxu0
    %11712 = vdwg.mxu0
    %11713 = vmatprep.subr.mxu0 0.0
    %v11714 = vand.u32 %v11008, 4294901760
    %v11715 = vsub.f32 %v11008, %v11714
    %11716 = vmatpush1.msra.mxu0 %v11715
    %11717 = vmatprep.subr.mxu0 0.0
    %v11718 = vand.u32 %v11014, 4294901760
    %v11719 = vsub.f32 %v11014, %v11718
    %11720 = vmatpush1.msra.mxu0 %v11719
    %11721 = vmatprep.subr.mxu0 0.0
    %11722 = vmatpush1.msra.mxu0 0.0
    %11723 = vmatprep.subr.mxu0 0.0
    %11724 = vmatpush1.msra.mxu0 0.0
    %11725 = vmatprep.subr.mxu0 0.0
    %11726 = vmatpush1.msra.mxu0 0.0
    %11727 = vmatprep.subr.mxu0 0.0
    %11728 = vmatpush1.msra.mxu0 0.0
    %11729 = vmatprep.subr.mxu0 0.0
    %11730 = vmatpush1.msra.mxu0 0.0
    %11731 = vmatprep.subr.mxu0 0.0
    %11732 = vmatpush1.msra.mxu0 0.0
    %11733 = vmatprep.subr.mxu0 0.0
    %11734 = vmatpush1.msra.mxu0 0.0
    %11735 = vmatprep.subr.mxu0 0.0
    %11736 = vmatpush1.msra.mxu0 0.0
    %11737 = vmatprep.subr.mxu0 0.0
    %11738 = vmatpush1.msra.mxu0 0.0
    %11739 = vmatprep.subr.mxu0 0.0
    %11740 = vmatpush1.msra.mxu0 0.0
    %11741 = vmatprep.subr.mxu0 0.0
    %11742 = vmatpush1.msra.mxu0 0.0
    %11743 = vmatprep.subr.mxu0 0.0
    %11744 = vmatpush1.msra.mxu0 0.0
    %11745 = vmatprep.subr.mxu0 0.0
    %11746 = vmatpush1.msra.mxu0 0.0
    %11747 = vmatprep.subr.mxu0 0.0
    %11748 = vmatpush1.msra.mxu0 0.0
    %11749 = vmatprep.subr.mxu0 0.0
    %11750 = vmatpush1.msra.mxu0 0.0
    %11751 = vmatprep.subr.mxu0 0.0
    %11752 = vmatpush1.msra.mxu0 0.0
    %11753 = vmatprep.subr.mxu0 0.0
    %11754 = vmatpush1.msra.mxu0 0.0
    %11755 = vmatprep.subr.mxu0 0.0
    %11756 = vmatpush1.msra.mxu0 0.0
    %11757 = vmatprep.subr.mxu0 0.0
    %11758 = vmatpush1.msra.mxu0 0.0
    %11759 = vmatprep.subr.mxu0 0.0
    %11760 = vmatpush1.msra.mxu0 0.0
    %11761 = vmatprep.subr.mxu0 0.0
    %11762 = vmatpush1.msra.mxu0 0.0
    %11763 = vmatprep.subr.mxu0 0.0
    %11764 = vmatpush1.msra.mxu0 0.0
    %11765 = vmatprep.subr.mxu0 0.0
    %11766 = vmatpush1.msra.mxu0 0.0
    %11767 = vmatprep.subr.mxu0 0.0
    %11768 = vmatpush1.msra.mxu0 0.0
    %11769 = vmatprep.subr.mxu0 0.0
    %11770 = vmatpush1.msra.mxu0 0.0
    %11771 = vmatprep.subr.mxu0 0.0
    %11772 = vmatpush1.msra.mxu0 0.0
    %11773 = vmatprep.subr.mxu0 0.0
    %11774 = vmatpush1.msra.mxu0 0.0
    %11775 = vmatprep.subr.mxu0 0.0
    %11776 = vmatpush1.msra.mxu0 0.0
    %11777 = vmatprep.subr.mxu0 0.0
    %11778 = vmatpush1.msra.mxu0 0.0
    %11779 = vmatprep.subr.mxu0 0.0
    %11780 = vmatpush1.msra.mxu0 0.0
    %11781 = vmatprep.mubr.f32.mxu0 0.0
    %v11782 = vand.u32 %v11534, 4294901760
    %v11783 = vsub.f32 %v11534, %v11782
    %11784 = vmatmul.mubr.f32.gmra.mrb[0].mxu0 %v11783
    %v11785 = vpop.f32.mrb[0].mxu0
    %v11786 = vadd.f32 %v11704, %v11785
    %v11787 = vpop.f32.mrb[0].mxu0
    %11788 = vmatprep.mubr.f32.mxu0 0.0
    %v11789 = vand.u32 %v11537, 4294901760
    %v11790 = vsub.f32 %v11537, %v11789
    %11791 = vmatmul.mubr.f32.gmra.mrb[0].mxu0 %v11790
    %v11792 = vpop.f32.mrb[0].mxu0
    %v11793 = vadd.f32 %v11710, %v11792
    %v11794 = vpop.f32.mrb[0].mxu0
    %11795 = vdwg.mxu0
    %11796 = vmatprep.subr.mxu0 0.0
    %v11797 = vand.u32 %v11008, 4294901760
    %11798 = vmatpush1.msra.mxu0 %v11797
    %11799 = vmatprep.subr.mxu0 0.0
    %v11800 = vand.u32 %v11014, 4294901760
    %11801 = vmatpush1.msra.mxu0 %v11800
    %11802 = vmatprep.subr.mxu0 0.0
    %11803 = vmatpush1.msra.mxu0 0.0
    %11804 = vmatprep.subr.mxu0 0.0
    %11805 = vmatpush1.msra.mxu0 0.0
    %11806 = vmatprep.subr.mxu0 0.0
    %11807 = vmatpush1.msra.mxu0 0.0
    %11808 = vmatprep.subr.mxu0 0.0
    %11809 = vmatpush1.msra.mxu0 0.0
    %11810 = vmatprep.subr.mxu0 0.0
    %11811 = vmatpush1.msra.mxu0 0.0
    %11812 = vmatprep.subr.mxu0 0.0
    %11813 = vmatpush1.msra.mxu0 0.0
    %11814 = vmatprep.subr.mxu0 0.0
    %11815 = vmatpush1.msra.mxu0 0.0
    %11816 = vmatprep.subr.mxu0 0.0
    %11817 = vmatpush1.msra.mxu0 0.0
    %11818 = vmatprep.subr.mxu0 0.0
    %11819 = vmatpush1.msra.mxu0 0.0
    %11820 = vmatprep.subr.mxu0 0.0
    %11821 = vmatpush1.msra.mxu0 0.0
    %11822 = vmatprep.subr.mxu0 0.0
    %11823 = vmatpush1.msra.mxu0 0.0
    %11824 = vmatprep.subr.mxu0 0.0
    %11825 = vmatpush1.msra.mxu0 0.0
    %11826 = vmatprep.subr.mxu0 0.0
    %11827 = vmatpush1.msra.mxu0 0.0
    %11828 = vmatprep.subr.mxu0 0.0
    %11829 = vmatpush1.msra.mxu0 0.0
    %11830 = vmatprep.subr.mxu0 0.0
    %11831 = vmatpush1.msra.mxu0 0.0
    %11832 = vmatprep.subr.mxu0 0.0
    %11833 = vmatpush1.msra.mxu0 0.0
    %11834 = vmatprep.subr.mxu0 0.0
    %11835 = vmatpush1.msra.mxu0 0.0
    %11836 = vmatprep.subr.mxu0 0.0
    %11837 = vmatpush1.msra.mxu0 0.0
    %11838 = vmatprep.subr.mxu0 0.0
    %11839 = vmatpush1.msra.mxu0 0.0
    %11840 = vmatprep.subr.mxu0 0.0
    %11841 = vmatpush1.msra.mxu0 0.0
    %11842 = vmatprep.subr.mxu0 0.0
    %11843 = vmatpush1.msra.mxu0 0.0
    %11844 = vmatprep.subr.mxu0 0.0
    %11845 = vmatpush1.msra.mxu0 0.0
    %11846 = vmatprep.subr.mxu0 0.0
    %11847 = vmatpush1.msra.mxu0 0.0
    %11848 = vmatprep.subr.mxu0 0.0
    %11849 = vmatpush1.msra.mxu0 0.0
    %11850 = vmatprep.subr.mxu0 0.0
    %11851 = vmatpush1.msra.mxu0 0.0
    %11852 = vmatprep.subr.mxu0 0.0
    %11853 = vmatpush1.msra.mxu0 0.0
    %11854 = vmatprep.subr.mxu0 0.0
    %11855 = vmatpush1.msra.mxu0 0.0
    %11856 = vmatprep.subr.mxu0 0.0
    %11857 = vmatpush1.msra.mxu0 0.0
    %11858 = vmatprep.subr.mxu0 0.0
    %11859 = vmatpush1.msra.mxu0 0.0
    %11860 = vmatprep.subr.mxu0 0.0
    %11861 = vmatpush1.msra.mxu0 0.0
    %11862 = vmatprep.mubr.f32.mxu0 0.0
    %v11863 = vand.u32 %v11534, 4294901760
    %v11864 = vsub.f32 %v11534, %v11863
    %v11865 = vand.u32 %v11864, 4294901760
    %11866 = vmatmul.mubr.f32.gmra.mrb[0].mxu0 %v11865
    %v11867 = vpop.f32.mrb[0].mxu0
    %v11868 = vadd.f32 %v11786, %v11867
    %v11869 = vpop.f32.mrb[0].mxu0
    %11870 = vmatprep.mubr.f32.mxu0 0.0
    %v11871 = vand.u32 %v11537, 4294901760
    %v11872 = vsub.f32 %v11537, %v11871
    %v11873 = vand.u32 %v11872, 4294901760
    %11874 = vmatmul.mubr.f32.gmra.mrb[0].mxu0 %v11873
    %v11875 = vpop.f32.mrb[0].mxu0
    %v11876 = vadd.f32 %v11793, %v11875
    %v11877 = vpop.f32.mrb[0].mxu0
    %11878 = vdwg.mxu0
    %11879 = vmatprep.subr.mxu0 0.0
    %v11880 = vand.u32 %v11008, 4294901760
    %v11881 = vsub.f32 %v11008, %v11880
    %v11882 = vand.u32 %v11881, 4294901760
    %11883 = vmatpush1.msra.mxu0 %v11882
    %11884 = vmatprep.subr.mxu0 0.0
    %v11885 = vand.u32 %v11014, 4294901760
    %v11886 = vsub.f32 %v11014, %v11885
    %v11887 = vand.u32 %v11886, 4294901760
    %11888 = vmatpush1.msra.mxu0 %v11887
    %11889 = vmatprep.subr.mxu0 0.0
    %11890 = vmatpush1.msra.mxu0 0.0
    %11891 = vmatprep.subr.mxu0 0.0
    %11892 = vmatpush1.msra.mxu0 0.0
    %11893 = vmatprep.subr.mxu0 0.0
    %11894 = vmatpush1.msra.mxu0 0.0
    %11895 = vmatprep.subr.mxu0 0.0
    %11896 = vmatpush1.msra.mxu0 0.0
    %11897 = vmatprep.subr.mxu0 0.0
    %11898 = vmatpush1.msra.mxu0 0.0
    %11899 = vmatprep.subr.mxu0 0.0
    %11900 = vmatpush1.msra.mxu0 0.0
    %11901 = vmatprep.subr.mxu0 0.0
    %11902 = vmatpush1.msra.mxu0 0.0
    %11903 = vmatprep.subr.mxu0 0.0
    %11904 = vmatpush1.msra.mxu0 0.0
    %11905 = vmatprep.subr.mxu0 0.0
    %11906 = vmatpush1.msra.mxu0 0.0
    %11907 = vmatprep.subr.mxu0 0.0
    %11908 = vmatpush1.msra.mxu0 0.0
    %11909 = vmatprep.subr.mxu0 0.0
    %11910 = vmatpush1.msra.mxu0 0.0
    %11911 = vmatprep.subr.mxu0 0.0
    %11912 = vmatpush1.msra.mxu0 0.0
    %11913 = vmatprep.subr.mxu0 0.0
    %11914 = vmatpush1.msra.mxu0 0.0
    %11915 = vmatprep.subr.mxu0 0.0
    %11916 = vmatpush1.msra.mxu0 0.0
    %11917 = vmatprep.subr.mxu0 0.0
    %11918 = vmatpush1.msra.mxu0 0.0
    %11919 = vmatprep.subr.mxu0 0.0
    %11920 = vmatpush1.msra.mxu0 0.0
    %11921 = vmatprep.subr.mxu0 0.0
    %11922 = vmatpush1.msra.mxu0 0.0
    %11923 = vmatprep.subr.mxu0 0.0
    %11924 = vmatpush1.msra.mxu0 0.0
    %11925 = vmatprep.subr.mxu0 0.0
    %11926 = vmatpush1.msra.mxu0 0.0
    %11927 = vmatprep.subr.mxu0 0.0
    %11928 = vmatpush1.msra.mxu0 0.0
    %11929 = vmatprep.subr.mxu0 0.0
    %11930 = vmatpush1.msra.mxu0 0.0
    %11931 = vmatprep.subr.mxu0 0.0
    %11932 = vmatpush1.msra.mxu0 0.0
    %11933 = vmatprep.subr.mxu0 0.0
    %11934 = vmatpush1.msra.mxu0 0.0
    %11935 = vmatprep.subr.mxu0 0.0
    %11936 = vmatpush1.msra.mxu0 0.0
    %11937 = vmatprep.subr.mxu0 0.0
    %11938 = vmatpush1.msra.mxu0 0.0
    %11939 = vmatprep.subr.mxu0 0.0
    %11940 = vmatpush1.msra.mxu0 0.0
    %11941 = vmatprep.subr.mxu0 0.0
    %11942 = vmatpush1.msra.mxu0 0.0
    %11943 = vmatprep.subr.mxu0 0.0
    %11944 = vmatpush1.msra.mxu0 0.0
    %11945 = vmatprep.subr.mxu0 0.0
    %11946 = vmatpush1.msra.mxu0 0.0
    %11947 = vmatprep.subr.mxu0 0.0
    %11948 = vmatpush1.msra.mxu0 0.0
    %11949 = vmatprep.mubr.f32.mxu0 0.0
    %v11950 = vand.u32 %v11534, 4294901760
    %11951 = vmatmul.mubr.f32.gmra.mrb[0].mxu0 %v11950
    %v11952 = vpop.f32.mrb[0].mxu0
    %v11953 = vadd.f32 %v11868, %v11952
    %v11954 = vpop.f32.mrb[0].mxu0
    %11955 = vmatprep.mubr.f32.mxu0 0.0
    %v11956 = vand.u32 %v11537, 4294901760
    %11957 = vmatmul.mubr.f32.gmra.mrb[0].mxu0 %v11956
    %v11958 = vpop.f32.mrb[0].mxu0
    %v11959 = vadd.f32 %v11876, %v11958
    %v11960 = vpop.f32.mrb[0].mxu0
    %11961 = vdwg.mxu0
    %11962 = vmatprep.subr.mxu0 0.0
    %v11963 = vand.u32 %v11008, 4294901760
    %11964 = vmatpush1.msra.mxu0 %v11963
    %11965 = vmatprep.subr.mxu0 0.0
    %v11966 = vand.u32 %v11014, 4294901760
    %11967 = vmatpush1.msra.mxu0 %v11966
    %11968 = vmatprep.subr.mxu0 0.0
    %11969 = vmatpush1.msra.mxu0 0.0
    %11970 = vmatprep.subr.mxu0 0.0
    %11971 = vmatpush1.msra.mxu0 0.0
    %11972 = vmatprep.subr.mxu0 0.0
    %11973 = vmatpush1.msra.mxu0 0.0
    %11974 = vmatprep.subr.mxu0 0.0
    %11975 = vmatpush1.msra.mxu0 0.0
    %11976 = vmatprep.subr.mxu0 0.0
    %11977 = vmatpush1.msra.mxu0 0.0
    %11978 = vmatprep.subr.mxu0 0.0
    %11979 = vmatpush1.msra.mxu0 0.0
    %11980 = vmatprep.subr.mxu0 0.0
    %11981 = vmatpush1.msra.mxu0 0.0
    %11982 = vmatprep.subr.mxu0 0.0
    %11983 = vmatpush1.msra.mxu0 0.0
    %11984 = vmatprep.subr.mxu0 0.0
    %11985 = vmatpush1.msra.mxu0 0.0
    %11986 = vmatprep.subr.mxu0 0.0
    %11987 = vmatpush1.msra.mxu0 0.0
    %11988 = vmatprep.subr.mxu0 0.0
    %11989 = vmatpush1.msra.mxu0 0.0
    %11990 = vmatprep.subr.mxu0 0.0
    %11991 = vmatpush1.msra.mxu0 0.0
    %11992 = vmatprep.subr.mxu0 0.0
    %11993 = vmatpush1.msra.mxu0 0.0
    %11994 = vmatprep.subr.mxu0 0.0
    %11995 = vmatpush1.msra.mxu0 0.0
    %11996 = vmatprep.subr.mxu0 0.0
    %11997 = vmatpush1.msra.mxu0 0.0
    %11998 = vmatprep.subr.mxu0 0.0
    %11999 = vmatpush1.msra.mxu0 0.0
    %12000 = vmatprep.subr.mxu0 0.0
    %12001 = vmatpush1.msra.mxu0 0.0
    %12002 = vmatprep.subr.mxu0 0.0
    %12003 = vmatpush1.msra.mxu0 0.0
    %12004 = vmatprep.subr.mxu0 0.0
    %12005 = vmatpush1.msra.mxu0 0.0
    %12006 = vmatprep.subr.mxu0 0.0
    %12007 = vmatpush1.msra.mxu0 0.0
    %12008 = vmatprep.subr.mxu0 0.0
    %12009 = vmatpush1.msra.mxu0 0.0
    %12010 = vmatprep.subr.mxu0 0.0
    %12011 = vmatpush1.msra.mxu0 0.0
    %12012 = vmatprep.subr.mxu0 0.0
    %12013 = vmatpush1.msra.mxu0 0.0
    %12014 = vmatprep.subr.mxu0 0.0
    %12015 = vmatpush1.msra.mxu0 0.0
    %12016 = vmatprep.subr.mxu0 0.0
    %12017 = vmatpush1.msra.mxu0 0.0
    %12018 = vmatprep.subr.mxu0 0.0
    %12019 = vmatpush1.msra.mxu0 0.0
    %12020 = vmatprep.subr.mxu0 0.0
    %12021 = vmatpush1.msra.mxu0 0.0
    %12022 = vmatprep.subr.mxu0 0.0
    %12023 = vmatpush1.msra.mxu0 0.0
    %12024 = vmatprep.subr.mxu0 0.0
    %12025 = vmatpush1.msra.mxu0 0.0
    %12026 = vmatprep.subr.mxu0 0.0
    %12027 = vmatpush1.msra.mxu0 0.0
    %12028 = vmatprep.mubr.f32.mxu0 0.0
    %v12029 = vand.u32 %v11534, 4294901760
    %12030 = vmatmul.mubr.f32.gmra.mrb[0].mxu0 %v12029
    %v12031 = vpop.f32.mrb[0].mxu0
    %v12032 = vadd.f32 %v11953, %v12031
    %v12033 = vpop.f32.mrb[0].mxu0
    %12034 = vmatprep.mubr.f32.mxu0 0.0
    %v12035 = vand.u32 %v11537, 4294901760
    %12036 = vmatmul.mubr.f32.gmra.mrb[0].mxu0 %v12035
    %v12037 = vpop.f32.mrb[0].mxu0
    %v12038 = vadd.f32 %v11959, %v12037
    %v12039 = vpop.f32.mrb[0].mxu0
    %12040 = vdwg.mxu0
    %v12041 = vsub.f32 %v9541, %v12032
    %v12042 = vsub.f32 %v9547, %v12038
    %12043 = vst.msk [vmem:[%s4] sm:$0xff] %vm569, %v12041
    %12044 = vst.msk [vmem:[%s4 + $0x8] sm:$0xff] %vm569, %v12042
    // Predicated region
    $region26: #{tpu_custom_call.1} parent=1 // pred_check
      _
    $region27: #{tpu_custom_call.1} parent=1 // pred_check_branch
      %12046 = sbr.rel (0) target = $region29
    $region28: #{tpu_custom_call.1} parent=1 // pred_region
      _
    $region29: #{tpu_custom_call.1} parent=1 // pred_fallthru
      _
    // Predicated region
    $region30: #{tpu_custom_call.1} parent=1 // pred_check
      _
    $region31: #{tpu_custom_call.1} parent=1 // pred_check_branch
      %12048 = sbr.rel (0) target = $region33
    $region32: #{tpu_custom_call.1} parent=1 // pred_region
      _
    $region33: #{tpu_custom_call.1} parent=1 // pred_fallthru
      _
    %12049 = vsyncpa [#allocation3], 1
    %12050 = vsyncpa [#allocation5], 1

</llo_original>
